<compile_context>
chip_gen: v5e
topology: v5e:2x2
jax: 0.10.0
libtpu: 0.0.40
codegen_flags: <defaults>
</compile_context>

<pallas_src>
import functools

import jax
import jax.numpy as jnp
from jax.experimental import pallas as pl
from jax.experimental.pallas import tpu as pltpu

HIDDEN = 128          # stands in for hidden_dim = 5120
VOCAB = 1000          # stands in for voc_size = 32000 (not a tile multiple -> exercises padding)
IGNORE_INDEX = -100   # PyTorch CrossEntropyLoss default ignore_index
VOCAB_TILE = 512      # multiple of 256 (v6e/v7x MXU) and 128 (v5e); fixed across generations
NEG_BIG = -1e30       # finite "-inf" used for padded vocab columns (avoids NaN from inf-inf)


def _round_up(x, m):
    return ((x + m - 1) // m) * m


def _select_tiles(n_tokens):
    """Pick (token tile tm, vmem_limit_bytes) per TPU generation (roofline-driven)."""
    kind = ""
    try:
        kind = jax.devices()[0].device_kind.lower()
    except Exception:
        pass
    if ("v5 lite" in kind) or ("v5e" in kind) or ("v5lite" in kind):
        tm_max, vmem = 512, 64 << 20      # v5e: ~240 FLOP/B crossover, weak VPU
    elif "v6" in kind:
        tm_max, vmem = 1024, 96 << 20     # v6e: needs ~680 FLOP/B -> tm ~ 768-1024
    elif "v7" in kind:
        tm_max, vmem = 768, 48 << 20      # v7x: ~620 FLOP/B but only 64 MiB VMEM/TC
    else:
        tm_max, vmem = 512, 48 << 20      # conservative default (v4/v5p/unknown)
    # Never use a token tile larger than the rounded-up token count: a single
    # token tile already streams the lm-head weight exactly once (small-T case).
    tm = max(256, min(tm_max, _round_up(max(n_tokens, 1), 256)))
    return tm, vmem


# ---------------------------------------------------------------------------
# Fused lm_head matmul + shifted cross-entropy + argmax kernel
# ---------------------------------------------------------------------------
def _fused_ce_kernel(emb_ref, w_ref, bias_ref, lbl_ref, ce_ref, pred_ref,
                     m_sc, l_sc, ll_sc, amax_sc):
    vi = pl.program_id(1)                 # vocab tile index (reduction axis)
    tm = emb_ref.shape[0]
    tv = w_ref.shape[1]

    @pl.when(vi == 0)
    def _():
        m_sc[...] = jnp.full_like(m_sc, NEG_BIG)
        l_sc[...] = jnp.zeros_like(l_sc)
        ll_sc[...] = jnp.zeros_like(ll_sc)
        amax_sc[...] = jnp.zeros_like(amax_sc)

    # (tm, tv) logits tile on the MXU: bf16 x bf16 -> f32 accumulation,
    # canonical (M,K)@(K,N) form (weight pre-transposed & cached in the wrapper).
    logits = jnp.dot(emb_ref[...], w_ref[...],
                     preferred_element_type=jnp.float32)
    # Vocab-padding columns carry a -1e30 bias (0 elsewhere): single VPU add
    # per step instead of a compare+select; LSE / CE / argmax match unpadded.
    logits = logits + bias_ref[...]

    col = jax.lax.broadcasted_iota(jnp.int32, (tm, tv), 1) + vi * tv
    lbl = lbl_ref[...]                                           # (tm, 1) int32

    # logit at the label position (0 contribution if the label is not in this tile)
    ll_sc[...] += jnp.sum(jnp.where(col == lbl, logits, 0.0),
                          axis=-1, keepdims=True)

    tile_max = jnp.max(logits, axis=-1, keepdims=True)           # (tm, 1)

    # running argmax with torch-style first-occurrence tie breaking
    # (compare against the running max BEFORE it is updated; aval_sc removed).
    tile_arg = jnp.min(jnp.where(logits == tile_max, col, jnp.int32(2 ** 30)),
                       axis=-1, keepdims=True)
    better = tile_max > m_sc[...]
    amax_sc[...] = jnp.where(better, tile_arg, amax_sc[...])

    # online log-sum-exp across vocab tiles
    m_new = jnp.maximum(m_sc[...], tile_max)
    alpha = jnp.exp(m_sc[...] - m_new)
    l_sc[...] = alpha * l_sc[...] + jnp.sum(jnp.exp(logits - m_new),
                                            axis=-1, keepdims=True)
    m_sc[...] = m_new

    @pl.when(vi == pl.num_programs(1) - 1)
    def _():
        lse = m_sc[...] + jnp.log(l_sc[...])
        ce = lse - ll_sc[...]
        # CrossEntropyLoss(reduction='none') yields 0 at ignore_index positions
        ce_ref[...] = jnp.where(lbl == IGNORE_INDEX, 0.0, ce)
        pred_ref[...] = amax_sc[...]


def prepare_lm_head(w_lm, tv=VOCAB_TILE):
    """One-time prep of the tied lm-head: (H, Vpad) bf16 transpose + padding bias.

    Done once at model construction (NOT per forward call) so the full-weight
    HBM transpose/cast is never repeated.
    """
    v, h = w_lm.shape
    vpad = _round_up(v, tv)
    w_t = jnp.pad(w_lm.astype(jnp.bfloat16), ((0, vpad - v), (0, 0))).T   # (H, Vpad)
    pad_bias = jnp.where(jnp.arange(vpad) < v, 0.0, NEG_BIG
                         ).astype(jnp.float32)[None, :]                   # (1, Vpad)
    return w_t, pad_bias


def fused_shift_ce_argmax(hidden, w_t, pad_bias, labels, *, tm=None, tv=VOCAB_TILE,
                          vmem_limit_bytes=None):
    """hidden: (T, H) float; w_t: (H, Vpad) bf16 cached pre-transposed lm-head;
    pad_bias: (1, Vpad) f32; labels: (T,) int.

    Returns (per-token CE (T,) f32 with 0 at ignore_index, argmax preds (T,) i32).
    """
    t, h = hidden.shape
    vpad = pad_bias.shape[1]
    assert w_t.shape == (h, vpad) and vpad % tv == 0

    if tm is None or vmem_limit_bytes is None:
        tm_auto, vmem_auto = _select_tiles(t)
        tm = tm_auto if tm is None else tm
        vmem_limit_bytes = vmem_auto if vmem_limit_bytes is None else vmem_limit_bytes

    tpad = _round_up(t, tm)
    n_tok = tpad // tm
    n_voc = vpad // tv

    # bf16 activation stream (f32 accumulation in-kernel) halves the HBM traffic.
    hid = jnp.pad(hidden, ((0, tpad - t), (0, 0))).astype(jnp.bfloat16)
    lbl = jnp.pad(labels.astype(jnp.int32), (0, tpad - t),
                  constant_values=IGNORE_INDEX)[:, None]

    cost = pl.CostEstimate(
        flops=2 * tpad * vpad * h,
        transcendentals=tpad * vpad,
        bytes_accessed=n_tok * h * vpad * 2 + tpad * h * 2 + vpad * 4 + tpad * 12)

    ce, pred = pl.pallas_call(
        _fused_ce_kernel,
        out_shape=(jax.ShapeDtypeStruct((tpad, 1), jnp.float32),
                   jax.ShapeDtypeStruct((tpad, 1), jnp.int32)),
        grid_spec=pltpu.PrefetchScalarGridSpec(
            num_scalar_prefetch=0,
            grid=(n_tok, n_voc),
            in_specs=[pl.BlockSpec((tm, h), lambda i, j: (i, 0)),   # activations
                      pl.BlockSpec((h, tv), lambda i, j: (0, j)),   # cached weight^T
                      pl.BlockSpec((1, tv), lambda i, j: (0, j)),   # padding bias
                      pl.BlockSpec((tm, 1), lambda i, j: (i, 0))],  # labels
            out_specs=[pl.BlockSpec((tm, 1), lambda i, j: (i, 0)),
                       pl.BlockSpec((tm, 1), lambda i, j: (i, 0))],
            scratch_shapes=[pltpu.VMEM((tm, 1), jnp.float32),   # running max
                            pltpu.VMEM((tm, 1), jnp.float32),   # running sum exp
                            pltpu.VMEM((tm, 1), jnp.float32),   # label logit
                            pltpu.VMEM((tm, 1), jnp.int32)]),   # argmax index
        compiler_params=pltpu.CompilerParams(
            dimension_semantics=("parallel", "arbitrary"),
            vmem_limit_bytes=vmem_limit_bytes),
        cost_estimate=cost,
    )(hid, w_t, pad_bias, lbl)
    return ce[:t, 0], pred[:t, 0]


# ---------------------------------------------------------------------------
# Module
# ---------------------------------------------------------------------------
class MultiLLaMAForCausalLM:
    def __init__(self, key, hidden_dim=HIDDEN, voc_size=VOCAB):
        self.hidden_dim = hidden_dim
        self.voc_size = voc_size
        # Tied input-embedding / lm-head weight (voc, hidden) — deterministic init.
        self.embed_weight = (jax.random.normal(key, (voc_size, hidden_dim),
                                               jnp.float32)
                             / jnp.sqrt(jnp.float32(hidden_dim)))
        # Cache the pre-transposed/padded bf16 lm-head ONCE (perf-review item):
        # avoids a full (H, Vpad) HBM cast+transpose on every forward call.
        self._w_lm_t, self._pad_bias = prepare_lm_head(self.embed_weight)

    def forward(self, lang_x, vision_x, attention_mask, labels, loss_reweight,
                key_words_query=None):
        assert labels.shape == lang_x.shape   # 'Text' branch of the reference

        # MyEmbedding (flag='Text'): plain token-embedding lookup; loss_match=None.
        # TODO(synk): MyEmbedding vision branch (3D ViT + perceiver over vision_x /
        # key_words_query) is not reproduced — the Text path ignores them.
        input_embedding = self.embed_weight[lang_x]            # (B, S, H) f32
        loss_match = None

        # TODO(synk): LLaMA decoder stack (RoPE attention / MLP, LoRA adapters,
        # 4-bit NF4 quant, attention_mask) not reproduced; hidden states == input
        # embeddings and logits come from the tied lm_head inside the kernel.
        B, S, H = input_embedding.shape
        shift_hidden = input_embedding[:, :-1, :].reshape(-1, H)   # (B*(S-1), H)
        shift_labels = labels[:, 1:].reshape(-1)
        shift_reweight = loss_reweight[:, 1:].reshape(-1).astype(jnp.float32)

        ce, pred = fused_shift_ce_argmax(shift_hidden, self._w_lm_t,
                                         self._pad_bias, shift_labels)

        # Re-weighted CE (the reference computes this but ultimately returns the
        # LM's own loss; we mirror both).
        loss_reg = jnp.sum(shift_reweight * ce) / jnp.sum(shift_reweight)
        loss = loss_reg
        if loss_match is not None:
            loss = 0.8 * loss + 0.2 * loss_match
        del loss  # kept for parity with the reference (it is not returned)

        # output['loss']: HF Llama loss = mean shifted CE over non-ignored labels.
        valid = (shift_labels != IGNORE_INDEX).astype(jnp.float32)
        lm_loss = jnp.sum(ce) / jnp.maximum(jnp.sum(valid), 1.0)

        # Accuracy metric (returned under the 'logits' key, as in the reference).
        predictions = pred.reshape(B, S - 1)
        lbl_shift = labels[:, 1:]
        acc = jnp.sum(jnp.all(jnp.logical_or(predictions == lbl_shift,
                                             lbl_shift == IGNORE_INDEX), axis=-1))
        accuracy = acc / labels.shape[0]

        return dict(logits=accuracy, loss=lm_loss)


if __name__ == "__main__":
    key = jax.random.PRNGKey(0)
    kw, kx, kv = jax.random.split(key, 3)

    # Small but tile-exercising shapes: B*(S-1)=318 tokens (one token tile after
    # clamping), V=1000 -> Vpad=1024 -> 2 vocab tiles of 512 with padding masked.
    B, S = 2, 160
    model = MultiLLaMAForCausalLM(kw)

    lang_x = jax.random.randint(kx, (B, S), 0, VOCAB, dtype=jnp.int32)
    # (B, n_images, C, D, H, W) — present for API parity, unused in 'Text' mode.
    vision_x = jax.random.normal(kv, (B, 1, 3, 4, 16, 16), jnp.float32)
    attention_mask = jnp.ones((B, S), jnp.int32)
    labels = lang_x.at[:, :2].set(IGNORE_INDEX)   # mask prompt positions
    loss_reweight = jnp.ones((B, S), jnp.float32)

    out = model.forward(lang_x, vision_x, attention_mask, labels, loss_reweight)
    jax.block_until_ready(out["loss"])
    jax.block_until_ready(out["logits"])

    # ---- lightweight numerical check against a plain-JAX reference (same bf16
    # ---- inputs, f32 accumulation) -----------------------------------------
    hid = model.embed_weight[lang_x][:, :-1, :].reshape(-1, HIDDEN)
    lbl = labels[:, 1:].reshape(-1)
    ce, pred = fused_shift_ce_argmax(hid, model._w_lm_t, model._pad_bias, lbl)

    logits_ref = jnp.dot(hid.astype(jnp.bfloat16),
                         model.embed_weight.astype(jnp.bfloat16).T,
                         preferred_element_type=jnp.float32)
    lse_ref = jax.scipy.special.logsumexp(logits_ref, axis=-1)
    safe_lbl = jnp.where(lbl == IGNORE_INDEX, 0, lbl)
    ll_ref = jnp.take_along_axis(logits_ref, safe_lbl[:, None], axis=-1)[:, 0]
    ce_ref = jnp.where(lbl == IGNORE_INDEX, 0.0, lse_ref - ll_ref)
    pred_ref = jnp.argmax(logits_ref, axis=-1).astype(jnp.int32)

    assert bool(jnp.allclose(ce, ce_ref, atol=2e-2, rtol=2e-2)), "CE mismatch"
    assert float(jnp.mean((pred == pred_ref).astype(jnp.float32))) > 0.98, \
        "argmax mismatch"

    print("KERNEL_OK")
</pallas_src>

<mosaic_0001>
module attributes {stable_mosaic.version = 11 : i64} {
  func.func @_fused_ce_kernel(%arg0: i32, %arg1: i32, %arg2: memref<512x128xbf16, #tpu.memory_space<vmem>>, %arg3: memref<128x512xbf16, #tpu.memory_space<vmem>>, %arg4: memref<1x512xf32, #tpu.memory_space<vmem>>, %arg5: memref<512x1xi32, #tpu.memory_space<vmem>>, %arg6: memref<512x1xf32, #tpu.memory_space<vmem>>, %arg7: memref<512x1xi32, #tpu.memory_space<vmem>>, %arg8: memref<512x1xf32, #tpu.memory_space<vmem>>, %arg9: memref<512x1xf32, #tpu.memory_space<vmem>>, %arg10: memref<512x1xf32, #tpu.memory_space<vmem>>, %arg11: memref<512x1xi32, #tpu.memory_space<vmem>>) attributes {dimension_semantics = [#tpu.dimension_semantics<parallel>, #tpu.dimension_semantics<arbitrary>], iteration_bounds = array<i64: 1, 2>, scalar_prefetch = 0 : i64, scratch_operands = 4 : i64, tpu.core_type = #tpu.core_type<tc>, window_params = [{transform_indices = @transform_0, window_bounds = array<i64: 512, 128>}, {transform_indices = @transform_1, window_bounds = array<i64: 128, 512>}, {transform_indices = @transform_2, window_bounds = array<i64: 1, 512>}, {transform_indices = @transform_3, window_bounds = array<i64: 512, 1>}, {transform_indices = @transform_4, window_bounds = array<i64: 512, 1>}, {transform_indices = @transform_5, window_bounds = array<i64: 512, 1>}]} {
    %c0_i32 = arith.constant 0 : i32
    %0 = arith.cmpi eq, %arg1, %c0_i32 : i32
    %1 = arith.extui %0 : i1 to i32
    %c0_i32_0 = arith.constant 0 : i32
    %2 = arith.cmpi ne, %1, %c0_i32_0 : i32
    scf.if %2 {
      %cst_34 = arith.constant -1.000000e+30 : f32
      %54 = vector.broadcast %cst_34 : f32 to vector<512x1xf32>
      %c0_35 = arith.constant 0 : index
      %c0_36 = arith.constant 0 : index
      %55 = vector.load %arg8[%c0_35, %c0_36] : memref<512x1xf32, #tpu.memory_space<vmem>>, vector<512x1xf32>
      tpu.vector_store %arg8[%c0_35, %c0_36], %54 {strides = array<i32>} : memref<512x1xf32, #tpu.memory_space<vmem>>, vector<512x1xf32>,
      %cst_37 = arith.constant 0.000000e+00 : f32
      %56 = vector.broadcast %cst_37 : f32 to vector<512x1xf32>
      %c0_38 = arith.constant 0 : index
      %c0_39 = arith.constant 0 : index
      %57 = vector.load %arg9[%c0_38, %c0_39] : memref<512x1xf32, #tpu.memory_space<vmem>>, vector<512x1xf32>
      tpu.vector_store %arg9[%c0_38, %c0_39], %56 {strides = array<i32>} : memref<512x1xf32, #tpu.memory_space<vmem>>, vector<512x1xf32>,
      %cst_40 = arith.constant 0.000000e+00 : f32
      %58 = vector.broadcast %cst_40 : f32 to vector<512x1xf32>
      %c0_41 = arith.constant 0 : index
      %c0_42 = arith.constant 0 : index
      %59 = vector.load %arg10[%c0_41, %c0_42] : memref<512x1xf32, #tpu.memory_space<vmem>>, vector<512x1xf32>
      tpu.vector_store %arg10[%c0_41, %c0_42], %58 {strides = array<i32>} : memref<512x1xf32, #tpu.memory_space<vmem>>, vector<512x1xf32>,
      %c0_i32_43 = arith.constant 0 : i32
      %60 = vector.broadcast %c0_i32_43 : i32 to vector<512x1xi32>
      %c0_44 = arith.constant 0 : index
      %c0_45 = arith.constant 0 : index
      %61 = vector.load %arg11[%c0_44, %c0_45] : memref<512x1xi32, #tpu.memory_space<vmem>>, vector<512x1xi32>
      tpu.vector_store %arg11[%c0_44, %c0_45], %60 {strides = array<i32>} : memref<512x1xi32, #tpu.memory_space<vmem>>, vector<512x1xi32>,
    } else {
    }
    %c0 = arith.constant 0 : index
    %c0_1 = arith.constant 0 : index
    %3 = vector.load %arg2[%c0, %c0_1] : memref<512x128xbf16, #tpu.memory_space<vmem>>, vector<512x128xbf16>
    %c0_2 = arith.constant 0 : index
    %c0_3 = arith.constant 0 : index
    %4 = vector.load %arg3[%c0_2, %c0_3] : memref<128x512xbf16, #tpu.memory_space<vmem>>, vector<128x512xbf16>
    %cst = arith.constant dense<0.000000e+00> : vector<512x512xf32>
    %5 = tpu.matmul %3, %4, %cst {dimension_numbers = #tpu.dot_dimension_numbers<[1], [0], [0], [1], [0, 0, 1, 1], [], []>} : vector<512x128xbf16>, vector<128x512xbf16>, vector<512x512xf32> -> vector<512x512xf32>
    %c0_4 = arith.constant 0 : index
    %c0_5 = arith.constant 0 : index
    %6 = vector.load %arg4[%c0_4, %c0_5] : memref<1x512xf32, #tpu.memory_space<vmem>>, vector<1x512xf32>
    %7 = vector.broadcast %6 : vector<1x512xf32> to vector<512x512xf32>
    %8 = arith.addf %5, %7 : vector<512x512xf32>
    %9 = tpu.iota {dimensions = array<i32: 1>} : vector<512x512xi32>
    %c512_i32 = arith.constant 512 : i32
    %10 = arith.muli %arg1, %c512_i32 : i32
    %11 = vector.broadcast %10 : i32 to vector<512x512xi32>
    %12 = arith.addi %9, %11 : vector<512x512xi32>
    %c0_6 = arith.constant 0 : index
    %c0_7 = arith.constant 0 : index
    %13 = vector.load %arg5[%c0_6, %c0_7] : memref<512x1xi32, #tpu.memory_space<vmem>>, vector<512x1xi32>
    %c0_8 = arith.constant 0 : index
    %c0_9 = arith.constant 0 : index
    %14 = vector.load %arg10[%c0_8, %c0_9] : memref<512x1xf32, #tpu.memory_space<vmem>>, vector<512x1xf32>
    %15 = vector.broadcast %13 : vector<512x1xi32> to vector<512x512xi32>
    %16 = arith.cmpi eq, %12, %15 : vector<512x512xi32>
    %cst_10 = arith.constant 0.000000e+00 : f32
    %17 = vector.broadcast %cst_10 : f32 to vector<512x512xf32>
    %18 = arith.select %16, %8, %17 : vector<512x512xi1>, vector<512x512xf32>
    %cst_11 = arith.constant dense<0.000000e+00> : vector<512xf32>
    %19 = vector.multi_reduction <add>, %18, %cst_11 [1] : vector<512x512xf32> to vector<512xf32>
    %20 = vector.shape_cast %19 : vector<512xf32> to vector<512x1xf32>
    %21 = arith.addf %14, %20 : vector<512x1xf32>
    %c0_12 = arith.constant 0 : index
    %c0_13 = arith.constant 0 : index
    %22 = vector.load %arg10[%c0_12, %c0_13] : memref<512x1xf32, #tpu.memory_space<vmem>>, vector<512x1xf32>
    tpu.vector_store %arg10[%c0_12, %c0_13], %21 {strides = array<i32>} : memref<512x1xf32, #tpu.memory_space<vmem>>, vector<512x1xf32>,
    %cst_14 = arith.constant dense<0xFF800000> : vector<512xf32>
    %23 = vector.multi_reduction <maximumf>, %8, %cst_14 [1] : vector<512x512xf32> to vector<512xf32>
    %24 = vector.shape_cast %23 : vector<512xf32> to vector<512x1xf32>
    %25 = vector.broadcast %24 : vector<512x1xf32> to vector<512x512xf32>
    %26 = arith.cmpf oeq, %8, %25 : vector<512x512xf32>
    %c1073741824_i32 = arith.constant 1073741824 : i32
    %27 = vector.broadcast %c1073741824_i32 : i32 to vector<512x512xi32>
    %28 = arith.select %26, %12, %27 : vector<512x512xi1>, vector<512x512xi32>
    %cst_15 = arith.constant dense<2147483647> : vector<512xi32>
    %29 = vector.multi_reduction <minsi>, %28, %cst_15 [1] : vector<512x512xi32> to vector<512xi32>
    %30 = vector.shape_cast %29 : vector<512xi32> to vector<512x1xi32>
    %c0_16 = arith.constant 0 : index
    %c0_17 = arith.constant 0 : index
    %31 = vector.load %arg8[%c0_16, %c0_17] : memref<512x1xf32, #tpu.memory_space<vmem>>, vector<512x1xf32>
    %32 = arith.cmpf ogt, %24, %31 : vector<512x1xf32>
    %c0_18 = arith.constant 0 : index
    %c0_19 = arith.constant 0 : index
    %33 = vector.load %arg11[%c0_18, %c0_19] : memref<512x1xi32, #tpu.memory_space<vmem>>, vector<512x1xi32>
    %34 = arith.select %32, %30, %33 : vector<512x1xi1>, vector<512x1xi32>
    %c0_20 = arith.constant 0 : index
    %c0_21 = arith.constant 0 : index
    %35 = vector.load %arg11[%c0_20, %c0_21] : memref<512x1xi32, #tpu.memory_space<vmem>>, vector<512x1xi32>
    tpu.vector_store %arg11[%c0_20, %c0_21], %34 {strides = array<i32>} : memref<512x1xi32, #tpu.memory_space<vmem>>, vector<512x1xi32>,
    %c0_22 = arith.constant 0 : index
    %c0_23 = arith.constant 0 : index
    %36 = vector.load %arg8[%c0_22, %c0_23] : memref<512x1xf32, #tpu.memory_space<vmem>>, vector<512x1xf32>
    %37 = arith.maximumf %36, %24 : vector<512x1xf32>
    %c0_24 = arith.constant 0 : index
    %c0_25 = arith.constant 0 : index
    %38 = vector.load %arg8[%c0_24, %c0_25] : memref<512x1xf32, #tpu.memory_space<vmem>>, vector<512x1xf32>
    %39 = arith.subf %38, %37 : vector<512x1xf32>
    %40 = math.exp %39 : vector<512x1xf32>
    %c0_26 = arith.constant 0 : index
    %c0_27 = arith.constant 0 : index
    %41 = vector.load %arg9[%c0_26, %c0_27] : memref<512x1xf32, #tpu.memory_space<vmem>>, vector<512x1xf32>
    %42 = arith.mulf %40, %41 : vector<512x1xf32>
    %43 = vector.broadcast %37 : vector<512x1xf32> to vector<512x512xf32>
    %44 = arith.subf %8, %43 : vector<512x512xf32>
    %45 = math.exp %44 : vector<512x512xf32>
    %cst_28 = arith.constant dense<0.000000e+00> : vector<512xf32>
    %46 = vector.multi_reduction <add>, %45, %cst_28 [1] : vector<512x512xf32> to vector<512xf32>
    %47 = vector.shape_cast %46 : vector<512xf32> to vector<512x1xf32>
    %48 = arith.addf %42, %47 : vector<512x1xf32>
    %c0_29 = arith.constant 0 : index
    %c0_30 = arith.constant 0 : index
    %49 = vector.load %arg9[%c0_29, %c0_30] : memref<512x1xf32, #tpu.memory_space<vmem>>, vector<512x1xf32>
    tpu.vector_store %arg9[%c0_29, %c0_30], %48 {strides = array<i32>} : memref<512x1xf32, #tpu.memory_space<vmem>>, vector<512x1xf32>,
    %c0_31 = arith.constant 0 : index
    %c0_32 = arith.constant 0 : index
    %50 = vector.load %arg8[%c0_31, %c0_32] : memref<512x1xf32, #tpu.memory_space<vmem>>, vector<512x1xf32>
    tpu.vector_store %arg8[%c0_31, %c0_32], %37 {strides = array<i32>} : memref<512x1xf32, #tpu.memory_space<vmem>>, vector<512x1xf32>,
    %c1_i32 = arith.constant 1 : i32
    %51 = arith.cmpi eq, %arg1, %c1_i32 : i32
    %52 = arith.extui %51 : i1 to i32
    %c0_i32_33 = arith.constant 0 : i32
    %53 = arith.cmpi ne, %52, %c0_i32_33 : i32
    scf.if %53 {
      %c0_34 = arith.constant 0 : index
      %c0_35 = arith.constant 0 : index
      %54 = vector.load %arg8[%c0_34, %c0_35] : memref<512x1xf32, #tpu.memory_space<vmem>>, vector<512x1xf32>
      %c0_36 = arith.constant 0 : index
      %c0_37 = arith.constant 0 : index
      %55 = vector.load %arg9[%c0_36, %c0_37] : memref<512x1xf32, #tpu.memory_space<vmem>>, vector<512x1xf32>
      %56 = math.log %55 : vector<512x1xf32>
      %57 = arith.addf %54, %56 : vector<512x1xf32>
      %c0_38 = arith.constant 0 : index
      %c0_39 = arith.constant 0 : index
      %58 = vector.load %arg10[%c0_38, %c0_39] : memref<512x1xf32, #tpu.memory_space<vmem>>, vector<512x1xf32>
      %59 = arith.subf %57, %58 : vector<512x1xf32>
      %c-100_i32 = arith.constant -100 : i32
      %60 = vector.broadcast %c-100_i32 : i32 to vector<512x1xi32>
      %61 = arith.cmpi eq, %13, %60 : vector<512x1xi32>
      %cst_40 = arith.constant 0.000000e+00 : f32
      %62 = vector.broadcast %cst_40 : f32 to vector<512x1xf32>
      %63 = arith.select %61, %62, %59 : vector<512x1xi1>, vector<512x1xf32>
      %c0_41 = arith.constant 0 : index
      %c0_42 = arith.constant 0 : index
      %64 = vector.load %arg6[%c0_41, %c0_42] : memref<512x1xf32, #tpu.memory_space<vmem>>, vector<512x1xf32>
      tpu.vector_store %arg6[%c0_41, %c0_42], %63 {strides = array<i32>} : memref<512x1xf32, #tpu.memory_space<vmem>>, vector<512x1xf32>,
      %c0_43 = arith.constant 0 : index
      %c0_44 = arith.constant 0 : index
      %65 = vector.load %arg11[%c0_43, %c0_44] : memref<512x1xi32, #tpu.memory_space<vmem>>, vector<512x1xi32>
      %c0_45 = arith.constant 0 : index
      %c0_46 = arith.constant 0 : index
      %66 = vector.load %arg7[%c0_45, %c0_46] : memref<512x1xi32, #tpu.memory_space<vmem>>, vector<512x1xi32>
      tpu.vector_store %arg7[%c0_45, %c0_46], %65 {strides = array<i32>} : memref<512x1xi32, #tpu.memory_space<vmem>>, vector<512x1xi32>,
    } else {
    }
    return
  }
  func.func @transform_0(%arg0: i32, %arg1: i32) -> (i32, i32) {
    %c0_i32 = arith.constant 0 : i32
    %c0_i32_0 = arith.constant 0 : i32
    return %arg0, %c0_i32 : i32, i32
  }
  func.func @transform_1(%arg0: i32, %arg1: i32) -> (i32, i32) {
    %c0_i32 = arith.constant 0 : i32
    %c0_i32_0 = arith.constant 0 : i32
    return %c0_i32, %arg1 : i32, i32
  }
  func.func @transform_2(%arg0: i32, %arg1: i32) -> (i32, i32) {
    %c0_i32 = arith.constant 0 : i32
    %c0_i32_0 = arith.constant 0 : i32
    return %c0_i32, %arg1 : i32, i32
  }
  func.func @transform_3(%arg0: i32, %arg1: i32) -> (i32, i32) {
    %c0_i32 = arith.constant 0 : i32
    %c0_i32_0 = arith.constant 0 : i32
    return %arg0, %c0_i32 : i32, i32
  }
  func.func @transform_4(%arg0: i32, %arg1: i32) -> (i32, i32) {
    %c0_i32 = arith.constant 0 : i32
    %c0_i32_0 = arith.constant 0 : i32
    return %arg0, %c0_i32 : i32, i32
  }
  func.func @transform_5(%arg0: i32, %arg1: i32) -> (i32, i32) {
    %c0_i32 = arith.constant 0 : i32
    %c0_i32_0 = arith.constant 0 : i32
    return %arg0, %c0_i32 : i32, i32
  }
}

</mosaic_0001>

<llo_original>
// kernel: tpu_custom_call.1
$region0: #{tpu_custom_call.1}
  #allocation0 [shape = 'u32[]', space=smem, size = 0x4, offset = 0x4, fixed_abs, tag = 'smem constant byte address 0x4 - core index']
  #allocation1 [shape = 'u32[72,128]{1,0:T(1,128)}', space=vmem, size = 0x9000, scoped, tag = 'internal scratch']
  #allocation2 [shape = 'f32[512,1]{1,0:T(8,128)}', space=vmem, size = 0x40000, scoped, tag = 'scratch operand']
  #allocation3 [shape = 'f32[512,1]{1,0:T(8,128)}', space=vmem, size = 0x40000, scoped, tag = 'scratch operand']
  #allocation4 [shape = 'f32[512,1]{1,0:T(8,128)}', space=vmem, size = 0x40000, scoped, tag = 'scratch operand']
  #allocation5 [shape = 's32[512,1]{1,0:T(8,128)}', space=vmem, size = 0x40000, scoped, tag = 'scratch operand']
  %s0 = inlined_call_operand.hbm [shape: bf16[512,128], index: 0, kind: input, shape index: {}]
  %s1 = inlined_call_operand.vmem [shape: bf16[128,1024], index: 1, kind: input, shape index: {}]
  %s2 = inlined_call_operand.hbm [shape: f32[1,1024], index: 2, kind: input, shape index: {}]
  %s3 = inlined_call_operand.vmem [shape: s32[512,1], index: 3, kind: input, shape index: {}]
  %s4 = inlined_call_operand.vmem [shape: f32[512,1], index: 4, kind: output, shape index: {0}]
  %s5 = inlined_call_operand.vmem [shape: s32[512,1], index: 5, kind: output, shape index: {1}]
  %6 = xla_tuple %s4, %s5
  %s7 = sld [smem:[#allocation0]]
  $region96: #{tpu_custom_call.1} parent=0
    _
  %s9 = ssub.s32 1, %s7
  %s10 = scalar_select 0, %s9, %s7
  $region1: #{tpu_custom_call.1} parent=0
    #allocation6 [shape = 'u8[131072]{0}', space=vmem, size = 0x20000, scoped, tag = 'input window, operand 0, single buffered']
    #allocation7 [shape = 's32[2]{0}', space=sflag, size = 0x8, scoped, tag = 'scoped memory for tpu_custom_call.1']
    #allocation8 [shape = 'u8[262144]{0}', space=vmem, size = 0x40000, scoped, tag = 'input window, operand 1']
    #allocation9 [shape = 'u8[4096]{0}', space=vmem, size = 0x1000, scoped, tag = 'input window, operand 2']
    #allocation10 [shape = 's32[2]{0}', space=sflag, size = 0x8, scoped, tag = 'scoped memory for tpu_custom_call.1']
    %11 = vsyncpa [#allocation7], 0
    %12 = vsyncpa [#allocation10], 0
    %s13 = scalar_lea.sflag [#allocation10], 1
    %14 = vsyncpa %s13, 0
    loop: start=0, step=1, limit=4
    $region2: #{tpu_custom_call.1} parent=1 // loop_pre_header
      _
    $region3: #{tpu_custom_call.1} parent=1 // loop_header
      %s16 = sphi 0, %s20
      %p17 = scmp.ge.s32.totalorder %s16, 4
      %s23 = sphi 0, %s35
      %s24 = sphi 0, %s31
      %s25 = sphi 0, %s23
      %s26 = sphi 0, %s24
      %s27 = sphi 0, %s25
      %s28 = sphi 0, %s26
      %s38 = sphi 0, %s40
      %s41 = sphi 0, %s38
      %s42 = sphi 0, %s41
      %s58 = sphi 0, %s42
      %s64 = sphi 0, %s66
      %s67 = sphi 0, %s64
      %s68 = sphi 0, %s67
      %s84 = sphi 0, %s68
      %s90 = sphi 0, %s92
      %s93 = sphi 0, %s90
      %s94 = sphi 0, %s93
      %s110 = sphi 0, %s94
      %s116 = sphi 0, %s118
      %s119 = sphi 0, %s116
      %s120 = sphi 0, %s119
      %s136 = sphi 0, %s120
      %s142 = sphi 0, %s144
      %s145 = sphi 0, %s142
      %s146 = sphi 0, %s145
      %s162 = sphi 0, %s146
      %s168 = sphi 0, %s170
      %s171 = sphi 0, %s168
      %s172 = sphi 0, %s171
      %s188 = sphi 0, %s172
    $region4: #{tpu_custom_call.1} parent=1 // loop_header_branch
      %19 = sbr.rel (%p17) target = $region8
    $region5: #{tpu_custom_call.1} parent=1 // loop_body
      %s21 = ssub.s32 %s16, 1
      %s22 = ssub.s32 %s16, 2
      %s29 = sadd.s32 1, %s24
      %p30 = scmp.ge.s32.totalorder %s29, 2
      %s31 = scalar_select %p30, 0, %s29
      %s32 = sadd.s32 1, %s23
      %s33 = scalar_select %p30, %s32, %s23
      %p34 = scmp.ge.s32.totalorder %s33, 1
      %s35 = scalar_select %p34, 0, %s33
      %s36 = ssub.s32 %s23, %s35
      %p37 = scmp.eq.s32.totalorder %s36, 0
      %s39 = sadd.s32 %s38, 1
      %s40 = scalar_select %p37, %s38, %s39
      %p43 = pneg %p37
      %p44 = scmp.eq.s32.totalorder %s16, 1
      %p45 = por %p43, %p44
      %p46 = scmp.ne.s32.totalorder %s38, %s41
      %p47 = scmp.eq.s32.totalorder %s16, 0
      %p48 = por %p46, %p47
      %p49 = scmp.ne.s32.totalorder %s38, %s41
      %p50 = scmp.eq.s32.totalorder %s21, 1
      %p51 = por %p49, %p50
      %p52 = scmp.ne.s32.totalorder %s41, %s42
      %p53 = scmp.eq.s32.totalorder %s21, 0
      %p54 = por %p52, %p53
      %p55 = scmp.ne.s32.totalorder %s41, %s42
      %p56 = scmp.eq.s32.totalorder %s22, 1
      %p57 = por %p55, %p56
      %p59 = scmp.ne.s32.totalorder %s42, %s58
      %p60 = scmp.eq.s32.totalorder %s22, 0
      %p61 = por %p59, %p60
      %s62 = ssub.s32 %s24, %s31
      %p63 = scmp.eq.s32.totalorder %s62, 0
      %s65 = sadd.s32 %s64, 1
      %s66 = scalar_select %p63, %s64, %s65
      %p69 = pneg %p63
      %p70 = scmp.eq.s32.totalorder %s16, 1
      %p71 = por %p69, %p70
      %p72 = scmp.ne.s32.totalorder %s64, %s67
      %p73 = scmp.eq.s32.totalorder %s16, 0
      %p74 = por %p72, %p73
      %p75 = scmp.ne.s32.totalorder %s64, %s67
      %p76 = scmp.eq.s32.totalorder %s21, 1
      %p77 = por %p75, %p76
      %p78 = scmp.ne.s32.totalorder %s67, %s68
      %p79 = scmp.eq.s32.totalorder %s21, 0
      %p80 = por %p78, %p79
      %p81 = scmp.ne.s32.totalorder %s67, %s68
      %p82 = scmp.eq.s32.totalorder %s22, 1
      %p83 = por %p81, %p82
      %p85 = scmp.ne.s32.totalorder %s68, %s84
      %p86 = scmp.eq.s32.totalorder %s22, 0
      %p87 = por %p85, %p86
      %s88 = ssub.s32 %s24, %s31
      %p89 = scmp.eq.s32.totalorder %s88, 0
      %s91 = sadd.s32 %s90, 1
      %s92 = scalar_select %p89, %s90, %s91
      %p95 = pneg %p89
      %p96 = scmp.eq.s32.totalorder %s16, 1
      %p97 = por %p95, %p96
      %p98 = scmp.ne.s32.totalorder %s90, %s93
      %p99 = scmp.eq.s32.totalorder %s16, 0
      %p100 = por %p98, %p99
      %p101 = scmp.ne.s32.totalorder %s90, %s93
      %p102 = scmp.eq.s32.totalorder %s21, 1
      %p103 = por %p101, %p102
      %p104 = scmp.ne.s32.totalorder %s93, %s94
      %p105 = scmp.eq.s32.totalorder %s21, 0
      %p106 = por %p104, %p105
      %p107 = scmp.ne.s32.totalorder %s93, %s94
      %p108 = scmp.eq.s32.totalorder %s22, 1
      %p109 = por %p107, %p108
      %p111 = scmp.ne.s32.totalorder %s94, %s110
      %p112 = scmp.eq.s32.totalorder %s22, 0
      %p113 = por %p111, %p112
      %s114 = ssub.s32 %s23, %s35
      %p115 = scmp.eq.s32.totalorder %s114, 0
      %s117 = sadd.s32 %s116, 1
      %s118 = scalar_select %p115, %s116, %s117
      %p121 = pneg %p115
      %p122 = scmp.eq.s32.totalorder %s16, 1
      %p123 = por %p121, %p122
      %p124 = scmp.ne.s32.totalorder %s116, %s119
      %p125 = scmp.eq.s32.totalorder %s16, 0
      %p126 = por %p124, %p125
      %p127 = scmp.ne.s32.totalorder %s116, %s119
      %p128 = scmp.eq.s32.totalorder %s21, 1
      %p129 = por %p127, %p128
      %p130 = scmp.ne.s32.totalorder %s119, %s120
      %p131 = scmp.eq.s32.totalorder %s21, 0
      %p132 = por %p130, %p131
      %p133 = scmp.ne.s32.totalorder %s119, %s120
      %p134 = scmp.eq.s32.totalorder %s22, 1
      %p135 = por %p133, %p134
      %p137 = scmp.ne.s32.totalorder %s120, %s136
      %p138 = scmp.eq.s32.totalorder %s22, 0
      %p139 = por %p137, %p138
      %s140 = ssub.s32 %s23, %s35
      %p141 = scmp.eq.s32.totalorder %s140, 0
      %s143 = sadd.s32 %s142, 1
      %s144 = scalar_select %p141, %s142, %s143
      %p147 = pneg %p141
      %p148 = scmp.eq.s32.totalorder %s16, 1
      %p149 = por %p147, %p148
      %p150 = scmp.ne.s32.totalorder %s142, %s145
      %p151 = scmp.eq.s32.totalorder %s16, 0
      %p152 = por %p150, %p151
      %p153 = scmp.ne.s32.totalorder %s142, %s145
      %p154 = scmp.eq.s32.totalorder %s21, 1
      %p155 = por %p153, %p154
      %p156 = scmp.ne.s32.totalorder %s145, %s146
      %p157 = scmp.eq.s32.totalorder %s21, 0
      %p158 = por %p156, %p157
      %p159 = scmp.ne.s32.totalorder %s145, %s146
      %p160 = scmp.eq.s32.totalorder %s22, 1
      %p161 = por %p159, %p160
      %p163 = scmp.ne.s32.totalorder %s146, %s162
      %p164 = scmp.eq.s32.totalorder %s22, 0
      %p165 = por %p163, %p164
      %s166 = ssub.s32 %s23, %s35
      %p167 = scmp.eq.s32.totalorder %s166, 0
      %s169 = sadd.s32 %s168, 1
      %s170 = scalar_select %p167, %s168, %s169
      %p173 = pneg %p167
      %p174 = scmp.eq.s32.totalorder %s16, 1
      %p175 = por %p173, %p174
      %p176 = scmp.ne.s32.totalorder %s168, %s171
      %p177 = scmp.eq.s32.totalorder %s16, 0
      %p178 = por %p176, %p177
      %p179 = scmp.ne.s32.totalorder %s168, %s171
      %p180 = scmp.eq.s32.totalorder %s21, 1
      %p181 = por %p179, %p180
      %p182 = scmp.ne.s32.totalorder %s171, %s172
      %p183 = scmp.eq.s32.totalorder %s21, 0
      %p184 = por %p182, %p183
      %p185 = scmp.ne.s32.totalorder %s171, %s172
      %p186 = scmp.eq.s32.totalorder %s22, 1
      %p187 = por %p185, %p186
      %p189 = scmp.ne.s32.totalorder %s172, %s188
      %p190 = scmp.eq.s32.totalorder %s22, 0
      %p191 = por %p189, %p190
      %p192 = scmp.le.s32.totalorder 1, %s16
      %p193 = scmp.lt.s32.totalorder %s16, 3
      %p194 = pnand %p192, %p193
      %p195 = pneg %p194
      // Predicated region
      $region9: #{tpu_custom_call.1} parent=5 // pred_check
        _
      $region10: #{tpu_custom_call.1} parent=5 // pred_check_branch
        %197 = sbr.rel (%p194) target = $region12
      $region11: #{tpu_custom_call.1} parent=5 // pred_region
        %s198 = ssub.s32 %s16, 1
        // Predicated region
        $region13: #{tpu_custom_call.1} parent=11 // pred_check
          %p199 = pneg %p54
        $region14: #{tpu_custom_call.1} parent=11 // pred_check_branch
          %201 = sbr.rel (%p199) target = $region16
        $region15: #{tpu_custom_call.1} parent=11 // pred_region
          %s202 = smul.u32 64, %s25
          %204 = vsyncadd [#allocation7], 0
          %s205 = smul.addr %s202, 4
          %s206 = scalar_lea.hbm %s0, %s205
          %s207 = sshll.u32 %s206, 4
          %s208 = int_to_ptr.hbm [resolvable:$true] %s207
          %s209 = sshll.u32 [#allocation6], 4
          %s210 = int_to_ptr.vmem [resolvable:$true] %s209
          %215 = dma.hbm_to_vmem [thread:$0]  %s208, 4096, %s210, [#allocation7], 64, 64, 4
        $region16: #{tpu_custom_call.1} parent=11 // pred_fallthru
          _
        // Predicated region
        $region17: #{tpu_custom_call.1} parent=11 // pred_check
          %p216 = pneg %p132
        $region18: #{tpu_custom_call.1} parent=11 // pred_check_branch
          %218 = sbr.rel (%p216) target = $region20
        $region19: #{tpu_custom_call.1} parent=11 // pred_region
          %s219 = smul.u32 64, %s25
          %p220 = scmp.lt.s32.totalorder %s219, 63
          %s221 = scalar_select %p220, %s219, 63
          %s222 = smul.addr %s221, 8
          %s223 = scalar_lea.vmem %s3, %s222
          %s224 = smul.u32 64, %s25
        $region20: #{tpu_custom_call.1} parent=11 // pred_fallthru
          _
      $region12: #{tpu_custom_call.1} parent=5 // pred_fallthru
        _
      %p225 = scmp.lt.s32.totalorder %s16, 2
      // Predicated region
      $region21: #{tpu_custom_call.1} parent=5 // pred_check
        %p226 = pneg %p225
      $region22: #{tpu_custom_call.1} parent=5 // pred_check_branch
        %228 = sbr.rel (%p226) target = $region24
      $region23: #{tpu_custom_call.1} parent=5 // pred_region
        // Predicated region
        $region25: #{tpu_custom_call.1} parent=23 // pred_check
          %p229 = pneg %p74
        $region26: #{tpu_custom_call.1} parent=23 // pred_check_branch
          %231 = sbr.rel (%p229) target = $region28
        $region27: #{tpu_custom_call.1} parent=23 // pred_region
          %s232 = sand.u32 %s64, 1
          %s233 = sand.u32 %s64, 1
          %s234 = smul.addr %s233, 256
          %s235 = scalar_lea.vmem [#allocation8], %s234
          %s236 = smul.u32 4, %s24
          %s237 = smul.addr %s236, 4
          %s238 = scalar_lea.vmem %s1, %s237
          // Predicated region
          $region29: #{tpu_custom_call.1} parent=27 // pred_check
            _
          $region30: #{tpu_custom_call.1} parent=27 // pred_check_branch
            %240 = sbr.rel (0) target = $region32
          $region31: #{tpu_custom_call.1} parent=27 // pred_region
            // Predicated region
            $region33: #{tpu_custom_call.1} parent=31 // pred_check
              _
            $region34: #{tpu_custom_call.1} parent=31 // pred_check_branch
              %242 = sbr.rel (0) target = $region36
            $region35: #{tpu_custom_call.1} parent=31 // pred_region
              loop: start=0, step=1, limit=1
              $region37: #{tpu_custom_call.1} parent=35 // loop_pre_header
                _
              $region38: #{tpu_custom_call.1} parent=35 // loop_header
                %s244 = sphi 0, %s248
                %p245 = scmp.ge.s32.totalorder %s244, 1
                %s249 = sphi %s238, %s238
                %s250 = sphi %s235, %s235
              $region39: #{tpu_custom_call.1} parent=35 // loop_header_branch
                %247 = sbr.rel (%p245) target = $region43
              $region40: #{tpu_custom_call.1} parent=35 // loop_body
                %v251 = vld [vmem:[%s249] sm:$0xff]
                %252 = vst [vmem:[%s250] sm:$0xff] %v251
                %v253 = vld [vmem:[%s249 + $0x8] sm:$0xff]
                %254 = vst [vmem:[%s250 + $0x8] sm:$0xff] %v253
                %v255 = vld [vmem:[%s249 + $0x20] sm:$0xff]
                %256 = vst [vmem:[%s250 + $0x10] sm:$0xff] %v255
                %v257 = vld [vmem:[%s249 + $0x28] sm:$0xff]
                %258 = vst [vmem:[%s250 + $0x18] sm:$0xff] %v257
                %v259 = vld [vmem:[%s249 + $0x40] sm:$0xff]
                %260 = vst [vmem:[%s250 + $0x20] sm:$0xff] %v259
                %v261 = vld [vmem:[%s249 + $0x48] sm:$0xff]
                %262 = vst [vmem:[%s250 + $0x28] sm:$0xff] %v261
                %v263 = vld [vmem:[%s249 + $0x60] sm:$0xff]
                %264 = vst [vmem:[%s250 + $0x30] sm:$0xff] %v263
                %v265 = vld [vmem:[%s249 + $0x68] sm:$0xff]
                %266 = vst [vmem:[%s250 + $0x38] sm:$0xff] %v265
                %v267 = vld [vmem:[%s249 + $0x80] sm:$0xff]
                %268 = vst [vmem:[%s250 + $0x40] sm:$0xff] %v267
                %v269 = vld [vmem:[%s249 + $0x88] sm:$0xff]
                %270 = vst [vmem:[%s250 + $0x48] sm:$0xff] %v269
                %v271 = vld [vmem:[%s249 + $0xa0] sm:$0xff]
                %272 = vst [vmem:[%s250 + $0x50] sm:$0xff] %v271
                %v273 = vld [vmem:[%s249 + $0xa8] sm:$0xff]
                %274 = vst [vmem:[%s250 + $0x58] sm:$0xff] %v273
                %v275 = vld [vmem:[%s249 + $0xc0] sm:$0xff]
                %276 = vst [vmem:[%s250 + $0x60] sm:$0xff] %v275
                %v277 = vld [vmem:[%s249 + $0xc8] sm:$0xff]
                %278 = vst [vmem:[%s250 + $0x68] sm:$0xff] %v277
                %v279 = vld [vmem:[%s249 + $0xe0] sm:$0xff]
                %280 = vst [vmem:[%s250 + $0x70] sm:$0xff] %v279
                %v281 = vld [vmem:[%s249 + $0xe8] sm:$0xff]
                %282 = vst [vmem:[%s250 + $0x78] sm:$0xff] %v281
                %v283 = vld [vmem:[%s249 + $0x100] sm:$0xff]
                %284 = vst [vmem:[%s250 + $0x80] sm:$0xff] %v283
                %v285 = vld [vmem:[%s249 + $0x108] sm:$0xff]
                %286 = vst [vmem:[%s250 + $0x88] sm:$0xff] %v285
                %v287 = vld [vmem:[%s249 + $0x120] sm:$0xff]
                %288 = vst [vmem:[%s250 + $0x90] sm:$0xff] %v287
                %v289 = vld [vmem:[%s249 + $0x128] sm:$0xff]
                %290 = vst [vmem:[%s250 + $0x98] sm:$0xff] %v289
                %v291 = vld [vmem:[%s249 + $0x140] sm:$0xff]
                %292 = vst [vmem:[%s250 + $0xa0] sm:$0xff] %v291
                %v293 = vld [vmem:[%s249 + $0x148] sm:$0xff]
                %294 = vst [vmem:[%s250 + $0xa8] sm:$0xff] %v293
                %v295 = vld [vmem:[%s249 + $0x160] sm:$0xff]
                %296 = vst [vmem:[%s250 + $0xb0] sm:$0xff] %v295
                %v297 = vld [vmem:[%s249 + $0x168] sm:$0xff]
                %298 = vst [vmem:[%s250 + $0xb8] sm:$0xff] %v297
                %v299 = vld [vmem:[%s249 + $0x180] sm:$0xff]
                %300 = vst [vmem:[%s250 + $0xc0] sm:$0xff] %v299
                %v301 = vld [vmem:[%s249 + $0x188] sm:$0xff]
                %302 = vst [vmem:[%s250 + $0xc8] sm:$0xff] %v301
                %v303 = vld [vmem:[%s249 + $0x1a0] sm:$0xff]
                %304 = vst [vmem:[%s250 + $0xd0] sm:$0xff] %v303
                %v305 = vld [vmem:[%s249 + $0x1a8] sm:$0xff]
                %306 = vst [vmem:[%s250 + $0xd8] sm:$0xff] %v305
                %v307 = vld [vmem:[%s249 + $0x1c0] sm:$0xff]
                %308 = vst [vmem:[%s250 + $0xe0] sm:$0xff] %v307
                %v309 = vld [vmem:[%s249 + $0x1c8] sm:$0xff]
                %310 = vst [vmem:[%s250 + $0xe8] sm:$0xff] %v309
                %v311 = vld [vmem:[%s249 + $0x1e0] sm:$0xff]
                %312 = vst [vmem:[%s250 + $0xf0] sm:$0xff] %v311
                %v313 = vld [vmem:[%s249 + $0x1e8] sm:$0xff]
                %314 = vst [vmem:[%s250 + $0xf8] sm:$0xff] %v313
              $region41: #{tpu_custom_call.1} parent=35 // loop_footer
                %s248 = sadd.s32 1, %s244
              $region42: #{tpu_custom_call.1} parent=35 // loop_footer_branch
                %243 = sbr.rel target = $region38
              $region43: #{tpu_custom_call.1} parent=35 // loop_exit
                _
            $region36: #{tpu_custom_call.1} parent=31 // pred_fallthru
              _
            // Predicated region
            $region44: #{tpu_custom_call.1} parent=31 // pred_check
              _
            $region45: #{tpu_custom_call.1} parent=31 // pred_check_branch
              %316 = sbr.rel target = $region47
            $region46: #{tpu_custom_call.1} parent=31 // pred_region
              _
            $region47: #{tpu_custom_call.1} parent=31 // pred_fallthru
              _
          $region32: #{tpu_custom_call.1} parent=27 // pred_fallthru
            _
          %317 = vnop
        $region28: #{tpu_custom_call.1} parent=23 // pred_fallthru
          _
        // Predicated region
        $region48: #{tpu_custom_call.1} parent=23 // pred_check
          %p318 = pneg %p100
        $region49: #{tpu_custom_call.1} parent=23 // pred_check_branch
          %320 = sbr.rel (%p318) target = $region51
        $region50: #{tpu_custom_call.1} parent=23 // pred_region
          %s321 = sand.u32 %s90, 1
          %s322 = scalar_lea.sflag [#allocation10], %s321
          %s323 = sand.u32 %s90, 1
          %s324 = smul.addr %s323, 4
          %s325 = scalar_lea.vmem [#allocation9], %s324
          %s326 = smul.u32 4, %s24
          %328 = vsyncadd %s322, 0
          %s329 = scalar_lea.hbm %s2, %s326
          %s331 = sshll.u32 %s329, 4
          %s332 = int_to_ptr.hbm [resolvable:$true] %s331
          %s333 = sshll.u32 %s325, 4
          %s334 = int_to_ptr.vmem [resolvable:$true] %s333
          %336 = dma.hbm_to_vmem [thread:$0]  %s332, 64, %s334, %s322
        $region51: #{tpu_custom_call.1} parent=23 // pred_fallthru
          _
      $region24: #{tpu_custom_call.1} parent=5 // pred_fallthru
        _
      %p337 = scmp.le.s32.totalorder 1, %s16
      %p338 = scmp.lt.s32.totalorder %s16, 3
      %p339 = pnand %p337, %p338
      %p340 = pneg %p339
      // Predicated region
      $region52: #{tpu_custom_call.1} parent=5 // pred_check
        _
      $region53: #{tpu_custom_call.1} parent=5 // pred_check_branch
        %342 = sbr.rel (%p339) target = $region55
      $region54: #{tpu_custom_call.1} parent=5 // pred_region
        %s343 = ssub.s32 %s16, 1
        // Predicated region
        $region56: #{tpu_custom_call.1} parent=54 // pred_check
          %p344 = pneg %p54
        $region57: #{tpu_custom_call.1} parent=54 // pred_check_branch
          %346 = sbr.rel (%p344) target = $region59
        $region58: #{tpu_custom_call.1} parent=54 // pred_region
          %348 = dma.done [#allocation7], 4096
        $region59: #{tpu_custom_call.1} parent=54 // pred_fallthru
          _
        %s349 = sand.u32 %s67, 1
        %s350 = sand.u32 %s67, 1
        %s351 = smul.addr %s350, 256
        %s352 = scalar_lea.vmem [#allocation8], %s351
        // Predicated region
        $region60: #{tpu_custom_call.1} parent=54 // pred_check
          %p353 = pneg %p80
        $region61: #{tpu_custom_call.1} parent=54 // pred_check_branch
          %355 = sbr.rel (%p353) target = $region63
        $region62: #{tpu_custom_call.1} parent=54 // pred_region
          _
        $region63: #{tpu_custom_call.1} parent=54 // pred_fallthru
          _
        %s356 = sand.u32 %s93, 1
        %s357 = scalar_lea.sflag [#allocation10], %s356
        %s358 = sand.u32 %s93, 1
        %s359 = smul.addr %s358, 4
        %s360 = scalar_lea.vmem [#allocation9], %s359
        // Predicated region
        $region64: #{tpu_custom_call.1} parent=54 // pred_check
          %p361 = pneg %p106
        $region65: #{tpu_custom_call.1} parent=54 // pred_check_branch
          %363 = sbr.rel (%p361) target = $region67
        $region66: #{tpu_custom_call.1} parent=54 // pred_region
          %365 = dma.done %s357, 64
        $region67: #{tpu_custom_call.1} parent=54 // pred_fallthru
          _
        %p366 = pneg %p54
        %p367 = pneg %p51
        %s368 = sand.u32 %s67, 1
        %s369 = sand.u32 %s67, 1
        %s370 = smul.addr %s369, 256
        %s371 = scalar_lea.vmem [#allocation8], %s370
        %p372 = pneg %p80
        %p373 = pneg %p77
        %s374 = sand.u32 %s93, 1
        %s375 = scalar_lea.sflag [#allocation10], %s374
        %s376 = sand.u32 %s93, 1
        %s377 = smul.addr %s376, 4
        %s378 = scalar_lea.vmem [#allocation9], %s377
        %p379 = pneg %p106
        %p380 = pneg %p103
        %s381 = smul.u32 64, %s25
        %p382 = scmp.lt.s32.totalorder %s381, 63
        %s383 = scalar_select %p382, %s381, 63
        %s384 = smul.addr %s383, 8
        %s385 = scalar_lea.vmem %s3, %s384
        %p386 = pneg %p132
        %p387 = pneg %p129
        %p388 = pneg %p158
        %p389 = pneg %p155
        %s390 = smul.u32 64, %s25
        %p391 = scmp.lt.s32.totalorder %s390, 63
        %s392 = scalar_select %p391, %s390, 63
        %s393 = smul.addr %s392, 8
        %s394 = scalar_lea.vmem %s4, %s393
        %p395 = pneg %p184
        %p396 = pneg %p181
        %s397 = smul.u32 64, %s25
        %p398 = scmp.lt.s32.totalorder %s397, 63
        %s399 = scalar_select %p398, %s397, 63
        %s400 = smul.addr %s399, 8
        %s401 = scalar_lea.vmem %s5, %s400
        %s402 = smul.u32 64, %s25
        %s403 = smul.u32 4, %s26
        %s404 = smul.u32 4, %s26
        %s405 = smul.u32 64, %s25
        %p406 = scmp.lt.s32.totalorder %s405, 63
        %s407 = scalar_select %p406, %s405, 63
        %s408 = smul.addr %s407, 8
        %s409 = scalar_lea.vmem %s3, %s408
        %s410 = smul.u32 64, %s25
        %s411 = smul.u32 64, %s25
        %p412 = scmp.lt.s32.totalorder %s411, 63
        %s413 = scalar_select %p412, %s411, 63
        %s414 = smul.addr %s413, 8
        %s415 = scalar_lea.vmem %s4, %s414
        %s416 = smul.u32 64, %s25
        %s417 = smul.u32 64, %s25
        %p418 = scmp.lt.s32.totalorder %s417, 63
        %s419 = scalar_select %p418, %s417, 63
        %s420 = smul.addr %s419, 8
        %s421 = scalar_lea.vmem %s5, %s420
        %s422 = smul.u32 64, %s25
        %p423 = scmp.eq.s32.totalorder %s26, 0
        // Predicated region
        $region68: #{tpu_custom_call.1} parent=54 // pred_check
          %p424 = pneg %p423
        $region69: #{tpu_custom_call.1} parent=54 // pred_check_branch
          %426 = sbr.rel (%p424) target = $region71
        $region70: #{tpu_custom_call.1} parent=54 // pred_region
          %vm427 = vcmask 7168
          %428 = vst.msk [vmem:[#allocation2] sm:$0xff] %vm427, -1e+30
          %429 = vst.msk [vmem:[#allocation2 + $0x8] sm:$0xff] %vm427, -1e+30
          %430 = vst.msk [vmem:[#allocation2 + $0x10] sm:$0xff] %vm427, -1e+30
          %431 = vst.msk [vmem:[#allocation2 + $0x18] sm:$0xff] %vm427, -1e+30
          %432 = vst.msk [vmem:[#allocation2 + $0x20] sm:$0xff] %vm427, -1e+30
          %433 = vst.msk [vmem:[#allocation2 + $0x28] sm:$0xff] %vm427, -1e+30
          %434 = vst.msk [vmem:[#allocation2 + $0x30] sm:$0xff] %vm427, -1e+30
          %435 = vst.msk [vmem:[#allocation2 + $0x38] sm:$0xff] %vm427, -1e+30
          %436 = vst.msk [vmem:[#allocation2 + $0x40] sm:$0xff] %vm427, -1e+30
          %437 = vst.msk [vmem:[#allocation2 + $0x48] sm:$0xff] %vm427, -1e+30
          %438 = vst.msk [vmem:[#allocation2 + $0x50] sm:$0xff] %vm427, -1e+30
          %439 = vst.msk [vmem:[#allocation2 + $0x58] sm:$0xff] %vm427, -1e+30
          %440 = vst.msk [vmem:[#allocation2 + $0x60] sm:$0xff] %vm427, -1e+30
          %441 = vst.msk [vmem:[#allocation2 + $0x68] sm:$0xff] %vm427, -1e+30
          %442 = vst.msk [vmem:[#allocation2 + $0x70] sm:$0xff] %vm427, -1e+30
          %443 = vst.msk [vmem:[#allocation2 + $0x78] sm:$0xff] %vm427, -1e+30
          %444 = vst.msk [vmem:[#allocation2 + $0x80] sm:$0xff] %vm427, -1e+30
          %445 = vst.msk [vmem:[#allocation2 + $0x88] sm:$0xff] %vm427, -1e+30
          %446 = vst.msk [vmem:[#allocation2 + $0x90] sm:$0xff] %vm427, -1e+30
          %447 = vst.msk [vmem:[#allocation2 + $0x98] sm:$0xff] %vm427, -1e+30
          %448 = vst.msk [vmem:[#allocation2 + $0xa0] sm:$0xff] %vm427, -1e+30
          %449 = vst.msk [vmem:[#allocation2 + $0xa8] sm:$0xff] %vm427, -1e+30
          %450 = vst.msk [vmem:[#allocation2 + $0xb0] sm:$0xff] %vm427, -1e+30
          %451 = vst.msk [vmem:[#allocation2 + $0xb8] sm:$0xff] %vm427, -1e+30
          %452 = vst.msk [vmem:[#allocation2 + $0xc0] sm:$0xff] %vm427, -1e+30
          %453 = vst.msk [vmem:[#allocation2 + $0xc8] sm:$0xff] %vm427, -1e+30
          %454 = vst.msk [vmem:[#allocation2 + $0xd0] sm:$0xff] %vm427, -1e+30
          %455 = vst.msk [vmem:[#allocation2 + $0xd8] sm:$0xff] %vm427, -1e+30
          %456 = vst.msk [vmem:[#allocation2 + $0xe0] sm:$0xff] %vm427, -1e+30
          %457 = vst.msk [vmem:[#allocation2 + $0xe8] sm:$0xff] %vm427, -1e+30
          %458 = vst.msk [vmem:[#allocation2 + $0xf0] sm:$0xff] %vm427, -1e+30
          %459 = vst.msk [vmem:[#allocation2 + $0xf8] sm:$0xff] %vm427, -1e+30
          %460 = vst.msk [vmem:[#allocation2 + $0x100] sm:$0xff] %vm427, -1e+30
          %461 = vst.msk [vmem:[#allocation2 + $0x108] sm:$0xff] %vm427, -1e+30
          %462 = vst.msk [vmem:[#allocation2 + $0x110] sm:$0xff] %vm427, -1e+30
          %463 = vst.msk [vmem:[#allocation2 + $0x118] sm:$0xff] %vm427, -1e+30
          %464 = vst.msk [vmem:[#allocation2 + $0x120] sm:$0xff] %vm427, -1e+30
          %465 = vst.msk [vmem:[#allocation2 + $0x128] sm:$0xff] %vm427, -1e+30
          %466 = vst.msk [vmem:[#allocation2 + $0x130] sm:$0xff] %vm427, -1e+30
          %467 = vst.msk [vmem:[#allocation2 + $0x138] sm:$0xff] %vm427, -1e+30
          %468 = vst.msk [vmem:[#allocation2 + $0x140] sm:$0xff] %vm427, -1e+30
          %469 = vst.msk [vmem:[#allocation2 + $0x148] sm:$0xff] %vm427, -1e+30
          %470 = vst.msk [vmem:[#allocation2 + $0x150] sm:$0xff] %vm427, -1e+30
          %471 = vst.msk [vmem:[#allocation2 + $0x158] sm:$0xff] %vm427, -1e+30
          %472 = vst.msk [vmem:[#allocation2 + $0x160] sm:$0xff] %vm427, -1e+30
          %473 = vst.msk [vmem:[#allocation2 + $0x168] sm:$0xff] %vm427, -1e+30
          %474 = vst.msk [vmem:[#allocation2 + $0x170] sm:$0xff] %vm427, -1e+30
          %475 = vst.msk [vmem:[#allocation2 + $0x178] sm:$0xff] %vm427, -1e+30
          %476 = vst.msk [vmem:[#allocation2 + $0x180] sm:$0xff] %vm427, -1e+30
          %477 = vst.msk [vmem:[#allocation2 + $0x188] sm:$0xff] %vm427, -1e+30
          %478 = vst.msk [vmem:[#allocation2 + $0x190] sm:$0xff] %vm427, -1e+30
          %479 = vst.msk [vmem:[#allocation2 + $0x198] sm:$0xff] %vm427, -1e+30
          %480 = vst.msk [vmem:[#allocation2 + $0x1a0] sm:$0xff] %vm427, -1e+30
          %481 = vst.msk [vmem:[#allocation2 + $0x1a8] sm:$0xff] %vm427, -1e+30
          %482 = vst.msk [vmem:[#allocation2 + $0x1b0] sm:$0xff] %vm427, -1e+30
          %483 = vst.msk [vmem:[#allocation2 + $0x1b8] sm:$0xff] %vm427, -1e+30
          %484 = vst.msk [vmem:[#allocation2 + $0x1c0] sm:$0xff] %vm427, -1e+30
          %485 = vst.msk [vmem:[#allocation2 + $0x1c8] sm:$0xff] %vm427, -1e+30
          %486 = vst.msk [vmem:[#allocation2 + $0x1d0] sm:$0xff] %vm427, -1e+30
          %487 = vst.msk [vmem:[#allocation2 + $0x1d8] sm:$0xff] %vm427, -1e+30
          %488 = vst.msk [vmem:[#allocation2 + $0x1e0] sm:$0xff] %vm427, -1e+30
          %489 = vst.msk [vmem:[#allocation2 + $0x1e8] sm:$0xff] %vm427, -1e+30
          %490 = vst.msk [vmem:[#allocation2 + $0x1f0] sm:$0xff] %vm427, -1e+30
          %491 = vst.msk [vmem:[#allocation2 + $0x1f8] sm:$0xff] %vm427, -1e+30
          %492 = vst.msk [vmem:[#allocation3] sm:$0xff] %vm427, 0.0
          %493 = vst.msk [vmem:[#allocation3 + $0x8] sm:$0xff] %vm427, 0.0
          %494 = vst.msk [vmem:[#allocation3 + $0x10] sm:$0xff] %vm427, 0.0
          %495 = vst.msk [vmem:[#allocation3 + $0x18] sm:$0xff] %vm427, 0.0
          %496 = vst.msk [vmem:[#allocation3 + $0x20] sm:$0xff] %vm427, 0.0
          %497 = vst.msk [vmem:[#allocation3 + $0x28] sm:$0xff] %vm427, 0.0
          %498 = vst.msk [vmem:[#allocation3 + $0x30] sm:$0xff] %vm427, 0.0
          %499 = vst.msk [vmem:[#allocation3 + $0x38] sm:$0xff] %vm427, 0.0
          %500 = vst.msk [vmem:[#allocation3 + $0x40] sm:$0xff] %vm427, 0.0
          %501 = vst.msk [vmem:[#allocation3 + $0x48] sm:$0xff] %vm427, 0.0
          %502 = vst.msk [vmem:[#allocation3 + $0x50] sm:$0xff] %vm427, 0.0
          %503 = vst.msk [vmem:[#allocation3 + $0x58] sm:$0xff] %vm427, 0.0
          %504 = vst.msk [vmem:[#allocation3 + $0x60] sm:$0xff] %vm427, 0.0
          %505 = vst.msk [vmem:[#allocation3 + $0x68] sm:$0xff] %vm427, 0.0
          %506 = vst.msk [vmem:[#allocation3 + $0x70] sm:$0xff] %vm427, 0.0
          %507 = vst.msk [vmem:[#allocation3 + $0x78] sm:$0xff] %vm427, 0.0
          %508 = vst.msk [vmem:[#allocation3 + $0x80] sm:$0xff] %vm427, 0.0
          %509 = vst.msk [vmem:[#allocation3 + $0x88] sm:$0xff] %vm427, 0.0
          %510 = vst.msk [vmem:[#allocation3 + $0x90] sm:$0xff] %vm427, 0.0
          %511 = vst.msk [vmem:[#allocation3 + $0x98] sm:$0xff] %vm427, 0.0
          %512 = vst.msk [vmem:[#allocation3 + $0xa0] sm:$0xff] %vm427, 0.0
          %513 = vst.msk [vmem:[#allocation3 + $0xa8] sm:$0xff] %vm427, 0.0
          %514 = vst.msk [vmem:[#allocation3 + $0xb0] sm:$0xff] %vm427, 0.0
          %515 = vst.msk [vmem:[#allocation3 + $0xb8] sm:$0xff] %vm427, 0.0
          %516 = vst.msk [vmem:[#allocation3 + $0xc0] sm:$0xff] %vm427, 0.0
          %517 = vst.msk [vmem:[#allocation3 + $0xc8] sm:$0xff] %vm427, 0.0
          %518 = vst.msk [vmem:[#allocation3 + $0xd0] sm:$0xff] %vm427, 0.0
          %519 = vst.msk [vmem:[#allocation3 + $0xd8] sm:$0xff] %vm427, 0.0
          %520 = vst.msk [vmem:[#allocation3 + $0xe0] sm:$0xff] %vm427, 0.0
          %521 = vst.msk [vmem:[#allocation3 + $0xe8] sm:$0xff] %vm427, 0.0
          %522 = vst.msk [vmem:[#allocation3 + $0xf0] sm:$0xff] %vm427, 0.0
          %523 = vst.msk [vmem:[#allocation3 + $0xf8] sm:$0xff] %vm427, 0.0
          %524 = vst.msk [vmem:[#allocation3 + $0x100] sm:$0xff] %vm427, 0.0
          %525 = vst.msk [vmem:[#allocation3 + $0x108] sm:$0xff] %vm427, 0.0
          %526 = vst.msk [vmem:[#allocation3 + $0x110] sm:$0xff] %vm427, 0.0
          %527 = vst.msk [vmem:[#allocation3 + $0x118] sm:$0xff] %vm427, 0.0
          %528 = vst.msk [vmem:[#allocation3 + $0x120] sm:$0xff] %vm427, 0.0
          %529 = vst.msk [vmem:[#allocation3 + $0x128] sm:$0xff] %vm427, 0.0
          %530 = vst.msk [vmem:[#allocation3 + $0x130] sm:$0xff] %vm427, 0.0
          %531 = vst.msk [vmem:[#allocation3 + $0x138] sm:$0xff] %vm427, 0.0
          %532 = vst.msk [vmem:[#allocation3 + $0x140] sm:$0xff] %vm427, 0.0
          %533 = vst.msk [vmem:[#allocation3 + $0x148] sm:$0xff] %vm427, 0.0
          %534 = vst.msk [vmem:[#allocation3 + $0x150] sm:$0xff] %vm427, 0.0
          %535 = vst.msk [vmem:[#allocation3 + $0x158] sm:$0xff] %vm427, 0.0
          %536 = vst.msk [vmem:[#allocation3 + $0x160] sm:$0xff] %vm427, 0.0
          %537 = vst.msk [vmem:[#allocation3 + $0x168] sm:$0xff] %vm427, 0.0
          %538 = vst.msk [vmem:[#allocation3 + $0x170] sm:$0xff] %vm427, 0.0
          %539 = vst.msk [vmem:[#allocation3 + $0x178] sm:$0xff] %vm427, 0.0
          %540 = vst.msk [vmem:[#allocation3 + $0x180] sm:$0xff] %vm427, 0.0
          %541 = vst.msk [vmem:[#allocation3 + $0x188] sm:$0xff] %vm427, 0.0
          %542 = vst.msk [vmem:[#allocation3 + $0x190] sm:$0xff] %vm427, 0.0
          %543 = vst.msk [vmem:[#allocation3 + $0x198] sm:$0xff] %vm427, 0.0
          %544 = vst.msk [vmem:[#allocation3 + $0x1a0] sm:$0xff] %vm427, 0.0
          %545 = vst.msk [vmem:[#allocation3 + $0x1a8] sm:$0xff] %vm427, 0.0
          %546 = vst.msk [vmem:[#allocation3 + $0x1b0] sm:$0xff] %vm427, 0.0
          %547 = vst.msk [vmem:[#allocation3 + $0x1b8] sm:$0xff] %vm427, 0.0
          %548 = vst.msk [vmem:[#allocation3 + $0x1c0] sm:$0xff] %vm427, 0.0
          %549 = vst.msk [vmem:[#allocation3 + $0x1c8] sm:$0xff] %vm427, 0.0
          %550 = vst.msk [vmem:[#allocation3 + $0x1d0] sm:$0xff] %vm427, 0.0
          %551 = vst.msk [vmem:[#allocation3 + $0x1d8] sm:$0xff] %vm427, 0.0
          %552 = vst.msk [vmem:[#allocation3 + $0x1e0] sm:$0xff] %vm427, 0.0
          %553 = vst.msk [vmem:[#allocation3 + $0x1e8] sm:$0xff] %vm427, 0.0
          %554 = vst.msk [vmem:[#allocation3 + $0x1f0] sm:$0xff] %vm427, 0.0
          %555 = vst.msk [vmem:[#allocation3 + $0x1f8] sm:$0xff] %vm427, 0.0
          %556 = vst.msk [vmem:[#allocation4] sm:$0xff] %vm427, 0.0
          %557 = vst.msk [vmem:[#allocation4 + $0x8] sm:$0xff] %vm427, 0.0
          %558 = vst.msk [vmem:[#allocation4 + $0x10] sm:$0xff] %vm427, 0.0
          %559 = vst.msk [vmem:[#allocation4 + $0x18] sm:$0xff] %vm427, 0.0
          %560 = vst.msk [vmem:[#allocation4 + $0x20] sm:$0xff] %vm427, 0.0
          %561 = vst.msk [vmem:[#allocation4 + $0x28] sm:$0xff] %vm427, 0.0
          %562 = vst.msk [vmem:[#allocation4 + $0x30] sm:$0xff] %vm427, 0.0
          %563 = vst.msk [vmem:[#allocation4 + $0x38] sm:$0xff] %vm427, 0.0
          %564 = vst.msk [vmem:[#allocation4 + $0x40] sm:$0xff] %vm427, 0.0
          %565 = vst.msk [vmem:[#allocation4 + $0x48] sm:$0xff] %vm427, 0.0
          %566 = vst.msk [vmem:[#allocation4 + $0x50] sm:$0xff] %vm427, 0.0
          %567 = vst.msk [vmem:[#allocation4 + $0x58] sm:$0xff] %vm427, 0.0
          %568 = vst.msk [vmem:[#allocation4 + $0x60] sm:$0xff] %vm427, 0.0
          %569 = vst.msk [vmem:[#allocation4 + $0x68] sm:$0xff] %vm427, 0.0
          %570 = vst.msk [vmem:[#allocation4 + $0x70] sm:$0xff] %vm427, 0.0
          %571 = vst.msk [vmem:[#allocation4 + $0x78] sm:$0xff] %vm427, 0.0
          %572 = vst.msk [vmem:[#allocation4 + $0x80] sm:$0xff] %vm427, 0.0
          %573 = vst.msk [vmem:[#allocation4 + $0x88] sm:$0xff] %vm427, 0.0
          %574 = vst.msk [vmem:[#allocation4 + $0x90] sm:$0xff] %vm427, 0.0
          %575 = vst.msk [vmem:[#allocation4 + $0x98] sm:$0xff] %vm427, 0.0
          %576 = vst.msk [vmem:[#allocation4 + $0xa0] sm:$0xff] %vm427, 0.0
          %577 = vst.msk [vmem:[#allocation4 + $0xa8] sm:$0xff] %vm427, 0.0
          %578 = vst.msk [vmem:[#allocation4 + $0xb0] sm:$0xff] %vm427, 0.0
          %579 = vst.msk [vmem:[#allocation4 + $0xb8] sm:$0xff] %vm427, 0.0
          %580 = vst.msk [vmem:[#allocation4 + $0xc0] sm:$0xff] %vm427, 0.0
          %581 = vst.msk [vmem:[#allocation4 + $0xc8] sm:$0xff] %vm427, 0.0
          %582 = vst.msk [vmem:[#allocation4 + $0xd0] sm:$0xff] %vm427, 0.0
          %583 = vst.msk [vmem:[#allocation4 + $0xd8] sm:$0xff] %vm427, 0.0
          %584 = vst.msk [vmem:[#allocation4 + $0xe0] sm:$0xff] %vm427, 0.0
          %585 = vst.msk [vmem:[#allocation4 + $0xe8] sm:$0xff] %vm427, 0.0
          %586 = vst.msk [vmem:[#allocation4 + $0xf0] sm:$0xff] %vm427, 0.0
          %587 = vst.msk [vmem:[#allocation4 + $0xf8] sm:$0xff] %vm427, 0.0
          %588 = vst.msk [vmem:[#allocation4 + $0x100] sm:$0xff] %vm427, 0.0
          %589 = vst.msk [vmem:[#allocation4 + $0x108] sm:$0xff] %vm427, 0.0
          %590 = vst.msk [vmem:[#allocation4 + $0x110] sm:$0xff] %vm427, 0.0
          %591 = vst.msk [vmem:[#allocation4 + $0x118] sm:$0xff] %vm427, 0.0
          %592 = vst.msk [vmem:[#allocation4 + $0x120] sm:$0xff] %vm427, 0.0
          %593 = vst.msk [vmem:[#allocation4 + $0x128] sm:$0xff] %vm427, 0.0
          %594 = vst.msk [vmem:[#allocation4 + $0x130] sm:$0xff] %vm427, 0.0
          %595 = vst.msk [vmem:[#allocation4 + $0x138] sm:$0xff] %vm427, 0.0
          %596 = vst.msk [vmem:[#allocation4 + $0x140] sm:$0xff] %vm427, 0.0
          %597 = vst.msk [vmem:[#allocation4 + $0x148] sm:$0xff] %vm427, 0.0
          %598 = vst.msk [vmem:[#allocation4 + $0x150] sm:$0xff] %vm427, 0.0
          %599 = vst.msk [vmem:[#allocation4 + $0x158] sm:$0xff] %vm427, 0.0
          %600 = vst.msk [vmem:[#allocation4 + $0x160] sm:$0xff] %vm427, 0.0
          %601 = vst.msk [vmem:[#allocation4 + $0x168] sm:$0xff] %vm427, 0.0
          %602 = vst.msk [vmem:[#allocation4 + $0x170] sm:$0xff] %vm427, 0.0
          %603 = vst.msk [vmem:[#allocation4 + $0x178] sm:$0xff] %vm427, 0.0
          %604 = vst.msk [vmem:[#allocation4 + $0x180] sm:$0xff] %vm427, 0.0
          %605 = vst.msk [vmem:[#allocation4 + $0x188] sm:$0xff] %vm427, 0.0
          %606 = vst.msk [vmem:[#allocation4 + $0x190] sm:$0xff] %vm427, 0.0
          %607 = vst.msk [vmem:[#allocation4 + $0x198] sm:$0xff] %vm427, 0.0
          %608 = vst.msk [vmem:[#allocation4 + $0x1a0] sm:$0xff] %vm427, 0.0
          %609 = vst.msk [vmem:[#allocation4 + $0x1a8] sm:$0xff] %vm427, 0.0
          %610 = vst.msk [vmem:[#allocation4 + $0x1b0] sm:$0xff] %vm427, 0.0
          %611 = vst.msk [vmem:[#allocation4 + $0x1b8] sm:$0xff] %vm427, 0.0
          %612 = vst.msk [vmem:[#allocation4 + $0x1c0] sm:$0xff] %vm427, 0.0
          %613 = vst.msk [vmem:[#allocation4 + $0x1c8] sm:$0xff] %vm427, 0.0
          %614 = vst.msk [vmem:[#allocation4 + $0x1d0] sm:$0xff] %vm427, 0.0
          %615 = vst.msk [vmem:[#allocation4 + $0x1d8] sm:$0xff] %vm427, 0.0
          %616 = vst.msk [vmem:[#allocation4 + $0x1e0] sm:$0xff] %vm427, 0.0
          %617 = vst.msk [vmem:[#allocation4 + $0x1e8] sm:$0xff] %vm427, 0.0
          %618 = vst.msk [vmem:[#allocation4 + $0x1f0] sm:$0xff] %vm427, 0.0
          %619 = vst.msk [vmem:[#allocation4 + $0x1f8] sm:$0xff] %vm427, 0.0
          %620 = vst.msk [vmem:[#allocation5] sm:$0xff] %vm427, 0
          %621 = vst.msk [vmem:[#allocation5 + $0x8] sm:$0xff] %vm427, 0
          %622 = vst.msk [vmem:[#allocation5 + $0x10] sm:$0xff] %vm427, 0
          %623 = vst.msk [vmem:[#allocation5 + $0x18] sm:$0xff] %vm427, 0
          %624 = vst.msk [vmem:[#allocation5 + $0x20] sm:$0xff] %vm427, 0
          %625 = vst.msk [vmem:[#allocation5 + $0x28] sm:$0xff] %vm427, 0
          %626 = vst.msk [vmem:[#allocation5 + $0x30] sm:$0xff] %vm427, 0
          %627 = vst.msk [vmem:[#allocation5 + $0x38] sm:$0xff] %vm427, 0
          %628 = vst.msk [vmem:[#allocation5 + $0x40] sm:$0xff] %vm427, 0
          %629 = vst.msk [vmem:[#allocation5 + $0x48] sm:$0xff] %vm427, 0
          %630 = vst.msk [vmem:[#allocation5 + $0x50] sm:$0xff] %vm427, 0
          %631 = vst.msk [vmem:[#allocation5 + $0x58] sm:$0xff] %vm427, 0
          %632 = vst.msk [vmem:[#allocation5 + $0x60] sm:$0xff] %vm427, 0
          %633 = vst.msk [vmem:[#allocation5 + $0x68] sm:$0xff] %vm427, 0
          %634 = vst.msk [vmem:[#allocation5 + $0x70] sm:$0xff] %vm427, 0
          %635 = vst.msk [vmem:[#allocation5 + $0x78] sm:$0xff] %vm427, 0
          %636 = vst.msk [vmem:[#allocation5 + $0x80] sm:$0xff] %vm427, 0
          %637 = vst.msk [vmem:[#allocation5 + $0x88] sm:$0xff] %vm427, 0
          %638 = vst.msk [vmem:[#allocation5 + $0x90] sm:$0xff] %vm427, 0
          %639 = vst.msk [vmem:[#allocation5 + $0x98] sm:$0xff] %vm427, 0
          %640 = vst.msk [vmem:[#allocation5 + $0xa0] sm:$0xff] %vm427, 0
          %641 = vst.msk [vmem:[#allocation5 + $0xa8] sm:$0xff] %vm427, 0
          %642 = vst.msk [vmem:[#allocation5 + $0xb0] sm:$0xff] %vm427, 0
          %643 = vst.msk [vmem:[#allocation5 + $0xb8] sm:$0xff] %vm427, 0
          %644 = vst.msk [vmem:[#allocation5 + $0xc0] sm:$0xff] %vm427, 0
          %645 = vst.msk [vmem:[#allocation5 + $0xc8] sm:$0xff] %vm427, 0
          %646 = vst.msk [vmem:[#allocation5 + $0xd0] sm:$0xff] %vm427, 0
          %647 = vst.msk [vmem:[#allocation5 + $0xd8] sm:$0xff] %vm427, 0
          %648 = vst.msk [vmem:[#allocation5 + $0xe0] sm:$0xff] %vm427, 0
          %649 = vst.msk [vmem:[#allocation5 + $0xe8] sm:$0xff] %vm427, 0
          %650 = vst.msk [vmem:[#allocation5 + $0xf0] sm:$0xff] %vm427, 0
          %651 = vst.msk [vmem:[#allocation5 + $0xf8] sm:$0xff] %vm427, 0
          %652 = vst.msk [vmem:[#allocation5 + $0x100] sm:$0xff] %vm427, 0
          %653 = vst.msk [vmem:[#allocation5 + $0x108] sm:$0xff] %vm427, 0
          %654 = vst.msk [vmem:[#allocation5 + $0x110] sm:$0xff] %vm427, 0
          %655 = vst.msk [vmem:[#allocation5 + $0x118] sm:$0xff] %vm427, 0
          %656 = vst.msk [vmem:[#allocation5 + $0x120] sm:$0xff] %vm427, 0
          %657 = vst.msk [vmem:[#allocation5 + $0x128] sm:$0xff] %vm427, 0
          %658 = vst.msk [vmem:[#allocation5 + $0x130] sm:$0xff] %vm427, 0
          %659 = vst.msk [vmem:[#allocation5 + $0x138] sm:$0xff] %vm427, 0
          %660 = vst.msk [vmem:[#allocation5 + $0x140] sm:$0xff] %vm427, 0
          %661 = vst.msk [vmem:[#allocation5 + $0x148] sm:$0xff] %vm427, 0
          %662 = vst.msk [vmem:[#allocation5 + $0x150] sm:$0xff] %vm427, 0
          %663 = vst.msk [vmem:[#allocation5 + $0x158] sm:$0xff] %vm427, 0
          %664 = vst.msk [vmem:[#allocation5 + $0x160] sm:$0xff] %vm427, 0
          %665 = vst.msk [vmem:[#allocation5 + $0x168] sm:$0xff] %vm427, 0
          %666 = vst.msk [vmem:[#allocation5 + $0x170] sm:$0xff] %vm427, 0
          %667 = vst.msk [vmem:[#allocation5 + $0x178] sm:$0xff] %vm427, 0
          %668 = vst.msk [vmem:[#allocation5 + $0x180] sm:$0xff] %vm427, 0
          %669 = vst.msk [vmem:[#allocation5 + $0x188] sm:$0xff] %vm427, 0
          %670 = vst.msk [vmem:[#allocation5 + $0x190] sm:$0xff] %vm427, 0
          %671 = vst.msk [vmem:[#allocation5 + $0x198] sm:$0xff] %vm427, 0
          %672 = vst.msk [vmem:[#allocation5 + $0x1a0] sm:$0xff] %vm427, 0
          %673 = vst.msk [vmem:[#allocation5 + $0x1a8] sm:$0xff] %vm427, 0
          %674 = vst.msk [vmem:[#allocation5 + $0x1b0] sm:$0xff] %vm427, 0
          %675 = vst.msk [vmem:[#allocation5 + $0x1b8] sm:$0xff] %vm427, 0
          %676 = vst.msk [vmem:[#allocation5 + $0x1c0] sm:$0xff] %vm427, 0
          %677 = vst.msk [vmem:[#allocation5 + $0x1c8] sm:$0xff] %vm427, 0
          %678 = vst.msk [vmem:[#allocation5 + $0x1d0] sm:$0xff] %vm427, 0
          %679 = vst.msk [vmem:[#allocation5 + $0x1d8] sm:$0xff] %vm427, 0
          %680 = vst.msk [vmem:[#allocation5 + $0x1e0] sm:$0xff] %vm427, 0
          %681 = vst.msk [vmem:[#allocation5 + $0x1e8] sm:$0xff] %vm427, 0
          %682 = vst.msk [vmem:[#allocation5 + $0x1f0] sm:$0xff] %vm427, 0
          %683 = vst.msk [vmem:[#allocation5 + $0x1f8] sm:$0xff] %vm427, 0
        $region71: #{tpu_custom_call.1} parent=54 // pred_fallthru
          _
        %v684 = vld [vmem:[#allocation6] sm:$0xf]
        %v685 = vld [vmem:[#allocation6 + $0x4] sm:$0xf]
        %v686 = vld [vmem:[#allocation6 + $0x8] sm:$0xf]
        %v687 = vld [vmem:[#allocation6 + $0xc] sm:$0xf]
        %v688 = vld [vmem:[#allocation6 + $0x10] sm:$0xf]
        %v689 = vld [vmem:[#allocation6 + $0x14] sm:$0xf]
        %v690 = vld [vmem:[#allocation6 + $0x18] sm:$0xf]
        %v691 = vld [vmem:[#allocation6 + $0x1c] sm:$0xf]
        %v692 = vld [vmem:[#allocation6 + $0x20] sm:$0xf]
        %v693 = vld [vmem:[#allocation6 + $0x24] sm:$0xf]
        %v694 = vld [vmem:[#allocation6 + $0x28] sm:$0xf]
        %v695 = vld [vmem:[#allocation6 + $0x2c] sm:$0xf]
        %v696 = vld [vmem:[#allocation6 + $0x30] sm:$0xf]
        %v697 = vld [vmem:[#allocation6 + $0x34] sm:$0xf]
        %v698 = vld [vmem:[#allocation6 + $0x38] sm:$0xf]
        %v699 = vld [vmem:[#allocation6 + $0x3c] sm:$0xf]
        %v700 = vld [vmem:[#allocation6 + $0x40] sm:$0xf]
        %v701 = vld [vmem:[#allocation6 + $0x44] sm:$0xf]
        %v702 = vld [vmem:[#allocation6 + $0x48] sm:$0xf]
        %v703 = vld [vmem:[#allocation6 + $0x4c] sm:$0xf]
        %v704 = vld [vmem:[#allocation6 + $0x50] sm:$0xf]
        %v705 = vld [vmem:[#allocation6 + $0x54] sm:$0xf]
        %v706 = vld [vmem:[#allocation6 + $0x58] sm:$0xf]
        %v707 = vld [vmem:[#allocation6 + $0x5c] sm:$0xf]
        %v708 = vld [vmem:[#allocation6 + $0x60] sm:$0xf]
        %v709 = vld [vmem:[#allocation6 + $0x64] sm:$0xf]
        %v710 = vld [vmem:[#allocation6 + $0x68] sm:$0xf]
        %v711 = vld [vmem:[#allocation6 + $0x6c] sm:$0xf]
        %v712 = vld [vmem:[#allocation6 + $0x70] sm:$0xf]
        %v713 = vld [vmem:[#allocation6 + $0x74] sm:$0xf]
        %v714 = vld [vmem:[#allocation6 + $0x78] sm:$0xf]
        %v715 = vld [vmem:[#allocation6 + $0x7c] sm:$0xf]
        %v716 = vld [vmem:[#allocation6 + $0x80] sm:$0xf]
        %v717 = vld [vmem:[#allocation6 + $0x84] sm:$0xf]
        %v718 = vld [vmem:[#allocation6 + $0x88] sm:$0xf]
        %v719 = vld [vmem:[#allocation6 + $0x8c] sm:$0xf]
        %v720 = vld [vmem:[#allocation6 + $0x90] sm:$0xf]
        %v721 = vld [vmem:[#allocation6 + $0x94] sm:$0xf]
        %v722 = vld [vmem:[#allocation6 + $0x98] sm:$0xf]
        %v723 = vld [vmem:[#allocation6 + $0x9c] sm:$0xf]
        %v724 = vld [vmem:[#allocation6 + $0xa0] sm:$0xf]
        %v725 = vld [vmem:[#allocation6 + $0xa4] sm:$0xf]
        %v726 = vld [vmem:[#allocation6 + $0xa8] sm:$0xf]
        %v727 = vld [vmem:[#allocation6 + $0xac] sm:$0xf]
        %v728 = vld [vmem:[#allocation6 + $0xb0] sm:$0xf]
        %v729 = vld [vmem:[#allocation6 + $0xb4] sm:$0xf]
        %v730 = vld [vmem:[#allocation6 + $0xb8] sm:$0xf]
        %v731 = vld [vmem:[#allocation6 + $0xbc] sm:$0xf]
        %v732 = vld [vmem:[#allocation6 + $0xc0] sm:$0xf]
        %v733 = vld [vmem:[#allocation6 + $0xc4] sm:$0xf]
        %v734 = vld [vmem:[#allocation6 + $0xc8] sm:$0xf]
        %v735 = vld [vmem:[#allocation6 + $0xcc] sm:$0xf]
        %v736 = vld [vmem:[#allocation6 + $0xd0] sm:$0xf]
        %v737 = vld [vmem:[#allocation6 + $0xd4] sm:$0xf]
        %v738 = vld [vmem:[#allocation6 + $0xd8] sm:$0xf]
        %v739 = vld [vmem:[#allocation6 + $0xdc] sm:$0xf]
        %v740 = vld [vmem:[#allocation6 + $0xe0] sm:$0xf]
        %v741 = vld [vmem:[#allocation6 + $0xe4] sm:$0xf]
        %v742 = vld [vmem:[#allocation6 + $0xe8] sm:$0xf]
        %v743 = vld [vmem:[#allocation6 + $0xec] sm:$0xf]
        %v744 = vld [vmem:[#allocation6 + $0xf0] sm:$0xf]
        %v745 = vld [vmem:[#allocation6 + $0xf4] sm:$0xf]
        %v746 = vld [vmem:[#allocation6 + $0xf8] sm:$0xf]
        %v747 = vld [vmem:[#allocation6 + $0xfc] sm:$0xf]
        %v748 = vld [vmem:[%s352] sm:$0xff]
        %v749 = vld [vmem:[%s352 + $0x8] sm:$0xff]
        %v750 = vld [vmem:[%s352 + $0x10] sm:$0xff]
        %v751 = vld [vmem:[%s352 + $0x18] sm:$0xff]
        %v752 = vld [vmem:[%s352 + $0x20] sm:$0xff]
        %v753 = vld [vmem:[%s352 + $0x28] sm:$0xff]
        %v754 = vld [vmem:[%s352 + $0x30] sm:$0xff]
        %v755 = vld [vmem:[%s352 + $0x38] sm:$0xff]
        %v756 = vld [vmem:[%s352 + $0x40] sm:$0xff]
        %v757 = vld [vmem:[%s352 + $0x48] sm:$0xff]
        %v758 = vld [vmem:[%s352 + $0x50] sm:$0xff]
        %v759 = vld [vmem:[%s352 + $0x58] sm:$0xff]
        %v760 = vld [vmem:[%s352 + $0x60] sm:$0xff]
        %v761 = vld [vmem:[%s352 + $0x68] sm:$0xff]
        %v762 = vld [vmem:[%s352 + $0x70] sm:$0xff]
        %v763 = vld [vmem:[%s352 + $0x78] sm:$0xff]
        %v764 = vld [vmem:[%s352 + $0x80] sm:$0xff]
        %v765 = vld [vmem:[%s352 + $0x88] sm:$0xff]
        %v766 = vld [vmem:[%s352 + $0x90] sm:$0xff]
        %v767 = vld [vmem:[%s352 + $0x98] sm:$0xff]
        %v768 = vld [vmem:[%s352 + $0xa0] sm:$0xff]
        %v769 = vld [vmem:[%s352 + $0xa8] sm:$0xff]
        %v770 = vld [vmem:[%s352 + $0xb0] sm:$0xff]
        %v771 = vld [vmem:[%s352 + $0xb8] sm:$0xff]
        %v772 = vld [vmem:[%s352 + $0xc0] sm:$0xff]
        %v773 = vld [vmem:[%s352 + $0xc8] sm:$0xff]
        %v774 = vld [vmem:[%s352 + $0xd0] sm:$0xff]
        %v775 = vld [vmem:[%s352 + $0xd8] sm:$0xff]
        %v776 = vld [vmem:[%s352 + $0xe0] sm:$0xff]
        %v777 = vld [vmem:[%s352 + $0xe8] sm:$0xff]
        %v778 = vld [vmem:[%s352 + $0xf0] sm:$0xff]
        %v779 = vld [vmem:[%s352 + $0xf8] sm:$0xff]
        %v780 = vld [vmem:[%s360] sm:$0xf]
        %v782 = vperm.slane %v780, 0
        %v783 = vperm.slane %v780, 1
        %v784 = vperm.slane %v780, 2
        %v785 = vperm.slane %v780, 3
        %v854 = vunpack.c.l.b16 %v684
        %v855 = vunpack.c.l.b16 %v685
        %v856 = vunpack.c.l.b16 %v686
        %v857 = vunpack.c.l.b16 %v687
        %v858 = vunpack.c.l.b16 %v688
        %v859 = vunpack.c.l.b16 %v689
        %v860 = vunpack.c.l.b16 %v690
        %v861 = vunpack.c.l.b16 %v691
        %v862 = vunpack.c.l.b16 %v692
        %v863 = vunpack.c.l.b16 %v693
        %v864 = vunpack.c.l.b16 %v694
        %v865 = vunpack.c.l.b16 %v695
        %v866 = vunpack.c.l.b16 %v696
        %v867 = vunpack.c.l.b16 %v697
        %v868 = vunpack.c.l.b16 %v698
        %v869 = vunpack.c.l.b16 %v699
        %v870 = vunpack.c.l.b16 %v700
        %v871 = vunpack.c.l.b16 %v701
        %v872 = vunpack.c.l.b16 %v702
        %v873 = vunpack.c.l.b16 %v703
        %v874 = vunpack.c.l.b16 %v704
        %v875 = vunpack.c.l.b16 %v705
        %v876 = vunpack.c.l.b16 %v706
        %v877 = vunpack.c.l.b16 %v707
        %v878 = vunpack.c.l.b16 %v708
        %v879 = vunpack.c.l.b16 %v709
        %v880 = vunpack.c.l.b16 %v710
        %v881 = vunpack.c.l.b16 %v711
        %v882 = vunpack.c.l.b16 %v712
        %v883 = vunpack.c.l.b16 %v713
        %v884 = vunpack.c.l.b16 %v714
        %v885 = vunpack.c.l.b16 %v715
        %v886 = vunpack.c.l.b16 %v716
        %v887 = vunpack.c.l.b16 %v717
        %v888 = vunpack.c.l.b16 %v718
        %v889 = vunpack.c.l.b16 %v719
        %v890 = vunpack.c.l.b16 %v720
        %v891 = vunpack.c.l.b16 %v721
        %v892 = vunpack.c.l.b16 %v722
        %v893 = vunpack.c.l.b16 %v723
        %v894 = vunpack.c.l.b16 %v724
        %v895 = vunpack.c.l.b16 %v725
        %v896 = vunpack.c.l.b16 %v726
        %v897 = vunpack.c.l.b16 %v727
        %v898 = vunpack.c.l.b16 %v728
        %v899 = vunpack.c.l.b16 %v729
        %v900 = vunpack.c.l.b16 %v730
        %v901 = vunpack.c.l.b16 %v731
        %v902 = vunpack.c.l.b16 %v732
        %v903 = vunpack.c.l.b16 %v733
        %v904 = vunpack.c.l.b16 %v734
        %v905 = vunpack.c.l.b16 %v735
        %v906 = vunpack.c.l.b16 %v736
        %v907 = vunpack.c.l.b16 %v737
        %v908 = vunpack.c.l.b16 %v738
        %v909 = vunpack.c.l.b16 %v739
        %v910 = vunpack.c.l.b16 %v740
        %v911 = vunpack.c.l.b16 %v741
        %v912 = vunpack.c.l.b16 %v742
        %v913 = vunpack.c.l.b16 %v743
        %v914 = vunpack.c.l.b16 %v744
        %v915 = vunpack.c.l.b16 %v745
        %v916 = vunpack.c.l.b16 %v746
        %v917 = vunpack.c.l.b16 %v747
        %v918 = vpack.c.b16 %v855, %v854
        %v919 = vpack.c.b16 %v857, %v856
        %v920 = vpack.c.b16 %v859, %v858
        %v921 = vpack.c.b16 %v861, %v860
        %v922 = vpack.c.b16 %v863, %v862
        %v923 = vpack.c.b16 %v865, %v864
        %v924 = vpack.c.b16 %v867, %v866
        %v925 = vpack.c.b16 %v869, %v868
        %v926 = vpack.c.b16 %v871, %v870
        %v927 = vpack.c.b16 %v873, %v872
        %v928 = vpack.c.b16 %v875, %v874
        %v929 = vpack.c.b16 %v877, %v876
        %v930 = vpack.c.b16 %v879, %v878
        %v931 = vpack.c.b16 %v881, %v880
        %v932 = vpack.c.b16 %v883, %v882
        %v933 = vpack.c.b16 %v885, %v884
        %v934 = vpack.c.b16 %v887, %v886
        %v935 = vpack.c.b16 %v889, %v888
        %v936 = vpack.c.b16 %v891, %v890
        %v937 = vpack.c.b16 %v893, %v892
        %v938 = vpack.c.b16 %v895, %v894
        %v939 = vpack.c.b16 %v897, %v896
        %v940 = vpack.c.b16 %v899, %v898
        %v941 = vpack.c.b16 %v901, %v900
        %v942 = vpack.c.b16 %v903, %v902
        %v943 = vpack.c.b16 %v905, %v904
        %v944 = vpack.c.b16 %v907, %v906
        %v945 = vpack.c.b16 %v909, %v908
        %v946 = vpack.c.b16 %v911, %v910
        %v947 = vpack.c.b16 %v913, %v912
        %v948 = vpack.c.b16 %v915, %v914
        %v949 = vpack.c.b16 %v917, %v916
        %v1014 = vunpack.c.l.b16 %v748
        %v1015 = vunpack.c.h.b16 %v748
        %v1016 = vunpack.c.l.b16 %v749
        %v1017 = vunpack.c.h.b16 %v749
        %v1018 = vunpack.c.l.b16 %v750
        %v1019 = vunpack.c.h.b16 %v750
        %v1020 = vunpack.c.l.b16 %v751
        %v1021 = vunpack.c.h.b16 %v751
        %v1022 = vunpack.c.l.b16 %v752
        %v1023 = vunpack.c.h.b16 %v752
        %v1024 = vunpack.c.l.b16 %v753
        %v1025 = vunpack.c.h.b16 %v753
        %v1026 = vunpack.c.l.b16 %v754
        %v1027 = vunpack.c.h.b16 %v754
        %v1028 = vunpack.c.l.b16 %v755
        %v1029 = vunpack.c.h.b16 %v755
        %v1030 = vunpack.c.l.b16 %v756
        %v1031 = vunpack.c.h.b16 %v756
        %v1032 = vunpack.c.l.b16 %v757
        %v1033 = vunpack.c.h.b16 %v757
        %v1034 = vunpack.c.l.b16 %v758
        %v1035 = vunpack.c.h.b16 %v758
        %v1036 = vunpack.c.l.b16 %v759
        %v1037 = vunpack.c.h.b16 %v759
        %v1038 = vunpack.c.l.b16 %v760
        %v1039 = vunpack.c.h.b16 %v760
        %v1040 = vunpack.c.l.b16 %v761
        %v1041 = vunpack.c.h.b16 %v761
        %v1042 = vunpack.c.l.b16 %v762
        %v1043 = vunpack.c.h.b16 %v762
        %v1044 = vunpack.c.l.b16 %v763
        %v1045 = vunpack.c.h.b16 %v763
        %v1046 = vunpack.c.l.b16 %v764
        %v1047 = vunpack.c.h.b16 %v764
        %v1048 = vunpack.c.l.b16 %v765
        %v1049 = vunpack.c.h.b16 %v765
        %v1050 = vunpack.c.l.b16 %v766
        %v1051 = vunpack.c.h.b16 %v766
        %v1052 = vunpack.c.l.b16 %v767
        %v1053 = vunpack.c.h.b16 %v767
        %v1054 = vunpack.c.l.b16 %v768
        %v1055 = vunpack.c.h.b16 %v768
        %v1056 = vunpack.c.l.b16 %v769
        %v1057 = vunpack.c.h.b16 %v769
        %v1058 = vunpack.c.l.b16 %v770
        %v1059 = vunpack.c.h.b16 %v770
        %v1060 = vunpack.c.l.b16 %v771
        %v1061 = vunpack.c.h.b16 %v771
        %v1062 = vunpack.c.l.b16 %v772
        %v1063 = vunpack.c.h.b16 %v772
        %v1064 = vunpack.c.l.b16 %v773
        %v1065 = vunpack.c.h.b16 %v773
        %v1066 = vunpack.c.l.b16 %v774
        %v1067 = vunpack.c.h.b16 %v774
        %v1068 = vunpack.c.l.b16 %v775
        %v1069 = vunpack.c.h.b16 %v775
        %v1070 = vunpack.c.l.b16 %v776
        %v1071 = vunpack.c.h.b16 %v776
        %v1072 = vunpack.c.l.b16 %v777
        %v1073 = vunpack.c.h.b16 %v777
        %v1074 = vunpack.c.l.b16 %v778
        %v1075 = vunpack.c.h.b16 %v778
        %v1076 = vunpack.c.l.b16 %v779
        %v1077 = vunpack.c.h.b16 %v779
        %v1078 = vpack.c.b16 %v1018, %v1014
        %v1079 = vpack.c.b16 %v1019, %v1015
        %v1080 = vpack.c.b16 %v1020, %v1016
        %v1081 = vpack.c.b16 %v1021, %v1017
        %v1082 = vpack.c.b16 %v1026, %v1022
        %v1083 = vpack.c.b16 %v1027, %v1023
        %v1084 = vpack.c.b16 %v1028, %v1024
        %v1085 = vpack.c.b16 %v1029, %v1025
        %v1086 = vpack.c.b16 %v1034, %v1030
        %v1087 = vpack.c.b16 %v1035, %v1031
        %v1088 = vpack.c.b16 %v1036, %v1032
        %v1089 = vpack.c.b16 %v1037, %v1033
        %v1090 = vpack.c.b16 %v1042, %v1038
        %v1091 = vpack.c.b16 %v1043, %v1039
        %v1092 = vpack.c.b16 %v1044, %v1040
        %v1093 = vpack.c.b16 %v1045, %v1041
        %v1094 = vpack.c.b16 %v1050, %v1046
        %v1095 = vpack.c.b16 %v1051, %v1047
        %v1096 = vpack.c.b16 %v1052, %v1048
        %v1097 = vpack.c.b16 %v1053, %v1049
        %v1098 = vpack.c.b16 %v1058, %v1054
        %v1099 = vpack.c.b16 %v1059, %v1055
        %v1100 = vpack.c.b16 %v1060, %v1056
        %v1101 = vpack.c.b16 %v1061, %v1057
        %v1102 = vpack.c.b16 %v1066, %v1062
        %v1103 = vpack.c.b16 %v1067, %v1063
        %v1104 = vpack.c.b16 %v1068, %v1064
        %v1105 = vpack.c.b16 %v1069, %v1065
        %v1106 = vpack.c.b16 %v1074, %v1070
        %v1107 = vpack.c.b16 %v1075, %v1071
        %v1108 = vpack.c.b16 %v1076, %v1072
        %v1109 = vpack.c.b16 %v1077, %v1073
        %1142 = vmatpush.bf16.msra.mxu0 %v1106
        %1143 = vmatpush.bf16.msra.mxu0 %v1102
        %1144 = vmatpush.bf16.msra.mxu0 %v1098
        %1145 = vmatpush.bf16.msra.mxu0 %v1094
        %1146 = vmatpush.bf16.msra.mxu0 %v1090
        %1147 = vmatpush.bf16.msra.mxu0 %v1086
        %1148 = vmatpush.bf16.msra.mxu0 %v1082
        %1149 = vmatpush.bf16.msra.mxu0 %v1078
        %1150 = vmatmul.bf16.gmra.mxu0 %v918
        %v1151 = vpop.f32.mrf.mxu0
        %v1152 = vadd.f32 %v782, %v1151
        %v1153 = vpop.f32.mrf.mxu0
        %v1154 = vadd.f32 %v782, %v1153
        %1155 = vmatmul.bf16.gmra.mxu0 %v919
        %v1156 = vpop.f32.mrf.mxu0
        %v1157 = vadd.f32 %v782, %v1156
        %v1158 = vpop.f32.mrf.mxu0
        %v1159 = vadd.f32 %v782, %v1158
        %1160 = vmatmul.bf16.gmra.mxu0 %v920
        %v1161 = vpop.f32.mrf.mxu0
        %v1162 = vadd.f32 %v782, %v1161
        %v1163 = vpop.f32.mrf.mxu0
        %v1164 = vadd.f32 %v782, %v1163
        %1165 = vmatmul.bf16.gmra.mxu0 %v921
        %v1166 = vpop.f32.mrf.mxu0
        %v1167 = vadd.f32 %v782, %v1166
        %v1168 = vpop.f32.mrf.mxu0
        %v1169 = vadd.f32 %v782, %v1168
        %1170 = vmatmul.bf16.gmra.mxu0 %v922
        %v1171 = vpop.f32.mrf.mxu0
        %v1172 = vadd.f32 %v782, %v1171
        %v1173 = vpop.f32.mrf.mxu0
        %v1174 = vadd.f32 %v782, %v1173
        %1175 = vmatmul.bf16.gmra.mxu0 %v923
        %v1176 = vpop.f32.mrf.mxu0
        %v1177 = vadd.f32 %v782, %v1176
        %v1178 = vpop.f32.mrf.mxu0
        %v1179 = vadd.f32 %v782, %v1178
        %1180 = vmatmul.bf16.gmra.mxu0 %v924
        %v1181 = vpop.f32.mrf.mxu0
        %v1182 = vadd.f32 %v782, %v1181
        %v1183 = vpop.f32.mrf.mxu0
        %v1184 = vadd.f32 %v782, %v1183
        %1185 = vmatmul.bf16.gmra.mxu0 %v925
        %v1186 = vpop.f32.mrf.mxu0
        %v1187 = vadd.f32 %v782, %v1186
        %v1188 = vpop.f32.mrf.mxu0
        %v1189 = vadd.f32 %v782, %v1188
        %1190 = vmatmul.bf16.gmra.mxu0 %v926
        %v1191 = vpop.f32.mrf.mxu0
        %v1192 = vadd.f32 %v782, %v1191
        %v1193 = vpop.f32.mrf.mxu0
        %v1194 = vadd.f32 %v782, %v1193
        %1195 = vmatmul.bf16.gmra.mxu0 %v927
        %v1196 = vpop.f32.mrf.mxu0
        %v1197 = vadd.f32 %v782, %v1196
        %v1198 = vpop.f32.mrf.mxu0
        %v1199 = vadd.f32 %v782, %v1198
        %1200 = vmatmul.bf16.gmra.mxu0 %v928
        %v1201 = vpop.f32.mrf.mxu0
        %v1202 = vadd.f32 %v782, %v1201
        %v1203 = vpop.f32.mrf.mxu0
        %v1204 = vadd.f32 %v782, %v1203
        %1205 = vmatmul.bf16.gmra.mxu0 %v929
        %v1206 = vpop.f32.mrf.mxu0
        %v1207 = vadd.f32 %v782, %v1206
        %v1208 = vpop.f32.mrf.mxu0
        %v1209 = vadd.f32 %v782, %v1208
        %1210 = vmatmul.bf16.gmra.mxu0 %v930
        %v1211 = vpop.f32.mrf.mxu0
        %v1212 = vadd.f32 %v782, %v1211
        %v1213 = vpop.f32.mrf.mxu0
        %v1214 = vadd.f32 %v782, %v1213
        %1215 = vmatmul.bf16.gmra.mxu0 %v931
        %v1216 = vpop.f32.mrf.mxu0
        %v1217 = vadd.f32 %v782, %v1216
        %v1218 = vpop.f32.mrf.mxu0
        %v1219 = vadd.f32 %v782, %v1218
        %1220 = vmatmul.bf16.gmra.mxu0 %v932
        %v1221 = vpop.f32.mrf.mxu0
        %v1222 = vadd.f32 %v782, %v1221
        %v1223 = vpop.f32.mrf.mxu0
        %v1224 = vadd.f32 %v782, %v1223
        %1225 = vmatmul.bf16.gmra.mxu0 %v933
        %v1226 = vpop.f32.mrf.mxu0
        %v1227 = vadd.f32 %v782, %v1226
        %v1228 = vpop.f32.mrf.mxu0
        %v1229 = vadd.f32 %v782, %v1228
        %1230 = vmatmul.bf16.gmra.mxu0 %v934
        %v1231 = vpop.f32.mrf.mxu0
        %v1232 = vadd.f32 %v782, %v1231
        %v1233 = vpop.f32.mrf.mxu0
        %v1234 = vadd.f32 %v782, %v1233
        %1235 = vmatmul.bf16.gmra.mxu0 %v935
        %v1236 = vpop.f32.mrf.mxu0
        %v1237 = vadd.f32 %v782, %v1236
        %v1238 = vpop.f32.mrf.mxu0
        %v1239 = vadd.f32 %v782, %v1238
        %1240 = vmatmul.bf16.gmra.mxu0 %v936
        %v1241 = vpop.f32.mrf.mxu0
        %v1242 = vadd.f32 %v782, %v1241
        %v1243 = vpop.f32.mrf.mxu0
        %v1244 = vadd.f32 %v782, %v1243
        %1245 = vmatmul.bf16.gmra.mxu0 %v937
        %v1246 = vpop.f32.mrf.mxu0
        %v1247 = vadd.f32 %v782, %v1246
        %v1248 = vpop.f32.mrf.mxu0
        %v1249 = vadd.f32 %v782, %v1248
        %1250 = vmatmul.bf16.gmra.mxu0 %v938
        %v1251 = vpop.f32.mrf.mxu0
        %v1252 = vadd.f32 %v782, %v1251
        %v1253 = vpop.f32.mrf.mxu0
        %v1254 = vadd.f32 %v782, %v1253
        %1255 = vmatmul.bf16.gmra.mxu0 %v939
        %v1256 = vpop.f32.mrf.mxu0
        %v1257 = vadd.f32 %v782, %v1256
        %v1258 = vpop.f32.mrf.mxu0
        %v1259 = vadd.f32 %v782, %v1258
        %1260 = vmatmul.bf16.gmra.mxu0 %v940
        %v1261 = vpop.f32.mrf.mxu0
        %v1262 = vadd.f32 %v782, %v1261
        %v1263 = vpop.f32.mrf.mxu0
        %v1264 = vadd.f32 %v782, %v1263
        %1265 = vmatmul.bf16.gmra.mxu0 %v941
        %v1266 = vpop.f32.mrf.mxu0
        %v1267 = vadd.f32 %v782, %v1266
        %v1268 = vpop.f32.mrf.mxu0
        %v1269 = vadd.f32 %v782, %v1268
        %1270 = vmatmul.bf16.gmra.mxu0 %v942
        %v1271 = vpop.f32.mrf.mxu0
        %v1272 = vadd.f32 %v782, %v1271
        %v1273 = vpop.f32.mrf.mxu0
        %v1274 = vadd.f32 %v782, %v1273
        %1275 = vmatmul.bf16.gmra.mxu0 %v943
        %v1276 = vpop.f32.mrf.mxu0
        %v1277 = vadd.f32 %v782, %v1276
        %v1278 = vpop.f32.mrf.mxu0
        %v1279 = vadd.f32 %v782, %v1278
        %1280 = vmatmul.bf16.gmra.mxu0 %v944
        %v1281 = vpop.f32.mrf.mxu0
        %v1282 = vadd.f32 %v782, %v1281
        %v1283 = vpop.f32.mrf.mxu0
        %v1284 = vadd.f32 %v782, %v1283
        %1285 = vmatmul.bf16.gmra.mxu0 %v945
        %v1286 = vpop.f32.mrf.mxu0
        %v1287 = vadd.f32 %v782, %v1286
        %v1288 = vpop.f32.mrf.mxu0
        %v1289 = vadd.f32 %v782, %v1288
        %1290 = vmatmul.bf16.gmra.mxu0 %v946
        %v1291 = vpop.f32.mrf.mxu0
        %v1292 = vadd.f32 %v782, %v1291
        %v1293 = vpop.f32.mrf.mxu0
        %v1294 = vadd.f32 %v782, %v1293
        %1295 = vmatmul.bf16.gmra.mxu0 %v947
        %v1296 = vpop.f32.mrf.mxu0
        %v1297 = vadd.f32 %v782, %v1296
        %v1298 = vpop.f32.mrf.mxu0
        %v1299 = vadd.f32 %v782, %v1298
        %1300 = vmatmul.bf16.gmra.mxu0 %v948
        %v1301 = vpop.f32.mrf.mxu0
        %v1302 = vadd.f32 %v782, %v1301
        %v1303 = vpop.f32.mrf.mxu0
        %v1304 = vadd.f32 %v782, %v1303
        %1305 = vmatmul.bf16.gmra.mxu0 %v949
        %v1306 = vpop.f32.mrf.mxu0
        %v1307 = vadd.f32 %v782, %v1306
        %v1308 = vpop.f32.mrf.mxu0
        %v1309 = vadd.f32 %v782, %v1308
        %1310 = vdwg.mxu0
        %1311 = vmatpush.bf16.msra.mxu0 %v1107
        %1312 = vmatpush.bf16.msra.mxu0 %v1103
        %1313 = vmatpush.bf16.msra.mxu0 %v1099
        %1314 = vmatpush.bf16.msra.mxu0 %v1095
        %1315 = vmatpush.bf16.msra.mxu0 %v1091
        %1316 = vmatpush.bf16.msra.mxu0 %v1087
        %1317 = vmatpush.bf16.msra.mxu0 %v1083
        %1318 = vmatpush.bf16.msra.mxu0 %v1079
        %1319 = vmatmul.bf16.gmra.mxu0 %v918
        %v1320 = vpop.f32.mrf.mxu0
        %v1321 = vadd.f32 %v783, %v1320
        %v1322 = vpop.f32.mrf.mxu0
        %v1323 = vadd.f32 %v783, %v1322
        %1324 = vmatmul.bf16.gmra.mxu0 %v919
        %v1325 = vpop.f32.mrf.mxu0
        %v1326 = vadd.f32 %v783, %v1325
        %v1327 = vpop.f32.mrf.mxu0
        %v1328 = vadd.f32 %v783, %v1327
        %1329 = vmatmul.bf16.gmra.mxu0 %v920
        %v1330 = vpop.f32.mrf.mxu0
        %v1331 = vadd.f32 %v783, %v1330
        %v1332 = vpop.f32.mrf.mxu0
        %v1333 = vadd.f32 %v783, %v1332
        %1334 = vmatmul.bf16.gmra.mxu0 %v921
        %v1335 = vpop.f32.mrf.mxu0
        %v1336 = vadd.f32 %v783, %v1335
        %v1337 = vpop.f32.mrf.mxu0
        %v1338 = vadd.f32 %v783, %v1337
        %1339 = vmatmul.bf16.gmra.mxu0 %v922
        %v1340 = vpop.f32.mrf.mxu0
        %v1341 = vadd.f32 %v783, %v1340
        %v1342 = vpop.f32.mrf.mxu0
        %v1343 = vadd.f32 %v783, %v1342
        %1344 = vmatmul.bf16.gmra.mxu0 %v923
        %v1345 = vpop.f32.mrf.mxu0
        %v1346 = vadd.f32 %v783, %v1345
        %v1347 = vpop.f32.mrf.mxu0
        %v1348 = vadd.f32 %v783, %v1347
        %1349 = vmatmul.bf16.gmra.mxu0 %v924
        %v1350 = vpop.f32.mrf.mxu0
        %v1351 = vadd.f32 %v783, %v1350
        %v1352 = vpop.f32.mrf.mxu0
        %v1353 = vadd.f32 %v783, %v1352
        %1354 = vmatmul.bf16.gmra.mxu0 %v925
        %v1355 = vpop.f32.mrf.mxu0
        %v1356 = vadd.f32 %v783, %v1355
        %v1357 = vpop.f32.mrf.mxu0
        %v1358 = vadd.f32 %v783, %v1357
        %1359 = vmatmul.bf16.gmra.mxu0 %v926
        %v1360 = vpop.f32.mrf.mxu0
        %v1361 = vadd.f32 %v783, %v1360
        %v1362 = vpop.f32.mrf.mxu0
        %v1363 = vadd.f32 %v783, %v1362
        %1364 = vmatmul.bf16.gmra.mxu0 %v927
        %v1365 = vpop.f32.mrf.mxu0
        %v1366 = vadd.f32 %v783, %v1365
        %v1367 = vpop.f32.mrf.mxu0
        %v1368 = vadd.f32 %v783, %v1367
        %1369 = vmatmul.bf16.gmra.mxu0 %v928
        %v1370 = vpop.f32.mrf.mxu0
        %v1371 = vadd.f32 %v783, %v1370
        %v1372 = vpop.f32.mrf.mxu0
        %v1373 = vadd.f32 %v783, %v1372
        %1374 = vmatmul.bf16.gmra.mxu0 %v929
        %v1375 = vpop.f32.mrf.mxu0
        %v1376 = vadd.f32 %v783, %v1375
        %v1377 = vpop.f32.mrf.mxu0
        %v1378 = vadd.f32 %v783, %v1377
        %1379 = vmatmul.bf16.gmra.mxu0 %v930
        %v1380 = vpop.f32.mrf.mxu0
        %v1381 = vadd.f32 %v783, %v1380
        %v1382 = vpop.f32.mrf.mxu0
        %v1383 = vadd.f32 %v783, %v1382
        %1384 = vmatmul.bf16.gmra.mxu0 %v931
        %v1385 = vpop.f32.mrf.mxu0
        %v1386 = vadd.f32 %v783, %v1385
        %v1387 = vpop.f32.mrf.mxu0
        %v1388 = vadd.f32 %v783, %v1387
        %1389 = vmatmul.bf16.gmra.mxu0 %v932
        %v1390 = vpop.f32.mrf.mxu0
        %v1391 = vadd.f32 %v783, %v1390
        %v1392 = vpop.f32.mrf.mxu0
        %v1393 = vadd.f32 %v783, %v1392
        %1394 = vmatmul.bf16.gmra.mxu0 %v933
        %v1395 = vpop.f32.mrf.mxu0
        %v1396 = vadd.f32 %v783, %v1395
        %v1397 = vpop.f32.mrf.mxu0
        %v1398 = vadd.f32 %v783, %v1397
        %1399 = vmatmul.bf16.gmra.mxu0 %v934
        %v1400 = vpop.f32.mrf.mxu0
        %v1401 = vadd.f32 %v783, %v1400
        %v1402 = vpop.f32.mrf.mxu0
        %v1403 = vadd.f32 %v783, %v1402
        %1404 = vmatmul.bf16.gmra.mxu0 %v935
        %v1405 = vpop.f32.mrf.mxu0
        %v1406 = vadd.f32 %v783, %v1405
        %v1407 = vpop.f32.mrf.mxu0
        %v1408 = vadd.f32 %v783, %v1407
        %1409 = vmatmul.bf16.gmra.mxu0 %v936
        %v1410 = vpop.f32.mrf.mxu0
        %v1411 = vadd.f32 %v783, %v1410
        %v1412 = vpop.f32.mrf.mxu0
        %v1413 = vadd.f32 %v783, %v1412
        %1414 = vmatmul.bf16.gmra.mxu0 %v937
        %v1415 = vpop.f32.mrf.mxu0
        %v1416 = vadd.f32 %v783, %v1415
        %v1417 = vpop.f32.mrf.mxu0
        %v1418 = vadd.f32 %v783, %v1417
        %1419 = vmatmul.bf16.gmra.mxu0 %v938
        %v1420 = vpop.f32.mrf.mxu0
        %v1421 = vadd.f32 %v783, %v1420
        %v1422 = vpop.f32.mrf.mxu0
        %v1423 = vadd.f32 %v783, %v1422
        %1424 = vmatmul.bf16.gmra.mxu0 %v939
        %v1425 = vpop.f32.mrf.mxu0
        %v1426 = vadd.f32 %v783, %v1425
        %v1427 = vpop.f32.mrf.mxu0
        %v1428 = vadd.f32 %v783, %v1427
        %1429 = vmatmul.bf16.gmra.mxu0 %v940
        %v1430 = vpop.f32.mrf.mxu0
        %v1431 = vadd.f32 %v783, %v1430
        %v1432 = vpop.f32.mrf.mxu0
        %v1433 = vadd.f32 %v783, %v1432
        %1434 = vmatmul.bf16.gmra.mxu0 %v941
        %v1435 = vpop.f32.mrf.mxu0
        %v1436 = vadd.f32 %v783, %v1435
        %v1437 = vpop.f32.mrf.mxu0
        %v1438 = vadd.f32 %v783, %v1437
        %1439 = vmatmul.bf16.gmra.mxu0 %v942
        %v1440 = vpop.f32.mrf.mxu0
        %v1441 = vadd.f32 %v783, %v1440
        %v1442 = vpop.f32.mrf.mxu0
        %v1443 = vadd.f32 %v783, %v1442
        %1444 = vmatmul.bf16.gmra.mxu0 %v943
        %v1445 = vpop.f32.mrf.mxu0
        %v1446 = vadd.f32 %v783, %v1445
        %v1447 = vpop.f32.mrf.mxu0
        %v1448 = vadd.f32 %v783, %v1447
        %1449 = vmatmul.bf16.gmra.mxu0 %v944
        %v1450 = vpop.f32.mrf.mxu0
        %v1451 = vadd.f32 %v783, %v1450
        %v1452 = vpop.f32.mrf.mxu0
        %v1453 = vadd.f32 %v783, %v1452
        %1454 = vmatmul.bf16.gmra.mxu0 %v945
        %v1455 = vpop.f32.mrf.mxu0
        %v1456 = vadd.f32 %v783, %v1455
        %v1457 = vpop.f32.mrf.mxu0
        %v1458 = vadd.f32 %v783, %v1457
        %1459 = vmatmul.bf16.gmra.mxu0 %v946
        %v1460 = vpop.f32.mrf.mxu0
        %v1461 = vadd.f32 %v783, %v1460
        %v1462 = vpop.f32.mrf.mxu0
        %v1463 = vadd.f32 %v783, %v1462
        %1464 = vmatmul.bf16.gmra.mxu0 %v947
        %v1465 = vpop.f32.mrf.mxu0
        %v1466 = vadd.f32 %v783, %v1465
        %v1467 = vpop.f32.mrf.mxu0
        %v1468 = vadd.f32 %v783, %v1467
        %1469 = vmatmul.bf16.gmra.mxu0 %v948
        %v1470 = vpop.f32.mrf.mxu0
        %v1471 = vadd.f32 %v783, %v1470
        %v1472 = vpop.f32.mrf.mxu0
        %v1473 = vadd.f32 %v783, %v1472
        %1474 = vmatmul.bf16.gmra.mxu0 %v949
        %v1475 = vpop.f32.mrf.mxu0
        %v1476 = vadd.f32 %v783, %v1475
        %v1477 = vpop.f32.mrf.mxu0
        %v1478 = vadd.f32 %v783, %v1477
        %1479 = vdwg.mxu0
        %1480 = vmatpush.bf16.msra.mxu0 %v1108
        %1481 = vmatpush.bf16.msra.mxu0 %v1104
        %1482 = vmatpush.bf16.msra.mxu0 %v1100
        %1483 = vmatpush.bf16.msra.mxu0 %v1096
        %1484 = vmatpush.bf16.msra.mxu0 %v1092
        %1485 = vmatpush.bf16.msra.mxu0 %v1088
        %1486 = vmatpush.bf16.msra.mxu0 %v1084
        %1487 = vmatpush.bf16.msra.mxu0 %v1080
        %1488 = vmatmul.bf16.gmra.mxu0 %v918
        %v1489 = vpop.f32.mrf.mxu0
        %v1490 = vadd.f32 %v784, %v1489
        %v1491 = vpop.f32.mrf.mxu0
        %v1492 = vadd.f32 %v784, %v1491
        %1493 = vmatmul.bf16.gmra.mxu0 %v919
        %v1494 = vpop.f32.mrf.mxu0
        %v1495 = vadd.f32 %v784, %v1494
        %v1496 = vpop.f32.mrf.mxu0
        %v1497 = vadd.f32 %v784, %v1496
        %1498 = vmatmul.bf16.gmra.mxu0 %v920
        %v1499 = vpop.f32.mrf.mxu0
        %v1500 = vadd.f32 %v784, %v1499
        %v1501 = vpop.f32.mrf.mxu0
        %v1502 = vadd.f32 %v784, %v1501
        %1503 = vmatmul.bf16.gmra.mxu0 %v921
        %v1504 = vpop.f32.mrf.mxu0
        %v1505 = vadd.f32 %v784, %v1504
        %v1506 = vpop.f32.mrf.mxu0
        %v1507 = vadd.f32 %v784, %v1506
        %1508 = vmatmul.bf16.gmra.mxu0 %v922
        %v1509 = vpop.f32.mrf.mxu0
        %v1510 = vadd.f32 %v784, %v1509
        %v1511 = vpop.f32.mrf.mxu0
        %v1512 = vadd.f32 %v784, %v1511
        %1513 = vmatmul.bf16.gmra.mxu0 %v923
        %v1514 = vpop.f32.mrf.mxu0
        %v1515 = vadd.f32 %v784, %v1514
        %v1516 = vpop.f32.mrf.mxu0
        %v1517 = vadd.f32 %v784, %v1516
        %1518 = vmatmul.bf16.gmra.mxu0 %v924
        %v1519 = vpop.f32.mrf.mxu0
        %v1520 = vadd.f32 %v784, %v1519
        %v1521 = vpop.f32.mrf.mxu0
        %v1522 = vadd.f32 %v784, %v1521
        %1523 = vmatmul.bf16.gmra.mxu0 %v925
        %v1524 = vpop.f32.mrf.mxu0
        %v1525 = vadd.f32 %v784, %v1524
        %v1526 = vpop.f32.mrf.mxu0
        %v1527 = vadd.f32 %v784, %v1526
        %1528 = vmatmul.bf16.gmra.mxu0 %v926
        %v1529 = vpop.f32.mrf.mxu0
        %v1530 = vadd.f32 %v784, %v1529
        %v1531 = vpop.f32.mrf.mxu0
        %v1532 = vadd.f32 %v784, %v1531
        %1533 = vmatmul.bf16.gmra.mxu0 %v927
        %v1534 = vpop.f32.mrf.mxu0
        %v1535 = vadd.f32 %v784, %v1534
        %v1536 = vpop.f32.mrf.mxu0
        %v1537 = vadd.f32 %v784, %v1536
        %1538 = vmatmul.bf16.gmra.mxu0 %v928
        %v1539 = vpop.f32.mrf.mxu0
        %v1540 = vadd.f32 %v784, %v1539
        %v1541 = vpop.f32.mrf.mxu0
        %v1542 = vadd.f32 %v784, %v1541
        %1543 = vmatmul.bf16.gmra.mxu0 %v929
        %v1544 = vpop.f32.mrf.mxu0
        %v1545 = vadd.f32 %v784, %v1544
        %v1546 = vpop.f32.mrf.mxu0
        %v1547 = vadd.f32 %v784, %v1546
        %1548 = vmatmul.bf16.gmra.mxu0 %v930
        %v1549 = vpop.f32.mrf.mxu0
        %v1550 = vadd.f32 %v784, %v1549
        %v1551 = vpop.f32.mrf.mxu0
        %v1552 = vadd.f32 %v784, %v1551
        %1553 = vmatmul.bf16.gmra.mxu0 %v931
        %v1554 = vpop.f32.mrf.mxu0
        %v1555 = vadd.f32 %v784, %v1554
        %v1556 = vpop.f32.mrf.mxu0
        %v1557 = vadd.f32 %v784, %v1556
        %1558 = vmatmul.bf16.gmra.mxu0 %v932
        %v1559 = vpop.f32.mrf.mxu0
        %v1560 = vadd.f32 %v784, %v1559
        %v1561 = vpop.f32.mrf.mxu0
        %v1562 = vadd.f32 %v784, %v1561
        %1563 = vmatmul.bf16.gmra.mxu0 %v933
        %v1564 = vpop.f32.mrf.mxu0
        %v1565 = vadd.f32 %v784, %v1564
        %v1566 = vpop.f32.mrf.mxu0
        %v1567 = vadd.f32 %v784, %v1566
        %1568 = vmatmul.bf16.gmra.mxu0 %v934
        %v1569 = vpop.f32.mrf.mxu0
        %v1570 = vadd.f32 %v784, %v1569
        %v1571 = vpop.f32.mrf.mxu0
        %v1572 = vadd.f32 %v784, %v1571
        %1573 = vmatmul.bf16.gmra.mxu0 %v935
        %v1574 = vpop.f32.mrf.mxu0
        %v1575 = vadd.f32 %v784, %v1574
        %v1576 = vpop.f32.mrf.mxu0
        %v1577 = vadd.f32 %v784, %v1576
        %1578 = vmatmul.bf16.gmra.mxu0 %v936
        %v1579 = vpop.f32.mrf.mxu0
        %v1580 = vadd.f32 %v784, %v1579
        %v1581 = vpop.f32.mrf.mxu0
        %v1582 = vadd.f32 %v784, %v1581
        %1583 = vmatmul.bf16.gmra.mxu0 %v937
        %v1584 = vpop.f32.mrf.mxu0
        %v1585 = vadd.f32 %v784, %v1584
        %v1586 = vpop.f32.mrf.mxu0
        %v1587 = vadd.f32 %v784, %v1586
        %1588 = vmatmul.bf16.gmra.mxu0 %v938
        %v1589 = vpop.f32.mrf.mxu0
        %v1590 = vadd.f32 %v784, %v1589
        %v1591 = vpop.f32.mrf.mxu0
        %v1592 = vadd.f32 %v784, %v1591
        %1593 = vmatmul.bf16.gmra.mxu0 %v939
        %v1594 = vpop.f32.mrf.mxu0
        %v1595 = vadd.f32 %v784, %v1594
        %v1596 = vpop.f32.mrf.mxu0
        %v1597 = vadd.f32 %v784, %v1596
        %1598 = vmatmul.bf16.gmra.mxu0 %v940
        %v1599 = vpop.f32.mrf.mxu0
        %v1600 = vadd.f32 %v784, %v1599
        %v1601 = vpop.f32.mrf.mxu0
        %v1602 = vadd.f32 %v784, %v1601
        %1603 = vmatmul.bf16.gmra.mxu0 %v941
        %v1604 = vpop.f32.mrf.mxu0
        %v1605 = vadd.f32 %v784, %v1604
        %v1606 = vpop.f32.mrf.mxu0
        %v1607 = vadd.f32 %v784, %v1606
        %1608 = vmatmul.bf16.gmra.mxu0 %v942
        %v1609 = vpop.f32.mrf.mxu0
        %v1610 = vadd.f32 %v784, %v1609
        %v1611 = vpop.f32.mrf.mxu0
        %v1612 = vadd.f32 %v784, %v1611
        %1613 = vmatmul.bf16.gmra.mxu0 %v943
        %v1614 = vpop.f32.mrf.mxu0
        %v1615 = vadd.f32 %v784, %v1614
        %v1616 = vpop.f32.mrf.mxu0
        %v1617 = vadd.f32 %v784, %v1616
        %1618 = vmatmul.bf16.gmra.mxu0 %v944
        %v1619 = vpop.f32.mrf.mxu0
        %v1620 = vadd.f32 %v784, %v1619
        %v1621 = vpop.f32.mrf.mxu0
        %v1622 = vadd.f32 %v784, %v1621
        %1623 = vmatmul.bf16.gmra.mxu0 %v945
        %v1624 = vpop.f32.mrf.mxu0
        %v1625 = vadd.f32 %v784, %v1624
        %v1626 = vpop.f32.mrf.mxu0
        %v1627 = vadd.f32 %v784, %v1626
        %1628 = vmatmul.bf16.gmra.mxu0 %v946
        %v1629 = vpop.f32.mrf.mxu0
        %v1630 = vadd.f32 %v784, %v1629
        %v1631 = vpop.f32.mrf.mxu0
        %v1632 = vadd.f32 %v784, %v1631
        %1633 = vmatmul.bf16.gmra.mxu0 %v947
        %v1634 = vpop.f32.mrf.mxu0
        %v1635 = vadd.f32 %v784, %v1634
        %v1636 = vpop.f32.mrf.mxu0
        %v1637 = vadd.f32 %v784, %v1636
        %1638 = vmatmul.bf16.gmra.mxu0 %v948
        %v1639 = vpop.f32.mrf.mxu0
        %v1640 = vadd.f32 %v784, %v1639
        %v1641 = vpop.f32.mrf.mxu0
        %v1642 = vadd.f32 %v784, %v1641
        %1643 = vmatmul.bf16.gmra.mxu0 %v949
        %v1644 = vpop.f32.mrf.mxu0
        %v1645 = vadd.f32 %v784, %v1644
        %v1646 = vpop.f32.mrf.mxu0
        %v1647 = vadd.f32 %v784, %v1646
        %1648 = vdwg.mxu0
        %1649 = vmatpush.bf16.msra.mxu0 %v1109
        %1650 = vmatpush.bf16.msra.mxu0 %v1105
        %1651 = vmatpush.bf16.msra.mxu0 %v1101
        %1652 = vmatpush.bf16.msra.mxu0 %v1097
        %1653 = vmatpush.bf16.msra.mxu0 %v1093
        %1654 = vmatpush.bf16.msra.mxu0 %v1089
        %1655 = vmatpush.bf16.msra.mxu0 %v1085
        %1656 = vmatpush.bf16.msra.mxu0 %v1081
        %1657 = vmatmul.bf16.gmra.mxu0 %v918
        %v1658 = vpop.f32.mrf.mxu0
        %v1659 = vadd.f32 %v785, %v1658
        %v1660 = vpop.f32.mrf.mxu0
        %v1661 = vadd.f32 %v785, %v1660
        %1662 = vmatmul.bf16.gmra.mxu0 %v919
        %v1663 = vpop.f32.mrf.mxu0
        %v1664 = vadd.f32 %v785, %v1663
        %v1665 = vpop.f32.mrf.mxu0
        %v1666 = vadd.f32 %v785, %v1665
        %1667 = vmatmul.bf16.gmra.mxu0 %v920
        %v1668 = vpop.f32.mrf.mxu0
        %v1669 = vadd.f32 %v785, %v1668
        %v1670 = vpop.f32.mrf.mxu0
        %v1671 = vadd.f32 %v785, %v1670
        %1672 = vmatmul.bf16.gmra.mxu0 %v921
        %v1673 = vpop.f32.mrf.mxu0
        %v1674 = vadd.f32 %v785, %v1673
        %v1675 = vpop.f32.mrf.mxu0
        %v1676 = vadd.f32 %v785, %v1675
        %1677 = vmatmul.bf16.gmra.mxu0 %v922
        %v1678 = vpop.f32.mrf.mxu0
        %v1679 = vadd.f32 %v785, %v1678
        %v1680 = vpop.f32.mrf.mxu0
        %v1681 = vadd.f32 %v785, %v1680
        %1682 = vmatmul.bf16.gmra.mxu0 %v923
        %v1683 = vpop.f32.mrf.mxu0
        %v1684 = vadd.f32 %v785, %v1683
        %v1685 = vpop.f32.mrf.mxu0
        %v1686 = vadd.f32 %v785, %v1685
        %1687 = vmatmul.bf16.gmra.mxu0 %v924
        %v1688 = vpop.f32.mrf.mxu0
        %v1689 = vadd.f32 %v785, %v1688
        %v1690 = vpop.f32.mrf.mxu0
        %v1691 = vadd.f32 %v785, %v1690
        %1692 = vmatmul.bf16.gmra.mxu0 %v925
        %v1693 = vpop.f32.mrf.mxu0
        %v1694 = vadd.f32 %v785, %v1693
        %v1695 = vpop.f32.mrf.mxu0
        %v1696 = vadd.f32 %v785, %v1695
        %1697 = vmatmul.bf16.gmra.mxu0 %v926
        %v1698 = vpop.f32.mrf.mxu0
        %v1699 = vadd.f32 %v785, %v1698
        %v1700 = vpop.f32.mrf.mxu0
        %v1701 = vadd.f32 %v785, %v1700
        %1702 = vmatmul.bf16.gmra.mxu0 %v927
        %v1703 = vpop.f32.mrf.mxu0
        %v1704 = vadd.f32 %v785, %v1703
        %v1705 = vpop.f32.mrf.mxu0
        %v1706 = vadd.f32 %v785, %v1705
        %1707 = vmatmul.bf16.gmra.mxu0 %v928
        %v1708 = vpop.f32.mrf.mxu0
        %v1709 = vadd.f32 %v785, %v1708
        %v1710 = vpop.f32.mrf.mxu0
        %v1711 = vadd.f32 %v785, %v1710
        %1712 = vmatmul.bf16.gmra.mxu0 %v929
        %v1713 = vpop.f32.mrf.mxu0
        %v1714 = vadd.f32 %v785, %v1713
        %v1715 = vpop.f32.mrf.mxu0
        %v1716 = vadd.f32 %v785, %v1715
        %1717 = vmatmul.bf16.gmra.mxu0 %v930
        %v1718 = vpop.f32.mrf.mxu0
        %v1719 = vadd.f32 %v785, %v1718
        %v1720 = vpop.f32.mrf.mxu0
        %v1721 = vadd.f32 %v785, %v1720
        %1722 = vmatmul.bf16.gmra.mxu0 %v931
        %v1723 = vpop.f32.mrf.mxu0
        %v1724 = vadd.f32 %v785, %v1723
        %v1725 = vpop.f32.mrf.mxu0
        %v1726 = vadd.f32 %v785, %v1725
        %1727 = vmatmul.bf16.gmra.mxu0 %v932
        %v1728 = vpop.f32.mrf.mxu0
        %v1729 = vadd.f32 %v785, %v1728
        %v1730 = vpop.f32.mrf.mxu0
        %v1731 = vadd.f32 %v785, %v1730
        %1732 = vmatmul.bf16.gmra.mxu0 %v933
        %v1733 = vpop.f32.mrf.mxu0
        %v1734 = vadd.f32 %v785, %v1733
        %v1735 = vpop.f32.mrf.mxu0
        %v1736 = vadd.f32 %v785, %v1735
        %1737 = vmatmul.bf16.gmra.mxu0 %v934
        %v1738 = vpop.f32.mrf.mxu0
        %v1739 = vadd.f32 %v785, %v1738
        %v1740 = vpop.f32.mrf.mxu0
        %v1741 = vadd.f32 %v785, %v1740
        %1742 = vmatmul.bf16.gmra.mxu0 %v935
        %v1743 = vpop.f32.mrf.mxu0
        %v1744 = vadd.f32 %v785, %v1743
        %v1745 = vpop.f32.mrf.mxu0
        %v1746 = vadd.f32 %v785, %v1745
        %1747 = vmatmul.bf16.gmra.mxu0 %v936
        %v1748 = vpop.f32.mrf.mxu0
        %v1749 = vadd.f32 %v785, %v1748
        %v1750 = vpop.f32.mrf.mxu0
        %v1751 = vadd.f32 %v785, %v1750
        %1752 = vmatmul.bf16.gmra.mxu0 %v937
        %v1753 = vpop.f32.mrf.mxu0
        %v1754 = vadd.f32 %v785, %v1753
        %v1755 = vpop.f32.mrf.mxu0
        %v1756 = vadd.f32 %v785, %v1755
        %1757 = vmatmul.bf16.gmra.mxu0 %v938
        %v1758 = vpop.f32.mrf.mxu0
        %v1759 = vadd.f32 %v785, %v1758
        %v1760 = vpop.f32.mrf.mxu0
        %v1761 = vadd.f32 %v785, %v1760
        %1762 = vmatmul.bf16.gmra.mxu0 %v939
        %v1763 = vpop.f32.mrf.mxu0
        %v1764 = vadd.f32 %v785, %v1763
        %v1765 = vpop.f32.mrf.mxu0
        %v1766 = vadd.f32 %v785, %v1765
        %1767 = vmatmul.bf16.gmra.mxu0 %v940
        %v1768 = vpop.f32.mrf.mxu0
        %v1769 = vadd.f32 %v785, %v1768
        %v1770 = vpop.f32.mrf.mxu0
        %v1771 = vadd.f32 %v785, %v1770
        %1772 = vmatmul.bf16.gmra.mxu0 %v941
        %v1773 = vpop.f32.mrf.mxu0
        %v1774 = vadd.f32 %v785, %v1773
        %v1775 = vpop.f32.mrf.mxu0
        %v1776 = vadd.f32 %v785, %v1775
        %1777 = vmatmul.bf16.gmra.mxu0 %v942
        %v1778 = vpop.f32.mrf.mxu0
        %v1779 = vadd.f32 %v785, %v1778
        %v1780 = vpop.f32.mrf.mxu0
        %v1781 = vadd.f32 %v785, %v1780
        %1782 = vmatmul.bf16.gmra.mxu0 %v943
        %v1783 = vpop.f32.mrf.mxu0
        %v1784 = vadd.f32 %v785, %v1783
        %v1785 = vpop.f32.mrf.mxu0
        %v1786 = vadd.f32 %v785, %v1785
        %1787 = vmatmul.bf16.gmra.mxu0 %v944
        %v1788 = vpop.f32.mrf.mxu0
        %v1789 = vadd.f32 %v785, %v1788
        %v1790 = vpop.f32.mrf.mxu0
        %v1791 = vadd.f32 %v785, %v1790
        %1792 = vmatmul.bf16.gmra.mxu0 %v945
        %v1793 = vpop.f32.mrf.mxu0
        %v1794 = vadd.f32 %v785, %v1793
        %v1795 = vpop.f32.mrf.mxu0
        %v1796 = vadd.f32 %v785, %v1795
        %1797 = vmatmul.bf16.gmra.mxu0 %v946
        %v1798 = vpop.f32.mrf.mxu0
        %v1799 = vadd.f32 %v785, %v1798
        %v1800 = vpop.f32.mrf.mxu0
        %v1801 = vadd.f32 %v785, %v1800
        %1802 = vmatmul.bf16.gmra.mxu0 %v947
        %v1803 = vpop.f32.mrf.mxu0
        %v1804 = vadd.f32 %v785, %v1803
        %v1805 = vpop.f32.mrf.mxu0
        %v1806 = vadd.f32 %v785, %v1805
        %1807 = vmatmul.bf16.gmra.mxu0 %v948
        %v1808 = vpop.f32.mrf.mxu0
        %v1809 = vadd.f32 %v785, %v1808
        %v1810 = vpop.f32.mrf.mxu0
        %v1811 = vadd.f32 %v785, %v1810
        %1812 = vmatmul.bf16.gmra.mxu0 %v949
        %v1813 = vpop.f32.mrf.mxu0
        %v1814 = vadd.f32 %v785, %v1813
        %v1815 = vpop.f32.mrf.mxu0
        %v1816 = vadd.f32 %v785, %v1815
        %1817 = vdwg.mxu0
        %v1818 = vlaneseq
        %v1819 = vand.u32 %v1818, 127
        %v1820 = vadd.s32 %v1819, 128
        %v1821 = vadd.s32 %v1819, 256
        %v1822 = vadd.s32 %v1819, 384
        %s1823 = smul.u32 %s26, 512
        %v1824 = vstv %s1823
        %v1825 = vadd.s32 %v1819, %v1824
        %v1826 = vadd.s32 %v1820, %v1824
        %v1827 = vadd.s32 %v1821, %v1824
        %v1828 = vadd.s32 %v1822, %v1824
        %v1829 = vld [vmem:[%s409] sm:$0xff]
        %v1830 = vld [vmem:[%s409 + $0x8] sm:$0xff]
        %v1831 = vld [vmem:[%s409 + $0x10] sm:$0xff]
        %v1832 = vld [vmem:[%s409 + $0x18] sm:$0xff]
        %v1833 = vld [vmem:[%s409 + $0x20] sm:$0xff]
        %v1834 = vld [vmem:[%s409 + $0x28] sm:$0xff]
        %v1835 = vld [vmem:[%s409 + $0x30] sm:$0xff]
        %v1836 = vld [vmem:[%s409 + $0x38] sm:$0xff]
        %v1837 = vld [vmem:[%s409 + $0x40] sm:$0xff]
        %v1838 = vld [vmem:[%s409 + $0x48] sm:$0xff]
        %v1839 = vld [vmem:[%s409 + $0x50] sm:$0xff]
        %v1840 = vld [vmem:[%s409 + $0x58] sm:$0xff]
        %v1841 = vld [vmem:[%s409 + $0x60] sm:$0xff]
        %v1842 = vld [vmem:[%s409 + $0x68] sm:$0xff]
        %v1843 = vld [vmem:[%s409 + $0x70] sm:$0xff]
        %v1844 = vld [vmem:[%s409 + $0x78] sm:$0xff]
        %v1845 = vld [vmem:[%s409 + $0x80] sm:$0xff]
        %v1846 = vld [vmem:[%s409 + $0x88] sm:$0xff]
        %v1847 = vld [vmem:[%s409 + $0x90] sm:$0xff]
        %v1848 = vld [vmem:[%s409 + $0x98] sm:$0xff]
        %v1849 = vld [vmem:[%s409 + $0xa0] sm:$0xff]
        %v1850 = vld [vmem:[%s409 + $0xa8] sm:$0xff]
        %v1851 = vld [vmem:[%s409 + $0xb0] sm:$0xff]
        %v1852 = vld [vmem:[%s409 + $0xb8] sm:$0xff]
        %v1853 = vld [vmem:[%s409 + $0xc0] sm:$0xff]
        %v1854 = vld [vmem:[%s409 + $0xc8] sm:$0xff]
        %v1855 = vld [vmem:[%s409 + $0xd0] sm:$0xff]
        %v1856 = vld [vmem:[%s409 + $0xd8] sm:$0xff]
        %v1857 = vld [vmem:[%s409 + $0xe0] sm:$0xff]
        %v1858 = vld [vmem:[%s409 + $0xe8] sm:$0xff]
        %v1859 = vld [vmem:[%s409 + $0xf0] sm:$0xff]
        %v1860 = vld [vmem:[%s409 + $0xf8] sm:$0xff]
        %v1861 = vld [vmem:[%s409 + $0x100] sm:$0xff]
        %v1862 = vld [vmem:[%s409 + $0x108] sm:$0xff]
        %v1863 = vld [vmem:[%s409 + $0x110] sm:$0xff]
        %v1864 = vld [vmem:[%s409 + $0x118] sm:$0xff]
        %v1865 = vld [vmem:[%s409 + $0x120] sm:$0xff]
        %v1866 = vld [vmem:[%s409 + $0x128] sm:$0xff]
        %v1867 = vld [vmem:[%s409 + $0x130] sm:$0xff]
        %v1868 = vld [vmem:[%s409 + $0x138] sm:$0xff]
        %v1869 = vld [vmem:[%s409 + $0x140] sm:$0xff]
        %v1870 = vld [vmem:[%s409 + $0x148] sm:$0xff]
        %v1871 = vld [vmem:[%s409 + $0x150] sm:$0xff]
        %v1872 = vld [vmem:[%s409 + $0x158] sm:$0xff]
        %v1873 = vld [vmem:[%s409 + $0x160] sm:$0xff]
        %v1874 = vld [vmem:[%s409 + $0x168] sm:$0xff]
        %v1875 = vld [vmem:[%s409 + $0x170] sm:$0xff]
        %v1876 = vld [vmem:[%s409 + $0x178] sm:$0xff]
        %v1877 = vld [vmem:[%s409 + $0x180] sm:$0xff]
        %v1878 = vld [vmem:[%s409 + $0x188] sm:$0xff]
        %v1879 = vld [vmem:[%s409 + $0x190] sm:$0xff]
        %v1880 = vld [vmem:[%s409 + $0x198] sm:$0xff]
        %v1881 = vld [vmem:[%s409 + $0x1a0] sm:$0xff]
        %v1882 = vld [vmem:[%s409 + $0x1a8] sm:$0xff]
        %v1883 = vld [vmem:[%s409 + $0x1b0] sm:$0xff]
        %v1884 = vld [vmem:[%s409 + $0x1b8] sm:$0xff]
        %v1885 = vld [vmem:[%s409 + $0x1c0] sm:$0xff]
        %v1886 = vld [vmem:[%s409 + $0x1c8] sm:$0xff]
        %v1887 = vld [vmem:[%s409 + $0x1d0] sm:$0xff]
        %v1888 = vld [vmem:[%s409 + $0x1d8] sm:$0xff]
        %v1889 = vld [vmem:[%s409 + $0x1e0] sm:$0xff]
        %v1890 = vld [vmem:[%s409 + $0x1e8] sm:$0xff]
        %v1891 = vld [vmem:[%s409 + $0x1f0] sm:$0xff]
        %v1892 = vld [vmem:[%s409 + $0x1f8] sm:$0xff]
        %v1893 = vld [vmem:[#allocation4] sm:$0xff]
        %v1894 = vld [vmem:[#allocation4 + $0x8] sm:$0xff]
        %v1895 = vld [vmem:[#allocation4 + $0x10] sm:$0xff]
        %v1896 = vld [vmem:[#allocation4 + $0x18] sm:$0xff]
        %v1897 = vld [vmem:[#allocation4 + $0x20] sm:$0xff]
        %v1898 = vld [vmem:[#allocation4 + $0x28] sm:$0xff]
        %v1899 = vld [vmem:[#allocation4 + $0x30] sm:$0xff]
        %v1900 = vld [vmem:[#allocation4 + $0x38] sm:$0xff]
        %v1901 = vld [vmem:[#allocation4 + $0x40] sm:$0xff]
        %v1902 = vld [vmem:[#allocation4 + $0x48] sm:$0xff]
        %v1903 = vld [vmem:[#allocation4 + $0x50] sm:$0xff]
        %v1904 = vld [vmem:[#allocation4 + $0x58] sm:$0xff]
        %v1905 = vld [vmem:[#allocation4 + $0x60] sm:$0xff]
        %v1906 = vld [vmem:[#allocation4 + $0x68] sm:$0xff]
        %v1907 = vld [vmem:[#allocation4 + $0x70] sm:$0xff]
        %v1908 = vld [vmem:[#allocation4 + $0x78] sm:$0xff]
        %v1909 = vld [vmem:[#allocation4 + $0x80] sm:$0xff]
        %v1910 = vld [vmem:[#allocation4 + $0x88] sm:$0xff]
        %v1911 = vld [vmem:[#allocation4 + $0x90] sm:$0xff]
        %v1912 = vld [vmem:[#allocation4 + $0x98] sm:$0xff]
        %v1913 = vld [vmem:[#allocation4 + $0xa0] sm:$0xff]
        %v1914 = vld [vmem:[#allocation4 + $0xa8] sm:$0xff]
        %v1915 = vld [vmem:[#allocation4 + $0xb0] sm:$0xff]
        %v1916 = vld [vmem:[#allocation4 + $0xb8] sm:$0xff]
        %v1917 = vld [vmem:[#allocation4 + $0xc0] sm:$0xff]
        %v1918 = vld [vmem:[#allocation4 + $0xc8] sm:$0xff]
        %v1919 = vld [vmem:[#allocation4 + $0xd0] sm:$0xff]
        %v1920 = vld [vmem:[#allocation4 + $0xd8] sm:$0xff]
        %v1921 = vld [vmem:[#allocation4 + $0xe0] sm:$0xff]
        %v1922 = vld [vmem:[#allocation4 + $0xe8] sm:$0xff]
        %v1923 = vld [vmem:[#allocation4 + $0xf0] sm:$0xff]
        %v1924 = vld [vmem:[#allocation4 + $0xf8] sm:$0xff]
        %v1925 = vld [vmem:[#allocation4 + $0x100] sm:$0xff]
        %v1926 = vld [vmem:[#allocation4 + $0x108] sm:$0xff]
        %v1927 = vld [vmem:[#allocation4 + $0x110] sm:$0xff]
        %v1928 = vld [vmem:[#allocation4 + $0x118] sm:$0xff]
        %v1929 = vld [vmem:[#allocation4 + $0x120] sm:$0xff]
        %v1930 = vld [vmem:[#allocation4 + $0x128] sm:$0xff]
        %v1931 = vld [vmem:[#allocation4 + $0x130] sm:$0xff]
        %v1932 = vld [vmem:[#allocation4 + $0x138] sm:$0xff]
        %v1933 = vld [vmem:[#allocation4 + $0x140] sm:$0xff]
        %v1934 = vld [vmem:[#allocation4 + $0x148] sm:$0xff]
        %v1935 = vld [vmem:[#allocation4 + $0x150] sm:$0xff]
        %v1936 = vld [vmem:[#allocation4 + $0x158] sm:$0xff]
        %v1937 = vld [vmem:[#allocation4 + $0x160] sm:$0xff]
        %v1938 = vld [vmem:[#allocation4 + $0x168] sm:$0xff]
        %v1939 = vld [vmem:[#allocation4 + $0x170] sm:$0xff]
        %v1940 = vld [vmem:[#allocation4 + $0x178] sm:$0xff]
        %v1941 = vld [vmem:[#allocation4 + $0x180] sm:$0xff]
        %v1942 = vld [vmem:[#allocation4 + $0x188] sm:$0xff]
        %v1943 = vld [vmem:[#allocation4 + $0x190] sm:$0xff]
        %v1944 = vld [vmem:[#allocation4 + $0x198] sm:$0xff]
        %v1945 = vld [vmem:[#allocation4 + $0x1a0] sm:$0xff]
        %v1946 = vld [vmem:[#allocation4 + $0x1a8] sm:$0xff]
        %v1947 = vld [vmem:[#allocation4 + $0x1b0] sm:$0xff]
        %v1948 = vld [vmem:[#allocation4 + $0x1b8] sm:$0xff]
        %v1949 = vld [vmem:[#allocation4 + $0x1c0] sm:$0xff]
        %v1950 = vld [vmem:[#allocation4 + $0x1c8] sm:$0xff]
        %v1951 = vld [vmem:[#allocation4 + $0x1d0] sm:$0xff]
        %v1952 = vld [vmem:[#allocation4 + $0x1d8] sm:$0xff]
        %v1953 = vld [vmem:[#allocation4 + $0x1e0] sm:$0xff]
        %v1954 = vld [vmem:[#allocation4 + $0x1e8] sm:$0xff]
        %v1955 = vld [vmem:[#allocation4 + $0x1f0] sm:$0xff]
        %v1956 = vld [vmem:[#allocation4 + $0x1f8] sm:$0xff]
        %1957 = vset.pattern.permute.xlu0 0
        %1958 = vperm.xlu0 %1957, %v1829
        %v1959 = vpop.permute.xlu0 %1958
        %1960 = vset.pattern.permute.xlu0 0
        %1961 = vperm.xlu0 %1960, %v1830
        %v1962 = vpop.permute.xlu0 %1961
        %1963 = vset.pattern.permute.xlu0 0
        %1964 = vperm.xlu0 %1963, %v1831
        %v1965 = vpop.permute.xlu0 %1964
        %1966 = vset.pattern.permute.xlu0 0
        %1967 = vperm.xlu0 %1966, %v1832
        %v1968 = vpop.permute.xlu0 %1967
        %1969 = vset.pattern.permute.xlu0 0
        %1970 = vperm.xlu0 %1969, %v1833
        %v1971 = vpop.permute.xlu0 %1970
        %1972 = vset.pattern.permute.xlu0 0
        %1973 = vperm.xlu0 %1972, %v1834
        %v1974 = vpop.permute.xlu0 %1973
        %1975 = vset.pattern.permute.xlu0 0
        %1976 = vperm.xlu0 %1975, %v1835
        %v1977 = vpop.permute.xlu0 %1976
        %1978 = vset.pattern.permute.xlu0 0
        %1979 = vperm.xlu0 %1978, %v1836
        %v1980 = vpop.permute.xlu0 %1979
        %1981 = vset.pattern.permute.xlu0 0
        %1982 = vperm.xlu0 %1981, %v1837
        %v1983 = vpop.permute.xlu0 %1982
        %1984 = vset.pattern.permute.xlu0 0
        %1985 = vperm.xlu0 %1984, %v1838
        %v1986 = vpop.permute.xlu0 %1985
        %1987 = vset.pattern.permute.xlu0 0
        %1988 = vperm.xlu0 %1987, %v1839
        %v1989 = vpop.permute.xlu0 %1988
        %1990 = vset.pattern.permute.xlu0 0
        %1991 = vperm.xlu0 %1990, %v1840
        %v1992 = vpop.permute.xlu0 %1991
        %1993 = vset.pattern.permute.xlu0 0
        %1994 = vperm.xlu0 %1993, %v1841
        %v1995 = vpop.permute.xlu0 %1994
        %1996 = vset.pattern.permute.xlu0 0
        %1997 = vperm.xlu0 %1996, %v1842
        %v1998 = vpop.permute.xlu0 %1997
        %1999 = vset.pattern.permute.xlu0 0
        %2000 = vperm.xlu0 %1999, %v1843
        %v2001 = vpop.permute.xlu0 %2000
        %2002 = vset.pattern.permute.xlu0 0
        %2003 = vperm.xlu0 %2002, %v1844
        %v2004 = vpop.permute.xlu0 %2003
        %2005 = vset.pattern.permute.xlu0 0
        %2006 = vperm.xlu0 %2005, %v1845
        %v2007 = vpop.permute.xlu0 %2006
        %2008 = vset.pattern.permute.xlu0 0
        %2009 = vperm.xlu0 %2008, %v1846
        %v2010 = vpop.permute.xlu0 %2009
        %2011 = vset.pattern.permute.xlu0 0
        %2012 = vperm.xlu0 %2011, %v1847
        %v2013 = vpop.permute.xlu0 %2012
        %2014 = vset.pattern.permute.xlu0 0
        %2015 = vperm.xlu0 %2014, %v1848
        %v2016 = vpop.permute.xlu0 %2015
        %2017 = vset.pattern.permute.xlu0 0
        %2018 = vperm.xlu0 %2017, %v1849
        %v2019 = vpop.permute.xlu0 %2018
        %2020 = vset.pattern.permute.xlu0 0
        %2021 = vperm.xlu0 %2020, %v1850
        %v2022 = vpop.permute.xlu0 %2021
        %2023 = vset.pattern.permute.xlu0 0
        %2024 = vperm.xlu0 %2023, %v1851
        %v2025 = vpop.permute.xlu0 %2024
        %2026 = vset.pattern.permute.xlu0 0
        %2027 = vperm.xlu0 %2026, %v1852
        %v2028 = vpop.permute.xlu0 %2027
        %2029 = vset.pattern.permute.xlu0 0
        %2030 = vperm.xlu0 %2029, %v1853
        %v2031 = vpop.permute.xlu0 %2030
        %2032 = vset.pattern.permute.xlu0 0
        %2033 = vperm.xlu0 %2032, %v1854
        %v2034 = vpop.permute.xlu0 %2033
        %2035 = vset.pattern.permute.xlu0 0
        %2036 = vperm.xlu0 %2035, %v1855
        %v2037 = vpop.permute.xlu0 %2036
        %2038 = vset.pattern.permute.xlu0 0
        %2039 = vperm.xlu0 %2038, %v1856
        %v2040 = vpop.permute.xlu0 %2039
        %2041 = vset.pattern.permute.xlu0 0
        %2042 = vperm.xlu0 %2041, %v1857
        %v2043 = vpop.permute.xlu0 %2042
        %2044 = vset.pattern.permute.xlu0 0
        %2045 = vperm.xlu0 %2044, %v1858
        %v2046 = vpop.permute.xlu0 %2045
        %2047 = vset.pattern.permute.xlu0 0
        %2048 = vperm.xlu0 %2047, %v1859
        %v2049 = vpop.permute.xlu0 %2048
        %2050 = vset.pattern.permute.xlu0 0
        %2051 = vperm.xlu0 %2050, %v1860
        %v2052 = vpop.permute.xlu0 %2051
        %2053 = vset.pattern.permute.xlu0 0
        %2054 = vperm.xlu0 %2053, %v1861
        %v2055 = vpop.permute.xlu0 %2054
        %2056 = vset.pattern.permute.xlu0 0
        %2057 = vperm.xlu0 %2056, %v1862
        %v2058 = vpop.permute.xlu0 %2057
        %2059 = vset.pattern.permute.xlu0 0
        %2060 = vperm.xlu0 %2059, %v1863
        %v2061 = vpop.permute.xlu0 %2060
        %2062 = vset.pattern.permute.xlu0 0
        %2063 = vperm.xlu0 %2062, %v1864
        %v2064 = vpop.permute.xlu0 %2063
        %2065 = vset.pattern.permute.xlu0 0
        %2066 = vperm.xlu0 %2065, %v1865
        %v2067 = vpop.permute.xlu0 %2066
        %2068 = vset.pattern.permute.xlu0 0
        %2069 = vperm.xlu0 %2068, %v1866
        %v2070 = vpop.permute.xlu0 %2069
        %2071 = vset.pattern.permute.xlu0 0
        %2072 = vperm.xlu0 %2071, %v1867
        %v2073 = vpop.permute.xlu0 %2072
        %2074 = vset.pattern.permute.xlu0 0
        %2075 = vperm.xlu0 %2074, %v1868
        %v2076 = vpop.permute.xlu0 %2075
        %2077 = vset.pattern.permute.xlu0 0
        %2078 = vperm.xlu0 %2077, %v1869
        %v2079 = vpop.permute.xlu0 %2078
        %2080 = vset.pattern.permute.xlu0 0
        %2081 = vperm.xlu0 %2080, %v1870
        %v2082 = vpop.permute.xlu0 %2081
        %2083 = vset.pattern.permute.xlu0 0
        %2084 = vperm.xlu0 %2083, %v1871
        %v2085 = vpop.permute.xlu0 %2084
        %2086 = vset.pattern.permute.xlu0 0
        %2087 = vperm.xlu0 %2086, %v1872
        %v2088 = vpop.permute.xlu0 %2087
        %2089 = vset.pattern.permute.xlu0 0
        %2090 = vperm.xlu0 %2089, %v1873
        %v2091 = vpop.permute.xlu0 %2090
        %2092 = vset.pattern.permute.xlu0 0
        %2093 = vperm.xlu0 %2092, %v1874
        %v2094 = vpop.permute.xlu0 %2093
        %2095 = vset.pattern.permute.xlu0 0
        %2096 = vperm.xlu0 %2095, %v1875
        %v2097 = vpop.permute.xlu0 %2096
        %2098 = vset.pattern.permute.xlu0 0
        %2099 = vperm.xlu0 %2098, %v1876
        %v2100 = vpop.permute.xlu0 %2099
        %2101 = vset.pattern.permute.xlu0 0
        %2102 = vperm.xlu0 %2101, %v1877
        %v2103 = vpop.permute.xlu0 %2102
        %2104 = vset.pattern.permute.xlu0 0
        %2105 = vperm.xlu0 %2104, %v1878
        %v2106 = vpop.permute.xlu0 %2105
        %2107 = vset.pattern.permute.xlu0 0
        %2108 = vperm.xlu0 %2107, %v1879
        %v2109 = vpop.permute.xlu0 %2108
        %2110 = vset.pattern.permute.xlu0 0
        %2111 = vperm.xlu0 %2110, %v1880
        %v2112 = vpop.permute.xlu0 %2111
        %2113 = vset.pattern.permute.xlu0 0
        %2114 = vperm.xlu0 %2113, %v1881
        %v2115 = vpop.permute.xlu0 %2114
        %2116 = vset.pattern.permute.xlu0 0
        %2117 = vperm.xlu0 %2116, %v1882
        %v2118 = vpop.permute.xlu0 %2117
        %2119 = vset.pattern.permute.xlu0 0
        %2120 = vperm.xlu0 %2119, %v1883
        %v2121 = vpop.permute.xlu0 %2120
        %2122 = vset.pattern.permute.xlu0 0
        %2123 = vperm.xlu0 %2122, %v1884
        %v2124 = vpop.permute.xlu0 %2123
        %2125 = vset.pattern.permute.xlu0 0
        %2126 = vperm.xlu0 %2125, %v1885
        %v2127 = vpop.permute.xlu0 %2126
        %2128 = vset.pattern.permute.xlu0 0
        %2129 = vperm.xlu0 %2128, %v1886
        %v2130 = vpop.permute.xlu0 %2129
        %2131 = vset.pattern.permute.xlu0 0
        %2132 = vperm.xlu0 %2131, %v1887
        %v2133 = vpop.permute.xlu0 %2132
        %2134 = vset.pattern.permute.xlu0 0
        %2135 = vperm.xlu0 %2134, %v1888
        %v2136 = vpop.permute.xlu0 %2135
        %2137 = vset.pattern.permute.xlu0 0
        %2138 = vperm.xlu0 %2137, %v1889
        %v2139 = vpop.permute.xlu0 %2138
        %2140 = vset.pattern.permute.xlu0 0
        %2141 = vperm.xlu0 %2140, %v1890
        %v2142 = vpop.permute.xlu0 %2141
        %2143 = vset.pattern.permute.xlu0 0
        %2144 = vperm.xlu0 %2143, %v1891
        %v2145 = vpop.permute.xlu0 %2144
        %2146 = vset.pattern.permute.xlu0 0
        %2147 = vperm.xlu0 %2146, %v1892
        %v2148 = vpop.permute.xlu0 %2147
        %vm2149 = vcmp.eq.s32.totalorder %v1825, %v1959
        %vm2150 = vcmp.eq.s32.totalorder %v1826, %v1959
        %vm2151 = vcmp.eq.s32.totalorder %v1827, %v1959
        %vm2152 = vcmp.eq.s32.totalorder %v1828, %v1959
        %vm2153 = vcmp.eq.s32.totalorder %v1825, %v1962
        %vm2154 = vcmp.eq.s32.totalorder %v1826, %v1962
        %vm2155 = vcmp.eq.s32.totalorder %v1827, %v1962
        %vm2156 = vcmp.eq.s32.totalorder %v1828, %v1962
        %vm2157 = vcmp.eq.s32.totalorder %v1825, %v1965
        %vm2158 = vcmp.eq.s32.totalorder %v1826, %v1965
        %vm2159 = vcmp.eq.s32.totalorder %v1827, %v1965
        %vm2160 = vcmp.eq.s32.totalorder %v1828, %v1965
        %vm2161 = vcmp.eq.s32.totalorder %v1825, %v1968
        %vm2162 = vcmp.eq.s32.totalorder %v1826, %v1968
        %vm2163 = vcmp.eq.s32.totalorder %v1827, %v1968
        %vm2164 = vcmp.eq.s32.totalorder %v1828, %v1968
        %vm2165 = vcmp.eq.s32.totalorder %v1825, %v1971
        %vm2166 = vcmp.eq.s32.totalorder %v1826, %v1971
        %vm2167 = vcmp.eq.s32.totalorder %v1827, %v1971
        %vm2168 = vcmp.eq.s32.totalorder %v1828, %v1971
        %vm2169 = vcmp.eq.s32.totalorder %v1825, %v1974
        %vm2170 = vcmp.eq.s32.totalorder %v1826, %v1974
        %vm2171 = vcmp.eq.s32.totalorder %v1827, %v1974
        %vm2172 = vcmp.eq.s32.totalorder %v1828, %v1974
        %vm2173 = vcmp.eq.s32.totalorder %v1825, %v1977
        %vm2174 = vcmp.eq.s32.totalorder %v1826, %v1977
        %vm2175 = vcmp.eq.s32.totalorder %v1827, %v1977
        %vm2176 = vcmp.eq.s32.totalorder %v1828, %v1977
        %vm2177 = vcmp.eq.s32.totalorder %v1825, %v1980
        %vm2178 = vcmp.eq.s32.totalorder %v1826, %v1980
        %vm2179 = vcmp.eq.s32.totalorder %v1827, %v1980
        %vm2180 = vcmp.eq.s32.totalorder %v1828, %v1980
        %vm2181 = vcmp.eq.s32.totalorder %v1825, %v1983
        %vm2182 = vcmp.eq.s32.totalorder %v1826, %v1983
        %vm2183 = vcmp.eq.s32.totalorder %v1827, %v1983
        %vm2184 = vcmp.eq.s32.totalorder %v1828, %v1983
        %vm2185 = vcmp.eq.s32.totalorder %v1825, %v1986
        %vm2186 = vcmp.eq.s32.totalorder %v1826, %v1986
        %vm2187 = vcmp.eq.s32.totalorder %v1827, %v1986
        %vm2188 = vcmp.eq.s32.totalorder %v1828, %v1986
        %vm2189 = vcmp.eq.s32.totalorder %v1825, %v1989
        %vm2190 = vcmp.eq.s32.totalorder %v1826, %v1989
        %vm2191 = vcmp.eq.s32.totalorder %v1827, %v1989
        %vm2192 = vcmp.eq.s32.totalorder %v1828, %v1989
        %vm2193 = vcmp.eq.s32.totalorder %v1825, %v1992
        %vm2194 = vcmp.eq.s32.totalorder %v1826, %v1992
        %vm2195 = vcmp.eq.s32.totalorder %v1827, %v1992
        %vm2196 = vcmp.eq.s32.totalorder %v1828, %v1992
        %vm2197 = vcmp.eq.s32.totalorder %v1825, %v1995
        %vm2198 = vcmp.eq.s32.totalorder %v1826, %v1995
        %vm2199 = vcmp.eq.s32.totalorder %v1827, %v1995
        %vm2200 = vcmp.eq.s32.totalorder %v1828, %v1995
        %vm2201 = vcmp.eq.s32.totalorder %v1825, %v1998
        %vm2202 = vcmp.eq.s32.totalorder %v1826, %v1998
        %vm2203 = vcmp.eq.s32.totalorder %v1827, %v1998
        %vm2204 = vcmp.eq.s32.totalorder %v1828, %v1998
        %vm2205 = vcmp.eq.s32.totalorder %v1825, %v2001
        %vm2206 = vcmp.eq.s32.totalorder %v1826, %v2001
        %vm2207 = vcmp.eq.s32.totalorder %v1827, %v2001
        %vm2208 = vcmp.eq.s32.totalorder %v1828, %v2001
        %vm2209 = vcmp.eq.s32.totalorder %v1825, %v2004
        %vm2210 = vcmp.eq.s32.totalorder %v1826, %v2004
        %vm2211 = vcmp.eq.s32.totalorder %v1827, %v2004
        %vm2212 = vcmp.eq.s32.totalorder %v1828, %v2004
        %vm2213 = vcmp.eq.s32.totalorder %v1825, %v2007
        %vm2214 = vcmp.eq.s32.totalorder %v1826, %v2007
        %vm2215 = vcmp.eq.s32.totalorder %v1827, %v2007
        %vm2216 = vcmp.eq.s32.totalorder %v1828, %v2007
        %vm2217 = vcmp.eq.s32.totalorder %v1825, %v2010
        %vm2218 = vcmp.eq.s32.totalorder %v1826, %v2010
        %vm2219 = vcmp.eq.s32.totalorder %v1827, %v2010
        %vm2220 = vcmp.eq.s32.totalorder %v1828, %v2010
        %vm2221 = vcmp.eq.s32.totalorder %v1825, %v2013
        %vm2222 = vcmp.eq.s32.totalorder %v1826, %v2013
        %vm2223 = vcmp.eq.s32.totalorder %v1827, %v2013
        %vm2224 = vcmp.eq.s32.totalorder %v1828, %v2013
        %vm2225 = vcmp.eq.s32.totalorder %v1825, %v2016
        %vm2226 = vcmp.eq.s32.totalorder %v1826, %v2016
        %vm2227 = vcmp.eq.s32.totalorder %v1827, %v2016
        %vm2228 = vcmp.eq.s32.totalorder %v1828, %v2016
        %vm2229 = vcmp.eq.s32.totalorder %v1825, %v2019
        %vm2230 = vcmp.eq.s32.totalorder %v1826, %v2019
        %vm2231 = vcmp.eq.s32.totalorder %v1827, %v2019
        %vm2232 = vcmp.eq.s32.totalorder %v1828, %v2019
        %vm2233 = vcmp.eq.s32.totalorder %v1825, %v2022
        %vm2234 = vcmp.eq.s32.totalorder %v1826, %v2022
        %vm2235 = vcmp.eq.s32.totalorder %v1827, %v2022
        %vm2236 = vcmp.eq.s32.totalorder %v1828, %v2022
        %vm2237 = vcmp.eq.s32.totalorder %v1825, %v2025
        %vm2238 = vcmp.eq.s32.totalorder %v1826, %v2025
        %vm2239 = vcmp.eq.s32.totalorder %v1827, %v2025
        %vm2240 = vcmp.eq.s32.totalorder %v1828, %v2025
        %vm2241 = vcmp.eq.s32.totalorder %v1825, %v2028
        %vm2242 = vcmp.eq.s32.totalorder %v1826, %v2028
        %vm2243 = vcmp.eq.s32.totalorder %v1827, %v2028
        %vm2244 = vcmp.eq.s32.totalorder %v1828, %v2028
        %vm2245 = vcmp.eq.s32.totalorder %v1825, %v2031
        %vm2246 = vcmp.eq.s32.totalorder %v1826, %v2031
        %vm2247 = vcmp.eq.s32.totalorder %v1827, %v2031
        %vm2248 = vcmp.eq.s32.totalorder %v1828, %v2031
        %vm2249 = vcmp.eq.s32.totalorder %v1825, %v2034
        %vm2250 = vcmp.eq.s32.totalorder %v1826, %v2034
        %vm2251 = vcmp.eq.s32.totalorder %v1827, %v2034
        %vm2252 = vcmp.eq.s32.totalorder %v1828, %v2034
        %vm2253 = vcmp.eq.s32.totalorder %v1825, %v2037
        %vm2254 = vcmp.eq.s32.totalorder %v1826, %v2037
        %vm2255 = vcmp.eq.s32.totalorder %v1827, %v2037
        %vm2256 = vcmp.eq.s32.totalorder %v1828, %v2037
        %vm2257 = vcmp.eq.s32.totalorder %v1825, %v2040
        %vm2258 = vcmp.eq.s32.totalorder %v1826, %v2040
        %vm2259 = vcmp.eq.s32.totalorder %v1827, %v2040
        %vm2260 = vcmp.eq.s32.totalorder %v1828, %v2040
        %vm2261 = vcmp.eq.s32.totalorder %v1825, %v2043
        %vm2262 = vcmp.eq.s32.totalorder %v1826, %v2043
        %vm2263 = vcmp.eq.s32.totalorder %v1827, %v2043
        %vm2264 = vcmp.eq.s32.totalorder %v1828, %v2043
        %vm2265 = vcmp.eq.s32.totalorder %v1825, %v2046
        %vm2266 = vcmp.eq.s32.totalorder %v1826, %v2046
        %vm2267 = vcmp.eq.s32.totalorder %v1827, %v2046
        %vm2268 = vcmp.eq.s32.totalorder %v1828, %v2046
        %vm2269 = vcmp.eq.s32.totalorder %v1825, %v2049
        %vm2270 = vcmp.eq.s32.totalorder %v1826, %v2049
        %vm2271 = vcmp.eq.s32.totalorder %v1827, %v2049
        %vm2272 = vcmp.eq.s32.totalorder %v1828, %v2049
        %vm2273 = vcmp.eq.s32.totalorder %v1825, %v2052
        %vm2274 = vcmp.eq.s32.totalorder %v1826, %v2052
        %vm2275 = vcmp.eq.s32.totalorder %v1827, %v2052
        %vm2276 = vcmp.eq.s32.totalorder %v1828, %v2052
        %vm2277 = vcmp.eq.s32.totalorder %v1825, %v2055
        %vm2278 = vcmp.eq.s32.totalorder %v1826, %v2055
        %vm2279 = vcmp.eq.s32.totalorder %v1827, %v2055
        %vm2280 = vcmp.eq.s32.totalorder %v1828, %v2055
        %vm2281 = vcmp.eq.s32.totalorder %v1825, %v2058
        %vm2282 = vcmp.eq.s32.totalorder %v1826, %v2058
        %vm2283 = vcmp.eq.s32.totalorder %v1827, %v2058
        %vm2284 = vcmp.eq.s32.totalorder %v1828, %v2058
        %vm2285 = vcmp.eq.s32.totalorder %v1825, %v2061
        %vm2286 = vcmp.eq.s32.totalorder %v1826, %v2061
        %vm2287 = vcmp.eq.s32.totalorder %v1827, %v2061
        %vm2288 = vcmp.eq.s32.totalorder %v1828, %v2061
        %vm2289 = vcmp.eq.s32.totalorder %v1825, %v2064
        %vm2290 = vcmp.eq.s32.totalorder %v1826, %v2064
        %vm2291 = vcmp.eq.s32.totalorder %v1827, %v2064
        %vm2292 = vcmp.eq.s32.totalorder %v1828, %v2064
        %vm2293 = vcmp.eq.s32.totalorder %v1825, %v2067
        %vm2294 = vcmp.eq.s32.totalorder %v1826, %v2067
        %vm2295 = vcmp.eq.s32.totalorder %v1827, %v2067
        %vm2296 = vcmp.eq.s32.totalorder %v1828, %v2067
        %vm2297 = vcmp.eq.s32.totalorder %v1825, %v2070
        %vm2298 = vcmp.eq.s32.totalorder %v1826, %v2070
        %vm2299 = vcmp.eq.s32.totalorder %v1827, %v2070
        %vm2300 = vcmp.eq.s32.totalorder %v1828, %v2070
        %vm2301 = vcmp.eq.s32.totalorder %v1825, %v2073
        %vm2302 = vcmp.eq.s32.totalorder %v1826, %v2073
        %vm2303 = vcmp.eq.s32.totalorder %v1827, %v2073
        %vm2304 = vcmp.eq.s32.totalorder %v1828, %v2073
        %vm2305 = vcmp.eq.s32.totalorder %v1825, %v2076
        %vm2306 = vcmp.eq.s32.totalorder %v1826, %v2076
        %vm2307 = vcmp.eq.s32.totalorder %v1827, %v2076
        %vm2308 = vcmp.eq.s32.totalorder %v1828, %v2076
        %vm2309 = vcmp.eq.s32.totalorder %v1825, %v2079
        %vm2310 = vcmp.eq.s32.totalorder %v1826, %v2079
        %vm2311 = vcmp.eq.s32.totalorder %v1827, %v2079
        %vm2312 = vcmp.eq.s32.totalorder %v1828, %v2079
        %vm2313 = vcmp.eq.s32.totalorder %v1825, %v2082
        %vm2314 = vcmp.eq.s32.totalorder %v1826, %v2082
        %vm2315 = vcmp.eq.s32.totalorder %v1827, %v2082
        %vm2316 = vcmp.eq.s32.totalorder %v1828, %v2082
        %vm2317 = vcmp.eq.s32.totalorder %v1825, %v2085
        %vm2318 = vcmp.eq.s32.totalorder %v1826, %v2085
        %vm2319 = vcmp.eq.s32.totalorder %v1827, %v2085
        %vm2320 = vcmp.eq.s32.totalorder %v1828, %v2085
        %vm2321 = vcmp.eq.s32.totalorder %v1825, %v2088
        %vm2322 = vcmp.eq.s32.totalorder %v1826, %v2088
        %vm2323 = vcmp.eq.s32.totalorder %v1827, %v2088
        %vm2324 = vcmp.eq.s32.totalorder %v1828, %v2088
        %vm2325 = vcmp.eq.s32.totalorder %v1825, %v2091
        %vm2326 = vcmp.eq.s32.totalorder %v1826, %v2091
        %vm2327 = vcmp.eq.s32.totalorder %v1827, %v2091
        %vm2328 = vcmp.eq.s32.totalorder %v1828, %v2091
        %vm2329 = vcmp.eq.s32.totalorder %v1825, %v2094
        %vm2330 = vcmp.eq.s32.totalorder %v1826, %v2094
        %vm2331 = vcmp.eq.s32.totalorder %v1827, %v2094
        %vm2332 = vcmp.eq.s32.totalorder %v1828, %v2094
        %vm2333 = vcmp.eq.s32.totalorder %v1825, %v2097
        %vm2334 = vcmp.eq.s32.totalorder %v1826, %v2097
        %vm2335 = vcmp.eq.s32.totalorder %v1827, %v2097
        %vm2336 = vcmp.eq.s32.totalorder %v1828, %v2097
        %vm2337 = vcmp.eq.s32.totalorder %v1825, %v2100
        %vm2338 = vcmp.eq.s32.totalorder %v1826, %v2100
        %vm2339 = vcmp.eq.s32.totalorder %v1827, %v2100
        %vm2340 = vcmp.eq.s32.totalorder %v1828, %v2100
        %vm2341 = vcmp.eq.s32.totalorder %v1825, %v2103
        %vm2342 = vcmp.eq.s32.totalorder %v1826, %v2103
        %vm2343 = vcmp.eq.s32.totalorder %v1827, %v2103
        %vm2344 = vcmp.eq.s32.totalorder %v1828, %v2103
        %vm2345 = vcmp.eq.s32.totalorder %v1825, %v2106
        %vm2346 = vcmp.eq.s32.totalorder %v1826, %v2106
        %vm2347 = vcmp.eq.s32.totalorder %v1827, %v2106
        %vm2348 = vcmp.eq.s32.totalorder %v1828, %v2106
        %vm2349 = vcmp.eq.s32.totalorder %v1825, %v2109
        %vm2350 = vcmp.eq.s32.totalorder %v1826, %v2109
        %vm2351 = vcmp.eq.s32.totalorder %v1827, %v2109
        %vm2352 = vcmp.eq.s32.totalorder %v1828, %v2109
        %vm2353 = vcmp.eq.s32.totalorder %v1825, %v2112
        %vm2354 = vcmp.eq.s32.totalorder %v1826, %v2112
        %vm2355 = vcmp.eq.s32.totalorder %v1827, %v2112
        %vm2356 = vcmp.eq.s32.totalorder %v1828, %v2112
        %vm2357 = vcmp.eq.s32.totalorder %v1825, %v2115
        %vm2358 = vcmp.eq.s32.totalorder %v1826, %v2115
        %vm2359 = vcmp.eq.s32.totalorder %v1827, %v2115
        %vm2360 = vcmp.eq.s32.totalorder %v1828, %v2115
        %vm2361 = vcmp.eq.s32.totalorder %v1825, %v2118
        %vm2362 = vcmp.eq.s32.totalorder %v1826, %v2118
        %vm2363 = vcmp.eq.s32.totalorder %v1827, %v2118
        %vm2364 = vcmp.eq.s32.totalorder %v1828, %v2118
        %vm2365 = vcmp.eq.s32.totalorder %v1825, %v2121
        %vm2366 = vcmp.eq.s32.totalorder %v1826, %v2121
        %vm2367 = vcmp.eq.s32.totalorder %v1827, %v2121
        %vm2368 = vcmp.eq.s32.totalorder %v1828, %v2121
        %vm2369 = vcmp.eq.s32.totalorder %v1825, %v2124
        %vm2370 = vcmp.eq.s32.totalorder %v1826, %v2124
        %vm2371 = vcmp.eq.s32.totalorder %v1827, %v2124
        %vm2372 = vcmp.eq.s32.totalorder %v1828, %v2124
        %vm2373 = vcmp.eq.s32.totalorder %v1825, %v2127
        %vm2374 = vcmp.eq.s32.totalorder %v1826, %v2127
        %vm2375 = vcmp.eq.s32.totalorder %v1827, %v2127
        %vm2376 = vcmp.eq.s32.totalorder %v1828, %v2127
        %vm2377 = vcmp.eq.s32.totalorder %v1825, %v2130
        %vm2378 = vcmp.eq.s32.totalorder %v1826, %v2130
        %vm2379 = vcmp.eq.s32.totalorder %v1827, %v2130
        %vm2380 = vcmp.eq.s32.totalorder %v1828, %v2130
        %vm2381 = vcmp.eq.s32.totalorder %v1825, %v2133
        %vm2382 = vcmp.eq.s32.totalorder %v1826, %v2133
        %vm2383 = vcmp.eq.s32.totalorder %v1827, %v2133
        %vm2384 = vcmp.eq.s32.totalorder %v1828, %v2133
        %vm2385 = vcmp.eq.s32.totalorder %v1825, %v2136
        %vm2386 = vcmp.eq.s32.totalorder %v1826, %v2136
        %vm2387 = vcmp.eq.s32.totalorder %v1827, %v2136
        %vm2388 = vcmp.eq.s32.totalorder %v1828, %v2136
        %vm2389 = vcmp.eq.s32.totalorder %v1825, %v2139
        %vm2390 = vcmp.eq.s32.totalorder %v1826, %v2139
        %vm2391 = vcmp.eq.s32.totalorder %v1827, %v2139
        %vm2392 = vcmp.eq.s32.totalorder %v1828, %v2139
        %vm2393 = vcmp.eq.s32.totalorder %v1825, %v2142
        %vm2394 = vcmp.eq.s32.totalorder %v1826, %v2142
        %vm2395 = vcmp.eq.s32.totalorder %v1827, %v2142
        %vm2396 = vcmp.eq.s32.totalorder %v1828, %v2142
        %vm2397 = vcmp.eq.s32.totalorder %v1825, %v2145
        %vm2398 = vcmp.eq.s32.totalorder %v1826, %v2145
        %vm2399 = vcmp.eq.s32.totalorder %v1827, %v2145
        %vm2400 = vcmp.eq.s32.totalorder %v1828, %v2145
        %vm2401 = vcmp.eq.s32.totalorder %v1825, %v2148
        %vm2402 = vcmp.eq.s32.totalorder %v1826, %v2148
        %vm2403 = vcmp.eq.s32.totalorder %v1827, %v2148
        %vm2404 = vcmp.eq.s32.totalorder %v1828, %v2148
        %v2405 = vsel %vm2149, %v1152, 0.0
        %v2406 = vsel %vm2150, %v1321, 0.0
        %v2407 = vsel %vm2151, %v1490, 0.0
        %v2408 = vsel %vm2152, %v1659, 0.0
        %v2409 = vsel %vm2153, %v1154, 0.0
        %v2410 = vsel %vm2154, %v1323, 0.0
        %v2411 = vsel %vm2155, %v1492, 0.0
        %v2412 = vsel %vm2156, %v1661, 0.0
        %v2413 = vsel %vm2157, %v1157, 0.0
        %v2414 = vsel %vm2158, %v1326, 0.0
        %v2415 = vsel %vm2159, %v1495, 0.0
        %v2416 = vsel %vm2160, %v1664, 0.0
        %v2417 = vsel %vm2161, %v1159, 0.0
        %v2418 = vsel %vm2162, %v1328, 0.0
        %v2419 = vsel %vm2163, %v1497, 0.0
        %v2420 = vsel %vm2164, %v1666, 0.0
        %v2421 = vsel %vm2165, %v1162, 0.0
        %v2422 = vsel %vm2166, %v1331, 0.0
        %v2423 = vsel %vm2167, %v1500, 0.0
        %v2424 = vsel %vm2168, %v1669, 0.0
        %v2425 = vsel %vm2169, %v1164, 0.0
        %v2426 = vsel %vm2170, %v1333, 0.0
        %v2427 = vsel %vm2171, %v1502, 0.0
        %v2428 = vsel %vm2172, %v1671, 0.0
        %v2429 = vsel %vm2173, %v1167, 0.0
        %v2430 = vsel %vm2174, %v1336, 0.0
        %v2431 = vsel %vm2175, %v1505, 0.0
        %v2432 = vsel %vm2176, %v1674, 0.0
        %v2433 = vsel %vm2177, %v1169, 0.0
        %v2434 = vsel %vm2178, %v1338, 0.0
        %v2435 = vsel %vm2179, %v1507, 0.0
        %v2436 = vsel %vm2180, %v1676, 0.0
        %v2437 = vsel %vm2181, %v1172, 0.0
        %v2438 = vsel %vm2182, %v1341, 0.0
        %v2439 = vsel %vm2183, %v1510, 0.0
        %v2440 = vsel %vm2184, %v1679, 0.0
        %v2441 = vsel %vm2185, %v1174, 0.0
        %v2442 = vsel %vm2186, %v1343, 0.0
        %v2443 = vsel %vm2187, %v1512, 0.0
        %v2444 = vsel %vm2188, %v1681, 0.0
        %v2445 = vsel %vm2189, %v1177, 0.0
        %v2446 = vsel %vm2190, %v1346, 0.0
        %v2447 = vsel %vm2191, %v1515, 0.0
        %v2448 = vsel %vm2192, %v1684, 0.0
        %v2449 = vsel %vm2193, %v1179, 0.0
        %v2450 = vsel %vm2194, %v1348, 0.0
        %v2451 = vsel %vm2195, %v1517, 0.0
        %v2452 = vsel %vm2196, %v1686, 0.0
        %v2453 = vsel %vm2197, %v1182, 0.0
        %v2454 = vsel %vm2198, %v1351, 0.0
        %v2455 = vsel %vm2199, %v1520, 0.0
        %v2456 = vsel %vm2200, %v1689, 0.0
        %v2457 = vsel %vm2201, %v1184, 0.0
        %v2458 = vsel %vm2202, %v1353, 0.0
        %v2459 = vsel %vm2203, %v1522, 0.0
        %v2460 = vsel %vm2204, %v1691, 0.0
        %v2461 = vsel %vm2205, %v1187, 0.0
        %v2462 = vsel %vm2206, %v1356, 0.0
        %v2463 = vsel %vm2207, %v1525, 0.0
        %v2464 = vsel %vm2208, %v1694, 0.0
        %v2465 = vsel %vm2209, %v1189, 0.0
        %v2466 = vsel %vm2210, %v1358, 0.0
        %v2467 = vsel %vm2211, %v1527, 0.0
        %v2468 = vsel %vm2212, %v1696, 0.0
        %v2469 = vsel %vm2213, %v1192, 0.0
        %v2470 = vsel %vm2214, %v1361, 0.0
        %v2471 = vsel %vm2215, %v1530, 0.0
        %v2472 = vsel %vm2216, %v1699, 0.0
        %v2473 = vsel %vm2217, %v1194, 0.0
        %v2474 = vsel %vm2218, %v1363, 0.0
        %v2475 = vsel %vm2219, %v1532, 0.0
        %v2476 = vsel %vm2220, %v1701, 0.0
        %v2477 = vsel %vm2221, %v1197, 0.0
        %v2478 = vsel %vm2222, %v1366, 0.0
        %v2479 = vsel %vm2223, %v1535, 0.0
        %v2480 = vsel %vm2224, %v1704, 0.0
        %v2481 = vsel %vm2225, %v1199, 0.0
        %v2482 = vsel %vm2226, %v1368, 0.0
        %v2483 = vsel %vm2227, %v1537, 0.0
        %v2484 = vsel %vm2228, %v1706, 0.0
        %v2485 = vsel %vm2229, %v1202, 0.0
        %v2486 = vsel %vm2230, %v1371, 0.0
        %v2487 = vsel %vm2231, %v1540, 0.0
        %v2488 = vsel %vm2232, %v1709, 0.0
        %v2489 = vsel %vm2233, %v1204, 0.0
        %v2490 = vsel %vm2234, %v1373, 0.0
        %v2491 = vsel %vm2235, %v1542, 0.0
        %v2492 = vsel %vm2236, %v1711, 0.0
        %v2493 = vsel %vm2237, %v1207, 0.0
        %v2494 = vsel %vm2238, %v1376, 0.0
        %v2495 = vsel %vm2239, %v1545, 0.0
        %v2496 = vsel %vm2240, %v1714, 0.0
        %v2497 = vsel %vm2241, %v1209, 0.0
        %v2498 = vsel %vm2242, %v1378, 0.0
        %v2499 = vsel %vm2243, %v1547, 0.0
        %v2500 = vsel %vm2244, %v1716, 0.0
        %v2501 = vsel %vm2245, %v1212, 0.0
        %v2502 = vsel %vm2246, %v1381, 0.0
        %v2503 = vsel %vm2247, %v1550, 0.0
        %v2504 = vsel %vm2248, %v1719, 0.0
        %v2505 = vsel %vm2249, %v1214, 0.0
        %v2506 = vsel %vm2250, %v1383, 0.0
        %v2507 = vsel %vm2251, %v1552, 0.0
        %v2508 = vsel %vm2252, %v1721, 0.0
        %v2509 = vsel %vm2253, %v1217, 0.0
        %v2510 = vsel %vm2254, %v1386, 0.0
        %v2511 = vsel %vm2255, %v1555, 0.0
        %v2512 = vsel %vm2256, %v1724, 0.0
        %v2513 = vsel %vm2257, %v1219, 0.0
        %v2514 = vsel %vm2258, %v1388, 0.0
        %v2515 = vsel %vm2259, %v1557, 0.0
        %v2516 = vsel %vm2260, %v1726, 0.0
        %v2517 = vsel %vm2261, %v1222, 0.0
        %v2518 = vsel %vm2262, %v1391, 0.0
        %v2519 = vsel %vm2263, %v1560, 0.0
        %v2520 = vsel %vm2264, %v1729, 0.0
        %v2521 = vsel %vm2265, %v1224, 0.0
        %v2522 = vsel %vm2266, %v1393, 0.0
        %v2523 = vsel %vm2267, %v1562, 0.0
        %v2524 = vsel %vm2268, %v1731, 0.0
        %v2525 = vsel %vm2269, %v1227, 0.0
        %v2526 = vsel %vm2270, %v1396, 0.0
        %v2527 = vsel %vm2271, %v1565, 0.0
        %v2528 = vsel %vm2272, %v1734, 0.0
        %v2529 = vsel %vm2273, %v1229, 0.0
        %v2530 = vsel %vm2274, %v1398, 0.0
        %v2531 = vsel %vm2275, %v1567, 0.0
        %v2532 = vsel %vm2276, %v1736, 0.0
        %v2533 = vsel %vm2277, %v1232, 0.0
        %v2534 = vsel %vm2278, %v1401, 0.0
        %v2535 = vsel %vm2279, %v1570, 0.0
        %v2536 = vsel %vm2280, %v1739, 0.0
        %v2537 = vsel %vm2281, %v1234, 0.0
        %v2538 = vsel %vm2282, %v1403, 0.0
        %v2539 = vsel %vm2283, %v1572, 0.0
        %v2540 = vsel %vm2284, %v1741, 0.0
        %v2541 = vsel %vm2285, %v1237, 0.0
        %v2542 = vsel %vm2286, %v1406, 0.0
        %v2543 = vsel %vm2287, %v1575, 0.0
        %v2544 = vsel %vm2288, %v1744, 0.0
        %v2545 = vsel %vm2289, %v1239, 0.0
        %v2546 = vsel %vm2290, %v1408, 0.0
        %v2547 = vsel %vm2291, %v1577, 0.0
        %v2548 = vsel %vm2292, %v1746, 0.0
        %v2549 = vsel %vm2293, %v1242, 0.0
        %v2550 = vsel %vm2294, %v1411, 0.0
        %v2551 = vsel %vm2295, %v1580, 0.0
        %v2552 = vsel %vm2296, %v1749, 0.0
        %v2553 = vsel %vm2297, %v1244, 0.0
        %v2554 = vsel %vm2298, %v1413, 0.0
        %v2555 = vsel %vm2299, %v1582, 0.0
        %v2556 = vsel %vm2300, %v1751, 0.0
        %v2557 = vsel %vm2301, %v1247, 0.0
        %v2558 = vsel %vm2302, %v1416, 0.0
        %v2559 = vsel %vm2303, %v1585, 0.0
        %v2560 = vsel %vm2304, %v1754, 0.0
        %v2561 = vsel %vm2305, %v1249, 0.0
        %v2562 = vsel %vm2306, %v1418, 0.0
        %v2563 = vsel %vm2307, %v1587, 0.0
        %v2564 = vsel %vm2308, %v1756, 0.0
        %v2565 = vsel %vm2309, %v1252, 0.0
        %v2566 = vsel %vm2310, %v1421, 0.0
        %v2567 = vsel %vm2311, %v1590, 0.0
        %v2568 = vsel %vm2312, %v1759, 0.0
        %v2569 = vsel %vm2313, %v1254, 0.0
        %v2570 = vsel %vm2314, %v1423, 0.0
        %v2571 = vsel %vm2315, %v1592, 0.0
        %v2572 = vsel %vm2316, %v1761, 0.0
        %v2573 = vsel %vm2317, %v1257, 0.0
        %v2574 = vsel %vm2318, %v1426, 0.0
        %v2575 = vsel %vm2319, %v1595, 0.0
        %v2576 = vsel %vm2320, %v1764, 0.0
        %v2577 = vsel %vm2321, %v1259, 0.0
        %v2578 = vsel %vm2322, %v1428, 0.0
        %v2579 = vsel %vm2323, %v1597, 0.0
        %v2580 = vsel %vm2324, %v1766, 0.0
        %v2581 = vsel %vm2325, %v1262, 0.0
        %v2582 = vsel %vm2326, %v1431, 0.0
        %v2583 = vsel %vm2327, %v1600, 0.0
        %v2584 = vsel %vm2328, %v1769, 0.0
        %v2585 = vsel %vm2329, %v1264, 0.0
        %v2586 = vsel %vm2330, %v1433, 0.0
        %v2587 = vsel %vm2331, %v1602, 0.0
        %v2588 = vsel %vm2332, %v1771, 0.0
        %v2589 = vsel %vm2333, %v1267, 0.0
        %v2590 = vsel %vm2334, %v1436, 0.0
        %v2591 = vsel %vm2335, %v1605, 0.0
        %v2592 = vsel %vm2336, %v1774, 0.0
        %v2593 = vsel %vm2337, %v1269, 0.0
        %v2594 = vsel %vm2338, %v1438, 0.0
        %v2595 = vsel %vm2339, %v1607, 0.0
        %v2596 = vsel %vm2340, %v1776, 0.0
        %v2597 = vsel %vm2341, %v1272, 0.0
        %v2598 = vsel %vm2342, %v1441, 0.0
        %v2599 = vsel %vm2343, %v1610, 0.0
        %v2600 = vsel %vm2344, %v1779, 0.0
        %v2601 = vsel %vm2345, %v1274, 0.0
        %v2602 = vsel %vm2346, %v1443, 0.0
        %v2603 = vsel %vm2347, %v1612, 0.0
        %v2604 = vsel %vm2348, %v1781, 0.0
        %v2605 = vsel %vm2349, %v1277, 0.0
        %v2606 = vsel %vm2350, %v1446, 0.0
        %v2607 = vsel %vm2351, %v1615, 0.0
        %v2608 = vsel %vm2352, %v1784, 0.0
        %v2609 = vsel %vm2353, %v1279, 0.0
        %v2610 = vsel %vm2354, %v1448, 0.0
        %v2611 = vsel %vm2355, %v1617, 0.0
        %v2612 = vsel %vm2356, %v1786, 0.0
        %v2613 = vsel %vm2357, %v1282, 0.0
        %v2614 = vsel %vm2358, %v1451, 0.0
        %v2615 = vsel %vm2359, %v1620, 0.0
        %v2616 = vsel %vm2360, %v1789, 0.0
        %v2617 = vsel %vm2361, %v1284, 0.0
        %v2618 = vsel %vm2362, %v1453, 0.0
        %v2619 = vsel %vm2363, %v1622, 0.0
        %v2620 = vsel %vm2364, %v1791, 0.0
        %v2621 = vsel %vm2365, %v1287, 0.0
        %v2622 = vsel %vm2366, %v1456, 0.0
        %v2623 = vsel %vm2367, %v1625, 0.0
        %v2624 = vsel %vm2368, %v1794, 0.0
        %v2625 = vsel %vm2369, %v1289, 0.0
        %v2626 = vsel %vm2370, %v1458, 0.0
        %v2627 = vsel %vm2371, %v1627, 0.0
        %v2628 = vsel %vm2372, %v1796, 0.0
        %v2629 = vsel %vm2373, %v1292, 0.0
        %v2630 = vsel %vm2374, %v1461, 0.0
        %v2631 = vsel %vm2375, %v1630, 0.0
        %v2632 = vsel %vm2376, %v1799, 0.0
        %v2633 = vsel %vm2377, %v1294, 0.0
        %v2634 = vsel %vm2378, %v1463, 0.0
        %v2635 = vsel %vm2379, %v1632, 0.0
        %v2636 = vsel %vm2380, %v1801, 0.0
        %v2637 = vsel %vm2381, %v1297, 0.0
        %v2638 = vsel %vm2382, %v1466, 0.0
        %v2639 = vsel %vm2383, %v1635, 0.0
        %v2640 = vsel %vm2384, %v1804, 0.0
        %v2641 = vsel %vm2385, %v1299, 0.0
        %v2642 = vsel %vm2386, %v1468, 0.0
        %v2643 = vsel %vm2387, %v1637, 0.0
        %v2644 = vsel %vm2388, %v1806, 0.0
        %v2645 = vsel %vm2389, %v1302, 0.0
        %v2646 = vsel %vm2390, %v1471, 0.0
        %v2647 = vsel %vm2391, %v1640, 0.0
        %v2648 = vsel %vm2392, %v1809, 0.0
        %v2649 = vsel %vm2393, %v1304, 0.0
        %v2650 = vsel %vm2394, %v1473, 0.0
        %v2651 = vsel %vm2395, %v1642, 0.0
        %v2652 = vsel %vm2396, %v1811, 0.0
        %v2653 = vsel %vm2397, %v1307, 0.0
        %v2654 = vsel %vm2398, %v1476, 0.0
        %v2655 = vsel %vm2399, %v1645, 0.0
        %v2656 = vsel %vm2400, %v1814, 0.0
        %v2657 = vsel %vm2401, %v1309, 0.0
        %v2658 = vsel %vm2402, %v1478, 0.0
        %v2659 = vsel %vm2403, %v1647, 0.0
        %v2660 = vsel %vm2404, %v1816, 0.0
        %v2661 = vadd.f32 %v2405, %v2406
        %v2662 = vadd.f32 %v2661, %v2407
        %v2663 = vadd.f32 %v2662, %v2408
        %2664 = vadd.xlane.f32.xlu0 %v2663
        %v2665 = vpop.xlane.xlu0 %2664
        %v2666 = vadd.f32 %v2409, %v2410
        %v2667 = vadd.f32 %v2666, %v2411
        %v2668 = vadd.f32 %v2667, %v2412
        %2669 = vadd.xlane.f32.xlu0 %v2668
        %v2670 = vpop.xlane.xlu0 %2669
        %v2671 = vadd.f32 %v2413, %v2414
        %v2672 = vadd.f32 %v2671, %v2415
        %v2673 = vadd.f32 %v2672, %v2416
        %2674 = vadd.xlane.f32.xlu0 %v2673
        %v2675 = vpop.xlane.xlu0 %2674
        %v2676 = vadd.f32 %v2417, %v2418
        %v2677 = vadd.f32 %v2676, %v2419
        %v2678 = vadd.f32 %v2677, %v2420
        %2679 = vadd.xlane.f32.xlu0 %v2678
        %v2680 = vpop.xlane.xlu0 %2679
        %v2681 = vadd.f32 %v2421, %v2422
        %v2682 = vadd.f32 %v2681, %v2423
        %v2683 = vadd.f32 %v2682, %v2424
        %2684 = vadd.xlane.f32.xlu0 %v2683
        %v2685 = vpop.xlane.xlu0 %2684
        %v2686 = vadd.f32 %v2425, %v2426
        %v2687 = vadd.f32 %v2686, %v2427
        %v2688 = vadd.f32 %v2687, %v2428
        %2689 = vadd.xlane.f32.xlu0 %v2688
        %v2690 = vpop.xlane.xlu0 %2689
        %v2691 = vadd.f32 %v2429, %v2430
        %v2692 = vadd.f32 %v2691, %v2431
        %v2693 = vadd.f32 %v2692, %v2432
        %2694 = vadd.xlane.f32.xlu0 %v2693
        %v2695 = vpop.xlane.xlu0 %2694
        %v2696 = vadd.f32 %v2433, %v2434
        %v2697 = vadd.f32 %v2696, %v2435
        %v2698 = vadd.f32 %v2697, %v2436
        %2699 = vadd.xlane.f32.xlu0 %v2698
        %v2700 = vpop.xlane.xlu0 %2699
        %v2701 = vadd.f32 %v2437, %v2438
        %v2702 = vadd.f32 %v2701, %v2439
        %v2703 = vadd.f32 %v2702, %v2440
        %2704 = vadd.xlane.f32.xlu0 %v2703
        %v2705 = vpop.xlane.xlu0 %2704
        %v2706 = vadd.f32 %v2441, %v2442
        %v2707 = vadd.f32 %v2706, %v2443
        %v2708 = vadd.f32 %v2707, %v2444
        %2709 = vadd.xlane.f32.xlu0 %v2708
        %v2710 = vpop.xlane.xlu0 %2709
        %v2711 = vadd.f32 %v2445, %v2446
        %v2712 = vadd.f32 %v2711, %v2447
        %v2713 = vadd.f32 %v2712, %v2448
        %2714 = vadd.xlane.f32.xlu0 %v2713
        %v2715 = vpop.xlane.xlu0 %2714
        %v2716 = vadd.f32 %v2449, %v2450
        %v2717 = vadd.f32 %v2716, %v2451
        %v2718 = vadd.f32 %v2717, %v2452
        %2719 = vadd.xlane.f32.xlu0 %v2718
        %v2720 = vpop.xlane.xlu0 %2719
        %v2721 = vadd.f32 %v2453, %v2454
        %v2722 = vadd.f32 %v2721, %v2455
        %v2723 = vadd.f32 %v2722, %v2456
        %2724 = vadd.xlane.f32.xlu0 %v2723
        %v2725 = vpop.xlane.xlu0 %2724
        %v2726 = vadd.f32 %v2457, %v2458
        %v2727 = vadd.f32 %v2726, %v2459
        %v2728 = vadd.f32 %v2727, %v2460
        %2729 = vadd.xlane.f32.xlu0 %v2728
        %v2730 = vpop.xlane.xlu0 %2729
        %v2731 = vadd.f32 %v2461, %v2462
        %v2732 = vadd.f32 %v2731, %v2463
        %v2733 = vadd.f32 %v2732, %v2464
        %2734 = vadd.xlane.f32.xlu0 %v2733
        %v2735 = vpop.xlane.xlu0 %2734
        %v2736 = vadd.f32 %v2465, %v2466
        %v2737 = vadd.f32 %v2736, %v2467
        %v2738 = vadd.f32 %v2737, %v2468
        %2739 = vadd.xlane.f32.xlu0 %v2738
        %v2740 = vpop.xlane.xlu0 %2739
        %v2741 = vadd.f32 %v2469, %v2470
        %v2742 = vadd.f32 %v2741, %v2471
        %v2743 = vadd.f32 %v2742, %v2472
        %2744 = vadd.xlane.f32.xlu0 %v2743
        %v2745 = vpop.xlane.xlu0 %2744
        %v2746 = vadd.f32 %v2473, %v2474
        %v2747 = vadd.f32 %v2746, %v2475
        %v2748 = vadd.f32 %v2747, %v2476
        %2749 = vadd.xlane.f32.xlu0 %v2748
        %v2750 = vpop.xlane.xlu0 %2749
        %v2751 = vadd.f32 %v2477, %v2478
        %v2752 = vadd.f32 %v2751, %v2479
        %v2753 = vadd.f32 %v2752, %v2480
        %2754 = vadd.xlane.f32.xlu0 %v2753
        %v2755 = vpop.xlane.xlu0 %2754
        %v2756 = vadd.f32 %v2481, %v2482
        %v2757 = vadd.f32 %v2756, %v2483
        %v2758 = vadd.f32 %v2757, %v2484
        %2759 = vadd.xlane.f32.xlu0 %v2758
        %v2760 = vpop.xlane.xlu0 %2759
        %v2761 = vadd.f32 %v2485, %v2486
        %v2762 = vadd.f32 %v2761, %v2487
        %v2763 = vadd.f32 %v2762, %v2488
        %2764 = vadd.xlane.f32.xlu0 %v2763
        %v2765 = vpop.xlane.xlu0 %2764
        %v2766 = vadd.f32 %v2489, %v2490
        %v2767 = vadd.f32 %v2766, %v2491
        %v2768 = vadd.f32 %v2767, %v2492
        %2769 = vadd.xlane.f32.xlu0 %v2768
        %v2770 = vpop.xlane.xlu0 %2769
        %v2771 = vadd.f32 %v2493, %v2494
        %v2772 = vadd.f32 %v2771, %v2495
        %v2773 = vadd.f32 %v2772, %v2496
        %2774 = vadd.xlane.f32.xlu0 %v2773
        %v2775 = vpop.xlane.xlu0 %2774
        %v2776 = vadd.f32 %v2497, %v2498
        %v2777 = vadd.f32 %v2776, %v2499
        %v2778 = vadd.f32 %v2777, %v2500
        %2779 = vadd.xlane.f32.xlu0 %v2778
        %v2780 = vpop.xlane.xlu0 %2779
        %v2781 = vadd.f32 %v2501, %v2502
        %v2782 = vadd.f32 %v2781, %v2503
        %v2783 = vadd.f32 %v2782, %v2504
        %2784 = vadd.xlane.f32.xlu0 %v2783
        %v2785 = vpop.xlane.xlu0 %2784
        %v2786 = vadd.f32 %v2505, %v2506
        %v2787 = vadd.f32 %v2786, %v2507
        %v2788 = vadd.f32 %v2787, %v2508
        %2789 = vadd.xlane.f32.xlu0 %v2788
        %v2790 = vpop.xlane.xlu0 %2789
        %v2791 = vadd.f32 %v2509, %v2510
        %v2792 = vadd.f32 %v2791, %v2511
        %v2793 = vadd.f32 %v2792, %v2512
        %2794 = vadd.xlane.f32.xlu0 %v2793
        %v2795 = vpop.xlane.xlu0 %2794
        %v2796 = vadd.f32 %v2513, %v2514
        %v2797 = vadd.f32 %v2796, %v2515
        %v2798 = vadd.f32 %v2797, %v2516
        %2799 = vadd.xlane.f32.xlu0 %v2798
        %v2800 = vpop.xlane.xlu0 %2799
        %v2801 = vadd.f32 %v2517, %v2518
        %v2802 = vadd.f32 %v2801, %v2519
        %v2803 = vadd.f32 %v2802, %v2520
        %2804 = vadd.xlane.f32.xlu0 %v2803
        %v2805 = vpop.xlane.xlu0 %2804
        %v2806 = vadd.f32 %v2521, %v2522
        %v2807 = vadd.f32 %v2806, %v2523
        %v2808 = vadd.f32 %v2807, %v2524
        %2809 = vadd.xlane.f32.xlu0 %v2808
        %v2810 = vpop.xlane.xlu0 %2809
        %v2811 = vadd.f32 %v2525, %v2526
        %v2812 = vadd.f32 %v2811, %v2527
        %v2813 = vadd.f32 %v2812, %v2528
        %2814 = vadd.xlane.f32.xlu0 %v2813
        %v2815 = vpop.xlane.xlu0 %2814
        %v2816 = vadd.f32 %v2529, %v2530
        %v2817 = vadd.f32 %v2816, %v2531
        %v2818 = vadd.f32 %v2817, %v2532
        %2819 = vadd.xlane.f32.xlu0 %v2818
        %v2820 = vpop.xlane.xlu0 %2819
        %v2821 = vadd.f32 %v2533, %v2534
        %v2822 = vadd.f32 %v2821, %v2535
        %v2823 = vadd.f32 %v2822, %v2536
        %2824 = vadd.xlane.f32.xlu0 %v2823
        %v2825 = vpop.xlane.xlu0 %2824
        %v2826 = vadd.f32 %v2537, %v2538
        %v2827 = vadd.f32 %v2826, %v2539
        %v2828 = vadd.f32 %v2827, %v2540
        %2829 = vadd.xlane.f32.xlu0 %v2828
        %v2830 = vpop.xlane.xlu0 %2829
        %v2831 = vadd.f32 %v2541, %v2542
        %v2832 = vadd.f32 %v2831, %v2543
        %v2833 = vadd.f32 %v2832, %v2544
        %2834 = vadd.xlane.f32.xlu0 %v2833
        %v2835 = vpop.xlane.xlu0 %2834
        %v2836 = vadd.f32 %v2545, %v2546
        %v2837 = vadd.f32 %v2836, %v2547
        %v2838 = vadd.f32 %v2837, %v2548
        %2839 = vadd.xlane.f32.xlu0 %v2838
        %v2840 = vpop.xlane.xlu0 %2839
        %v2841 = vadd.f32 %v2549, %v2550
        %v2842 = vadd.f32 %v2841, %v2551
        %v2843 = vadd.f32 %v2842, %v2552
        %2844 = vadd.xlane.f32.xlu0 %v2843
        %v2845 = vpop.xlane.xlu0 %2844
        %v2846 = vadd.f32 %v2553, %v2554
        %v2847 = vadd.f32 %v2846, %v2555
        %v2848 = vadd.f32 %v2847, %v2556
        %2849 = vadd.xlane.f32.xlu0 %v2848
        %v2850 = vpop.xlane.xlu0 %2849
        %v2851 = vadd.f32 %v2557, %v2558
        %v2852 = vadd.f32 %v2851, %v2559
        %v2853 = vadd.f32 %v2852, %v2560
        %2854 = vadd.xlane.f32.xlu0 %v2853
        %v2855 = vpop.xlane.xlu0 %2854
        %v2856 = vadd.f32 %v2561, %v2562
        %v2857 = vadd.f32 %v2856, %v2563
        %v2858 = vadd.f32 %v2857, %v2564
        %2859 = vadd.xlane.f32.xlu0 %v2858
        %v2860 = vpop.xlane.xlu0 %2859
        %v2861 = vadd.f32 %v2565, %v2566
        %v2862 = vadd.f32 %v2861, %v2567
        %v2863 = vadd.f32 %v2862, %v2568
        %2864 = vadd.xlane.f32.xlu0 %v2863
        %v2865 = vpop.xlane.xlu0 %2864
        %v2866 = vadd.f32 %v2569, %v2570
        %v2867 = vadd.f32 %v2866, %v2571
        %v2868 = vadd.f32 %v2867, %v2572
        %2869 = vadd.xlane.f32.xlu0 %v2868
        %v2870 = vpop.xlane.xlu0 %2869
        %v2871 = vadd.f32 %v2573, %v2574
        %v2872 = vadd.f32 %v2871, %v2575
        %v2873 = vadd.f32 %v2872, %v2576
        %2874 = vadd.xlane.f32.xlu0 %v2873
        %v2875 = vpop.xlane.xlu0 %2874
        %v2876 = vadd.f32 %v2577, %v2578
        %v2877 = vadd.f32 %v2876, %v2579
        %v2878 = vadd.f32 %v2877, %v2580
        %2879 = vadd.xlane.f32.xlu0 %v2878
        %v2880 = vpop.xlane.xlu0 %2879
        %v2881 = vadd.f32 %v2581, %v2582
        %v2882 = vadd.f32 %v2881, %v2583
        %v2883 = vadd.f32 %v2882, %v2584
        %2884 = vadd.xlane.f32.xlu0 %v2883
        %v2885 = vpop.xlane.xlu0 %2884
        %v2886 = vadd.f32 %v2585, %v2586
        %v2887 = vadd.f32 %v2886, %v2587
        %v2888 = vadd.f32 %v2887, %v2588
        %2889 = vadd.xlane.f32.xlu0 %v2888
        %v2890 = vpop.xlane.xlu0 %2889
        %v2891 = vadd.f32 %v2589, %v2590
        %v2892 = vadd.f32 %v2891, %v2591
        %v2893 = vadd.f32 %v2892, %v2592
        %2894 = vadd.xlane.f32.xlu0 %v2893
        %v2895 = vpop.xlane.xlu0 %2894
        %v2896 = vadd.f32 %v2593, %v2594
        %v2897 = vadd.f32 %v2896, %v2595
        %v2898 = vadd.f32 %v2897, %v2596
        %2899 = vadd.xlane.f32.xlu0 %v2898
        %v2900 = vpop.xlane.xlu0 %2899
        %v2901 = vadd.f32 %v2597, %v2598
        %v2902 = vadd.f32 %v2901, %v2599
        %v2903 = vadd.f32 %v2902, %v2600
        %2904 = vadd.xlane.f32.xlu0 %v2903
        %v2905 = vpop.xlane.xlu0 %2904
        %v2906 = vadd.f32 %v2601, %v2602
        %v2907 = vadd.f32 %v2906, %v2603
        %v2908 = vadd.f32 %v2907, %v2604
        %2909 = vadd.xlane.f32.xlu0 %v2908
        %v2910 = vpop.xlane.xlu0 %2909
        %v2911 = vadd.f32 %v2605, %v2606
        %v2912 = vadd.f32 %v2911, %v2607
        %v2913 = vadd.f32 %v2912, %v2608
        %2914 = vadd.xlane.f32.xlu0 %v2913
        %v2915 = vpop.xlane.xlu0 %2914
        %v2916 = vadd.f32 %v2609, %v2610
        %v2917 = vadd.f32 %v2916, %v2611
        %v2918 = vadd.f32 %v2917, %v2612
        %2919 = vadd.xlane.f32.xlu0 %v2918
        %v2920 = vpop.xlane.xlu0 %2919
        %v2921 = vadd.f32 %v2613, %v2614
        %v2922 = vadd.f32 %v2921, %v2615
        %v2923 = vadd.f32 %v2922, %v2616
        %2924 = vadd.xlane.f32.xlu0 %v2923
        %v2925 = vpop.xlane.xlu0 %2924
        %v2926 = vadd.f32 %v2617, %v2618
        %v2927 = vadd.f32 %v2926, %v2619
        %v2928 = vadd.f32 %v2927, %v2620
        %2929 = vadd.xlane.f32.xlu0 %v2928
        %v2930 = vpop.xlane.xlu0 %2929
        %v2931 = vadd.f32 %v2621, %v2622
        %v2932 = vadd.f32 %v2931, %v2623
        %v2933 = vadd.f32 %v2932, %v2624
        %2934 = vadd.xlane.f32.xlu0 %v2933
        %v2935 = vpop.xlane.xlu0 %2934
        %v2936 = vadd.f32 %v2625, %v2626
        %v2937 = vadd.f32 %v2936, %v2627
        %v2938 = vadd.f32 %v2937, %v2628
        %2939 = vadd.xlane.f32.xlu0 %v2938
        %v2940 = vpop.xlane.xlu0 %2939
        %v2941 = vadd.f32 %v2629, %v2630
        %v2942 = vadd.f32 %v2941, %v2631
        %v2943 = vadd.f32 %v2942, %v2632
        %2944 = vadd.xlane.f32.xlu0 %v2943
        %v2945 = vpop.xlane.xlu0 %2944
        %v2946 = vadd.f32 %v2633, %v2634
        %v2947 = vadd.f32 %v2946, %v2635
        %v2948 = vadd.f32 %v2947, %v2636
        %2949 = vadd.xlane.f32.xlu0 %v2948
        %v2950 = vpop.xlane.xlu0 %2949
        %v2951 = vadd.f32 %v2637, %v2638
        %v2952 = vadd.f32 %v2951, %v2639
        %v2953 = vadd.f32 %v2952, %v2640
        %2954 = vadd.xlane.f32.xlu0 %v2953
        %v2955 = vpop.xlane.xlu0 %2954
        %v2956 = vadd.f32 %v2641, %v2642
        %v2957 = vadd.f32 %v2956, %v2643
        %v2958 = vadd.f32 %v2957, %v2644
        %2959 = vadd.xlane.f32.xlu0 %v2958
        %v2960 = vpop.xlane.xlu0 %2959
        %v2961 = vadd.f32 %v2645, %v2646
        %v2962 = vadd.f32 %v2961, %v2647
        %v2963 = vadd.f32 %v2962, %v2648
        %2964 = vadd.xlane.f32.xlu0 %v2963
        %v2965 = vpop.xlane.xlu0 %2964
        %v2966 = vadd.f32 %v2649, %v2650
        %v2967 = vadd.f32 %v2966, %v2651
        %v2968 = vadd.f32 %v2967, %v2652
        %2969 = vadd.xlane.f32.xlu0 %v2968
        %v2970 = vpop.xlane.xlu0 %2969
        %v2971 = vadd.f32 %v2653, %v2654
        %v2972 = vadd.f32 %v2971, %v2655
        %v2973 = vadd.f32 %v2972, %v2656
        %2974 = vadd.xlane.f32.xlu0 %v2973
        %v2975 = vpop.xlane.xlu0 %2974
        %v2976 = vadd.f32 %v2657, %v2658
        %v2977 = vadd.f32 %v2976, %v2659
        %v2978 = vadd.f32 %v2977, %v2660
        %2979 = vadd.xlane.f32.xlu0 %v2978
        %v2980 = vpop.xlane.xlu0 %2979
        %v2981 = vadd.f32 %v1893, %v2665
        %v2982 = vadd.f32 %v1894, %v2670
        %v2983 = vadd.f32 %v1895, %v2675
        %v2984 = vadd.f32 %v1896, %v2680
        %v2985 = vadd.f32 %v1897, %v2685
        %v2986 = vadd.f32 %v1898, %v2690
        %v2987 = vadd.f32 %v1899, %v2695
        %v2988 = vadd.f32 %v1900, %v2700
        %v2989 = vadd.f32 %v1901, %v2705
        %v2990 = vadd.f32 %v1902, %v2710
        %v2991 = vadd.f32 %v1903, %v2715
        %v2992 = vadd.f32 %v1904, %v2720
        %v2993 = vadd.f32 %v1905, %v2725
        %v2994 = vadd.f32 %v1906, %v2730
        %v2995 = vadd.f32 %v1907, %v2735
        %v2996 = vadd.f32 %v1908, %v2740
        %v2997 = vadd.f32 %v1909, %v2745
        %v2998 = vadd.f32 %v1910, %v2750
        %v2999 = vadd.f32 %v1911, %v2755
        %v3000 = vadd.f32 %v1912, %v2760
        %v3001 = vadd.f32 %v1913, %v2765
        %v3002 = vadd.f32 %v1914, %v2770
        %v3003 = vadd.f32 %v1915, %v2775
        %v3004 = vadd.f32 %v1916, %v2780
        %v3005 = vadd.f32 %v1917, %v2785
        %v3006 = vadd.f32 %v1918, %v2790
        %v3007 = vadd.f32 %v1919, %v2795
        %v3008 = vadd.f32 %v1920, %v2800
        %v3009 = vadd.f32 %v1921, %v2805
        %v3010 = vadd.f32 %v1922, %v2810
        %v3011 = vadd.f32 %v1923, %v2815
        %v3012 = vadd.f32 %v1924, %v2820
        %v3013 = vadd.f32 %v1925, %v2825
        %v3014 = vadd.f32 %v1926, %v2830
        %v3015 = vadd.f32 %v1927, %v2835
        %v3016 = vadd.f32 %v1928, %v2840
        %v3017 = vadd.f32 %v1929, %v2845
        %v3018 = vadd.f32 %v1930, %v2850
        %v3019 = vadd.f32 %v1931, %v2855
        %v3020 = vadd.f32 %v1932, %v2860
        %v3021 = vadd.f32 %v1933, %v2865
        %v3022 = vadd.f32 %v1934, %v2870
        %v3023 = vadd.f32 %v1935, %v2875
        %v3024 = vadd.f32 %v1936, %v2880
        %v3025 = vadd.f32 %v1937, %v2885
        %v3026 = vadd.f32 %v1938, %v2890
        %v3027 = vadd.f32 %v1939, %v2895
        %v3028 = vadd.f32 %v1940, %v2900
        %v3029 = vadd.f32 %v1941, %v2905
        %v3030 = vadd.f32 %v1942, %v2910
        %v3031 = vadd.f32 %v1943, %v2915
        %v3032 = vadd.f32 %v1944, %v2920
        %v3033 = vadd.f32 %v1945, %v2925
        %v3034 = vadd.f32 %v1946, %v2930
        %v3035 = vadd.f32 %v1947, %v2935
        %v3036 = vadd.f32 %v1948, %v2940
        %v3037 = vadd.f32 %v1949, %v2945
        %v3038 = vadd.f32 %v1950, %v2950
        %v3039 = vadd.f32 %v1951, %v2955
        %v3040 = vadd.f32 %v1952, %v2960
        %v3041 = vadd.f32 %v1953, %v2965
        %v3042 = vadd.f32 %v1954, %v2970
        %v3043 = vadd.f32 %v1955, %v2975
        %v3044 = vadd.f32 %v1956, %v2980
        %vm3045 = vcmask 7168
        %3046 = vst.msk [vmem:[#allocation4] sm:$0xff] %vm3045, %v2981
        %3047 = vst.msk [vmem:[#allocation4 + $0x8] sm:$0xff] %vm3045, %v2982
        %3048 = vst.msk [vmem:[#allocation4 + $0x10] sm:$0xff] %vm3045, %v2983
        %3049 = vst.msk [vmem:[#allocation4 + $0x18] sm:$0xff] %vm3045, %v2984
        %3050 = vst.msk [vmem:[#allocation4 + $0x20] sm:$0xff] %vm3045, %v2985
        %3051 = vst.msk [vmem:[#allocation4 + $0x28] sm:$0xff] %vm3045, %v2986
        %3052 = vst.msk [vmem:[#allocation4 + $0x30] sm:$0xff] %vm3045, %v2987
        %3053 = vst.msk [vmem:[#allocation4 + $0x38] sm:$0xff] %vm3045, %v2988
        %3054 = vst.msk [vmem:[#allocation4 + $0x40] sm:$0xff] %vm3045, %v2989
        %3055 = vst.msk [vmem:[#allocation4 + $0x48] sm:$0xff] %vm3045, %v2990
        %3056 = vst.msk [vmem:[#allocation4 + $0x50] sm:$0xff] %vm3045, %v2991
        %3057 = vst.msk [vmem:[#allocation4 + $0x58] sm:$0xff] %vm3045, %v2992
        %3058 = vst.msk [vmem:[#allocation4 + $0x60] sm:$0xff] %vm3045, %v2993
        %3059 = vst.msk [vmem:[#allocation4 + $0x68] sm:$0xff] %vm3045, %v2994
        %3060 = vst.msk [vmem:[#allocation4 + $0x70] sm:$0xff] %vm3045, %v2995
        %3061 = vst.msk [vmem:[#allocation4 + $0x78] sm:$0xff] %vm3045, %v2996
        %3062 = vst.msk [vmem:[#allocation4 + $0x80] sm:$0xff] %vm3045, %v2997
        %3063 = vst.msk [vmem:[#allocation4 + $0x88] sm:$0xff] %vm3045, %v2998
        %3064 = vst.msk [vmem:[#allocation4 + $0x90] sm:$0xff] %vm3045, %v2999
        %3065 = vst.msk [vmem:[#allocation4 + $0x98] sm:$0xff] %vm3045, %v3000
        %3066 = vst.msk [vmem:[#allocation4 + $0xa0] sm:$0xff] %vm3045, %v3001
        %3067 = vst.msk [vmem:[#allocation4 + $0xa8] sm:$0xff] %vm3045, %v3002
        %3068 = vst.msk [vmem:[#allocation4 + $0xb0] sm:$0xff] %vm3045, %v3003
        %3069 = vst.msk [vmem:[#allocation4 + $0xb8] sm:$0xff] %vm3045, %v3004
        %3070 = vst.msk [vmem:[#allocation4 + $0xc0] sm:$0xff] %vm3045, %v3005
        %3071 = vst.msk [vmem:[#allocation4 + $0xc8] sm:$0xff] %vm3045, %v3006
        %3072 = vst.msk [vmem:[#allocation4 + $0xd0] sm:$0xff] %vm3045, %v3007
        %3073 = vst.msk [vmem:[#allocation4 + $0xd8] sm:$0xff] %vm3045, %v3008
        %3074 = vst.msk [vmem:[#allocation4 + $0xe0] sm:$0xff] %vm3045, %v3009
        %3075 = vst.msk [vmem:[#allocation4 + $0xe8] sm:$0xff] %vm3045, %v3010
        %3076 = vst.msk [vmem:[#allocation4 + $0xf0] sm:$0xff] %vm3045, %v3011
        %3077 = vst.msk [vmem:[#allocation4 + $0xf8] sm:$0xff] %vm3045, %v3012
        %3078 = vst.msk [vmem:[#allocation4 + $0x100] sm:$0xff] %vm3045, %v3013
        %3079 = vst.msk [vmem:[#allocation4 + $0x108] sm:$0xff] %vm3045, %v3014
        %3080 = vst.msk [vmem:[#allocation4 + $0x110] sm:$0xff] %vm3045, %v3015
        %3081 = vst.msk [vmem:[#allocation4 + $0x118] sm:$0xff] %vm3045, %v3016
        %3082 = vst.msk [vmem:[#allocation4 + $0x120] sm:$0xff] %vm3045, %v3017
        %3083 = vst.msk [vmem:[#allocation4 + $0x128] sm:$0xff] %vm3045, %v3018
        %3084 = vst.msk [vmem:[#allocation4 + $0x130] sm:$0xff] %vm3045, %v3019
        %3085 = vst.msk [vmem:[#allocation4 + $0x138] sm:$0xff] %vm3045, %v3020
        %3086 = vst.msk [vmem:[#allocation4 + $0x140] sm:$0xff] %vm3045, %v3021
        %3087 = vst.msk [vmem:[#allocation4 + $0x148] sm:$0xff] %vm3045, %v3022
        %3088 = vst.msk [vmem:[#allocation4 + $0x150] sm:$0xff] %vm3045, %v3023
        %3089 = vst.msk [vmem:[#allocation4 + $0x158] sm:$0xff] %vm3045, %v3024
        %3090 = vst.msk [vmem:[#allocation4 + $0x160] sm:$0xff] %vm3045, %v3025
        %3091 = vst.msk [vmem:[#allocation4 + $0x168] sm:$0xff] %vm3045, %v3026
        %3092 = vst.msk [vmem:[#allocation4 + $0x170] sm:$0xff] %vm3045, %v3027
        %3093 = vst.msk [vmem:[#allocation4 + $0x178] sm:$0xff] %vm3045, %v3028
        %3094 = vst.msk [vmem:[#allocation4 + $0x180] sm:$0xff] %vm3045, %v3029
        %3095 = vst.msk [vmem:[#allocation4 + $0x188] sm:$0xff] %vm3045, %v3030
        %3096 = vst.msk [vmem:[#allocation4 + $0x190] sm:$0xff] %vm3045, %v3031
        %3097 = vst.msk [vmem:[#allocation4 + $0x198] sm:$0xff] %vm3045, %v3032
        %3098 = vst.msk [vmem:[#allocation4 + $0x1a0] sm:$0xff] %vm3045, %v3033
        %3099 = vst.msk [vmem:[#allocation4 + $0x1a8] sm:$0xff] %vm3045, %v3034
        %3100 = vst.msk [vmem:[#allocation4 + $0x1b0] sm:$0xff] %vm3045, %v3035
        %3101 = vst.msk [vmem:[#allocation4 + $0x1b8] sm:$0xff] %vm3045, %v3036
        %3102 = vst.msk [vmem:[#allocation4 + $0x1c0] sm:$0xff] %vm3045, %v3037
        %3103 = vst.msk [vmem:[#allocation4 + $0x1c8] sm:$0xff] %vm3045, %v3038
        %3104 = vst.msk [vmem:[#allocation4 + $0x1d0] sm:$0xff] %vm3045, %v3039
        %3105 = vst.msk [vmem:[#allocation4 + $0x1d8] sm:$0xff] %vm3045, %v3040
        %3106 = vst.msk [vmem:[#allocation4 + $0x1e0] sm:$0xff] %vm3045, %v3041
        %3107 = vst.msk [vmem:[#allocation4 + $0x1e8] sm:$0xff] %vm3045, %v3042
        %3108 = vst.msk [vmem:[#allocation4 + $0x1f0] sm:$0xff] %vm3045, %v3043
        %3109 = vst.msk [vmem:[#allocation4 + $0x1f8] sm:$0xff] %vm3045, %v3044
        %v3110 = vmax.f32 %v1152, %v1321
        %v3111 = vmax.f32 %v3110, %v1490
        %v3112 = vmax.f32 %v3111, %v1659
        %3113 = vmax.xlane.f32.xlu0 %v3112
        %v3114 = vpop.xlane.xlu0 %3113
        %v3115 = vmax.f32 %v1154, %v1323
        %v3116 = vmax.f32 %v3115, %v1492
        %v3117 = vmax.f32 %v3116, %v1661
        %3118 = vmax.xlane.f32.xlu0 %v3117
        %v3119 = vpop.xlane.xlu0 %3118
        %v3120 = vmax.f32 %v1157, %v1326
        %v3121 = vmax.f32 %v3120, %v1495
        %v3122 = vmax.f32 %v3121, %v1664
        %3123 = vmax.xlane.f32.xlu0 %v3122
        %v3124 = vpop.xlane.xlu0 %3123
        %v3125 = vmax.f32 %v1159, %v1328
        %v3126 = vmax.f32 %v3125, %v1497
        %v3127 = vmax.f32 %v3126, %v1666
        %3128 = vmax.xlane.f32.xlu0 %v3127
        %v3129 = vpop.xlane.xlu0 %3128
        %v3130 = vmax.f32 %v1162, %v1331
        %v3131 = vmax.f32 %v3130, %v1500
        %v3132 = vmax.f32 %v3131, %v1669
        %3133 = vmax.xlane.f32.xlu0 %v3132
        %v3134 = vpop.xlane.xlu0 %3133
        %v3135 = vmax.f32 %v1164, %v1333
        %v3136 = vmax.f32 %v3135, %v1502
        %v3137 = vmax.f32 %v3136, %v1671
        %3138 = vmax.xlane.f32.xlu0 %v3137
        %v3139 = vpop.xlane.xlu0 %3138
        %v3140 = vmax.f32 %v1167, %v1336
        %v3141 = vmax.f32 %v3140, %v1505
        %v3142 = vmax.f32 %v3141, %v1674
        %3143 = vmax.xlane.f32.xlu0 %v3142
        %v3144 = vpop.xlane.xlu0 %3143
        %v3145 = vmax.f32 %v1169, %v1338
        %v3146 = vmax.f32 %v3145, %v1507
        %v3147 = vmax.f32 %v3146, %v1676
        %3148 = vmax.xlane.f32.xlu0 %v3147
        %v3149 = vpop.xlane.xlu0 %3148
        %v3150 = vmax.f32 %v1172, %v1341
        %v3151 = vmax.f32 %v3150, %v1510
        %v3152 = vmax.f32 %v3151, %v1679
        %3153 = vmax.xlane.f32.xlu0 %v3152
        %v3154 = vpop.xlane.xlu0 %3153
        %v3155 = vmax.f32 %v1174, %v1343
        %v3156 = vmax.f32 %v3155, %v1512
        %v3157 = vmax.f32 %v3156, %v1681
        %3158 = vmax.xlane.f32.xlu0 %v3157
        %v3159 = vpop.xlane.xlu0 %3158
        %v3160 = vmax.f32 %v1177, %v1346
        %v3161 = vmax.f32 %v3160, %v1515
        %v3162 = vmax.f32 %v3161, %v1684
        %3163 = vmax.xlane.f32.xlu0 %v3162
        %v3164 = vpop.xlane.xlu0 %3163
        %v3165 = vmax.f32 %v1179, %v1348
        %v3166 = vmax.f32 %v3165, %v1517
        %v3167 = vmax.f32 %v3166, %v1686
        %3168 = vmax.xlane.f32.xlu0 %v3167
        %v3169 = vpop.xlane.xlu0 %3168
        %v3170 = vmax.f32 %v1182, %v1351
        %v3171 = vmax.f32 %v3170, %v1520
        %v3172 = vmax.f32 %v3171, %v1689
        %3173 = vmax.xlane.f32.xlu0 %v3172
        %v3174 = vpop.xlane.xlu0 %3173
        %v3175 = vmax.f32 %v1184, %v1353
        %v3176 = vmax.f32 %v3175, %v1522
        %v3177 = vmax.f32 %v3176, %v1691
        %3178 = vmax.xlane.f32.xlu0 %v3177
        %v3179 = vpop.xlane.xlu0 %3178
        %v3180 = vmax.f32 %v1187, %v1356
        %v3181 = vmax.f32 %v3180, %v1525
        %v3182 = vmax.f32 %v3181, %v1694
        %3183 = vmax.xlane.f32.xlu0 %v3182
        %v3184 = vpop.xlane.xlu0 %3183
        %v3185 = vmax.f32 %v1189, %v1358
        %v3186 = vmax.f32 %v3185, %v1527
        %v3187 = vmax.f32 %v3186, %v1696
        %3188 = vmax.xlane.f32.xlu0 %v3187
        %v3189 = vpop.xlane.xlu0 %3188
        %v3190 = vmax.f32 %v1192, %v1361
        %v3191 = vmax.f32 %v3190, %v1530
        %v3192 = vmax.f32 %v3191, %v1699
        %3193 = vmax.xlane.f32.xlu0 %v3192
        %v3194 = vpop.xlane.xlu0 %3193
        %v3195 = vmax.f32 %v1194, %v1363
        %v3196 = vmax.f32 %v3195, %v1532
        %v3197 = vmax.f32 %v3196, %v1701
        %3198 = vmax.xlane.f32.xlu0 %v3197
        %v3199 = vpop.xlane.xlu0 %3198
        %v3200 = vmax.f32 %v1197, %v1366
        %v3201 = vmax.f32 %v3200, %v1535
        %v3202 = vmax.f32 %v3201, %v1704
        %3203 = vmax.xlane.f32.xlu0 %v3202
        %v3204 = vpop.xlane.xlu0 %3203
        %v3205 = vmax.f32 %v1199, %v1368
        %v3206 = vmax.f32 %v3205, %v1537
        %v3207 = vmax.f32 %v3206, %v1706
        %3208 = vmax.xlane.f32.xlu0 %v3207
        %v3209 = vpop.xlane.xlu0 %3208
        %v3210 = vmax.f32 %v1202, %v1371
        %v3211 = vmax.f32 %v3210, %v1540
        %v3212 = vmax.f32 %v3211, %v1709
        %3213 = vmax.xlane.f32.xlu0 %v3212
        %v3214 = vpop.xlane.xlu0 %3213
        %v3215 = vmax.f32 %v1204, %v1373
        %v3216 = vmax.f32 %v3215, %v1542
        %v3217 = vmax.f32 %v3216, %v1711
        %3218 = vmax.xlane.f32.xlu0 %v3217
        %v3219 = vpop.xlane.xlu0 %3218
        %v3220 = vmax.f32 %v1207, %v1376
        %v3221 = vmax.f32 %v3220, %v1545
        %v3222 = vmax.f32 %v3221, %v1714
        %3223 = vmax.xlane.f32.xlu0 %v3222
        %v3224 = vpop.xlane.xlu0 %3223
        %v3225 = vmax.f32 %v1209, %v1378
        %v3226 = vmax.f32 %v3225, %v1547
        %v3227 = vmax.f32 %v3226, %v1716
        %3228 = vmax.xlane.f32.xlu0 %v3227
        %v3229 = vpop.xlane.xlu0 %3228
        %v3230 = vmax.f32 %v1212, %v1381
        %v3231 = vmax.f32 %v3230, %v1550
        %v3232 = vmax.f32 %v3231, %v1719
        %3233 = vmax.xlane.f32.xlu0 %v3232
        %v3234 = vpop.xlane.xlu0 %3233
        %v3235 = vmax.f32 %v1214, %v1383
        %v3236 = vmax.f32 %v3235, %v1552
        %v3237 = vmax.f32 %v3236, %v1721
        %3238 = vmax.xlane.f32.xlu0 %v3237
        %v3239 = vpop.xlane.xlu0 %3238
        %v3240 = vmax.f32 %v1217, %v1386
        %v3241 = vmax.f32 %v3240, %v1555
        %v3242 = vmax.f32 %v3241, %v1724
        %3243 = vmax.xlane.f32.xlu0 %v3242
        %v3244 = vpop.xlane.xlu0 %3243
        %v3245 = vmax.f32 %v1219, %v1388
        %v3246 = vmax.f32 %v3245, %v1557
        %v3247 = vmax.f32 %v3246, %v1726
        %3248 = vmax.xlane.f32.xlu0 %v3247
        %v3249 = vpop.xlane.xlu0 %3248
        %v3250 = vmax.f32 %v1222, %v1391
        %v3251 = vmax.f32 %v3250, %v1560
        %v3252 = vmax.f32 %v3251, %v1729
        %3253 = vmax.xlane.f32.xlu0 %v3252
        %v3254 = vpop.xlane.xlu0 %3253
        %v3255 = vmax.f32 %v1224, %v1393
        %v3256 = vmax.f32 %v3255, %v1562
        %v3257 = vmax.f32 %v3256, %v1731
        %3258 = vmax.xlane.f32.xlu0 %v3257
        %v3259 = vpop.xlane.xlu0 %3258
        %v3260 = vmax.f32 %v1227, %v1396
        %v3261 = vmax.f32 %v3260, %v1565
        %v3262 = vmax.f32 %v3261, %v1734
        %3263 = vmax.xlane.f32.xlu0 %v3262
        %v3264 = vpop.xlane.xlu0 %3263
        %v3265 = vmax.f32 %v1229, %v1398
        %v3266 = vmax.f32 %v3265, %v1567
        %v3267 = vmax.f32 %v3266, %v1736
        %3268 = vmax.xlane.f32.xlu0 %v3267
        %v3269 = vpop.xlane.xlu0 %3268
        %v3270 = vmax.f32 %v1232, %v1401
        %v3271 = vmax.f32 %v3270, %v1570
        %v3272 = vmax.f32 %v3271, %v1739
        %3273 = vmax.xlane.f32.xlu0 %v3272
        %v3274 = vpop.xlane.xlu0 %3273
        %v3275 = vmax.f32 %v1234, %v1403
        %v3276 = vmax.f32 %v3275, %v1572
        %v3277 = vmax.f32 %v3276, %v1741
        %3278 = vmax.xlane.f32.xlu0 %v3277
        %v3279 = vpop.xlane.xlu0 %3278
        %v3280 = vmax.f32 %v1237, %v1406
        %v3281 = vmax.f32 %v3280, %v1575
        %v3282 = vmax.f32 %v3281, %v1744
        %3283 = vmax.xlane.f32.xlu0 %v3282
        %v3284 = vpop.xlane.xlu0 %3283
        %v3285 = vmax.f32 %v1239, %v1408
        %v3286 = vmax.f32 %v3285, %v1577
        %v3287 = vmax.f32 %v3286, %v1746
        %3288 = vmax.xlane.f32.xlu0 %v3287
        %v3289 = vpop.xlane.xlu0 %3288
        %v3290 = vmax.f32 %v1242, %v1411
        %v3291 = vmax.f32 %v3290, %v1580
        %v3292 = vmax.f32 %v3291, %v1749
        %3293 = vmax.xlane.f32.xlu0 %v3292
        %v3294 = vpop.xlane.xlu0 %3293
        %v3295 = vmax.f32 %v1244, %v1413
        %v3296 = vmax.f32 %v3295, %v1582
        %v3297 = vmax.f32 %v3296, %v1751
        %3298 = vmax.xlane.f32.xlu0 %v3297
        %v3299 = vpop.xlane.xlu0 %3298
        %v3300 = vmax.f32 %v1247, %v1416
        %v3301 = vmax.f32 %v3300, %v1585
        %v3302 = vmax.f32 %v3301, %v1754
        %3303 = vmax.xlane.f32.xlu0 %v3302
        %v3304 = vpop.xlane.xlu0 %3303
        %v3305 = vmax.f32 %v1249, %v1418
        %v3306 = vmax.f32 %v3305, %v1587
        %v3307 = vmax.f32 %v3306, %v1756
        %3308 = vmax.xlane.f32.xlu0 %v3307
        %v3309 = vpop.xlane.xlu0 %3308
        %v3310 = vmax.f32 %v1252, %v1421
        %v3311 = vmax.f32 %v3310, %v1590
        %v3312 = vmax.f32 %v3311, %v1759
        %3313 = vmax.xlane.f32.xlu0 %v3312
        %v3314 = vpop.xlane.xlu0 %3313
        %v3315 = vmax.f32 %v1254, %v1423
        %v3316 = vmax.f32 %v3315, %v1592
        %v3317 = vmax.f32 %v3316, %v1761
        %3318 = vmax.xlane.f32.xlu0 %v3317
        %v3319 = vpop.xlane.xlu0 %3318
        %v3320 = vmax.f32 %v1257, %v1426
        %v3321 = vmax.f32 %v3320, %v1595
        %v3322 = vmax.f32 %v3321, %v1764
        %3323 = vmax.xlane.f32.xlu0 %v3322
        %v3324 = vpop.xlane.xlu0 %3323
        %v3325 = vmax.f32 %v1259, %v1428
        %v3326 = vmax.f32 %v3325, %v1597
        %v3327 = vmax.f32 %v3326, %v1766
        %3328 = vmax.xlane.f32.xlu0 %v3327
        %v3329 = vpop.xlane.xlu0 %3328
        %v3330 = vmax.f32 %v1262, %v1431
        %v3331 = vmax.f32 %v3330, %v1600
        %v3332 = vmax.f32 %v3331, %v1769
        %3333 = vmax.xlane.f32.xlu0 %v3332
        %v3334 = vpop.xlane.xlu0 %3333
        %v3335 = vmax.f32 %v1264, %v1433
        %v3336 = vmax.f32 %v3335, %v1602
        %v3337 = vmax.f32 %v3336, %v1771
        %3338 = vmax.xlane.f32.xlu0 %v3337
        %v3339 = vpop.xlane.xlu0 %3338
        %v3340 = vmax.f32 %v1267, %v1436
        %v3341 = vmax.f32 %v3340, %v1605
        %v3342 = vmax.f32 %v3341, %v1774
        %3343 = vmax.xlane.f32.xlu0 %v3342
        %v3344 = vpop.xlane.xlu0 %3343
        %v3345 = vmax.f32 %v1269, %v1438
        %v3346 = vmax.f32 %v3345, %v1607
        %v3347 = vmax.f32 %v3346, %v1776
        %3348 = vmax.xlane.f32.xlu0 %v3347
        %v3349 = vpop.xlane.xlu0 %3348
        %v3350 = vmax.f32 %v1272, %v1441
        %v3351 = vmax.f32 %v3350, %v1610
        %v3352 = vmax.f32 %v3351, %v1779
        %3353 = vmax.xlane.f32.xlu0 %v3352
        %v3354 = vpop.xlane.xlu0 %3353
        %v3355 = vmax.f32 %v1274, %v1443
        %v3356 = vmax.f32 %v3355, %v1612
        %v3357 = vmax.f32 %v3356, %v1781
        %3358 = vmax.xlane.f32.xlu0 %v3357
        %v3359 = vpop.xlane.xlu0 %3358
        %v3360 = vmax.f32 %v1277, %v1446
        %v3361 = vmax.f32 %v3360, %v1615
        %v3362 = vmax.f32 %v3361, %v1784
        %3363 = vmax.xlane.f32.xlu0 %v3362
        %v3364 = vpop.xlane.xlu0 %3363
        %v3365 = vmax.f32 %v1279, %v1448
        %v3366 = vmax.f32 %v3365, %v1617
        %v3367 = vmax.f32 %v3366, %v1786
        %3368 = vmax.xlane.f32.xlu0 %v3367
        %v3369 = vpop.xlane.xlu0 %3368
        %v3370 = vmax.f32 %v1282, %v1451
        %v3371 = vmax.f32 %v3370, %v1620
        %v3372 = vmax.f32 %v3371, %v1789
        %3373 = vmax.xlane.f32.xlu0 %v3372
        %v3374 = vpop.xlane.xlu0 %3373
        %v3375 = vmax.f32 %v1284, %v1453
        %v3376 = vmax.f32 %v3375, %v1622
        %v3377 = vmax.f32 %v3376, %v1791
        %3378 = vmax.xlane.f32.xlu0 %v3377
        %v3379 = vpop.xlane.xlu0 %3378
        %v3380 = vmax.f32 %v1287, %v1456
        %v3381 = vmax.f32 %v3380, %v1625
        %v3382 = vmax.f32 %v3381, %v1794
        %3383 = vmax.xlane.f32.xlu0 %v3382
        %v3384 = vpop.xlane.xlu0 %3383
        %v3385 = vmax.f32 %v1289, %v1458
        %v3386 = vmax.f32 %v3385, %v1627
        %v3387 = vmax.f32 %v3386, %v1796
        %3388 = vmax.xlane.f32.xlu0 %v3387
        %v3389 = vpop.xlane.xlu0 %3388
        %v3390 = vmax.f32 %v1292, %v1461
        %v3391 = vmax.f32 %v3390, %v1630
        %v3392 = vmax.f32 %v3391, %v1799
        %3393 = vmax.xlane.f32.xlu0 %v3392
        %v3394 = vpop.xlane.xlu0 %3393
        %v3395 = vmax.f32 %v1294, %v1463
        %v3396 = vmax.f32 %v3395, %v1632
        %v3397 = vmax.f32 %v3396, %v1801
        %3398 = vmax.xlane.f32.xlu0 %v3397
        %v3399 = vpop.xlane.xlu0 %3398
        %v3400 = vmax.f32 %v1297, %v1466
        %v3401 = vmax.f32 %v3400, %v1635
        %v3402 = vmax.f32 %v3401, %v1804
        %3403 = vmax.xlane.f32.xlu0 %v3402
        %v3404 = vpop.xlane.xlu0 %3403
        %v3405 = vmax.f32 %v1299, %v1468
        %v3406 = vmax.f32 %v3405, %v1637
        %v3407 = vmax.f32 %v3406, %v1806
        %3408 = vmax.xlane.f32.xlu0 %v3407
        %v3409 = vpop.xlane.xlu0 %3408
        %v3410 = vmax.f32 %v1302, %v1471
        %v3411 = vmax.f32 %v3410, %v1640
        %v3412 = vmax.f32 %v3411, %v1809
        %3413 = vmax.xlane.f32.xlu0 %v3412
        %v3414 = vpop.xlane.xlu0 %3413
        %v3415 = vmax.f32 %v1304, %v1473
        %v3416 = vmax.f32 %v3415, %v1642
        %v3417 = vmax.f32 %v3416, %v1811
        %3418 = vmax.xlane.f32.xlu0 %v3417
        %v3419 = vpop.xlane.xlu0 %3418
        %v3420 = vmax.f32 %v1307, %v1476
        %v3421 = vmax.f32 %v3420, %v1645
        %v3422 = vmax.f32 %v3421, %v1814
        %3423 = vmax.xlane.f32.xlu0 %v3422
        %v3424 = vpop.xlane.xlu0 %3423
        %v3425 = vmax.f32 %v1309, %v1478
        %v3426 = vmax.f32 %v3425, %v1647
        %v3427 = vmax.f32 %v3426, %v1816
        %3428 = vmax.xlane.f32.xlu0 %v3427
        %v3429 = vpop.xlane.xlu0 %3428
        %vm3430 = vcmp.eq.f32.partialorder %v1152, %v3114
        %vm3431 = vcmp.eq.f32.partialorder %v1321, %v3114
        %vm3432 = vcmp.eq.f32.partialorder %v1490, %v3114
        %vm3433 = vcmp.eq.f32.partialorder %v1659, %v3114
        %vm3434 = vcmp.eq.f32.partialorder %v1154, %v3119
        %vm3435 = vcmp.eq.f32.partialorder %v1323, %v3119
        %vm3436 = vcmp.eq.f32.partialorder %v1492, %v3119
        %vm3437 = vcmp.eq.f32.partialorder %v1661, %v3119
        %vm3438 = vcmp.eq.f32.partialorder %v1157, %v3124
        %vm3439 = vcmp.eq.f32.partialorder %v1326, %v3124
        %vm3440 = vcmp.eq.f32.partialorder %v1495, %v3124
        %vm3441 = vcmp.eq.f32.partialorder %v1664, %v3124
        %vm3442 = vcmp.eq.f32.partialorder %v1159, %v3129
        %vm3443 = vcmp.eq.f32.partialorder %v1328, %v3129
        %vm3444 = vcmp.eq.f32.partialorder %v1497, %v3129
        %vm3445 = vcmp.eq.f32.partialorder %v1666, %v3129
        %vm3446 = vcmp.eq.f32.partialorder %v1162, %v3134
        %vm3447 = vcmp.eq.f32.partialorder %v1331, %v3134
        %vm3448 = vcmp.eq.f32.partialorder %v1500, %v3134
        %vm3449 = vcmp.eq.f32.partialorder %v1669, %v3134
        %vm3450 = vcmp.eq.f32.partialorder %v1164, %v3139
        %vm3451 = vcmp.eq.f32.partialorder %v1333, %v3139
        %vm3452 = vcmp.eq.f32.partialorder %v1502, %v3139
        %vm3453 = vcmp.eq.f32.partialorder %v1671, %v3139
        %vm3454 = vcmp.eq.f32.partialorder %v1167, %v3144
        %vm3455 = vcmp.eq.f32.partialorder %v1336, %v3144
        %vm3456 = vcmp.eq.f32.partialorder %v1505, %v3144
        %vm3457 = vcmp.eq.f32.partialorder %v1674, %v3144
        %vm3458 = vcmp.eq.f32.partialorder %v1169, %v3149
        %vm3459 = vcmp.eq.f32.partialorder %v1338, %v3149
        %vm3460 = vcmp.eq.f32.partialorder %v1507, %v3149
        %vm3461 = vcmp.eq.f32.partialorder %v1676, %v3149
        %vm3462 = vcmp.eq.f32.partialorder %v1172, %v3154
        %vm3463 = vcmp.eq.f32.partialorder %v1341, %v3154
        %vm3464 = vcmp.eq.f32.partialorder %v1510, %v3154
        %vm3465 = vcmp.eq.f32.partialorder %v1679, %v3154
        %vm3466 = vcmp.eq.f32.partialorder %v1174, %v3159
        %vm3467 = vcmp.eq.f32.partialorder %v1343, %v3159
        %vm3468 = vcmp.eq.f32.partialorder %v1512, %v3159
        %vm3469 = vcmp.eq.f32.partialorder %v1681, %v3159
        %vm3470 = vcmp.eq.f32.partialorder %v1177, %v3164
        %vm3471 = vcmp.eq.f32.partialorder %v1346, %v3164
        %vm3472 = vcmp.eq.f32.partialorder %v1515, %v3164
        %vm3473 = vcmp.eq.f32.partialorder %v1684, %v3164
        %vm3474 = vcmp.eq.f32.partialorder %v1179, %v3169
        %vm3475 = vcmp.eq.f32.partialorder %v1348, %v3169
        %vm3476 = vcmp.eq.f32.partialorder %v1517, %v3169
        %vm3477 = vcmp.eq.f32.partialorder %v1686, %v3169
        %vm3478 = vcmp.eq.f32.partialorder %v1182, %v3174
        %vm3479 = vcmp.eq.f32.partialorder %v1351, %v3174
        %vm3480 = vcmp.eq.f32.partialorder %v1520, %v3174
        %vm3481 = vcmp.eq.f32.partialorder %v1689, %v3174
        %vm3482 = vcmp.eq.f32.partialorder %v1184, %v3179
        %vm3483 = vcmp.eq.f32.partialorder %v1353, %v3179
        %vm3484 = vcmp.eq.f32.partialorder %v1522, %v3179
        %vm3485 = vcmp.eq.f32.partialorder %v1691, %v3179
        %vm3486 = vcmp.eq.f32.partialorder %v1187, %v3184
        %vm3487 = vcmp.eq.f32.partialorder %v1356, %v3184
        %vm3488 = vcmp.eq.f32.partialorder %v1525, %v3184
        %vm3489 = vcmp.eq.f32.partialorder %v1694, %v3184
        %vm3490 = vcmp.eq.f32.partialorder %v1189, %v3189
        %vm3491 = vcmp.eq.f32.partialorder %v1358, %v3189
        %vm3492 = vcmp.eq.f32.partialorder %v1527, %v3189
        %vm3493 = vcmp.eq.f32.partialorder %v1696, %v3189
        %vm3494 = vcmp.eq.f32.partialorder %v1192, %v3194
        %vm3495 = vcmp.eq.f32.partialorder %v1361, %v3194
        %vm3496 = vcmp.eq.f32.partialorder %v1530, %v3194
        %vm3497 = vcmp.eq.f32.partialorder %v1699, %v3194
        %vm3498 = vcmp.eq.f32.partialorder %v1194, %v3199
        %vm3499 = vcmp.eq.f32.partialorder %v1363, %v3199
        %vm3500 = vcmp.eq.f32.partialorder %v1532, %v3199
        %vm3501 = vcmp.eq.f32.partialorder %v1701, %v3199
        %vm3502 = vcmp.eq.f32.partialorder %v1197, %v3204
        %vm3503 = vcmp.eq.f32.partialorder %v1366, %v3204
        %vm3504 = vcmp.eq.f32.partialorder %v1535, %v3204
        %vm3505 = vcmp.eq.f32.partialorder %v1704, %v3204
        %vm3506 = vcmp.eq.f32.partialorder %v1199, %v3209
        %vm3507 = vcmp.eq.f32.partialorder %v1368, %v3209
        %vm3508 = vcmp.eq.f32.partialorder %v1537, %v3209
        %vm3509 = vcmp.eq.f32.partialorder %v1706, %v3209
        %vm3510 = vcmp.eq.f32.partialorder %v1202, %v3214
        %vm3511 = vcmp.eq.f32.partialorder %v1371, %v3214
        %vm3512 = vcmp.eq.f32.partialorder %v1540, %v3214
        %vm3513 = vcmp.eq.f32.partialorder %v1709, %v3214
        %vm3514 = vcmp.eq.f32.partialorder %v1204, %v3219
        %vm3515 = vcmp.eq.f32.partialorder %v1373, %v3219
        %vm3516 = vcmp.eq.f32.partialorder %v1542, %v3219
        %vm3517 = vcmp.eq.f32.partialorder %v1711, %v3219
        %vm3518 = vcmp.eq.f32.partialorder %v1207, %v3224
        %vm3519 = vcmp.eq.f32.partialorder %v1376, %v3224
        %vm3520 = vcmp.eq.f32.partialorder %v1545, %v3224
        %vm3521 = vcmp.eq.f32.partialorder %v1714, %v3224
        %vm3522 = vcmp.eq.f32.partialorder %v1209, %v3229
        %vm3523 = vcmp.eq.f32.partialorder %v1378, %v3229
        %vm3524 = vcmp.eq.f32.partialorder %v1547, %v3229
        %vm3525 = vcmp.eq.f32.partialorder %v1716, %v3229
        %vm3526 = vcmp.eq.f32.partialorder %v1212, %v3234
        %vm3527 = vcmp.eq.f32.partialorder %v1381, %v3234
        %vm3528 = vcmp.eq.f32.partialorder %v1550, %v3234
        %vm3529 = vcmp.eq.f32.partialorder %v1719, %v3234
        %vm3530 = vcmp.eq.f32.partialorder %v1214, %v3239
        %vm3531 = vcmp.eq.f32.partialorder %v1383, %v3239
        %vm3532 = vcmp.eq.f32.partialorder %v1552, %v3239
        %vm3533 = vcmp.eq.f32.partialorder %v1721, %v3239
        %vm3534 = vcmp.eq.f32.partialorder %v1217, %v3244
        %vm3535 = vcmp.eq.f32.partialorder %v1386, %v3244
        %vm3536 = vcmp.eq.f32.partialorder %v1555, %v3244
        %vm3537 = vcmp.eq.f32.partialorder %v1724, %v3244
        %vm3538 = vcmp.eq.f32.partialorder %v1219, %v3249
        %vm3539 = vcmp.eq.f32.partialorder %v1388, %v3249
        %vm3540 = vcmp.eq.f32.partialorder %v1557, %v3249
        %vm3541 = vcmp.eq.f32.partialorder %v1726, %v3249
        %vm3542 = vcmp.eq.f32.partialorder %v1222, %v3254
        %vm3543 = vcmp.eq.f32.partialorder %v1391, %v3254
        %vm3544 = vcmp.eq.f32.partialorder %v1560, %v3254
        %vm3545 = vcmp.eq.f32.partialorder %v1729, %v3254
        %vm3546 = vcmp.eq.f32.partialorder %v1224, %v3259
        %vm3547 = vcmp.eq.f32.partialorder %v1393, %v3259
        %vm3548 = vcmp.eq.f32.partialorder %v1562, %v3259
        %vm3549 = vcmp.eq.f32.partialorder %v1731, %v3259
        %vm3550 = vcmp.eq.f32.partialorder %v1227, %v3264
        %vm3551 = vcmp.eq.f32.partialorder %v1396, %v3264
        %vm3552 = vcmp.eq.f32.partialorder %v1565, %v3264
        %vm3553 = vcmp.eq.f32.partialorder %v1734, %v3264
        %vm3554 = vcmp.eq.f32.partialorder %v1229, %v3269
        %vm3555 = vcmp.eq.f32.partialorder %v1398, %v3269
        %vm3556 = vcmp.eq.f32.partialorder %v1567, %v3269
        %vm3557 = vcmp.eq.f32.partialorder %v1736, %v3269
        %vm3558 = vcmp.eq.f32.partialorder %v1232, %v3274
        %vm3559 = vcmp.eq.f32.partialorder %v1401, %v3274
        %vm3560 = vcmp.eq.f32.partialorder %v1570, %v3274
        %vm3561 = vcmp.eq.f32.partialorder %v1739, %v3274
        %vm3562 = vcmp.eq.f32.partialorder %v1234, %v3279
        %vm3563 = vcmp.eq.f32.partialorder %v1403, %v3279
        %vm3564 = vcmp.eq.f32.partialorder %v1572, %v3279
        %vm3565 = vcmp.eq.f32.partialorder %v1741, %v3279
        %vm3566 = vcmp.eq.f32.partialorder %v1237, %v3284
        %vm3567 = vcmp.eq.f32.partialorder %v1406, %v3284
        %vm3568 = vcmp.eq.f32.partialorder %v1575, %v3284
        %vm3569 = vcmp.eq.f32.partialorder %v1744, %v3284
        %vm3570 = vcmp.eq.f32.partialorder %v1239, %v3289
        %vm3571 = vcmp.eq.f32.partialorder %v1408, %v3289
        %vm3572 = vcmp.eq.f32.partialorder %v1577, %v3289
        %vm3573 = vcmp.eq.f32.partialorder %v1746, %v3289
        %vm3574 = vcmp.eq.f32.partialorder %v1242, %v3294
        %vm3575 = vcmp.eq.f32.partialorder %v1411, %v3294
        %vm3576 = vcmp.eq.f32.partialorder %v1580, %v3294
        %vm3577 = vcmp.eq.f32.partialorder %v1749, %v3294
        %vm3578 = vcmp.eq.f32.partialorder %v1244, %v3299
        %vm3579 = vcmp.eq.f32.partialorder %v1413, %v3299
        %vm3580 = vcmp.eq.f32.partialorder %v1582, %v3299
        %vm3581 = vcmp.eq.f32.partialorder %v1751, %v3299
        %vm3582 = vcmp.eq.f32.partialorder %v1247, %v3304
        %vm3583 = vcmp.eq.f32.partialorder %v1416, %v3304
        %vm3584 = vcmp.eq.f32.partialorder %v1585, %v3304
        %vm3585 = vcmp.eq.f32.partialorder %v1754, %v3304
        %vm3586 = vcmp.eq.f32.partialorder %v1249, %v3309
        %vm3587 = vcmp.eq.f32.partialorder %v1418, %v3309
        %vm3588 = vcmp.eq.f32.partialorder %v1587, %v3309
        %vm3589 = vcmp.eq.f32.partialorder %v1756, %v3309
        %vm3590 = vcmp.eq.f32.partialorder %v1252, %v3314
        %vm3591 = vcmp.eq.f32.partialorder %v1421, %v3314
        %vm3592 = vcmp.eq.f32.partialorder %v1590, %v3314
        %vm3593 = vcmp.eq.f32.partialorder %v1759, %v3314
        %vm3594 = vcmp.eq.f32.partialorder %v1254, %v3319
        %vm3595 = vcmp.eq.f32.partialorder %v1423, %v3319
        %vm3596 = vcmp.eq.f32.partialorder %v1592, %v3319
        %vm3597 = vcmp.eq.f32.partialorder %v1761, %v3319
        %vm3598 = vcmp.eq.f32.partialorder %v1257, %v3324
        %vm3599 = vcmp.eq.f32.partialorder %v1426, %v3324
        %vm3600 = vcmp.eq.f32.partialorder %v1595, %v3324
        %vm3601 = vcmp.eq.f32.partialorder %v1764, %v3324
        %vm3602 = vcmp.eq.f32.partialorder %v1259, %v3329
        %vm3603 = vcmp.eq.f32.partialorder %v1428, %v3329
        %vm3604 = vcmp.eq.f32.partialorder %v1597, %v3329
        %vm3605 = vcmp.eq.f32.partialorder %v1766, %v3329
        %vm3606 = vcmp.eq.f32.partialorder %v1262, %v3334
        %vm3607 = vcmp.eq.f32.partialorder %v1431, %v3334
        %vm3608 = vcmp.eq.f32.partialorder %v1600, %v3334
        %vm3609 = vcmp.eq.f32.partialorder %v1769, %v3334
        %vm3610 = vcmp.eq.f32.partialorder %v1264, %v3339
        %vm3611 = vcmp.eq.f32.partialorder %v1433, %v3339
        %vm3612 = vcmp.eq.f32.partialorder %v1602, %v3339
        %vm3613 = vcmp.eq.f32.partialorder %v1771, %v3339
        %vm3614 = vcmp.eq.f32.partialorder %v1267, %v3344
        %vm3615 = vcmp.eq.f32.partialorder %v1436, %v3344
        %vm3616 = vcmp.eq.f32.partialorder %v1605, %v3344
        %vm3617 = vcmp.eq.f32.partialorder %v1774, %v3344
        %vm3618 = vcmp.eq.f32.partialorder %v1269, %v3349
        %vm3619 = vcmp.eq.f32.partialorder %v1438, %v3349
        %vm3620 = vcmp.eq.f32.partialorder %v1607, %v3349
        %vm3621 = vcmp.eq.f32.partialorder %v1776, %v3349
        %vm3622 = vcmp.eq.f32.partialorder %v1272, %v3354
        %vm3623 = vcmp.eq.f32.partialorder %v1441, %v3354
        %vm3624 = vcmp.eq.f32.partialorder %v1610, %v3354
        %vm3625 = vcmp.eq.f32.partialorder %v1779, %v3354
        %vm3626 = vcmp.eq.f32.partialorder %v1274, %v3359
        %vm3627 = vcmp.eq.f32.partialorder %v1443, %v3359
        %vm3628 = vcmp.eq.f32.partialorder %v1612, %v3359
        %vm3629 = vcmp.eq.f32.partialorder %v1781, %v3359
        %vm3630 = vcmp.eq.f32.partialorder %v1277, %v3364
        %vm3631 = vcmp.eq.f32.partialorder %v1446, %v3364
        %vm3632 = vcmp.eq.f32.partialorder %v1615, %v3364
        %vm3633 = vcmp.eq.f32.partialorder %v1784, %v3364
        %vm3634 = vcmp.eq.f32.partialorder %v1279, %v3369
        %vm3635 = vcmp.eq.f32.partialorder %v1448, %v3369
        %vm3636 = vcmp.eq.f32.partialorder %v1617, %v3369
        %vm3637 = vcmp.eq.f32.partialorder %v1786, %v3369
        %vm3638 = vcmp.eq.f32.partialorder %v1282, %v3374
        %vm3639 = vcmp.eq.f32.partialorder %v1451, %v3374
        %vm3640 = vcmp.eq.f32.partialorder %v1620, %v3374
        %vm3641 = vcmp.eq.f32.partialorder %v1789, %v3374
        %vm3642 = vcmp.eq.f32.partialorder %v1284, %v3379
        %vm3643 = vcmp.eq.f32.partialorder %v1453, %v3379
        %vm3644 = vcmp.eq.f32.partialorder %v1622, %v3379
        %vm3645 = vcmp.eq.f32.partialorder %v1791, %v3379
        %vm3646 = vcmp.eq.f32.partialorder %v1287, %v3384
        %vm3647 = vcmp.eq.f32.partialorder %v1456, %v3384
        %vm3648 = vcmp.eq.f32.partialorder %v1625, %v3384
        %vm3649 = vcmp.eq.f32.partialorder %v1794, %v3384
        %vm3650 = vcmp.eq.f32.partialorder %v1289, %v3389
        %vm3651 = vcmp.eq.f32.partialorder %v1458, %v3389
        %vm3652 = vcmp.eq.f32.partialorder %v1627, %v3389
        %vm3653 = vcmp.eq.f32.partialorder %v1796, %v3389
        %vm3654 = vcmp.eq.f32.partialorder %v1292, %v3394
        %vm3655 = vcmp.eq.f32.partialorder %v1461, %v3394
        %vm3656 = vcmp.eq.f32.partialorder %v1630, %v3394
        %vm3657 = vcmp.eq.f32.partialorder %v1799, %v3394
        %vm3658 = vcmp.eq.f32.partialorder %v1294, %v3399
        %vm3659 = vcmp.eq.f32.partialorder %v1463, %v3399
        %vm3660 = vcmp.eq.f32.partialorder %v1632, %v3399
        %vm3661 = vcmp.eq.f32.partialorder %v1801, %v3399
        %vm3662 = vcmp.eq.f32.partialorder %v1297, %v3404
        %vm3663 = vcmp.eq.f32.partialorder %v1466, %v3404
        %vm3664 = vcmp.eq.f32.partialorder %v1635, %v3404
        %vm3665 = vcmp.eq.f32.partialorder %v1804, %v3404
        %vm3666 = vcmp.eq.f32.partialorder %v1299, %v3409
        %vm3667 = vcmp.eq.f32.partialorder %v1468, %v3409
        %vm3668 = vcmp.eq.f32.partialorder %v1637, %v3409
        %vm3669 = vcmp.eq.f32.partialorder %v1806, %v3409
        %vm3670 = vcmp.eq.f32.partialorder %v1302, %v3414
        %vm3671 = vcmp.eq.f32.partialorder %v1471, %v3414
        %vm3672 = vcmp.eq.f32.partialorder %v1640, %v3414
        %vm3673 = vcmp.eq.f32.partialorder %v1809, %v3414
        %vm3674 = vcmp.eq.f32.partialorder %v1304, %v3419
        %vm3675 = vcmp.eq.f32.partialorder %v1473, %v3419
        %vm3676 = vcmp.eq.f32.partialorder %v1642, %v3419
        %vm3677 = vcmp.eq.f32.partialorder %v1811, %v3419
        %vm3678 = vcmp.eq.f32.partialorder %v1307, %v3424
        %vm3679 = vcmp.eq.f32.partialorder %v1476, %v3424
        %vm3680 = vcmp.eq.f32.partialorder %v1645, %v3424
        %vm3681 = vcmp.eq.f32.partialorder %v1814, %v3424
        %vm3682 = vcmp.eq.f32.partialorder %v1309, %v3429
        %vm3683 = vcmp.eq.f32.partialorder %v1478, %v3429
        %vm3684 = vcmp.eq.f32.partialorder %v1647, %v3429
        %vm3685 = vcmp.eq.f32.partialorder %v1816, %v3429
        %v3686 = vsel %vm3430, %v1825, 1073741824
        %v3687 = vsel %vm3431, %v1826, 1073741824
        %v3688 = vsel %vm3432, %v1827, 1073741824
        %v3689 = vsel %vm3433, %v1828, 1073741824
        %v3690 = vsel %vm3434, %v1825, 1073741824
        %v3691 = vsel %vm3435, %v1826, 1073741824
        %v3692 = vsel %vm3436, %v1827, 1073741824
        %v3693 = vsel %vm3437, %v1828, 1073741824
        %v3694 = vsel %vm3438, %v1825, 1073741824
        %v3695 = vsel %vm3439, %v1826, 1073741824
        %v3696 = vsel %vm3440, %v1827, 1073741824
        %v3697 = vsel %vm3441, %v1828, 1073741824
        %v3698 = vsel %vm3442, %v1825, 1073741824
        %v3699 = vsel %vm3443, %v1826, 1073741824
        %v3700 = vsel %vm3444, %v1827, 1073741824
        %v3701 = vsel %vm3445, %v1828, 1073741824
        %v3702 = vsel %vm3446, %v1825, 1073741824
        %v3703 = vsel %vm3447, %v1826, 1073741824
        %v3704 = vsel %vm3448, %v1827, 1073741824
        %v3705 = vsel %vm3449, %v1828, 1073741824
        %v3706 = vsel %vm3450, %v1825, 1073741824
        %v3707 = vsel %vm3451, %v1826, 1073741824
        %v3708 = vsel %vm3452, %v1827, 1073741824
        %v3709 = vsel %vm3453, %v1828, 1073741824
        %v3710 = vsel %vm3454, %v1825, 1073741824
        %v3711 = vsel %vm3455, %v1826, 1073741824
        %v3712 = vsel %vm3456, %v1827, 1073741824
        %v3713 = vsel %vm3457, %v1828, 1073741824
        %v3714 = vsel %vm3458, %v1825, 1073741824
        %v3715 = vsel %vm3459, %v1826, 1073741824
        %v3716 = vsel %vm3460, %v1827, 1073741824
        %v3717 = vsel %vm3461, %v1828, 1073741824
        %v3718 = vsel %vm3462, %v1825, 1073741824
        %v3719 = vsel %vm3463, %v1826, 1073741824
        %v3720 = vsel %vm3464, %v1827, 1073741824
        %v3721 = vsel %vm3465, %v1828, 1073741824
        %v3722 = vsel %vm3466, %v1825, 1073741824
        %v3723 = vsel %vm3467, %v1826, 1073741824
        %v3724 = vsel %vm3468, %v1827, 1073741824
        %v3725 = vsel %vm3469, %v1828, 1073741824
        %v3726 = vsel %vm3470, %v1825, 1073741824
        %v3727 = vsel %vm3471, %v1826, 1073741824
        %v3728 = vsel %vm3472, %v1827, 1073741824
        %v3729 = vsel %vm3473, %v1828, 1073741824
        %v3730 = vsel %vm3474, %v1825, 1073741824
        %v3731 = vsel %vm3475, %v1826, 1073741824
        %v3732 = vsel %vm3476, %v1827, 1073741824
        %v3733 = vsel %vm3477, %v1828, 1073741824
        %v3734 = vsel %vm3478, %v1825, 1073741824
        %v3735 = vsel %vm3479, %v1826, 1073741824
        %v3736 = vsel %vm3480, %v1827, 1073741824
        %v3737 = vsel %vm3481, %v1828, 1073741824
        %v3738 = vsel %vm3482, %v1825, 1073741824
        %v3739 = vsel %vm3483, %v1826, 1073741824
        %v3740 = vsel %vm3484, %v1827, 1073741824
        %v3741 = vsel %vm3485, %v1828, 1073741824
        %v3742 = vsel %vm3486, %v1825, 1073741824
        %v3743 = vsel %vm3487, %v1826, 1073741824
        %v3744 = vsel %vm3488, %v1827, 1073741824
        %v3745 = vsel %vm3489, %v1828, 1073741824
        %v3746 = vsel %vm3490, %v1825, 1073741824
        %v3747 = vsel %vm3491, %v1826, 1073741824
        %v3748 = vsel %vm3492, %v1827, 1073741824
        %v3749 = vsel %vm3493, %v1828, 1073741824
        %v3750 = vsel %vm3494, %v1825, 1073741824
        %v3751 = vsel %vm3495, %v1826, 1073741824
        %v3752 = vsel %vm3496, %v1827, 1073741824
        %v3753 = vsel %vm3497, %v1828, 1073741824
        %v3754 = vsel %vm3498, %v1825, 1073741824
        %v3755 = vsel %vm3499, %v1826, 1073741824
        %v3756 = vsel %vm3500, %v1827, 1073741824
        %v3757 = vsel %vm3501, %v1828, 1073741824
        %v3758 = vsel %vm3502, %v1825, 1073741824
        %v3759 = vsel %vm3503, %v1826, 1073741824
        %v3760 = vsel %vm3504, %v1827, 1073741824
        %v3761 = vsel %vm3505, %v1828, 1073741824
        %v3762 = vsel %vm3506, %v1825, 1073741824
        %v3763 = vsel %vm3507, %v1826, 1073741824
        %v3764 = vsel %vm3508, %v1827, 1073741824
        %v3765 = vsel %vm3509, %v1828, 1073741824
        %v3766 = vsel %vm3510, %v1825, 1073741824
        %v3767 = vsel %vm3511, %v1826, 1073741824
        %v3768 = vsel %vm3512, %v1827, 1073741824
        %v3769 = vsel %vm3513, %v1828, 1073741824
        %v3770 = vsel %vm3514, %v1825, 1073741824
        %v3771 = vsel %vm3515, %v1826, 1073741824
        %v3772 = vsel %vm3516, %v1827, 1073741824
        %v3773 = vsel %vm3517, %v1828, 1073741824
        %v3774 = vsel %vm3518, %v1825, 1073741824
        %v3775 = vsel %vm3519, %v1826, 1073741824
        %v3776 = vsel %vm3520, %v1827, 1073741824
        %v3777 = vsel %vm3521, %v1828, 1073741824
        %v3778 = vsel %vm3522, %v1825, 1073741824
        %v3779 = vsel %vm3523, %v1826, 1073741824
        %v3780 = vsel %vm3524, %v1827, 1073741824
        %v3781 = vsel %vm3525, %v1828, 1073741824
        %v3782 = vsel %vm3526, %v1825, 1073741824
        %v3783 = vsel %vm3527, %v1826, 1073741824
        %v3784 = vsel %vm3528, %v1827, 1073741824
        %v3785 = vsel %vm3529, %v1828, 1073741824
        %v3786 = vsel %vm3530, %v1825, 1073741824
        %v3787 = vsel %vm3531, %v1826, 1073741824
        %v3788 = vsel %vm3532, %v1827, 1073741824
        %v3789 = vsel %vm3533, %v1828, 1073741824
        %v3790 = vsel %vm3534, %v1825, 1073741824
        %v3791 = vsel %vm3535, %v1826, 1073741824
        %v3792 = vsel %vm3536, %v1827, 1073741824
        %v3793 = vsel %vm3537, %v1828, 1073741824
        %v3794 = vsel %vm3538, %v1825, 1073741824
        %v3795 = vsel %vm3539, %v1826, 1073741824
        %v3796 = vsel %vm3540, %v1827, 1073741824
        %v3797 = vsel %vm3541, %v1828, 1073741824
        %v3798 = vsel %vm3542, %v1825, 1073741824
        %v3799 = vsel %vm3543, %v1826, 1073741824
        %v3800 = vsel %vm3544, %v1827, 1073741824
        %v3801 = vsel %vm3545, %v1828, 1073741824
        %v3802 = vsel %vm3546, %v1825, 1073741824
        %v3803 = vsel %vm3547, %v1826, 1073741824
        %v3804 = vsel %vm3548, %v1827, 1073741824
        %v3805 = vsel %vm3549, %v1828, 1073741824
        %v3806 = vsel %vm3550, %v1825, 1073741824
        %v3807 = vsel %vm3551, %v1826, 1073741824
        %v3808 = vsel %vm3552, %v1827, 1073741824
        %v3809 = vsel %vm3553, %v1828, 1073741824
        %v3810 = vsel %vm3554, %v1825, 1073741824
        %v3811 = vsel %vm3555, %v1826, 1073741824
        %v3812 = vsel %vm3556, %v1827, 1073741824
        %v3813 = vsel %vm3557, %v1828, 1073741824
        %v3814 = vsel %vm3558, %v1825, 1073741824
        %v3815 = vsel %vm3559, %v1826, 1073741824
        %v3816 = vsel %vm3560, %v1827, 1073741824
        %v3817 = vsel %vm3561, %v1828, 1073741824
        %v3818 = vsel %vm3562, %v1825, 1073741824
        %v3819 = vsel %vm3563, %v1826, 1073741824
        %v3820 = vsel %vm3564, %v1827, 1073741824
        %v3821 = vsel %vm3565, %v1828, 1073741824
        %v3822 = vsel %vm3566, %v1825, 1073741824
        %v3823 = vsel %vm3567, %v1826, 1073741824
        %v3824 = vsel %vm3568, %v1827, 1073741824
        %v3825 = vsel %vm3569, %v1828, 1073741824
        %v3826 = vsel %vm3570, %v1825, 1073741824
        %v3827 = vsel %vm3571, %v1826, 1073741824
        %v3828 = vsel %vm3572, %v1827, 1073741824
        %v3829 = vsel %vm3573, %v1828, 1073741824
        %v3830 = vsel %vm3574, %v1825, 1073741824
        %v3831 = vsel %vm3575, %v1826, 1073741824
        %v3832 = vsel %vm3576, %v1827, 1073741824
        %v3833 = vsel %vm3577, %v1828, 1073741824
        %v3834 = vsel %vm3578, %v1825, 1073741824
        %v3835 = vsel %vm3579, %v1826, 1073741824
        %v3836 = vsel %vm3580, %v1827, 1073741824
        %v3837 = vsel %vm3581, %v1828, 1073741824
        %v3838 = vsel %vm3582, %v1825, 1073741824
        %v3839 = vsel %vm3583, %v1826, 1073741824
        %v3840 = vsel %vm3584, %v1827, 1073741824
        %v3841 = vsel %vm3585, %v1828, 1073741824
        %v3842 = vsel %vm3586, %v1825, 1073741824
        %v3843 = vsel %vm3587, %v1826, 1073741824
        %v3844 = vsel %vm3588, %v1827, 1073741824
        %v3845 = vsel %vm3589, %v1828, 1073741824
        %v3846 = vsel %vm3590, %v1825, 1073741824
        %v3847 = vsel %vm3591, %v1826, 1073741824
        %v3848 = vsel %vm3592, %v1827, 1073741824
        %v3849 = vsel %vm3593, %v1828, 1073741824
        %v3850 = vsel %vm3594, %v1825, 1073741824
        %v3851 = vsel %vm3595, %v1826, 1073741824
        %v3852 = vsel %vm3596, %v1827, 1073741824
        %v3853 = vsel %vm3597, %v1828, 1073741824
        %v3854 = vsel %vm3598, %v1825, 1073741824
        %v3855 = vsel %vm3599, %v1826, 1073741824
        %v3856 = vsel %vm3600, %v1827, 1073741824
        %v3857 = vsel %vm3601, %v1828, 1073741824
        %v3858 = vsel %vm3602, %v1825, 1073741824
        %v3859 = vsel %vm3603, %v1826, 1073741824
        %v3860 = vsel %vm3604, %v1827, 1073741824
        %v3861 = vsel %vm3605, %v1828, 1073741824
        %v3862 = vsel %vm3606, %v1825, 1073741824
        %v3863 = vsel %vm3607, %v1826, 1073741824
        %v3864 = vsel %vm3608, %v1827, 1073741824
        %v3865 = vsel %vm3609, %v1828, 1073741824
        %v3866 = vsel %vm3610, %v1825, 1073741824
        %v3867 = vsel %vm3611, %v1826, 1073741824
        %v3868 = vsel %vm3612, %v1827, 1073741824
        %v3869 = vsel %vm3613, %v1828, 1073741824
        %v3870 = vsel %vm3614, %v1825, 1073741824
        %v3871 = vsel %vm3615, %v1826, 1073741824
        %v3872 = vsel %vm3616, %v1827, 1073741824
        %v3873 = vsel %vm3617, %v1828, 1073741824
        %v3874 = vsel %vm3618, %v1825, 1073741824
        %v3875 = vsel %vm3619, %v1826, 1073741824
        %v3876 = vsel %vm3620, %v1827, 1073741824
        %v3877 = vsel %vm3621, %v1828, 1073741824
        %v3878 = vsel %vm3622, %v1825, 1073741824
        %v3879 = vsel %vm3623, %v1826, 1073741824
        %v3880 = vsel %vm3624, %v1827, 1073741824
        %v3881 = vsel %vm3625, %v1828, 1073741824
        %v3882 = vsel %vm3626, %v1825, 1073741824
        %v3883 = vsel %vm3627, %v1826, 1073741824
        %v3884 = vsel %vm3628, %v1827, 1073741824
        %v3885 = vsel %vm3629, %v1828, 1073741824
        %v3886 = vsel %vm3630, %v1825, 1073741824
        %v3887 = vsel %vm3631, %v1826, 1073741824
        %v3888 = vsel %vm3632, %v1827, 1073741824
        %v3889 = vsel %vm3633, %v1828, 1073741824
        %v3890 = vsel %vm3634, %v1825, 1073741824
        %v3891 = vsel %vm3635, %v1826, 1073741824
        %v3892 = vsel %vm3636, %v1827, 1073741824
        %v3893 = vsel %vm3637, %v1828, 1073741824
        %v3894 = vsel %vm3638, %v1825, 1073741824
        %v3895 = vsel %vm3639, %v1826, 1073741824
        %v3896 = vsel %vm3640, %v1827, 1073741824
        %v3897 = vsel %vm3641, %v1828, 1073741824
        %v3898 = vsel %vm3642, %v1825, 1073741824
        %v3899 = vsel %vm3643, %v1826, 1073741824
        %v3900 = vsel %vm3644, %v1827, 1073741824
        %v3901 = vsel %vm3645, %v1828, 1073741824
        %v3902 = vsel %vm3646, %v1825, 1073741824
        %v3903 = vsel %vm3647, %v1826, 1073741824
        %v3904 = vsel %vm3648, %v1827, 1073741824
        %v3905 = vsel %vm3649, %v1828, 1073741824
        %v3906 = vsel %vm3650, %v1825, 1073741824
        %v3907 = vsel %vm3651, %v1826, 1073741824
        %v3908 = vsel %vm3652, %v1827, 1073741824
        %v3909 = vsel %vm3653, %v1828, 1073741824
        %v3910 = vsel %vm3654, %v1825, 1073741824
        %v3911 = vsel %vm3655, %v1826, 1073741824
        %v3912 = vsel %vm3656, %v1827, 1073741824
        %v3913 = vsel %vm3657, %v1828, 1073741824
        %v3914 = vsel %vm3658, %v1825, 1073741824
        %v3915 = vsel %vm3659, %v1826, 1073741824
        %v3916 = vsel %vm3660, %v1827, 1073741824
        %v3917 = vsel %vm3661, %v1828, 1073741824
        %v3918 = vsel %vm3662, %v1825, 1073741824
        %v3919 = vsel %vm3663, %v1826, 1073741824
        %v3920 = vsel %vm3664, %v1827, 1073741824
        %v3921 = vsel %vm3665, %v1828, 1073741824
        %v3922 = vsel %vm3666, %v1825, 1073741824
        %v3923 = vsel %vm3667, %v1826, 1073741824
        %v3924 = vsel %vm3668, %v1827, 1073741824
        %v3925 = vsel %vm3669, %v1828, 1073741824
        %v3926 = vsel %vm3670, %v1825, 1073741824
        %v3927 = vsel %vm3671, %v1826, 1073741824
        %v3928 = vsel %vm3672, %v1827, 1073741824
        %v3929 = vsel %vm3673, %v1828, 1073741824
        %v3930 = vsel %vm3674, %v1825, 1073741824
        %v3931 = vsel %vm3675, %v1826, 1073741824
        %v3932 = vsel %vm3676, %v1827, 1073741824
        %v3933 = vsel %vm3677, %v1828, 1073741824
        %v3934 = vsel %vm3678, %v1825, 1073741824
        %v3935 = vsel %vm3679, %v1826, 1073741824
        %v3936 = vsel %vm3680, %v1827, 1073741824
        %v3937 = vsel %vm3681, %v1828, 1073741824
        %v3938 = vsel %vm3682, %v1825, 1073741824
        %v3939 = vsel %vm3683, %v1826, 1073741824
        %v3940 = vsel %vm3684, %v1827, 1073741824
        %v3941 = vsel %vm3685, %v1828, 1073741824
        %vm3942 = vcmp.lt.s32.totalorder %v3686, %v3687
        %v3943 = vsel %vm3942, %v3686, %v3687
        %vm3944 = vcmp.lt.s32.totalorder %v3943, %v3688
        %v3945 = vsel %vm3944, %v3943, %v3688
        %vm3946 = vcmp.lt.s32.totalorder %v3945, %v3689
        %v3947 = vsel %vm3946, %v3945, %v3689
        %v3948 = vand.u32 %v3947, 65535
        %v3949 = vshra.s32 %v3947, 16
        %v3950 = vcvt.s32.f32 %v3948
        %v3951 = vcvt.s32.f32 %v3949
        %3952 = vmin.xlane.f32.xlu0 %v3951
        %v3953 = vpop.xlane.xlu0 %3952
        %vm3954 = vcmp.eq.f32.partialorder %v3951, %v3953
        %v3955 = vsel %vm3954, %v3950, inf
        %3956 = vmin.xlane.f32.xlu0 %v3955
        %v3957 = vpop.xlane.xlu0 %3956
        %v3958 = vcvt.f32.s32 %v3957
        %v3959 = vcvt.f32.s32 %v3953
        %v3960 = vshll.u32 %v3959, 16
        %v3961 = vadd.s32 %v3960, %v3958
        %vm3962 = vcmp.lt.s32.totalorder %v3690, %v3691
        %v3963 = vsel %vm3962, %v3690, %v3691
        %vm3964 = vcmp.lt.s32.totalorder %v3963, %v3692
        %v3965 = vsel %vm3964, %v3963, %v3692
        %vm3966 = vcmp.lt.s32.totalorder %v3965, %v3693
        %v3967 = vsel %vm3966, %v3965, %v3693
        %v3968 = vand.u32 %v3967, 65535
        %v3969 = vshra.s32 %v3967, 16
        %v3970 = vcvt.s32.f32 %v3968
        %v3971 = vcvt.s32.f32 %v3969
        %3972 = vmin.xlane.f32.xlu0 %v3971
        %v3973 = vpop.xlane.xlu0 %3972
        %vm3974 = vcmp.eq.f32.partialorder %v3971, %v3973
        %v3975 = vsel %vm3974, %v3970, inf
        %3976 = vmin.xlane.f32.xlu0 %v3975
        %v3977 = vpop.xlane.xlu0 %3976
        %v3978 = vcvt.f32.s32 %v3977
        %v3979 = vcvt.f32.s32 %v3973
        %v3980 = vshll.u32 %v3979, 16
        %v3981 = vadd.s32 %v3980, %v3978
        %vm3982 = vcmp.lt.s32.totalorder %v3694, %v3695
        %v3983 = vsel %vm3982, %v3694, %v3695
        %vm3984 = vcmp.lt.s32.totalorder %v3983, %v3696
        %v3985 = vsel %vm3984, %v3983, %v3696
        %vm3986 = vcmp.lt.s32.totalorder %v3985, %v3697
        %v3987 = vsel %vm3986, %v3985, %v3697
        %v3988 = vand.u32 %v3987, 65535
        %v3989 = vshra.s32 %v3987, 16
        %v3990 = vcvt.s32.f32 %v3988
        %v3991 = vcvt.s32.f32 %v3989
        %3992 = vmin.xlane.f32.xlu0 %v3991
        %v3993 = vpop.xlane.xlu0 %3992
        %vm3994 = vcmp.eq.f32.partialorder %v3991, %v3993
        %v3995 = vsel %vm3994, %v3990, inf
        %3996 = vmin.xlane.f32.xlu0 %v3995
        %v3997 = vpop.xlane.xlu0 %3996
        %v3998 = vcvt.f32.s32 %v3997
        %v3999 = vcvt.f32.s32 %v3993
        %v4000 = vshll.u32 %v3999, 16
        %v4001 = vadd.s32 %v4000, %v3998
        %vm4002 = vcmp.lt.s32.totalorder %v3698, %v3699
        %v4003 = vsel %vm4002, %v3698, %v3699
        %vm4004 = vcmp.lt.s32.totalorder %v4003, %v3700
        %v4005 = vsel %vm4004, %v4003, %v3700
        %vm4006 = vcmp.lt.s32.totalorder %v4005, %v3701
        %v4007 = vsel %vm4006, %v4005, %v3701
        %v4008 = vand.u32 %v4007, 65535
        %v4009 = vshra.s32 %v4007, 16
        %v4010 = vcvt.s32.f32 %v4008
        %v4011 = vcvt.s32.f32 %v4009
        %4012 = vmin.xlane.f32.xlu0 %v4011
        %v4013 = vpop.xlane.xlu0 %4012
        %vm4014 = vcmp.eq.f32.partialorder %v4011, %v4013
        %v4015 = vsel %vm4014, %v4010, inf
        %4016 = vmin.xlane.f32.xlu0 %v4015
        %v4017 = vpop.xlane.xlu0 %4016
        %v4018 = vcvt.f32.s32 %v4017
        %v4019 = vcvt.f32.s32 %v4013
        %v4020 = vshll.u32 %v4019, 16
        %v4021 = vadd.s32 %v4020, %v4018
        %vm4022 = vcmp.lt.s32.totalorder %v3702, %v3703
        %v4023 = vsel %vm4022, %v3702, %v3703
        %vm4024 = vcmp.lt.s32.totalorder %v4023, %v3704
        %v4025 = vsel %vm4024, %v4023, %v3704
        %vm4026 = vcmp.lt.s32.totalorder %v4025, %v3705
        %v4027 = vsel %vm4026, %v4025, %v3705
        %v4028 = vand.u32 %v4027, 65535
        %v4029 = vshra.s32 %v4027, 16
        %v4030 = vcvt.s32.f32 %v4028
        %v4031 = vcvt.s32.f32 %v4029
        %4032 = vmin.xlane.f32.xlu0 %v4031
        %v4033 = vpop.xlane.xlu0 %4032
        %vm4034 = vcmp.eq.f32.partialorder %v4031, %v4033
        %v4035 = vsel %vm4034, %v4030, inf
        %4036 = vmin.xlane.f32.xlu0 %v4035
        %v4037 = vpop.xlane.xlu0 %4036
        %v4038 = vcvt.f32.s32 %v4037
        %v4039 = vcvt.f32.s32 %v4033
        %v4040 = vshll.u32 %v4039, 16
        %v4041 = vadd.s32 %v4040, %v4038
        %vm4042 = vcmp.lt.s32.totalorder %v3706, %v3707
        %v4043 = vsel %vm4042, %v3706, %v3707
        %vm4044 = vcmp.lt.s32.totalorder %v4043, %v3708
        %v4045 = vsel %vm4044, %v4043, %v3708
        %vm4046 = vcmp.lt.s32.totalorder %v4045, %v3709
        %v4047 = vsel %vm4046, %v4045, %v3709
        %v4048 = vand.u32 %v4047, 65535
        %v4049 = vshra.s32 %v4047, 16
        %v4050 = vcvt.s32.f32 %v4048
        %v4051 = vcvt.s32.f32 %v4049
        %4052 = vmin.xlane.f32.xlu0 %v4051
        %v4053 = vpop.xlane.xlu0 %4052
        %vm4054 = vcmp.eq.f32.partialorder %v4051, %v4053
        %v4055 = vsel %vm4054, %v4050, inf
        %4056 = vmin.xlane.f32.xlu0 %v4055
        %v4057 = vpop.xlane.xlu0 %4056
        %v4058 = vcvt.f32.s32 %v4057
        %v4059 = vcvt.f32.s32 %v4053
        %v4060 = vshll.u32 %v4059, 16
        %v4061 = vadd.s32 %v4060, %v4058
        %vm4062 = vcmp.lt.s32.totalorder %v3710, %v3711
        %v4063 = vsel %vm4062, %v3710, %v3711
        %vm4064 = vcmp.lt.s32.totalorder %v4063, %v3712
        %v4065 = vsel %vm4064, %v4063, %v3712
        %vm4066 = vcmp.lt.s32.totalorder %v4065, %v3713
        %v4067 = vsel %vm4066, %v4065, %v3713
        %v4068 = vand.u32 %v4067, 65535
        %v4069 = vshra.s32 %v4067, 16
        %v4070 = vcvt.s32.f32 %v4068
        %v4071 = vcvt.s32.f32 %v4069
        %4072 = vmin.xlane.f32.xlu0 %v4071
        %v4073 = vpop.xlane.xlu0 %4072
        %vm4074 = vcmp.eq.f32.partialorder %v4071, %v4073
        %v4075 = vsel %vm4074, %v4070, inf
        %4076 = vmin.xlane.f32.xlu0 %v4075
        %v4077 = vpop.xlane.xlu0 %4076
        %v4078 = vcvt.f32.s32 %v4077
        %v4079 = vcvt.f32.s32 %v4073
        %v4080 = vshll.u32 %v4079, 16
        %v4081 = vadd.s32 %v4080, %v4078
        %vm4082 = vcmp.lt.s32.totalorder %v3714, %v3715
        %v4083 = vsel %vm4082, %v3714, %v3715
        %vm4084 = vcmp.lt.s32.totalorder %v4083, %v3716
        %v4085 = vsel %vm4084, %v4083, %v3716
        %vm4086 = vcmp.lt.s32.totalorder %v4085, %v3717
        %v4087 = vsel %vm4086, %v4085, %v3717
        %v4088 = vand.u32 %v4087, 65535
        %v4089 = vshra.s32 %v4087, 16
        %v4090 = vcvt.s32.f32 %v4088
        %v4091 = vcvt.s32.f32 %v4089
        %4092 = vmin.xlane.f32.xlu0 %v4091
        %v4093 = vpop.xlane.xlu0 %4092
        %vm4094 = vcmp.eq.f32.partialorder %v4091, %v4093
        %v4095 = vsel %vm4094, %v4090, inf
        %4096 = vmin.xlane.f32.xlu0 %v4095
        %v4097 = vpop.xlane.xlu0 %4096
        %v4098 = vcvt.f32.s32 %v4097
        %v4099 = vcvt.f32.s32 %v4093
        %v4100 = vshll.u32 %v4099, 16
        %v4101 = vadd.s32 %v4100, %v4098
        %vm4102 = vcmp.lt.s32.totalorder %v3718, %v3719
        %v4103 = vsel %vm4102, %v3718, %v3719
        %vm4104 = vcmp.lt.s32.totalorder %v4103, %v3720
        %v4105 = vsel %vm4104, %v4103, %v3720
        %vm4106 = vcmp.lt.s32.totalorder %v4105, %v3721
        %v4107 = vsel %vm4106, %v4105, %v3721
        %v4108 = vand.u32 %v4107, 65535
        %v4109 = vshra.s32 %v4107, 16
        %v4110 = vcvt.s32.f32 %v4108
        %v4111 = vcvt.s32.f32 %v4109
        %4112 = vmin.xlane.f32.xlu0 %v4111
        %v4113 = vpop.xlane.xlu0 %4112
        %vm4114 = vcmp.eq.f32.partialorder %v4111, %v4113
        %v4115 = vsel %vm4114, %v4110, inf
        %4116 = vmin.xlane.f32.xlu0 %v4115
        %v4117 = vpop.xlane.xlu0 %4116
        %v4118 = vcvt.f32.s32 %v4117
        %v4119 = vcvt.f32.s32 %v4113
        %v4120 = vshll.u32 %v4119, 16
        %v4121 = vadd.s32 %v4120, %v4118
        %vm4122 = vcmp.lt.s32.totalorder %v3722, %v3723
        %v4123 = vsel %vm4122, %v3722, %v3723
        %vm4124 = vcmp.lt.s32.totalorder %v4123, %v3724
        %v4125 = vsel %vm4124, %v4123, %v3724
        %vm4126 = vcmp.lt.s32.totalorder %v4125, %v3725
        %v4127 = vsel %vm4126, %v4125, %v3725
        %v4128 = vand.u32 %v4127, 65535
        %v4129 = vshra.s32 %v4127, 16
        %v4130 = vcvt.s32.f32 %v4128
        %v4131 = vcvt.s32.f32 %v4129
        %4132 = vmin.xlane.f32.xlu0 %v4131
        %v4133 = vpop.xlane.xlu0 %4132
        %vm4134 = vcmp.eq.f32.partialorder %v4131, %v4133
        %v4135 = vsel %vm4134, %v4130, inf
        %4136 = vmin.xlane.f32.xlu0 %v4135
        %v4137 = vpop.xlane.xlu0 %4136
        %v4138 = vcvt.f32.s32 %v4137
        %v4139 = vcvt.f32.s32 %v4133
        %v4140 = vshll.u32 %v4139, 16
        %v4141 = vadd.s32 %v4140, %v4138
        %vm4142 = vcmp.lt.s32.totalorder %v3726, %v3727
        %v4143 = vsel %vm4142, %v3726, %v3727
        %vm4144 = vcmp.lt.s32.totalorder %v4143, %v3728
        %v4145 = vsel %vm4144, %v4143, %v3728
        %vm4146 = vcmp.lt.s32.totalorder %v4145, %v3729
        %v4147 = vsel %vm4146, %v4145, %v3729
        %v4148 = vand.u32 %v4147, 65535
        %v4149 = vshra.s32 %v4147, 16
        %v4150 = vcvt.s32.f32 %v4148
        %v4151 = vcvt.s32.f32 %v4149
        %4152 = vmin.xlane.f32.xlu0 %v4151
        %v4153 = vpop.xlane.xlu0 %4152
        %vm4154 = vcmp.eq.f32.partialorder %v4151, %v4153
        %v4155 = vsel %vm4154, %v4150, inf
        %4156 = vmin.xlane.f32.xlu0 %v4155
        %v4157 = vpop.xlane.xlu0 %4156
        %v4158 = vcvt.f32.s32 %v4157
        %v4159 = vcvt.f32.s32 %v4153
        %v4160 = vshll.u32 %v4159, 16
        %v4161 = vadd.s32 %v4160, %v4158
        %vm4162 = vcmp.lt.s32.totalorder %v3730, %v3731
        %v4163 = vsel %vm4162, %v3730, %v3731
        %vm4164 = vcmp.lt.s32.totalorder %v4163, %v3732
        %v4165 = vsel %vm4164, %v4163, %v3732
        %vm4166 = vcmp.lt.s32.totalorder %v4165, %v3733
        %v4167 = vsel %vm4166, %v4165, %v3733
        %v4168 = vand.u32 %v4167, 65535
        %v4169 = vshra.s32 %v4167, 16
        %v4170 = vcvt.s32.f32 %v4168
        %v4171 = vcvt.s32.f32 %v4169
        %4172 = vmin.xlane.f32.xlu0 %v4171
        %v4173 = vpop.xlane.xlu0 %4172
        %vm4174 = vcmp.eq.f32.partialorder %v4171, %v4173
        %v4175 = vsel %vm4174, %v4170, inf
        %4176 = vmin.xlane.f32.xlu0 %v4175
        %v4177 = vpop.xlane.xlu0 %4176
        %v4178 = vcvt.f32.s32 %v4177
        %v4179 = vcvt.f32.s32 %v4173
        %v4180 = vshll.u32 %v4179, 16
        %v4181 = vadd.s32 %v4180, %v4178
        %vm4182 = vcmp.lt.s32.totalorder %v3734, %v3735
        %v4183 = vsel %vm4182, %v3734, %v3735
        %vm4184 = vcmp.lt.s32.totalorder %v4183, %v3736
        %v4185 = vsel %vm4184, %v4183, %v3736
        %vm4186 = vcmp.lt.s32.totalorder %v4185, %v3737
        %v4187 = vsel %vm4186, %v4185, %v3737
        %v4188 = vand.u32 %v4187, 65535
        %v4189 = vshra.s32 %v4187, 16
        %v4190 = vcvt.s32.f32 %v4188
        %v4191 = vcvt.s32.f32 %v4189
        %4192 = vmin.xlane.f32.xlu0 %v4191
        %v4193 = vpop.xlane.xlu0 %4192
        %vm4194 = vcmp.eq.f32.partialorder %v4191, %v4193
        %v4195 = vsel %vm4194, %v4190, inf
        %4196 = vmin.xlane.f32.xlu0 %v4195
        %v4197 = vpop.xlane.xlu0 %4196
        %v4198 = vcvt.f32.s32 %v4197
        %v4199 = vcvt.f32.s32 %v4193
        %v4200 = vshll.u32 %v4199, 16
        %v4201 = vadd.s32 %v4200, %v4198
        %vm4202 = vcmp.lt.s32.totalorder %v3738, %v3739
        %v4203 = vsel %vm4202, %v3738, %v3739
        %vm4204 = vcmp.lt.s32.totalorder %v4203, %v3740
        %v4205 = vsel %vm4204, %v4203, %v3740
        %vm4206 = vcmp.lt.s32.totalorder %v4205, %v3741
        %v4207 = vsel %vm4206, %v4205, %v3741
        %v4208 = vand.u32 %v4207, 65535
        %v4209 = vshra.s32 %v4207, 16
        %v4210 = vcvt.s32.f32 %v4208
        %v4211 = vcvt.s32.f32 %v4209
        %4212 = vmin.xlane.f32.xlu0 %v4211
        %v4213 = vpop.xlane.xlu0 %4212
        %vm4214 = vcmp.eq.f32.partialorder %v4211, %v4213
        %v4215 = vsel %vm4214, %v4210, inf
        %4216 = vmin.xlane.f32.xlu0 %v4215
        %v4217 = vpop.xlane.xlu0 %4216
        %v4218 = vcvt.f32.s32 %v4217
        %v4219 = vcvt.f32.s32 %v4213
        %v4220 = vshll.u32 %v4219, 16
        %v4221 = vadd.s32 %v4220, %v4218
        %vm4222 = vcmp.lt.s32.totalorder %v3742, %v3743
        %v4223 = vsel %vm4222, %v3742, %v3743
        %vm4224 = vcmp.lt.s32.totalorder %v4223, %v3744
        %v4225 = vsel %vm4224, %v4223, %v3744
        %vm4226 = vcmp.lt.s32.totalorder %v4225, %v3745
        %v4227 = vsel %vm4226, %v4225, %v3745
        %v4228 = vand.u32 %v4227, 65535
        %v4229 = vshra.s32 %v4227, 16
        %v4230 = vcvt.s32.f32 %v4228
        %v4231 = vcvt.s32.f32 %v4229
        %4232 = vmin.xlane.f32.xlu0 %v4231
        %v4233 = vpop.xlane.xlu0 %4232
        %vm4234 = vcmp.eq.f32.partialorder %v4231, %v4233
        %v4235 = vsel %vm4234, %v4230, inf
        %4236 = vmin.xlane.f32.xlu0 %v4235
        %v4237 = vpop.xlane.xlu0 %4236
        %v4238 = vcvt.f32.s32 %v4237
        %v4239 = vcvt.f32.s32 %v4233
        %v4240 = vshll.u32 %v4239, 16
        %v4241 = vadd.s32 %v4240, %v4238
        %vm4242 = vcmp.lt.s32.totalorder %v3746, %v3747
        %v4243 = vsel %vm4242, %v3746, %v3747
        %vm4244 = vcmp.lt.s32.totalorder %v4243, %v3748
        %v4245 = vsel %vm4244, %v4243, %v3748
        %vm4246 = vcmp.lt.s32.totalorder %v4245, %v3749
        %v4247 = vsel %vm4246, %v4245, %v3749
        %v4248 = vand.u32 %v4247, 65535
        %v4249 = vshra.s32 %v4247, 16
        %v4250 = vcvt.s32.f32 %v4248
        %v4251 = vcvt.s32.f32 %v4249
        %4252 = vmin.xlane.f32.xlu0 %v4251
        %v4253 = vpop.xlane.xlu0 %4252
        %vm4254 = vcmp.eq.f32.partialorder %v4251, %v4253
        %v4255 = vsel %vm4254, %v4250, inf
        %4256 = vmin.xlane.f32.xlu0 %v4255
        %v4257 = vpop.xlane.xlu0 %4256
        %v4258 = vcvt.f32.s32 %v4257
        %v4259 = vcvt.f32.s32 %v4253
        %v4260 = vshll.u32 %v4259, 16
        %v4261 = vadd.s32 %v4260, %v4258
        %vm4262 = vcmp.lt.s32.totalorder %v3750, %v3751
        %v4263 = vsel %vm4262, %v3750, %v3751
        %vm4264 = vcmp.lt.s32.totalorder %v4263, %v3752
        %v4265 = vsel %vm4264, %v4263, %v3752
        %vm4266 = vcmp.lt.s32.totalorder %v4265, %v3753
        %v4267 = vsel %vm4266, %v4265, %v3753
        %v4268 = vand.u32 %v4267, 65535
        %v4269 = vshra.s32 %v4267, 16
        %v4270 = vcvt.s32.f32 %v4268
        %v4271 = vcvt.s32.f32 %v4269
        %4272 = vmin.xlane.f32.xlu0 %v4271
        %v4273 = vpop.xlane.xlu0 %4272
        %vm4274 = vcmp.eq.f32.partialorder %v4271, %v4273
        %v4275 = vsel %vm4274, %v4270, inf
        %4276 = vmin.xlane.f32.xlu0 %v4275
        %v4277 = vpop.xlane.xlu0 %4276
        %v4278 = vcvt.f32.s32 %v4277
        %v4279 = vcvt.f32.s32 %v4273
        %v4280 = vshll.u32 %v4279, 16
        %v4281 = vadd.s32 %v4280, %v4278
        %vm4282 = vcmp.lt.s32.totalorder %v3754, %v3755
        %v4283 = vsel %vm4282, %v3754, %v3755
        %vm4284 = vcmp.lt.s32.totalorder %v4283, %v3756
        %v4285 = vsel %vm4284, %v4283, %v3756
        %vm4286 = vcmp.lt.s32.totalorder %v4285, %v3757
        %v4287 = vsel %vm4286, %v4285, %v3757
        %v4288 = vand.u32 %v4287, 65535
        %v4289 = vshra.s32 %v4287, 16
        %v4290 = vcvt.s32.f32 %v4288
        %v4291 = vcvt.s32.f32 %v4289
        %4292 = vmin.xlane.f32.xlu0 %v4291
        %v4293 = vpop.xlane.xlu0 %4292
        %vm4294 = vcmp.eq.f32.partialorder %v4291, %v4293
        %v4295 = vsel %vm4294, %v4290, inf
        %4296 = vmin.xlane.f32.xlu0 %v4295
        %v4297 = vpop.xlane.xlu0 %4296
        %v4298 = vcvt.f32.s32 %v4297
        %v4299 = vcvt.f32.s32 %v4293
        %v4300 = vshll.u32 %v4299, 16
        %v4301 = vadd.s32 %v4300, %v4298
        %vm4302 = vcmp.lt.s32.totalorder %v3758, %v3759
        %v4303 = vsel %vm4302, %v3758, %v3759
        %vm4304 = vcmp.lt.s32.totalorder %v4303, %v3760
        %v4305 = vsel %vm4304, %v4303, %v3760
        %vm4306 = vcmp.lt.s32.totalorder %v4305, %v3761
        %v4307 = vsel %vm4306, %v4305, %v3761
        %v4308 = vand.u32 %v4307, 65535
        %v4309 = vshra.s32 %v4307, 16
        %v4310 = vcvt.s32.f32 %v4308
        %v4311 = vcvt.s32.f32 %v4309
        %4312 = vmin.xlane.f32.xlu0 %v4311
        %v4313 = vpop.xlane.xlu0 %4312
        %vm4314 = vcmp.eq.f32.partialorder %v4311, %v4313
        %v4315 = vsel %vm4314, %v4310, inf
        %4316 = vmin.xlane.f32.xlu0 %v4315
        %v4317 = vpop.xlane.xlu0 %4316
        %v4318 = vcvt.f32.s32 %v4317
        %v4319 = vcvt.f32.s32 %v4313
        %v4320 = vshll.u32 %v4319, 16
        %v4321 = vadd.s32 %v4320, %v4318
        %vm4322 = vcmp.lt.s32.totalorder %v3762, %v3763
        %v4323 = vsel %vm4322, %v3762, %v3763
        %vm4324 = vcmp.lt.s32.totalorder %v4323, %v3764
        %v4325 = vsel %vm4324, %v4323, %v3764
        %vm4326 = vcmp.lt.s32.totalorder %v4325, %v3765
        %v4327 = vsel %vm4326, %v4325, %v3765
        %v4328 = vand.u32 %v4327, 65535
        %v4329 = vshra.s32 %v4327, 16
        %v4330 = vcvt.s32.f32 %v4328
        %v4331 = vcvt.s32.f32 %v4329
        %4332 = vmin.xlane.f32.xlu0 %v4331
        %v4333 = vpop.xlane.xlu0 %4332
        %vm4334 = vcmp.eq.f32.partialorder %v4331, %v4333
        %v4335 = vsel %vm4334, %v4330, inf
        %4336 = vmin.xlane.f32.xlu0 %v4335
        %v4337 = vpop.xlane.xlu0 %4336
        %v4338 = vcvt.f32.s32 %v4337
        %v4339 = vcvt.f32.s32 %v4333
        %v4340 = vshll.u32 %v4339, 16
        %v4341 = vadd.s32 %v4340, %v4338
        %vm4342 = vcmp.lt.s32.totalorder %v3766, %v3767
        %v4343 = vsel %vm4342, %v3766, %v3767
        %vm4344 = vcmp.lt.s32.totalorder %v4343, %v3768
        %v4345 = vsel %vm4344, %v4343, %v3768
        %vm4346 = vcmp.lt.s32.totalorder %v4345, %v3769
        %v4347 = vsel %vm4346, %v4345, %v3769
        %v4348 = vand.u32 %v4347, 65535
        %v4349 = vshra.s32 %v4347, 16
        %v4350 = vcvt.s32.f32 %v4348
        %v4351 = vcvt.s32.f32 %v4349
        %4352 = vmin.xlane.f32.xlu0 %v4351
        %v4353 = vpop.xlane.xlu0 %4352
        %vm4354 = vcmp.eq.f32.partialorder %v4351, %v4353
        %v4355 = vsel %vm4354, %v4350, inf
        %4356 = vmin.xlane.f32.xlu0 %v4355
        %v4357 = vpop.xlane.xlu0 %4356
        %v4358 = vcvt.f32.s32 %v4357
        %v4359 = vcvt.f32.s32 %v4353
        %v4360 = vshll.u32 %v4359, 16
        %v4361 = vadd.s32 %v4360, %v4358
        %vm4362 = vcmp.lt.s32.totalorder %v3770, %v3771
        %v4363 = vsel %vm4362, %v3770, %v3771
        %vm4364 = vcmp.lt.s32.totalorder %v4363, %v3772
        %v4365 = vsel %vm4364, %v4363, %v3772
        %vm4366 = vcmp.lt.s32.totalorder %v4365, %v3773
        %v4367 = vsel %vm4366, %v4365, %v3773
        %v4368 = vand.u32 %v4367, 65535
        %v4369 = vshra.s32 %v4367, 16
        %v4370 = vcvt.s32.f32 %v4368
        %v4371 = vcvt.s32.f32 %v4369
        %4372 = vmin.xlane.f32.xlu0 %v4371
        %v4373 = vpop.xlane.xlu0 %4372
        %vm4374 = vcmp.eq.f32.partialorder %v4371, %v4373
        %v4375 = vsel %vm4374, %v4370, inf
        %4376 = vmin.xlane.f32.xlu0 %v4375
        %v4377 = vpop.xlane.xlu0 %4376
        %v4378 = vcvt.f32.s32 %v4377
        %v4379 = vcvt.f32.s32 %v4373
        %v4380 = vshll.u32 %v4379, 16
        %v4381 = vadd.s32 %v4380, %v4378
        %vm4382 = vcmp.lt.s32.totalorder %v3774, %v3775
        %v4383 = vsel %vm4382, %v3774, %v3775
        %vm4384 = vcmp.lt.s32.totalorder %v4383, %v3776
        %v4385 = vsel %vm4384, %v4383, %v3776
        %vm4386 = vcmp.lt.s32.totalorder %v4385, %v3777
        %v4387 = vsel %vm4386, %v4385, %v3777
        %v4388 = vand.u32 %v4387, 65535
        %v4389 = vshra.s32 %v4387, 16
        %v4390 = vcvt.s32.f32 %v4388
        %v4391 = vcvt.s32.f32 %v4389
        %4392 = vmin.xlane.f32.xlu0 %v4391
        %v4393 = vpop.xlane.xlu0 %4392
        %vm4394 = vcmp.eq.f32.partialorder %v4391, %v4393
        %v4395 = vsel %vm4394, %v4390, inf
        %4396 = vmin.xlane.f32.xlu0 %v4395
        %v4397 = vpop.xlane.xlu0 %4396
        %v4398 = vcvt.f32.s32 %v4397
        %v4399 = vcvt.f32.s32 %v4393
        %v4400 = vshll.u32 %v4399, 16
        %v4401 = vadd.s32 %v4400, %v4398
        %vm4402 = vcmp.lt.s32.totalorder %v3778, %v3779
        %v4403 = vsel %vm4402, %v3778, %v3779
        %vm4404 = vcmp.lt.s32.totalorder %v4403, %v3780
        %v4405 = vsel %vm4404, %v4403, %v3780
        %vm4406 = vcmp.lt.s32.totalorder %v4405, %v3781
        %v4407 = vsel %vm4406, %v4405, %v3781
        %v4408 = vand.u32 %v4407, 65535
        %v4409 = vshra.s32 %v4407, 16
        %v4410 = vcvt.s32.f32 %v4408
        %v4411 = vcvt.s32.f32 %v4409
        %4412 = vmin.xlane.f32.xlu0 %v4411
        %v4413 = vpop.xlane.xlu0 %4412
        %vm4414 = vcmp.eq.f32.partialorder %v4411, %v4413
        %v4415 = vsel %vm4414, %v4410, inf
        %4416 = vmin.xlane.f32.xlu0 %v4415
        %v4417 = vpop.xlane.xlu0 %4416
        %v4418 = vcvt.f32.s32 %v4417
        %v4419 = vcvt.f32.s32 %v4413
        %v4420 = vshll.u32 %v4419, 16
        %v4421 = vadd.s32 %v4420, %v4418
        %vm4422 = vcmp.lt.s32.totalorder %v3782, %v3783
        %v4423 = vsel %vm4422, %v3782, %v3783
        %vm4424 = vcmp.lt.s32.totalorder %v4423, %v3784
        %v4425 = vsel %vm4424, %v4423, %v3784
        %vm4426 = vcmp.lt.s32.totalorder %v4425, %v3785
        %v4427 = vsel %vm4426, %v4425, %v3785
        %v4428 = vand.u32 %v4427, 65535
        %v4429 = vshra.s32 %v4427, 16
        %v4430 = vcvt.s32.f32 %v4428
        %v4431 = vcvt.s32.f32 %v4429
        %4432 = vmin.xlane.f32.xlu0 %v4431
        %v4433 = vpop.xlane.xlu0 %4432
        %vm4434 = vcmp.eq.f32.partialorder %v4431, %v4433
        %v4435 = vsel %vm4434, %v4430, inf
        %4436 = vmin.xlane.f32.xlu0 %v4435
        %v4437 = vpop.xlane.xlu0 %4436
        %v4438 = vcvt.f32.s32 %v4437
        %v4439 = vcvt.f32.s32 %v4433
        %v4440 = vshll.u32 %v4439, 16
        %v4441 = vadd.s32 %v4440, %v4438
        %vm4442 = vcmp.lt.s32.totalorder %v3786, %v3787
        %v4443 = vsel %vm4442, %v3786, %v3787
        %vm4444 = vcmp.lt.s32.totalorder %v4443, %v3788
        %v4445 = vsel %vm4444, %v4443, %v3788
        %vm4446 = vcmp.lt.s32.totalorder %v4445, %v3789
        %v4447 = vsel %vm4446, %v4445, %v3789
        %v4448 = vand.u32 %v4447, 65535
        %v4449 = vshra.s32 %v4447, 16
        %v4450 = vcvt.s32.f32 %v4448
        %v4451 = vcvt.s32.f32 %v4449
        %4452 = vmin.xlane.f32.xlu0 %v4451
        %v4453 = vpop.xlane.xlu0 %4452
        %vm4454 = vcmp.eq.f32.partialorder %v4451, %v4453
        %v4455 = vsel %vm4454, %v4450, inf
        %4456 = vmin.xlane.f32.xlu0 %v4455
        %v4457 = vpop.xlane.xlu0 %4456
        %v4458 = vcvt.f32.s32 %v4457
        %v4459 = vcvt.f32.s32 %v4453
        %v4460 = vshll.u32 %v4459, 16
        %v4461 = vadd.s32 %v4460, %v4458
        %vm4462 = vcmp.lt.s32.totalorder %v3790, %v3791
        %v4463 = vsel %vm4462, %v3790, %v3791
        %vm4464 = vcmp.lt.s32.totalorder %v4463, %v3792
        %v4465 = vsel %vm4464, %v4463, %v3792
        %vm4466 = vcmp.lt.s32.totalorder %v4465, %v3793
        %v4467 = vsel %vm4466, %v4465, %v3793
        %v4468 = vand.u32 %v4467, 65535
        %v4469 = vshra.s32 %v4467, 16
        %v4470 = vcvt.s32.f32 %v4468
        %v4471 = vcvt.s32.f32 %v4469
        %4472 = vmin.xlane.f32.xlu0 %v4471
        %v4473 = vpop.xlane.xlu0 %4472
        %vm4474 = vcmp.eq.f32.partialorder %v4471, %v4473
        %v4475 = vsel %vm4474, %v4470, inf
        %4476 = vmin.xlane.f32.xlu0 %v4475
        %v4477 = vpop.xlane.xlu0 %4476
        %v4478 = vcvt.f32.s32 %v4477
        %v4479 = vcvt.f32.s32 %v4473
        %v4480 = vshll.u32 %v4479, 16
        %v4481 = vadd.s32 %v4480, %v4478
        %vm4482 = vcmp.lt.s32.totalorder %v3794, %v3795
        %v4483 = vsel %vm4482, %v3794, %v3795
        %vm4484 = vcmp.lt.s32.totalorder %v4483, %v3796
        %v4485 = vsel %vm4484, %v4483, %v3796
        %vm4486 = vcmp.lt.s32.totalorder %v4485, %v3797
        %v4487 = vsel %vm4486, %v4485, %v3797
        %v4488 = vand.u32 %v4487, 65535
        %v4489 = vshra.s32 %v4487, 16
        %v4490 = vcvt.s32.f32 %v4488
        %v4491 = vcvt.s32.f32 %v4489
        %4492 = vmin.xlane.f32.xlu0 %v4491
        %v4493 = vpop.xlane.xlu0 %4492
        %vm4494 = vcmp.eq.f32.partialorder %v4491, %v4493
        %v4495 = vsel %vm4494, %v4490, inf
        %4496 = vmin.xlane.f32.xlu0 %v4495
        %v4497 = vpop.xlane.xlu0 %4496
        %v4498 = vcvt.f32.s32 %v4497
        %v4499 = vcvt.f32.s32 %v4493
        %v4500 = vshll.u32 %v4499, 16
        %v4501 = vadd.s32 %v4500, %v4498
        %vm4502 = vcmp.lt.s32.totalorder %v3798, %v3799
        %v4503 = vsel %vm4502, %v3798, %v3799
        %vm4504 = vcmp.lt.s32.totalorder %v4503, %v3800
        %v4505 = vsel %vm4504, %v4503, %v3800
        %vm4506 = vcmp.lt.s32.totalorder %v4505, %v3801
        %v4507 = vsel %vm4506, %v4505, %v3801
        %v4508 = vand.u32 %v4507, 65535
        %v4509 = vshra.s32 %v4507, 16
        %v4510 = vcvt.s32.f32 %v4508
        %v4511 = vcvt.s32.f32 %v4509
        %4512 = vmin.xlane.f32.xlu0 %v4511
        %v4513 = vpop.xlane.xlu0 %4512
        %vm4514 = vcmp.eq.f32.partialorder %v4511, %v4513
        %v4515 = vsel %vm4514, %v4510, inf
        %4516 = vmin.xlane.f32.xlu0 %v4515
        %v4517 = vpop.xlane.xlu0 %4516
        %v4518 = vcvt.f32.s32 %v4517
        %v4519 = vcvt.f32.s32 %v4513
        %v4520 = vshll.u32 %v4519, 16
        %v4521 = vadd.s32 %v4520, %v4518
        %vm4522 = vcmp.lt.s32.totalorder %v3802, %v3803
        %v4523 = vsel %vm4522, %v3802, %v3803
        %vm4524 = vcmp.lt.s32.totalorder %v4523, %v3804
        %v4525 = vsel %vm4524, %v4523, %v3804
        %vm4526 = vcmp.lt.s32.totalorder %v4525, %v3805
        %v4527 = vsel %vm4526, %v4525, %v3805
        %v4528 = vand.u32 %v4527, 65535
        %v4529 = vshra.s32 %v4527, 16
        %v4530 = vcvt.s32.f32 %v4528
        %v4531 = vcvt.s32.f32 %v4529
        %4532 = vmin.xlane.f32.xlu0 %v4531
        %v4533 = vpop.xlane.xlu0 %4532
        %vm4534 = vcmp.eq.f32.partialorder %v4531, %v4533
        %v4535 = vsel %vm4534, %v4530, inf
        %4536 = vmin.xlane.f32.xlu0 %v4535
        %v4537 = vpop.xlane.xlu0 %4536
        %v4538 = vcvt.f32.s32 %v4537
        %v4539 = vcvt.f32.s32 %v4533
        %v4540 = vshll.u32 %v4539, 16
        %v4541 = vadd.s32 %v4540, %v4538
        %vm4542 = vcmp.lt.s32.totalorder %v3806, %v3807
        %v4543 = vsel %vm4542, %v3806, %v3807
        %vm4544 = vcmp.lt.s32.totalorder %v4543, %v3808
        %v4545 = vsel %vm4544, %v4543, %v3808
        %vm4546 = vcmp.lt.s32.totalorder %v4545, %v3809
        %v4547 = vsel %vm4546, %v4545, %v3809
        %v4548 = vand.u32 %v4547, 65535
        %v4549 = vshra.s32 %v4547, 16
        %v4550 = vcvt.s32.f32 %v4548
        %v4551 = vcvt.s32.f32 %v4549
        %4552 = vmin.xlane.f32.xlu0 %v4551
        %v4553 = vpop.xlane.xlu0 %4552
        %vm4554 = vcmp.eq.f32.partialorder %v4551, %v4553
        %v4555 = vsel %vm4554, %v4550, inf
        %4556 = vmin.xlane.f32.xlu0 %v4555
        %v4557 = vpop.xlane.xlu0 %4556
        %v4558 = vcvt.f32.s32 %v4557
        %v4559 = vcvt.f32.s32 %v4553
        %v4560 = vshll.u32 %v4559, 16
        %v4561 = vadd.s32 %v4560, %v4558
        %vm4562 = vcmp.lt.s32.totalorder %v3810, %v3811
        %v4563 = vsel %vm4562, %v3810, %v3811
        %vm4564 = vcmp.lt.s32.totalorder %v4563, %v3812
        %v4565 = vsel %vm4564, %v4563, %v3812
        %vm4566 = vcmp.lt.s32.totalorder %v4565, %v3813
        %v4567 = vsel %vm4566, %v4565, %v3813
        %v4568 = vand.u32 %v4567, 65535
        %v4569 = vshra.s32 %v4567, 16
        %v4570 = vcvt.s32.f32 %v4568
        %v4571 = vcvt.s32.f32 %v4569
        %4572 = vmin.xlane.f32.xlu0 %v4571
        %v4573 = vpop.xlane.xlu0 %4572
        %vm4574 = vcmp.eq.f32.partialorder %v4571, %v4573
        %v4575 = vsel %vm4574, %v4570, inf
        %4576 = vmin.xlane.f32.xlu0 %v4575
        %v4577 = vpop.xlane.xlu0 %4576
        %v4578 = vcvt.f32.s32 %v4577
        %v4579 = vcvt.f32.s32 %v4573
        %v4580 = vshll.u32 %v4579, 16
        %v4581 = vadd.s32 %v4580, %v4578
        %vm4582 = vcmp.lt.s32.totalorder %v3814, %v3815
        %v4583 = vsel %vm4582, %v3814, %v3815
        %vm4584 = vcmp.lt.s32.totalorder %v4583, %v3816
        %v4585 = vsel %vm4584, %v4583, %v3816
        %vm4586 = vcmp.lt.s32.totalorder %v4585, %v3817
        %v4587 = vsel %vm4586, %v4585, %v3817
        %v4588 = vand.u32 %v4587, 65535
        %v4589 = vshra.s32 %v4587, 16
        %v4590 = vcvt.s32.f32 %v4588
        %v4591 = vcvt.s32.f32 %v4589
        %4592 = vmin.xlane.f32.xlu0 %v4591
        %v4593 = vpop.xlane.xlu0 %4592
        %vm4594 = vcmp.eq.f32.partialorder %v4591, %v4593
        %v4595 = vsel %vm4594, %v4590, inf
        %4596 = vmin.xlane.f32.xlu0 %v4595
        %v4597 = vpop.xlane.xlu0 %4596
        %v4598 = vcvt.f32.s32 %v4597
        %v4599 = vcvt.f32.s32 %v4593
        %v4600 = vshll.u32 %v4599, 16
        %v4601 = vadd.s32 %v4600, %v4598
        %vm4602 = vcmp.lt.s32.totalorder %v3818, %v3819
        %v4603 = vsel %vm4602, %v3818, %v3819
        %vm4604 = vcmp.lt.s32.totalorder %v4603, %v3820
        %v4605 = vsel %vm4604, %v4603, %v3820
        %vm4606 = vcmp.lt.s32.totalorder %v4605, %v3821
        %v4607 = vsel %vm4606, %v4605, %v3821
        %v4608 = vand.u32 %v4607, 65535
        %v4609 = vshra.s32 %v4607, 16
        %v4610 = vcvt.s32.f32 %v4608
        %v4611 = vcvt.s32.f32 %v4609
        %4612 = vmin.xlane.f32.xlu0 %v4611
        %v4613 = vpop.xlane.xlu0 %4612
        %vm4614 = vcmp.eq.f32.partialorder %v4611, %v4613
        %v4615 = vsel %vm4614, %v4610, inf
        %4616 = vmin.xlane.f32.xlu0 %v4615
        %v4617 = vpop.xlane.xlu0 %4616
        %v4618 = vcvt.f32.s32 %v4617
        %v4619 = vcvt.f32.s32 %v4613
        %v4620 = vshll.u32 %v4619, 16
        %v4621 = vadd.s32 %v4620, %v4618
        %vm4622 = vcmp.lt.s32.totalorder %v3822, %v3823
        %v4623 = vsel %vm4622, %v3822, %v3823
        %vm4624 = vcmp.lt.s32.totalorder %v4623, %v3824
        %v4625 = vsel %vm4624, %v4623, %v3824
        %vm4626 = vcmp.lt.s32.totalorder %v4625, %v3825
        %v4627 = vsel %vm4626, %v4625, %v3825
        %v4628 = vand.u32 %v4627, 65535
        %v4629 = vshra.s32 %v4627, 16
        %v4630 = vcvt.s32.f32 %v4628
        %v4631 = vcvt.s32.f32 %v4629
        %4632 = vmin.xlane.f32.xlu0 %v4631
        %v4633 = vpop.xlane.xlu0 %4632
        %vm4634 = vcmp.eq.f32.partialorder %v4631, %v4633
        %v4635 = vsel %vm4634, %v4630, inf
        %4636 = vmin.xlane.f32.xlu0 %v4635
        %v4637 = vpop.xlane.xlu0 %4636
        %v4638 = vcvt.f32.s32 %v4637
        %v4639 = vcvt.f32.s32 %v4633
        %v4640 = vshll.u32 %v4639, 16
        %v4641 = vadd.s32 %v4640, %v4638
        %vm4642 = vcmp.lt.s32.totalorder %v3826, %v3827
        %v4643 = vsel %vm4642, %v3826, %v3827
        %vm4644 = vcmp.lt.s32.totalorder %v4643, %v3828
        %v4645 = vsel %vm4644, %v4643, %v3828
        %vm4646 = vcmp.lt.s32.totalorder %v4645, %v3829
        %v4647 = vsel %vm4646, %v4645, %v3829
        %v4648 = vand.u32 %v4647, 65535
        %v4649 = vshra.s32 %v4647, 16
        %v4650 = vcvt.s32.f32 %v4648
        %v4651 = vcvt.s32.f32 %v4649
        %4652 = vmin.xlane.f32.xlu0 %v4651
        %v4653 = vpop.xlane.xlu0 %4652
        %vm4654 = vcmp.eq.f32.partialorder %v4651, %v4653
        %v4655 = vsel %vm4654, %v4650, inf
        %4656 = vmin.xlane.f32.xlu0 %v4655
        %v4657 = vpop.xlane.xlu0 %4656
        %v4658 = vcvt.f32.s32 %v4657
        %v4659 = vcvt.f32.s32 %v4653
        %v4660 = vshll.u32 %v4659, 16
        %v4661 = vadd.s32 %v4660, %v4658
        %vm4662 = vcmp.lt.s32.totalorder %v3830, %v3831
        %v4663 = vsel %vm4662, %v3830, %v3831
        %vm4664 = vcmp.lt.s32.totalorder %v4663, %v3832
        %v4665 = vsel %vm4664, %v4663, %v3832
        %vm4666 = vcmp.lt.s32.totalorder %v4665, %v3833
        %v4667 = vsel %vm4666, %v4665, %v3833
        %v4668 = vand.u32 %v4667, 65535
        %v4669 = vshra.s32 %v4667, 16
        %v4670 = vcvt.s32.f32 %v4668
        %v4671 = vcvt.s32.f32 %v4669
        %4672 = vmin.xlane.f32.xlu0 %v4671
        %v4673 = vpop.xlane.xlu0 %4672
        %vm4674 = vcmp.eq.f32.partialorder %v4671, %v4673
        %v4675 = vsel %vm4674, %v4670, inf
        %4676 = vmin.xlane.f32.xlu0 %v4675
        %v4677 = vpop.xlane.xlu0 %4676
        %v4678 = vcvt.f32.s32 %v4677
        %v4679 = vcvt.f32.s32 %v4673
        %v4680 = vshll.u32 %v4679, 16
        %v4681 = vadd.s32 %v4680, %v4678
        %vm4682 = vcmp.lt.s32.totalorder %v3834, %v3835
        %v4683 = vsel %vm4682, %v3834, %v3835
        %vm4684 = vcmp.lt.s32.totalorder %v4683, %v3836
        %v4685 = vsel %vm4684, %v4683, %v3836
        %vm4686 = vcmp.lt.s32.totalorder %v4685, %v3837
        %v4687 = vsel %vm4686, %v4685, %v3837
        %v4688 = vand.u32 %v4687, 65535
        %v4689 = vshra.s32 %v4687, 16
        %v4690 = vcvt.s32.f32 %v4688
        %v4691 = vcvt.s32.f32 %v4689
        %4692 = vmin.xlane.f32.xlu0 %v4691
        %v4693 = vpop.xlane.xlu0 %4692
        %vm4694 = vcmp.eq.f32.partialorder %v4691, %v4693
        %v4695 = vsel %vm4694, %v4690, inf
        %4696 = vmin.xlane.f32.xlu0 %v4695
        %v4697 = vpop.xlane.xlu0 %4696
        %v4698 = vcvt.f32.s32 %v4697
        %v4699 = vcvt.f32.s32 %v4693
        %v4700 = vshll.u32 %v4699, 16
        %v4701 = vadd.s32 %v4700, %v4698
        %vm4702 = vcmp.lt.s32.totalorder %v3838, %v3839
        %v4703 = vsel %vm4702, %v3838, %v3839
        %vm4704 = vcmp.lt.s32.totalorder %v4703, %v3840
        %v4705 = vsel %vm4704, %v4703, %v3840
        %vm4706 = vcmp.lt.s32.totalorder %v4705, %v3841
        %v4707 = vsel %vm4706, %v4705, %v3841
        %v4708 = vand.u32 %v4707, 65535
        %v4709 = vshra.s32 %v4707, 16
        %v4710 = vcvt.s32.f32 %v4708
        %v4711 = vcvt.s32.f32 %v4709
        %4712 = vmin.xlane.f32.xlu0 %v4711
        %v4713 = vpop.xlane.xlu0 %4712
        %vm4714 = vcmp.eq.f32.partialorder %v4711, %v4713
        %v4715 = vsel %vm4714, %v4710, inf
        %4716 = vmin.xlane.f32.xlu0 %v4715
        %v4717 = vpop.xlane.xlu0 %4716
        %v4718 = vcvt.f32.s32 %v4717
        %v4719 = vcvt.f32.s32 %v4713
        %v4720 = vshll.u32 %v4719, 16
        %v4721 = vadd.s32 %v4720, %v4718
        %vm4722 = vcmp.lt.s32.totalorder %v3842, %v3843
        %v4723 = vsel %vm4722, %v3842, %v3843
        %vm4724 = vcmp.lt.s32.totalorder %v4723, %v3844
        %v4725 = vsel %vm4724, %v4723, %v3844
        %vm4726 = vcmp.lt.s32.totalorder %v4725, %v3845
        %v4727 = vsel %vm4726, %v4725, %v3845
        %v4728 = vand.u32 %v4727, 65535
        %v4729 = vshra.s32 %v4727, 16
        %v4730 = vcvt.s32.f32 %v4728
        %v4731 = vcvt.s32.f32 %v4729
        %4732 = vmin.xlane.f32.xlu0 %v4731
        %v4733 = vpop.xlane.xlu0 %4732
        %vm4734 = vcmp.eq.f32.partialorder %v4731, %v4733
        %v4735 = vsel %vm4734, %v4730, inf
        %4736 = vmin.xlane.f32.xlu0 %v4735
        %v4737 = vpop.xlane.xlu0 %4736
        %v4738 = vcvt.f32.s32 %v4737
        %v4739 = vcvt.f32.s32 %v4733
        %v4740 = vshll.u32 %v4739, 16
        %v4741 = vadd.s32 %v4740, %v4738
        %vm4742 = vcmp.lt.s32.totalorder %v3846, %v3847
        %v4743 = vsel %vm4742, %v3846, %v3847
        %vm4744 = vcmp.lt.s32.totalorder %v4743, %v3848
        %v4745 = vsel %vm4744, %v4743, %v3848
        %vm4746 = vcmp.lt.s32.totalorder %v4745, %v3849
        %v4747 = vsel %vm4746, %v4745, %v3849
        %v4748 = vand.u32 %v4747, 65535
        %v4749 = vshra.s32 %v4747, 16
        %v4750 = vcvt.s32.f32 %v4748
        %v4751 = vcvt.s32.f32 %v4749
        %4752 = vmin.xlane.f32.xlu0 %v4751
        %v4753 = vpop.xlane.xlu0 %4752
        %vm4754 = vcmp.eq.f32.partialorder %v4751, %v4753
        %v4755 = vsel %vm4754, %v4750, inf
        %4756 = vmin.xlane.f32.xlu0 %v4755
        %v4757 = vpop.xlane.xlu0 %4756
        %v4758 = vcvt.f32.s32 %v4757
        %v4759 = vcvt.f32.s32 %v4753
        %v4760 = vshll.u32 %v4759, 16
        %v4761 = vadd.s32 %v4760, %v4758
        %vm4762 = vcmp.lt.s32.totalorder %v3850, %v3851
        %v4763 = vsel %vm4762, %v3850, %v3851
        %vm4764 = vcmp.lt.s32.totalorder %v4763, %v3852
        %v4765 = vsel %vm4764, %v4763, %v3852
        %vm4766 = vcmp.lt.s32.totalorder %v4765, %v3853
        %v4767 = vsel %vm4766, %v4765, %v3853
        %v4768 = vand.u32 %v4767, 65535
        %v4769 = vshra.s32 %v4767, 16
        %v4770 = vcvt.s32.f32 %v4768
        %v4771 = vcvt.s32.f32 %v4769
        %4772 = vmin.xlane.f32.xlu0 %v4771
        %v4773 = vpop.xlane.xlu0 %4772
        %vm4774 = vcmp.eq.f32.partialorder %v4771, %v4773
        %v4775 = vsel %vm4774, %v4770, inf
        %4776 = vmin.xlane.f32.xlu0 %v4775
        %v4777 = vpop.xlane.xlu0 %4776
        %v4778 = vcvt.f32.s32 %v4777
        %v4779 = vcvt.f32.s32 %v4773
        %v4780 = vshll.u32 %v4779, 16
        %v4781 = vadd.s32 %v4780, %v4778
        %vm4782 = vcmp.lt.s32.totalorder %v3854, %v3855
        %v4783 = vsel %vm4782, %v3854, %v3855
        %vm4784 = vcmp.lt.s32.totalorder %v4783, %v3856
        %v4785 = vsel %vm4784, %v4783, %v3856
        %vm4786 = vcmp.lt.s32.totalorder %v4785, %v3857
        %v4787 = vsel %vm4786, %v4785, %v3857
        %v4788 = vand.u32 %v4787, 65535
        %v4789 = vshra.s32 %v4787, 16
        %v4790 = vcvt.s32.f32 %v4788
        %v4791 = vcvt.s32.f32 %v4789
        %4792 = vmin.xlane.f32.xlu0 %v4791
        %v4793 = vpop.xlane.xlu0 %4792
        %vm4794 = vcmp.eq.f32.partialorder %v4791, %v4793
        %v4795 = vsel %vm4794, %v4790, inf
        %4796 = vmin.xlane.f32.xlu0 %v4795
        %v4797 = vpop.xlane.xlu0 %4796
        %v4798 = vcvt.f32.s32 %v4797
        %v4799 = vcvt.f32.s32 %v4793
        %v4800 = vshll.u32 %v4799, 16
        %v4801 = vadd.s32 %v4800, %v4798
        %vm4802 = vcmp.lt.s32.totalorder %v3858, %v3859
        %v4803 = vsel %vm4802, %v3858, %v3859
        %vm4804 = vcmp.lt.s32.totalorder %v4803, %v3860
        %v4805 = vsel %vm4804, %v4803, %v3860
        %vm4806 = vcmp.lt.s32.totalorder %v4805, %v3861
        %v4807 = vsel %vm4806, %v4805, %v3861
        %v4808 = vand.u32 %v4807, 65535
        %v4809 = vshra.s32 %v4807, 16
        %v4810 = vcvt.s32.f32 %v4808
        %v4811 = vcvt.s32.f32 %v4809
        %4812 = vmin.xlane.f32.xlu0 %v4811
        %v4813 = vpop.xlane.xlu0 %4812
        %vm4814 = vcmp.eq.f32.partialorder %v4811, %v4813
        %v4815 = vsel %vm4814, %v4810, inf
        %4816 = vmin.xlane.f32.xlu0 %v4815
        %v4817 = vpop.xlane.xlu0 %4816
        %v4818 = vcvt.f32.s32 %v4817
        %v4819 = vcvt.f32.s32 %v4813
        %v4820 = vshll.u32 %v4819, 16
        %v4821 = vadd.s32 %v4820, %v4818
        %vm4822 = vcmp.lt.s32.totalorder %v3862, %v3863
        %v4823 = vsel %vm4822, %v3862, %v3863
        %vm4824 = vcmp.lt.s32.totalorder %v4823, %v3864
        %v4825 = vsel %vm4824, %v4823, %v3864
        %vm4826 = vcmp.lt.s32.totalorder %v4825, %v3865
        %v4827 = vsel %vm4826, %v4825, %v3865
        %v4828 = vand.u32 %v4827, 65535
        %v4829 = vshra.s32 %v4827, 16
        %v4830 = vcvt.s32.f32 %v4828
        %v4831 = vcvt.s32.f32 %v4829
        %4832 = vmin.xlane.f32.xlu0 %v4831
        %v4833 = vpop.xlane.xlu0 %4832
        %vm4834 = vcmp.eq.f32.partialorder %v4831, %v4833
        %v4835 = vsel %vm4834, %v4830, inf
        %4836 = vmin.xlane.f32.xlu0 %v4835
        %v4837 = vpop.xlane.xlu0 %4836
        %v4838 = vcvt.f32.s32 %v4837
        %v4839 = vcvt.f32.s32 %v4833
        %v4840 = vshll.u32 %v4839, 16
        %v4841 = vadd.s32 %v4840, %v4838
        %vm4842 = vcmp.lt.s32.totalorder %v3866, %v3867
        %v4843 = vsel %vm4842, %v3866, %v3867
        %vm4844 = vcmp.lt.s32.totalorder %v4843, %v3868
        %v4845 = vsel %vm4844, %v4843, %v3868
        %vm4846 = vcmp.lt.s32.totalorder %v4845, %v3869
        %v4847 = vsel %vm4846, %v4845, %v3869
        %v4848 = vand.u32 %v4847, 65535
        %v4849 = vshra.s32 %v4847, 16
        %v4850 = vcvt.s32.f32 %v4848
        %v4851 = vcvt.s32.f32 %v4849
        %4852 = vmin.xlane.f32.xlu0 %v4851
        %v4853 = vpop.xlane.xlu0 %4852
        %vm4854 = vcmp.eq.f32.partialorder %v4851, %v4853
        %v4855 = vsel %vm4854, %v4850, inf
        %4856 = vmin.xlane.f32.xlu0 %v4855
        %v4857 = vpop.xlane.xlu0 %4856
        %v4858 = vcvt.f32.s32 %v4857
        %v4859 = vcvt.f32.s32 %v4853
        %v4860 = vshll.u32 %v4859, 16
        %v4861 = vadd.s32 %v4860, %v4858
        %vm4862 = vcmp.lt.s32.totalorder %v3870, %v3871
        %v4863 = vsel %vm4862, %v3870, %v3871
        %vm4864 = vcmp.lt.s32.totalorder %v4863, %v3872
        %v4865 = vsel %vm4864, %v4863, %v3872
        %vm4866 = vcmp.lt.s32.totalorder %v4865, %v3873
        %v4867 = vsel %vm4866, %v4865, %v3873
        %v4868 = vand.u32 %v4867, 65535
        %v4869 = vshra.s32 %v4867, 16
        %v4870 = vcvt.s32.f32 %v4868
        %v4871 = vcvt.s32.f32 %v4869
        %4872 = vmin.xlane.f32.xlu0 %v4871
        %v4873 = vpop.xlane.xlu0 %4872
        %vm4874 = vcmp.eq.f32.partialorder %v4871, %v4873
        %v4875 = vsel %vm4874, %v4870, inf
        %4876 = vmin.xlane.f32.xlu0 %v4875
        %v4877 = vpop.xlane.xlu0 %4876
        %v4878 = vcvt.f32.s32 %v4877
        %v4879 = vcvt.f32.s32 %v4873
        %v4880 = vshll.u32 %v4879, 16
        %v4881 = vadd.s32 %v4880, %v4878
        %vm4882 = vcmp.lt.s32.totalorder %v3874, %v3875
        %v4883 = vsel %vm4882, %v3874, %v3875
        %vm4884 = vcmp.lt.s32.totalorder %v4883, %v3876
        %v4885 = vsel %vm4884, %v4883, %v3876
        %vm4886 = vcmp.lt.s32.totalorder %v4885, %v3877
        %v4887 = vsel %vm4886, %v4885, %v3877
        %v4888 = vand.u32 %v4887, 65535
        %v4889 = vshra.s32 %v4887, 16
        %v4890 = vcvt.s32.f32 %v4888
        %v4891 = vcvt.s32.f32 %v4889
        %4892 = vmin.xlane.f32.xlu0 %v4891
        %v4893 = vpop.xlane.xlu0 %4892
        %vm4894 = vcmp.eq.f32.partialorder %v4891, %v4893
        %v4895 = vsel %vm4894, %v4890, inf
        %4896 = vmin.xlane.f32.xlu0 %v4895
        %v4897 = vpop.xlane.xlu0 %4896
        %v4898 = vcvt.f32.s32 %v4897
        %v4899 = vcvt.f32.s32 %v4893
        %v4900 = vshll.u32 %v4899, 16
        %v4901 = vadd.s32 %v4900, %v4898
        %vm4902 = vcmp.lt.s32.totalorder %v3878, %v3879
        %v4903 = vsel %vm4902, %v3878, %v3879
        %vm4904 = vcmp.lt.s32.totalorder %v4903, %v3880
        %v4905 = vsel %vm4904, %v4903, %v3880
        %vm4906 = vcmp.lt.s32.totalorder %v4905, %v3881
        %v4907 = vsel %vm4906, %v4905, %v3881
        %v4908 = vand.u32 %v4907, 65535
        %v4909 = vshra.s32 %v4907, 16
        %v4910 = vcvt.s32.f32 %v4908
        %v4911 = vcvt.s32.f32 %v4909
        %4912 = vmin.xlane.f32.xlu0 %v4911
        %v4913 = vpop.xlane.xlu0 %4912
        %vm4914 = vcmp.eq.f32.partialorder %v4911, %v4913
        %v4915 = vsel %vm4914, %v4910, inf
        %4916 = vmin.xlane.f32.xlu0 %v4915
        %v4917 = vpop.xlane.xlu0 %4916
        %v4918 = vcvt.f32.s32 %v4917
        %v4919 = vcvt.f32.s32 %v4913
        %v4920 = vshll.u32 %v4919, 16
        %v4921 = vadd.s32 %v4920, %v4918
        %vm4922 = vcmp.lt.s32.totalorder %v3882, %v3883
        %v4923 = vsel %vm4922, %v3882, %v3883
        %vm4924 = vcmp.lt.s32.totalorder %v4923, %v3884
        %v4925 = vsel %vm4924, %v4923, %v3884
        %vm4926 = vcmp.lt.s32.totalorder %v4925, %v3885
        %v4927 = vsel %vm4926, %v4925, %v3885
        %v4928 = vand.u32 %v4927, 65535
        %v4929 = vshra.s32 %v4927, 16
        %v4930 = vcvt.s32.f32 %v4928
        %v4931 = vcvt.s32.f32 %v4929
        %4932 = vmin.xlane.f32.xlu0 %v4931
        %v4933 = vpop.xlane.xlu0 %4932
        %vm4934 = vcmp.eq.f32.partialorder %v4931, %v4933
        %v4935 = vsel %vm4934, %v4930, inf
        %4936 = vmin.xlane.f32.xlu0 %v4935
        %v4937 = vpop.xlane.xlu0 %4936
        %v4938 = vcvt.f32.s32 %v4937
        %v4939 = vcvt.f32.s32 %v4933
        %v4940 = vshll.u32 %v4939, 16
        %v4941 = vadd.s32 %v4940, %v4938
        %vm4942 = vcmp.lt.s32.totalorder %v3886, %v3887
        %v4943 = vsel %vm4942, %v3886, %v3887
        %vm4944 = vcmp.lt.s32.totalorder %v4943, %v3888
        %v4945 = vsel %vm4944, %v4943, %v3888
        %vm4946 = vcmp.lt.s32.totalorder %v4945, %v3889
        %v4947 = vsel %vm4946, %v4945, %v3889
        %v4948 = vand.u32 %v4947, 65535
        %v4949 = vshra.s32 %v4947, 16
        %v4950 = vcvt.s32.f32 %v4948
        %v4951 = vcvt.s32.f32 %v4949
        %4952 = vmin.xlane.f32.xlu0 %v4951
        %v4953 = vpop.xlane.xlu0 %4952
        %vm4954 = vcmp.eq.f32.partialorder %v4951, %v4953
        %v4955 = vsel %vm4954, %v4950, inf
        %4956 = vmin.xlane.f32.xlu0 %v4955
        %v4957 = vpop.xlane.xlu0 %4956
        %v4958 = vcvt.f32.s32 %v4957
        %v4959 = vcvt.f32.s32 %v4953
        %v4960 = vshll.u32 %v4959, 16
        %v4961 = vadd.s32 %v4960, %v4958
        %vm4962 = vcmp.lt.s32.totalorder %v3890, %v3891
        %v4963 = vsel %vm4962, %v3890, %v3891
        %vm4964 = vcmp.lt.s32.totalorder %v4963, %v3892
        %v4965 = vsel %vm4964, %v4963, %v3892
        %vm4966 = vcmp.lt.s32.totalorder %v4965, %v3893
        %v4967 = vsel %vm4966, %v4965, %v3893
        %v4968 = vand.u32 %v4967, 65535
        %v4969 = vshra.s32 %v4967, 16
        %v4970 = vcvt.s32.f32 %v4968
        %v4971 = vcvt.s32.f32 %v4969
        %4972 = vmin.xlane.f32.xlu0 %v4971
        %v4973 = vpop.xlane.xlu0 %4972
        %vm4974 = vcmp.eq.f32.partialorder %v4971, %v4973
        %v4975 = vsel %vm4974, %v4970, inf
        %4976 = vmin.xlane.f32.xlu0 %v4975
        %v4977 = vpop.xlane.xlu0 %4976
        %v4978 = vcvt.f32.s32 %v4977
        %v4979 = vcvt.f32.s32 %v4973
        %v4980 = vshll.u32 %v4979, 16
        %v4981 = vadd.s32 %v4980, %v4978
        %vm4982 = vcmp.lt.s32.totalorder %v3894, %v3895
        %v4983 = vsel %vm4982, %v3894, %v3895
        %vm4984 = vcmp.lt.s32.totalorder %v4983, %v3896
        %v4985 = vsel %vm4984, %v4983, %v3896
        %vm4986 = vcmp.lt.s32.totalorder %v4985, %v3897
        %v4987 = vsel %vm4986, %v4985, %v3897
        %v4988 = vand.u32 %v4987, 65535
        %v4989 = vshra.s32 %v4987, 16
        %v4990 = vcvt.s32.f32 %v4988
        %v4991 = vcvt.s32.f32 %v4989
        %4992 = vmin.xlane.f32.xlu0 %v4991
        %v4993 = vpop.xlane.xlu0 %4992
        %vm4994 = vcmp.eq.f32.partialorder %v4991, %v4993
        %v4995 = vsel %vm4994, %v4990, inf
        %4996 = vmin.xlane.f32.xlu0 %v4995
        %v4997 = vpop.xlane.xlu0 %4996
        %v4998 = vcvt.f32.s32 %v4997
        %v4999 = vcvt.f32.s32 %v4993
        %v5000 = vshll.u32 %v4999, 16
        %v5001 = vadd.s32 %v5000, %v4998
        %vm5002 = vcmp.lt.s32.totalorder %v3898, %v3899
        %v5003 = vsel %vm5002, %v3898, %v3899
        %vm5004 = vcmp.lt.s32.totalorder %v5003, %v3900
        %v5005 = vsel %vm5004, %v5003, %v3900
        %vm5006 = vcmp.lt.s32.totalorder %v5005, %v3901
        %v5007 = vsel %vm5006, %v5005, %v3901
        %v5008 = vand.u32 %v5007, 65535
        %v5009 = vshra.s32 %v5007, 16
        %v5010 = vcvt.s32.f32 %v5008
        %v5011 = vcvt.s32.f32 %v5009
        %5012 = vmin.xlane.f32.xlu0 %v5011
        %v5013 = vpop.xlane.xlu0 %5012
        %vm5014 = vcmp.eq.f32.partialorder %v5011, %v5013
        %v5015 = vsel %vm5014, %v5010, inf
        %5016 = vmin.xlane.f32.xlu0 %v5015
        %v5017 = vpop.xlane.xlu0 %5016
        %v5018 = vcvt.f32.s32 %v5017
        %v5019 = vcvt.f32.s32 %v5013
        %v5020 = vshll.u32 %v5019, 16
        %v5021 = vadd.s32 %v5020, %v5018
        %vm5022 = vcmp.lt.s32.totalorder %v3902, %v3903
        %v5023 = vsel %vm5022, %v3902, %v3903
        %vm5024 = vcmp.lt.s32.totalorder %v5023, %v3904
        %v5025 = vsel %vm5024, %v5023, %v3904
        %vm5026 = vcmp.lt.s32.totalorder %v5025, %v3905
        %v5027 = vsel %vm5026, %v5025, %v3905
        %v5028 = vand.u32 %v5027, 65535
        %v5029 = vshra.s32 %v5027, 16
        %v5030 = vcvt.s32.f32 %v5028
        %v5031 = vcvt.s32.f32 %v5029
        %5032 = vmin.xlane.f32.xlu0 %v5031
        %v5033 = vpop.xlane.xlu0 %5032
        %vm5034 = vcmp.eq.f32.partialorder %v5031, %v5033
        %v5035 = vsel %vm5034, %v5030, inf
        %5036 = vmin.xlane.f32.xlu0 %v5035
        %v5037 = vpop.xlane.xlu0 %5036
        %v5038 = vcvt.f32.s32 %v5037
        %v5039 = vcvt.f32.s32 %v5033
        %v5040 = vshll.u32 %v5039, 16
        %v5041 = vadd.s32 %v5040, %v5038
        %vm5042 = vcmp.lt.s32.totalorder %v3906, %v3907
        %v5043 = vsel %vm5042, %v3906, %v3907
        %vm5044 = vcmp.lt.s32.totalorder %v5043, %v3908
        %v5045 = vsel %vm5044, %v5043, %v3908
        %vm5046 = vcmp.lt.s32.totalorder %v5045, %v3909
        %v5047 = vsel %vm5046, %v5045, %v3909
        %v5048 = vand.u32 %v5047, 65535
        %v5049 = vshra.s32 %v5047, 16
        %v5050 = vcvt.s32.f32 %v5048
        %v5051 = vcvt.s32.f32 %v5049
        %5052 = vmin.xlane.f32.xlu0 %v5051
        %v5053 = vpop.xlane.xlu0 %5052
        %vm5054 = vcmp.eq.f32.partialorder %v5051, %v5053
        %v5055 = vsel %vm5054, %v5050, inf
        %5056 = vmin.xlane.f32.xlu0 %v5055
        %v5057 = vpop.xlane.xlu0 %5056
        %v5058 = vcvt.f32.s32 %v5057
        %v5059 = vcvt.f32.s32 %v5053
        %v5060 = vshll.u32 %v5059, 16
        %v5061 = vadd.s32 %v5060, %v5058
        %vm5062 = vcmp.lt.s32.totalorder %v3910, %v3911
        %v5063 = vsel %vm5062, %v3910, %v3911
        %vm5064 = vcmp.lt.s32.totalorder %v5063, %v3912
        %v5065 = vsel %vm5064, %v5063, %v3912
        %vm5066 = vcmp.lt.s32.totalorder %v5065, %v3913
        %v5067 = vsel %vm5066, %v5065, %v3913
        %v5068 = vand.u32 %v5067, 65535
        %v5069 = vshra.s32 %v5067, 16
        %v5070 = vcvt.s32.f32 %v5068
        %v5071 = vcvt.s32.f32 %v5069
        %5072 = vmin.xlane.f32.xlu0 %v5071
        %v5073 = vpop.xlane.xlu0 %5072
        %vm5074 = vcmp.eq.f32.partialorder %v5071, %v5073
        %v5075 = vsel %vm5074, %v5070, inf
        %5076 = vmin.xlane.f32.xlu0 %v5075
        %v5077 = vpop.xlane.xlu0 %5076
        %v5078 = vcvt.f32.s32 %v5077
        %v5079 = vcvt.f32.s32 %v5073
        %v5080 = vshll.u32 %v5079, 16
        %v5081 = vadd.s32 %v5080, %v5078
        %vm5082 = vcmp.lt.s32.totalorder %v3914, %v3915
        %v5083 = vsel %vm5082, %v3914, %v3915
        %vm5084 = vcmp.lt.s32.totalorder %v5083, %v3916
        %v5085 = vsel %vm5084, %v5083, %v3916
        %vm5086 = vcmp.lt.s32.totalorder %v5085, %v3917
        %v5087 = vsel %vm5086, %v5085, %v3917
        %v5088 = vand.u32 %v5087, 65535
        %v5089 = vshra.s32 %v5087, 16
        %v5090 = vcvt.s32.f32 %v5088
        %v5091 = vcvt.s32.f32 %v5089
        %5092 = vmin.xlane.f32.xlu0 %v5091
        %v5093 = vpop.xlane.xlu0 %5092
        %vm5094 = vcmp.eq.f32.partialorder %v5091, %v5093
        %v5095 = vsel %vm5094, %v5090, inf
        %5096 = vmin.xlane.f32.xlu0 %v5095
        %v5097 = vpop.xlane.xlu0 %5096
        %v5098 = vcvt.f32.s32 %v5097
        %v5099 = vcvt.f32.s32 %v5093
        %v5100 = vshll.u32 %v5099, 16
        %v5101 = vadd.s32 %v5100, %v5098
        %vm5102 = vcmp.lt.s32.totalorder %v3918, %v3919
        %v5103 = vsel %vm5102, %v3918, %v3919
        %vm5104 = vcmp.lt.s32.totalorder %v5103, %v3920
        %v5105 = vsel %vm5104, %v5103, %v3920
        %vm5106 = vcmp.lt.s32.totalorder %v5105, %v3921
        %v5107 = vsel %vm5106, %v5105, %v3921
        %v5108 = vand.u32 %v5107, 65535
        %v5109 = vshra.s32 %v5107, 16
        %v5110 = vcvt.s32.f32 %v5108
        %v5111 = vcvt.s32.f32 %v5109
        %5112 = vmin.xlane.f32.xlu0 %v5111
        %v5113 = vpop.xlane.xlu0 %5112
        %vm5114 = vcmp.eq.f32.partialorder %v5111, %v5113
        %v5115 = vsel %vm5114, %v5110, inf
        %5116 = vmin.xlane.f32.xlu0 %v5115
        %v5117 = vpop.xlane.xlu0 %5116
        %v5118 = vcvt.f32.s32 %v5117
        %v5119 = vcvt.f32.s32 %v5113
        %v5120 = vshll.u32 %v5119, 16
        %v5121 = vadd.s32 %v5120, %v5118
        %vm5122 = vcmp.lt.s32.totalorder %v3922, %v3923
        %v5123 = vsel %vm5122, %v3922, %v3923
        %vm5124 = vcmp.lt.s32.totalorder %v5123, %v3924
        %v5125 = vsel %vm5124, %v5123, %v3924
        %vm5126 = vcmp.lt.s32.totalorder %v5125, %v3925
        %v5127 = vsel %vm5126, %v5125, %v3925
        %v5128 = vand.u32 %v5127, 65535
        %v5129 = vshra.s32 %v5127, 16
        %v5130 = vcvt.s32.f32 %v5128
        %v5131 = vcvt.s32.f32 %v5129
        %5132 = vmin.xlane.f32.xlu0 %v5131
        %v5133 = vpop.xlane.xlu0 %5132
        %vm5134 = vcmp.eq.f32.partialorder %v5131, %v5133
        %v5135 = vsel %vm5134, %v5130, inf
        %5136 = vmin.xlane.f32.xlu0 %v5135
        %v5137 = vpop.xlane.xlu0 %5136
        %v5138 = vcvt.f32.s32 %v5137
        %v5139 = vcvt.f32.s32 %v5133
        %v5140 = vshll.u32 %v5139, 16
        %v5141 = vadd.s32 %v5140, %v5138
        %vm5142 = vcmp.lt.s32.totalorder %v3926, %v3927
        %v5143 = vsel %vm5142, %v3926, %v3927
        %vm5144 = vcmp.lt.s32.totalorder %v5143, %v3928
        %v5145 = vsel %vm5144, %v5143, %v3928
        %vm5146 = vcmp.lt.s32.totalorder %v5145, %v3929
        %v5147 = vsel %vm5146, %v5145, %v3929
        %v5148 = vand.u32 %v5147, 65535
        %v5149 = vshra.s32 %v5147, 16
        %v5150 = vcvt.s32.f32 %v5148
        %v5151 = vcvt.s32.f32 %v5149
        %5152 = vmin.xlane.f32.xlu0 %v5151
        %v5153 = vpop.xlane.xlu0 %5152
        %vm5154 = vcmp.eq.f32.partialorder %v5151, %v5153
        %v5155 = vsel %vm5154, %v5150, inf
        %5156 = vmin.xlane.f32.xlu0 %v5155
        %v5157 = vpop.xlane.xlu0 %5156
        %v5158 = vcvt.f32.s32 %v5157
        %v5159 = vcvt.f32.s32 %v5153
        %v5160 = vshll.u32 %v5159, 16
        %v5161 = vadd.s32 %v5160, %v5158
        %vm5162 = vcmp.lt.s32.totalorder %v3930, %v3931
        %v5163 = vsel %vm5162, %v3930, %v3931
        %vm5164 = vcmp.lt.s32.totalorder %v5163, %v3932
        %v5165 = vsel %vm5164, %v5163, %v3932
        %vm5166 = vcmp.lt.s32.totalorder %v5165, %v3933
        %v5167 = vsel %vm5166, %v5165, %v3933
        %v5168 = vand.u32 %v5167, 65535
        %v5169 = vshra.s32 %v5167, 16
        %v5170 = vcvt.s32.f32 %v5168
        %v5171 = vcvt.s32.f32 %v5169
        %5172 = vmin.xlane.f32.xlu0 %v5171
        %v5173 = vpop.xlane.xlu0 %5172
        %vm5174 = vcmp.eq.f32.partialorder %v5171, %v5173
        %v5175 = vsel %vm5174, %v5170, inf
        %5176 = vmin.xlane.f32.xlu0 %v5175
        %v5177 = vpop.xlane.xlu0 %5176
        %v5178 = vcvt.f32.s32 %v5177
        %v5179 = vcvt.f32.s32 %v5173
        %v5180 = vshll.u32 %v5179, 16
        %v5181 = vadd.s32 %v5180, %v5178
        %vm5182 = vcmp.lt.s32.totalorder %v3934, %v3935
        %v5183 = vsel %vm5182, %v3934, %v3935
        %vm5184 = vcmp.lt.s32.totalorder %v5183, %v3936
        %v5185 = vsel %vm5184, %v5183, %v3936
        %vm5186 = vcmp.lt.s32.totalorder %v5185, %v3937
        %v5187 = vsel %vm5186, %v5185, %v3937
        %v5188 = vand.u32 %v5187, 65535
        %v5189 = vshra.s32 %v5187, 16
        %v5190 = vcvt.s32.f32 %v5188
        %v5191 = vcvt.s32.f32 %v5189
        %5192 = vmin.xlane.f32.xlu0 %v5191
        %v5193 = vpop.xlane.xlu0 %5192
        %vm5194 = vcmp.eq.f32.partialorder %v5191, %v5193
        %v5195 = vsel %vm5194, %v5190, inf
        %5196 = vmin.xlane.f32.xlu0 %v5195
        %v5197 = vpop.xlane.xlu0 %5196
        %v5198 = vcvt.f32.s32 %v5197
        %v5199 = vcvt.f32.s32 %v5193
        %v5200 = vshll.u32 %v5199, 16
        %v5201 = vadd.s32 %v5200, %v5198
        %vm5202 = vcmp.lt.s32.totalorder %v3938, %v3939
        %v5203 = vsel %vm5202, %v3938, %v3939
        %vm5204 = vcmp.lt.s32.totalorder %v5203, %v3940
        %v5205 = vsel %vm5204, %v5203, %v3940
        %vm5206 = vcmp.lt.s32.totalorder %v5205, %v3941
        %v5207 = vsel %vm5206, %v5205, %v3941
        %v5208 = vand.u32 %v5207, 65535
        %v5209 = vshra.s32 %v5207, 16
        %v5210 = vcvt.s32.f32 %v5208
        %v5211 = vcvt.s32.f32 %v5209
        %5212 = vmin.xlane.f32.xlu0 %v5211
        %v5213 = vpop.xlane.xlu0 %5212
        %vm5214 = vcmp.eq.f32.partialorder %v5211, %v5213
        %v5215 = vsel %vm5214, %v5210, inf
        %5216 = vmin.xlane.f32.xlu0 %v5215
        %v5217 = vpop.xlane.xlu0 %5216
        %v5218 = vcvt.f32.s32 %v5217
        %v5219 = vcvt.f32.s32 %v5213
        %v5220 = vshll.u32 %v5219, 16
        %v5221 = vadd.s32 %v5220, %v5218
        %v5222 = vld [vmem:[#allocation2] sm:$0xff]
        %v5223 = vld [vmem:[#allocation2 + $0x8] sm:$0xff]
        %v5224 = vld [vmem:[#allocation2 + $0x10] sm:$0xff]
        %v5225 = vld [vmem:[#allocation2 + $0x18] sm:$0xff]
        %v5226 = vld [vmem:[#allocation2 + $0x20] sm:$0xff]
        %v5227 = vld [vmem:[#allocation2 + $0x28] sm:$0xff]
        %v5228 = vld [vmem:[#allocation2 + $0x30] sm:$0xff]
        %v5229 = vld [vmem:[#allocation2 + $0x38] sm:$0xff]
        %v5230 = vld [vmem:[#allocation2 + $0x40] sm:$0xff]
        %v5231 = vld [vmem:[#allocation2 + $0x48] sm:$0xff]
        %v5232 = vld [vmem:[#allocation2 + $0x50] sm:$0xff]
        %v5233 = vld [vmem:[#allocation2 + $0x58] sm:$0xff]
        %v5234 = vld [vmem:[#allocation2 + $0x60] sm:$0xff]
        %v5235 = vld [vmem:[#allocation2 + $0x68] sm:$0xff]
        %v5236 = vld [vmem:[#allocation2 + $0x70] sm:$0xff]
        %v5237 = vld [vmem:[#allocation2 + $0x78] sm:$0xff]
        %v5238 = vld [vmem:[#allocation2 + $0x80] sm:$0xff]
        %v5239 = vld [vmem:[#allocation2 + $0x88] sm:$0xff]
        %v5240 = vld [vmem:[#allocation2 + $0x90] sm:$0xff]
        %v5241 = vld [vmem:[#allocation2 + $0x98] sm:$0xff]
        %v5242 = vld [vmem:[#allocation2 + $0xa0] sm:$0xff]
        %v5243 = vld [vmem:[#allocation2 + $0xa8] sm:$0xff]
        %v5244 = vld [vmem:[#allocation2 + $0xb0] sm:$0xff]
        %v5245 = vld [vmem:[#allocation2 + $0xb8] sm:$0xff]
        %v5246 = vld [vmem:[#allocation2 + $0xc0] sm:$0xff]
        %v5247 = vld [vmem:[#allocation2 + $0xc8] sm:$0xff]
        %v5248 = vld [vmem:[#allocation2 + $0xd0] sm:$0xff]
        %v5249 = vld [vmem:[#allocation2 + $0xd8] sm:$0xff]
        %v5250 = vld [vmem:[#allocation2 + $0xe0] sm:$0xff]
        %v5251 = vld [vmem:[#allocation2 + $0xe8] sm:$0xff]
        %v5252 = vld [vmem:[#allocation2 + $0xf0] sm:$0xff]
        %v5253 = vld [vmem:[#allocation2 + $0xf8] sm:$0xff]
        %v5254 = vld [vmem:[#allocation2 + $0x100] sm:$0xff]
        %v5255 = vld [vmem:[#allocation2 + $0x108] sm:$0xff]
        %v5256 = vld [vmem:[#allocation2 + $0x110] sm:$0xff]
        %v5257 = vld [vmem:[#allocation2 + $0x118] sm:$0xff]
        %v5258 = vld [vmem:[#allocation2 + $0x120] sm:$0xff]
        %v5259 = vld [vmem:[#allocation2 + $0x128] sm:$0xff]
        %v5260 = vld [vmem:[#allocation2 + $0x130] sm:$0xff]
        %v5261 = vld [vmem:[#allocation2 + $0x138] sm:$0xff]
        %v5262 = vld [vmem:[#allocation2 + $0x140] sm:$0xff]
        %v5263 = vld [vmem:[#allocation2 + $0x148] sm:$0xff]
        %v5264 = vld [vmem:[#allocation2 + $0x150] sm:$0xff]
        %v5265 = vld [vmem:[#allocation2 + $0x158] sm:$0xff]
        %v5266 = vld [vmem:[#allocation2 + $0x160] sm:$0xff]
        %v5267 = vld [vmem:[#allocation2 + $0x168] sm:$0xff]
        %v5268 = vld [vmem:[#allocation2 + $0x170] sm:$0xff]
        %v5269 = vld [vmem:[#allocation2 + $0x178] sm:$0xff]
        %v5270 = vld [vmem:[#allocation2 + $0x180] sm:$0xff]
        %v5271 = vld [vmem:[#allocation2 + $0x188] sm:$0xff]
        %v5272 = vld [vmem:[#allocation2 + $0x190] sm:$0xff]
        %v5273 = vld [vmem:[#allocation2 + $0x198] sm:$0xff]
        %v5274 = vld [vmem:[#allocation2 + $0x1a0] sm:$0xff]
        %v5275 = vld [vmem:[#allocation2 + $0x1a8] sm:$0xff]
        %v5276 = vld [vmem:[#allocation2 + $0x1b0] sm:$0xff]
        %v5277 = vld [vmem:[#allocation2 + $0x1b8] sm:$0xff]
        %v5278 = vld [vmem:[#allocation2 + $0x1c0] sm:$0xff]
        %v5279 = vld [vmem:[#allocation2 + $0x1c8] sm:$0xff]
        %v5280 = vld [vmem:[#allocation2 + $0x1d0] sm:$0xff]
        %v5281 = vld [vmem:[#allocation2 + $0x1d8] sm:$0xff]
        %v5282 = vld [vmem:[#allocation2 + $0x1e0] sm:$0xff]
        %v5283 = vld [vmem:[#allocation2 + $0x1e8] sm:$0xff]
        %v5284 = vld [vmem:[#allocation2 + $0x1f0] sm:$0xff]
        %v5285 = vld [vmem:[#allocation2 + $0x1f8] sm:$0xff]
        %vm5286 = vcmp.gt.f32.partialorder %v3114, %v5222
        %vm5287 = vcmp.gt.f32.partialorder %v3119, %v5223
        %vm5288 = vcmp.gt.f32.partialorder %v3124, %v5224
        %vm5289 = vcmp.gt.f32.partialorder %v3129, %v5225
        %vm5290 = vcmp.gt.f32.partialorder %v3134, %v5226
        %vm5291 = vcmp.gt.f32.partialorder %v3139, %v5227
        %vm5292 = vcmp.gt.f32.partialorder %v3144, %v5228
        %vm5293 = vcmp.gt.f32.partialorder %v3149, %v5229
        %vm5294 = vcmp.gt.f32.partialorder %v3154, %v5230
        %vm5295 = vcmp.gt.f32.partialorder %v3159, %v5231
        %vm5296 = vcmp.gt.f32.partialorder %v3164, %v5232
        %vm5297 = vcmp.gt.f32.partialorder %v3169, %v5233
        %vm5298 = vcmp.gt.f32.partialorder %v3174, %v5234
        %vm5299 = vcmp.gt.f32.partialorder %v3179, %v5235
        %vm5300 = vcmp.gt.f32.partialorder %v3184, %v5236
        %vm5301 = vcmp.gt.f32.partialorder %v3189, %v5237
        %vm5302 = vcmp.gt.f32.partialorder %v3194, %v5238
        %vm5303 = vcmp.gt.f32.partialorder %v3199, %v5239
        %vm5304 = vcmp.gt.f32.partialorder %v3204, %v5240
        %vm5305 = vcmp.gt.f32.partialorder %v3209, %v5241
        %vm5306 = vcmp.gt.f32.partialorder %v3214, %v5242
        %vm5307 = vcmp.gt.f32.partialorder %v3219, %v5243
        %vm5308 = vcmp.gt.f32.partialorder %v3224, %v5244
        %vm5309 = vcmp.gt.f32.partialorder %v3229, %v5245
        %vm5310 = vcmp.gt.f32.partialorder %v3234, %v5246
        %vm5311 = vcmp.gt.f32.partialorder %v3239, %v5247
        %vm5312 = vcmp.gt.f32.partialorder %v3244, %v5248
        %vm5313 = vcmp.gt.f32.partialorder %v3249, %v5249
        %vm5314 = vcmp.gt.f32.partialorder %v3254, %v5250
        %vm5315 = vcmp.gt.f32.partialorder %v3259, %v5251
        %vm5316 = vcmp.gt.f32.partialorder %v3264, %v5252
        %vm5317 = vcmp.gt.f32.partialorder %v3269, %v5253
        %vm5318 = vcmp.gt.f32.partialorder %v3274, %v5254
        %vm5319 = vcmp.gt.f32.partialorder %v3279, %v5255
        %vm5320 = vcmp.gt.f32.partialorder %v3284, %v5256
        %vm5321 = vcmp.gt.f32.partialorder %v3289, %v5257
        %vm5322 = vcmp.gt.f32.partialorder %v3294, %v5258
        %vm5323 = vcmp.gt.f32.partialorder %v3299, %v5259
        %vm5324 = vcmp.gt.f32.partialorder %v3304, %v5260
        %vm5325 = vcmp.gt.f32.partialorder %v3309, %v5261
        %vm5326 = vcmp.gt.f32.partialorder %v3314, %v5262
        %vm5327 = vcmp.gt.f32.partialorder %v3319, %v5263
        %vm5328 = vcmp.gt.f32.partialorder %v3324, %v5264
        %vm5329 = vcmp.gt.f32.partialorder %v3329, %v5265
        %vm5330 = vcmp.gt.f32.partialorder %v3334, %v5266
        %vm5331 = vcmp.gt.f32.partialorder %v3339, %v5267
        %vm5332 = vcmp.gt.f32.partialorder %v3344, %v5268
        %vm5333 = vcmp.gt.f32.partialorder %v3349, %v5269
        %vm5334 = vcmp.gt.f32.partialorder %v3354, %v5270
        %vm5335 = vcmp.gt.f32.partialorder %v3359, %v5271
        %vm5336 = vcmp.gt.f32.partialorder %v3364, %v5272
        %vm5337 = vcmp.gt.f32.partialorder %v3369, %v5273
        %vm5338 = vcmp.gt.f32.partialorder %v3374, %v5274
        %vm5339 = vcmp.gt.f32.partialorder %v3379, %v5275
        %vm5340 = vcmp.gt.f32.partialorder %v3384, %v5276
        %vm5341 = vcmp.gt.f32.partialorder %v3389, %v5277
        %vm5342 = vcmp.gt.f32.partialorder %v3394, %v5278
        %vm5343 = vcmp.gt.f32.partialorder %v3399, %v5279
        %vm5344 = vcmp.gt.f32.partialorder %v3404, %v5280
        %vm5345 = vcmp.gt.f32.partialorder %v3409, %v5281
        %vm5346 = vcmp.gt.f32.partialorder %v3414, %v5282
        %vm5347 = vcmp.gt.f32.partialorder %v3419, %v5283
        %vm5348 = vcmp.gt.f32.partialorder %v3424, %v5284
        %vm5349 = vcmp.gt.f32.partialorder %v3429, %v5285
        %v5350 = vld [vmem:[#allocation5] sm:$0xff]
        %v5351 = vld [vmem:[#allocation5 + $0x8] sm:$0xff]
        %v5352 = vld [vmem:[#allocation5 + $0x10] sm:$0xff]
        %v5353 = vld [vmem:[#allocation5 + $0x18] sm:$0xff]
        %v5354 = vld [vmem:[#allocation5 + $0x20] sm:$0xff]
        %v5355 = vld [vmem:[#allocation5 + $0x28] sm:$0xff]
        %v5356 = vld [vmem:[#allocation5 + $0x30] sm:$0xff]
        %v5357 = vld [vmem:[#allocation5 + $0x38] sm:$0xff]
        %v5358 = vld [vmem:[#allocation5 + $0x40] sm:$0xff]
        %v5359 = vld [vmem:[#allocation5 + $0x48] sm:$0xff]
        %v5360 = vld [vmem:[#allocation5 + $0x50] sm:$0xff]
        %v5361 = vld [vmem:[#allocation5 + $0x58] sm:$0xff]
        %v5362 = vld [vmem:[#allocation5 + $0x60] sm:$0xff]
        %v5363 = vld [vmem:[#allocation5 + $0x68] sm:$0xff]
        %v5364 = vld [vmem:[#allocation5 + $0x70] sm:$0xff]
        %v5365 = vld [vmem:[#allocation5 + $0x78] sm:$0xff]
        %v5366 = vld [vmem:[#allocation5 + $0x80] sm:$0xff]
        %v5367 = vld [vmem:[#allocation5 + $0x88] sm:$0xff]
        %v5368 = vld [vmem:[#allocation5 + $0x90] sm:$0xff]
        %v5369 = vld [vmem:[#allocation5 + $0x98] sm:$0xff]
        %v5370 = vld [vmem:[#allocation5 + $0xa0] sm:$0xff]
        %v5371 = vld [vmem:[#allocation5 + $0xa8] sm:$0xff]
        %v5372 = vld [vmem:[#allocation5 + $0xb0] sm:$0xff]
        %v5373 = vld [vmem:[#allocation5 + $0xb8] sm:$0xff]
        %v5374 = vld [vmem:[#allocation5 + $0xc0] sm:$0xff]
        %v5375 = vld [vmem:[#allocation5 + $0xc8] sm:$0xff]
        %v5376 = vld [vmem:[#allocation5 + $0xd0] sm:$0xff]
        %v5377 = vld [vmem:[#allocation5 + $0xd8] sm:$0xff]
        %v5378 = vld [vmem:[#allocation5 + $0xe0] sm:$0xff]
        %v5379 = vld [vmem:[#allocation5 + $0xe8] sm:$0xff]
        %v5380 = vld [vmem:[#allocation5 + $0xf0] sm:$0xff]
        %v5381 = vld [vmem:[#allocation5 + $0xf8] sm:$0xff]
        %v5382 = vld [vmem:[#allocation5 + $0x100] sm:$0xff]
        %v5383 = vld [vmem:[#allocation5 + $0x108] sm:$0xff]
        %v5384 = vld [vmem:[#allocation5 + $0x110] sm:$0xff]
        %v5385 = vld [vmem:[#allocation5 + $0x118] sm:$0xff]
        %v5386 = vld [vmem:[#allocation5 + $0x120] sm:$0xff]
        %v5387 = vld [vmem:[#allocation5 + $0x128] sm:$0xff]
        %v5388 = vld [vmem:[#allocation5 + $0x130] sm:$0xff]
        %v5389 = vld [vmem:[#allocation5 + $0x138] sm:$0xff]
        %v5390 = vld [vmem:[#allocation5 + $0x140] sm:$0xff]
        %v5391 = vld [vmem:[#allocation5 + $0x148] sm:$0xff]
        %v5392 = vld [vmem:[#allocation5 + $0x150] sm:$0xff]
        %v5393 = vld [vmem:[#allocation5 + $0x158] sm:$0xff]
        %v5394 = vld [vmem:[#allocation5 + $0x160] sm:$0xff]
        %v5395 = vld [vmem:[#allocation5 + $0x168] sm:$0xff]
        %v5396 = vld [vmem:[#allocation5 + $0x170] sm:$0xff]
        %v5397 = vld [vmem:[#allocation5 + $0x178] sm:$0xff]
        %v5398 = vld [vmem:[#allocation5 + $0x180] sm:$0xff]
        %v5399 = vld [vmem:[#allocation5 + $0x188] sm:$0xff]
        %v5400 = vld [vmem:[#allocation5 + $0x190] sm:$0xff]
        %v5401 = vld [vmem:[#allocation5 + $0x198] sm:$0xff]
        %v5402 = vld [vmem:[#allocation5 + $0x1a0] sm:$0xff]
        %v5403 = vld [vmem:[#allocation5 + $0x1a8] sm:$0xff]
        %v5404 = vld [vmem:[#allocation5 + $0x1b0] sm:$0xff]
        %v5405 = vld [vmem:[#allocation5 + $0x1b8] sm:$0xff]
        %v5406 = vld [vmem:[#allocation5 + $0x1c0] sm:$0xff]
        %v5407 = vld [vmem:[#allocation5 + $0x1c8] sm:$0xff]
        %v5408 = vld [vmem:[#allocation5 + $0x1d0] sm:$0xff]
        %v5409 = vld [vmem:[#allocation5 + $0x1d8] sm:$0xff]
        %v5410 = vld [vmem:[#allocation5 + $0x1e0] sm:$0xff]
        %v5411 = vld [vmem:[#allocation5 + $0x1e8] sm:$0xff]
        %v5412 = vld [vmem:[#allocation5 + $0x1f0] sm:$0xff]
        %v5413 = vld [vmem:[#allocation5 + $0x1f8] sm:$0xff]
        %v5414 = vsel %vm5286, %v3961, %v5350
        %v5415 = vsel %vm5287, %v3981, %v5351
        %v5416 = vsel %vm5288, %v4001, %v5352
        %v5417 = vsel %vm5289, %v4021, %v5353
        %v5418 = vsel %vm5290, %v4041, %v5354
        %v5419 = vsel %vm5291, %v4061, %v5355
        %v5420 = vsel %vm5292, %v4081, %v5356
        %v5421 = vsel %vm5293, %v4101, %v5357
        %v5422 = vsel %vm5294, %v4121, %v5358
        %v5423 = vsel %vm5295, %v4141, %v5359
        %v5424 = vsel %vm5296, %v4161, %v5360
        %v5425 = vsel %vm5297, %v4181, %v5361
        %v5426 = vsel %vm5298, %v4201, %v5362
        %v5427 = vsel %vm5299, %v4221, %v5363
        %v5428 = vsel %vm5300, %v4241, %v5364
        %v5429 = vsel %vm5301, %v4261, %v5365
        %v5430 = vsel %vm5302, %v4281, %v5366
        %v5431 = vsel %vm5303, %v4301, %v5367
        %v5432 = vsel %vm5304, %v4321, %v5368
        %v5433 = vsel %vm5305, %v4341, %v5369
        %v5434 = vsel %vm5306, %v4361, %v5370
        %v5435 = vsel %vm5307, %v4381, %v5371
        %v5436 = vsel %vm5308, %v4401, %v5372
        %v5437 = vsel %vm5309, %v4421, %v5373
        %v5438 = vsel %vm5310, %v4441, %v5374
        %v5439 = vsel %vm5311, %v4461, %v5375
        %v5440 = vsel %vm5312, %v4481, %v5376
        %v5441 = vsel %vm5313, %v4501, %v5377
        %v5442 = vsel %vm5314, %v4521, %v5378
        %v5443 = vsel %vm5315, %v4541, %v5379
        %v5444 = vsel %vm5316, %v4561, %v5380
        %v5445 = vsel %vm5317, %v4581, %v5381
        %v5446 = vsel %vm5318, %v4601, %v5382
        %v5447 = vsel %vm5319, %v4621, %v5383
        %v5448 = vsel %vm5320, %v4641, %v5384
        %v5449 = vsel %vm5321, %v4661, %v5385
        %v5450 = vsel %vm5322, %v4681, %v5386
        %v5451 = vsel %vm5323, %v4701, %v5387
        %v5452 = vsel %vm5324, %v4721, %v5388
        %v5453 = vsel %vm5325, %v4741, %v5389
        %v5454 = vsel %vm5326, %v4761, %v5390
        %v5455 = vsel %vm5327, %v4781, %v5391
        %v5456 = vsel %vm5328, %v4801, %v5392
        %v5457 = vsel %vm5329, %v4821, %v5393
        %v5458 = vsel %vm5330, %v4841, %v5394
        %v5459 = vsel %vm5331, %v4861, %v5395
        %v5460 = vsel %vm5332, %v4881, %v5396
        %v5461 = vsel %vm5333, %v4901, %v5397
        %v5462 = vsel %vm5334, %v4921, %v5398
        %v5463 = vsel %vm5335, %v4941, %v5399
        %v5464 = vsel %vm5336, %v4961, %v5400
        %v5465 = vsel %vm5337, %v4981, %v5401
        %v5466 = vsel %vm5338, %v5001, %v5402
        %v5467 = vsel %vm5339, %v5021, %v5403
        %v5468 = vsel %vm5340, %v5041, %v5404
        %v5469 = vsel %vm5341, %v5061, %v5405
        %v5470 = vsel %vm5342, %v5081, %v5406
        %v5471 = vsel %vm5343, %v5101, %v5407
        %v5472 = vsel %vm5344, %v5121, %v5408
        %v5473 = vsel %vm5345, %v5141, %v5409
        %v5474 = vsel %vm5346, %v5161, %v5410
        %v5475 = vsel %vm5347, %v5181, %v5411
        %v5476 = vsel %vm5348, %v5201, %v5412
        %v5477 = vsel %vm5349, %v5221, %v5413
        %5478 = vst.msk [vmem:[#allocation5] sm:$0xff] %vm3045, %v5414
        %5479 = vst.msk [vmem:[#allocation5 + $0x8] sm:$0xff] %vm3045, %v5415
        %5480 = vst.msk [vmem:[#allocation5 + $0x10] sm:$0xff] %vm3045, %v5416
        %5481 = vst.msk [vmem:[#allocation5 + $0x18] sm:$0xff] %vm3045, %v5417
        %5482 = vst.msk [vmem:[#allocation5 + $0x20] sm:$0xff] %vm3045, %v5418
        %5483 = vst.msk [vmem:[#allocation5 + $0x28] sm:$0xff] %vm3045, %v5419
        %5484 = vst.msk [vmem:[#allocation5 + $0x30] sm:$0xff] %vm3045, %v5420
        %5485 = vst.msk [vmem:[#allocation5 + $0x38] sm:$0xff] %vm3045, %v5421
        %5486 = vst.msk [vmem:[#allocation5 + $0x40] sm:$0xff] %vm3045, %v5422
        %5487 = vst.msk [vmem:[#allocation5 + $0x48] sm:$0xff] %vm3045, %v5423
        %5488 = vst.msk [vmem:[#allocation5 + $0x50] sm:$0xff] %vm3045, %v5424
        %5489 = vst.msk [vmem:[#allocation5 + $0x58] sm:$0xff] %vm3045, %v5425
        %5490 = vst.msk [vmem:[#allocation5 + $0x60] sm:$0xff] %vm3045, %v5426
        %5491 = vst.msk [vmem:[#allocation5 + $0x68] sm:$0xff] %vm3045, %v5427
        %5492 = vst.msk [vmem:[#allocation5 + $0x70] sm:$0xff] %vm3045, %v5428
        %5493 = vst.msk [vmem:[#allocation5 + $0x78] sm:$0xff] %vm3045, %v5429
        %5494 = vst.msk [vmem:[#allocation5 + $0x80] sm:$0xff] %vm3045, %v5430
        %5495 = vst.msk [vmem:[#allocation5 + $0x88] sm:$0xff] %vm3045, %v5431
        %5496 = vst.msk [vmem:[#allocation5 + $0x90] sm:$0xff] %vm3045, %v5432
        %5497 = vst.msk [vmem:[#allocation5 + $0x98] sm:$0xff] %vm3045, %v5433
        %5498 = vst.msk [vmem:[#allocation5 + $0xa0] sm:$0xff] %vm3045, %v5434
        %5499 = vst.msk [vmem:[#allocation5 + $0xa8] sm:$0xff] %vm3045, %v5435
        %5500 = vst.msk [vmem:[#allocation5 + $0xb0] sm:$0xff] %vm3045, %v5436
        %5501 = vst.msk [vmem:[#allocation5 + $0xb8] sm:$0xff] %vm3045, %v5437
        %5502 = vst.msk [vmem:[#allocation5 + $0xc0] sm:$0xff] %vm3045, %v5438
        %5503 = vst.msk [vmem:[#allocation5 + $0xc8] sm:$0xff] %vm3045, %v5439
        %5504 = vst.msk [vmem:[#allocation5 + $0xd0] sm:$0xff] %vm3045, %v5440
        %5505 = vst.msk [vmem:[#allocation5 + $0xd8] sm:$0xff] %vm3045, %v5441
        %5506 = vst.msk [vmem:[#allocation5 + $0xe0] sm:$0xff] %vm3045, %v5442
        %5507 = vst.msk [vmem:[#allocation5 + $0xe8] sm:$0xff] %vm3045, %v5443
        %5508 = vst.msk [vmem:[#allocation5 + $0xf0] sm:$0xff] %vm3045, %v5444
        %5509 = vst.msk [vmem:[#allocation5 + $0xf8] sm:$0xff] %vm3045, %v5445
        %5510 = vst.msk [vmem:[#allocation5 + $0x100] sm:$0xff] %vm3045, %v5446
        %5511 = vst.msk [vmem:[#allocation5 + $0x108] sm:$0xff] %vm3045, %v5447
        %5512 = vst.msk [vmem:[#allocation5 + $0x110] sm:$0xff] %vm3045, %v5448
        %5513 = vst.msk [vmem:[#allocation5 + $0x118] sm:$0xff] %vm3045, %v5449
        %5514 = vst.msk [vmem:[#allocation5 + $0x120] sm:$0xff] %vm3045, %v5450
        %5515 = vst.msk [vmem:[#allocation5 + $0x128] sm:$0xff] %vm3045, %v5451
        %5516 = vst.msk [vmem:[#allocation5 + $0x130] sm:$0xff] %vm3045, %v5452
        %5517 = vst.msk [vmem:[#allocation5 + $0x138] sm:$0xff] %vm3045, %v5453
        %5518 = vst.msk [vmem:[#allocation5 + $0x140] sm:$0xff] %vm3045, %v5454
        %5519 = vst.msk [vmem:[#allocation5 + $0x148] sm:$0xff] %vm3045, %v5455
        %5520 = vst.msk [vmem:[#allocation5 + $0x150] sm:$0xff] %vm3045, %v5456
        %5521 = vst.msk [vmem:[#allocation5 + $0x158] sm:$0xff] %vm3045, %v5457
        %5522 = vst.msk [vmem:[#allocation5 + $0x160] sm:$0xff] %vm3045, %v5458
        %5523 = vst.msk [vmem:[#allocation5 + $0x168] sm:$0xff] %vm3045, %v5459
        %5524 = vst.msk [vmem:[#allocation5 + $0x170] sm:$0xff] %vm3045, %v5460
        %5525 = vst.msk [vmem:[#allocation5 + $0x178] sm:$0xff] %vm3045, %v5461
        %5526 = vst.msk [vmem:[#allocation5 + $0x180] sm:$0xff] %vm3045, %v5462
        %5527 = vst.msk [vmem:[#allocation5 + $0x188] sm:$0xff] %vm3045, %v5463
        %5528 = vst.msk [vmem:[#allocation5 + $0x190] sm:$0xff] %vm3045, %v5464
        %5529 = vst.msk [vmem:[#allocation5 + $0x198] sm:$0xff] %vm3045, %v5465
        %5530 = vst.msk [vmem:[#allocation5 + $0x1a0] sm:$0xff] %vm3045, %v5466
        %5531 = vst.msk [vmem:[#allocation5 + $0x1a8] sm:$0xff] %vm3045, %v5467
        %5532 = vst.msk [vmem:[#allocation5 + $0x1b0] sm:$0xff] %vm3045, %v5468
        %5533 = vst.msk [vmem:[#allocation5 + $0x1b8] sm:$0xff] %vm3045, %v5469
        %5534 = vst.msk [vmem:[#allocation5 + $0x1c0] sm:$0xff] %vm3045, %v5470
        %5535 = vst.msk [vmem:[#allocation5 + $0x1c8] sm:$0xff] %vm3045, %v5471
        %5536 = vst.msk [vmem:[#allocation5 + $0x1d0] sm:$0xff] %vm3045, %v5472
        %5537 = vst.msk [vmem:[#allocation5 + $0x1d8] sm:$0xff] %vm3045, %v5473
        %5538 = vst.msk [vmem:[#allocation5 + $0x1e0] sm:$0xff] %vm3045, %v5474
        %5539 = vst.msk [vmem:[#allocation5 + $0x1e8] sm:$0xff] %vm3045, %v5475
        %5540 = vst.msk [vmem:[#allocation5 + $0x1f0] sm:$0xff] %vm3045, %v5476
        %5541 = vst.msk [vmem:[#allocation5 + $0x1f8] sm:$0xff] %vm3045, %v5477
        %v5542 = vld [vmem:[#allocation2] sm:$0xff]
        %v5543 = vld [vmem:[#allocation2 + $0x8] sm:$0xff]
        %v5544 = vld [vmem:[#allocation2 + $0x10] sm:$0xff]
        %v5545 = vld [vmem:[#allocation2 + $0x18] sm:$0xff]
        %v5546 = vld [vmem:[#allocation2 + $0x20] sm:$0xff]
        %v5547 = vld [vmem:[#allocation2 + $0x28] sm:$0xff]
        %v5548 = vld [vmem:[#allocation2 + $0x30] sm:$0xff]
        %v5549 = vld [vmem:[#allocation2 + $0x38] sm:$0xff]
        %v5550 = vld [vmem:[#allocation2 + $0x40] sm:$0xff]
        %v5551 = vld [vmem:[#allocation2 + $0x48] sm:$0xff]
        %v5552 = vld [vmem:[#allocation2 + $0x50] sm:$0xff]
        %v5553 = vld [vmem:[#allocation2 + $0x58] sm:$0xff]
        %v5554 = vld [vmem:[#allocation2 + $0x60] sm:$0xff]
        %v5555 = vld [vmem:[#allocation2 + $0x68] sm:$0xff]
        %v5556 = vld [vmem:[#allocation2 + $0x70] sm:$0xff]
        %v5557 = vld [vmem:[#allocation2 + $0x78] sm:$0xff]
        %v5558 = vld [vmem:[#allocation2 + $0x80] sm:$0xff]
        %v5559 = vld [vmem:[#allocation2 + $0x88] sm:$0xff]
        %v5560 = vld [vmem:[#allocation2 + $0x90] sm:$0xff]
        %v5561 = vld [vmem:[#allocation2 + $0x98] sm:$0xff]
        %v5562 = vld [vmem:[#allocation2 + $0xa0] sm:$0xff]
        %v5563 = vld [vmem:[#allocation2 + $0xa8] sm:$0xff]
        %v5564 = vld [vmem:[#allocation2 + $0xb0] sm:$0xff]
        %v5565 = vld [vmem:[#allocation2 + $0xb8] sm:$0xff]
        %v5566 = vld [vmem:[#allocation2 + $0xc0] sm:$0xff]
        %v5567 = vld [vmem:[#allocation2 + $0xc8] sm:$0xff]
        %v5568 = vld [vmem:[#allocation2 + $0xd0] sm:$0xff]
        %v5569 = vld [vmem:[#allocation2 + $0xd8] sm:$0xff]
        %v5570 = vld [vmem:[#allocation2 + $0xe0] sm:$0xff]
        %v5571 = vld [vmem:[#allocation2 + $0xe8] sm:$0xff]
        %v5572 = vld [vmem:[#allocation2 + $0xf0] sm:$0xff]
        %v5573 = vld [vmem:[#allocation2 + $0xf8] sm:$0xff]
        %v5574 = vld [vmem:[#allocation2 + $0x100] sm:$0xff]
        %v5575 = vld [vmem:[#allocation2 + $0x108] sm:$0xff]
        %v5576 = vld [vmem:[#allocation2 + $0x110] sm:$0xff]
        %v5577 = vld [vmem:[#allocation2 + $0x118] sm:$0xff]
        %v5578 = vld [vmem:[#allocation2 + $0x120] sm:$0xff]
        %v5579 = vld [vmem:[#allocation2 + $0x128] sm:$0xff]
        %v5580 = vld [vmem:[#allocation2 + $0x130] sm:$0xff]
        %v5581 = vld [vmem:[#allocation2 + $0x138] sm:$0xff]
        %v5582 = vld [vmem:[#allocation2 + $0x140] sm:$0xff]
        %v5583 = vld [vmem:[#allocation2 + $0x148] sm:$0xff]
        %v5584 = vld [vmem:[#allocation2 + $0x150] sm:$0xff]
        %v5585 = vld [vmem:[#allocation2 + $0x158] sm:$0xff]
        %v5586 = vld [vmem:[#allocation2 + $0x160] sm:$0xff]
        %v5587 = vld [vmem:[#allocation2 + $0x168] sm:$0xff]
        %v5588 = vld [vmem:[#allocation2 + $0x170] sm:$0xff]
        %v5589 = vld [vmem:[#allocation2 + $0x178] sm:$0xff]
        %v5590 = vld [vmem:[#allocation2 + $0x180] sm:$0xff]
        %v5591 = vld [vmem:[#allocation2 + $0x188] sm:$0xff]
        %v5592 = vld [vmem:[#allocation2 + $0x190] sm:$0xff]
        %v5593 = vld [vmem:[#allocation2 + $0x198] sm:$0xff]
        %v5594 = vld [vmem:[#allocation2 + $0x1a0] sm:$0xff]
        %v5595 = vld [vmem:[#allocation2 + $0x1a8] sm:$0xff]
        %v5596 = vld [vmem:[#allocation2 + $0x1b0] sm:$0xff]
        %v5597 = vld [vmem:[#allocation2 + $0x1b8] sm:$0xff]
        %v5598 = vld [vmem:[#allocation2 + $0x1c0] sm:$0xff]
        %v5599 = vld [vmem:[#allocation2 + $0x1c8] sm:$0xff]
        %v5600 = vld [vmem:[#allocation2 + $0x1d0] sm:$0xff]
        %v5601 = vld [vmem:[#allocation2 + $0x1d8] sm:$0xff]
        %v5602 = vld [vmem:[#allocation2 + $0x1e0] sm:$0xff]
        %v5603 = vld [vmem:[#allocation2 + $0x1e8] sm:$0xff]
        %v5604 = vld [vmem:[#allocation2 + $0x1f0] sm:$0xff]
        %v5605 = vld [vmem:[#allocation2 + $0x1f8] sm:$0xff]
        %v5606 = vmax.f32 %v5542, %v3114
        %v5607 = vmax.f32 %v5543, %v3119
        %v5608 = vmax.f32 %v5544, %v3124
        %v5609 = vmax.f32 %v5545, %v3129
        %v5610 = vmax.f32 %v5546, %v3134
        %v5611 = vmax.f32 %v5547, %v3139
        %v5612 = vmax.f32 %v5548, %v3144
        %v5613 = vmax.f32 %v5549, %v3149
        %v5614 = vmax.f32 %v5550, %v3154
        %v5615 = vmax.f32 %v5551, %v3159
        %v5616 = vmax.f32 %v5552, %v3164
        %v5617 = vmax.f32 %v5553, %v3169
        %v5618 = vmax.f32 %v5554, %v3174
        %v5619 = vmax.f32 %v5555, %v3179
        %v5620 = vmax.f32 %v5556, %v3184
        %v5621 = vmax.f32 %v5557, %v3189
        %v5622 = vmax.f32 %v5558, %v3194
        %v5623 = vmax.f32 %v5559, %v3199
        %v5624 = vmax.f32 %v5560, %v3204
        %v5625 = vmax.f32 %v5561, %v3209
        %v5626 = vmax.f32 %v5562, %v3214
        %v5627 = vmax.f32 %v5563, %v3219
        %v5628 = vmax.f32 %v5564, %v3224
        %v5629 = vmax.f32 %v5565, %v3229
        %v5630 = vmax.f32 %v5566, %v3234
        %v5631 = vmax.f32 %v5567, %v3239
        %v5632 = vmax.f32 %v5568, %v3244
        %v5633 = vmax.f32 %v5569, %v3249
        %v5634 = vmax.f32 %v5570, %v3254
        %v5635 = vmax.f32 %v5571, %v3259
        %v5636 = vmax.f32 %v5572, %v3264
        %v5637 = vmax.f32 %v5573, %v3269
        %v5638 = vmax.f32 %v5574, %v3274
        %v5639 = vmax.f32 %v5575, %v3279
        %v5640 = vmax.f32 %v5576, %v3284
        %v5641 = vmax.f32 %v5577, %v3289
        %v5642 = vmax.f32 %v5578, %v3294
        %v5643 = vmax.f32 %v5579, %v3299
        %v5644 = vmax.f32 %v5580, %v3304
        %v5645 = vmax.f32 %v5581, %v3309
        %v5646 = vmax.f32 %v5582, %v3314
        %v5647 = vmax.f32 %v5583, %v3319
        %v5648 = vmax.f32 %v5584, %v3324
        %v5649 = vmax.f32 %v5585, %v3329
        %v5650 = vmax.f32 %v5586, %v3334
        %v5651 = vmax.f32 %v5587, %v3339
        %v5652 = vmax.f32 %v5588, %v3344
        %v5653 = vmax.f32 %v5589, %v3349
        %v5654 = vmax.f32 %v5590, %v3354
        %v5655 = vmax.f32 %v5591, %v3359
        %v5656 = vmax.f32 %v5592, %v3364
        %v5657 = vmax.f32 %v5593, %v3369
        %v5658 = vmax.f32 %v5594, %v3374
        %v5659 = vmax.f32 %v5595, %v3379
        %v5660 = vmax.f32 %v5596, %v3384
        %v5661 = vmax.f32 %v5597, %v3389
        %v5662 = vmax.f32 %v5598, %v3394
        %v5663 = vmax.f32 %v5599, %v3399
        %v5664 = vmax.f32 %v5600, %v3404
        %v5665 = vmax.f32 %v5601, %v3409
        %v5666 = vmax.f32 %v5602, %v3414
        %v5667 = vmax.f32 %v5603, %v3419
        %v5668 = vmax.f32 %v5604, %v3424
        %v5669 = vmax.f32 %v5605, %v3429
        %v5670 = vsub.f32 %v5542, %v5606
        %v5671 = vsub.f32 %v5543, %v5607
        %v5672 = vsub.f32 %v5544, %v5608
        %v5673 = vsub.f32 %v5545, %v5609
        %v5674 = vsub.f32 %v5546, %v5610
        %v5675 = vsub.f32 %v5547, %v5611
        %v5676 = vsub.f32 %v5548, %v5612
        %v5677 = vsub.f32 %v5549, %v5613
        %v5678 = vsub.f32 %v5550, %v5614
        %v5679 = vsub.f32 %v5551, %v5615
        %v5680 = vsub.f32 %v5552, %v5616
        %v5681 = vsub.f32 %v5553, %v5617
        %v5682 = vsub.f32 %v5554, %v5618
        %v5683 = vsub.f32 %v5555, %v5619
        %v5684 = vsub.f32 %v5556, %v5620
        %v5685 = vsub.f32 %v5557, %v5621
        %v5686 = vsub.f32 %v5558, %v5622
        %v5687 = vsub.f32 %v5559, %v5623
        %v5688 = vsub.f32 %v5560, %v5624
        %v5689 = vsub.f32 %v5561, %v5625
        %v5690 = vsub.f32 %v5562, %v5626
        %v5691 = vsub.f32 %v5563, %v5627
        %v5692 = vsub.f32 %v5564, %v5628
        %v5693 = vsub.f32 %v5565, %v5629
        %v5694 = vsub.f32 %v5566, %v5630
        %v5695 = vsub.f32 %v5567, %v5631
        %v5696 = vsub.f32 %v5568, %v5632
        %v5697 = vsub.f32 %v5569, %v5633
        %v5698 = vsub.f32 %v5570, %v5634
        %v5699 = vsub.f32 %v5571, %v5635
        %v5700 = vsub.f32 %v5572, %v5636
        %v5701 = vsub.f32 %v5573, %v5637
        %v5702 = vsub.f32 %v5574, %v5638
        %v5703 = vsub.f32 %v5575, %v5639
        %v5704 = vsub.f32 %v5576, %v5640
        %v5705 = vsub.f32 %v5577, %v5641
        %v5706 = vsub.f32 %v5578, %v5642
        %v5707 = vsub.f32 %v5579, %v5643
        %v5708 = vsub.f32 %v5580, %v5644
        %v5709 = vsub.f32 %v5581, %v5645
        %v5710 = vsub.f32 %v5582, %v5646
        %v5711 = vsub.f32 %v5583, %v5647
        %v5712 = vsub.f32 %v5584, %v5648
        %v5713 = vsub.f32 %v5585, %v5649
        %v5714 = vsub.f32 %v5586, %v5650
        %v5715 = vsub.f32 %v5587, %v5651
        %v5716 = vsub.f32 %v5588, %v5652
        %v5717 = vsub.f32 %v5589, %v5653
        %v5718 = vsub.f32 %v5590, %v5654
        %v5719 = vsub.f32 %v5591, %v5655
        %v5720 = vsub.f32 %v5592, %v5656
        %v5721 = vsub.f32 %v5593, %v5657
        %v5722 = vsub.f32 %v5594, %v5658
        %v5723 = vsub.f32 %v5595, %v5659
        %v5724 = vsub.f32 %v5596, %v5660
        %v5725 = vsub.f32 %v5597, %v5661
        %v5726 = vsub.f32 %v5598, %v5662
        %v5727 = vsub.f32 %v5599, %v5663
        %v5728 = vsub.f32 %v5600, %v5664
        %v5729 = vsub.f32 %v5601, %v5665
        %v5730 = vsub.f32 %v5602, %v5666
        %v5731 = vsub.f32 %v5603, %v5667
        %v5732 = vsub.f32 %v5604, %v5668
        %v5733 = vsub.f32 %v5605, %v5669
        %v5734 = vmul.f32 %v5670, 1.442695
        %v5735 = vpow.pop %v5734
        %v5736 = vmul.f32 %v5671, 1.442695
        %v5737 = vpow.pop %v5736
        %v5738 = vmul.f32 %v5672, 1.442695
        %v5739 = vpow.pop %v5738
        %v5740 = vmul.f32 %v5673, 1.442695
        %v5741 = vpow.pop %v5740
        %v5742 = vmul.f32 %v5674, 1.442695
        %v5743 = vpow.pop %v5742
        %v5744 = vmul.f32 %v5675, 1.442695
        %v5745 = vpow.pop %v5744
        %v5746 = vmul.f32 %v5676, 1.442695
        %v5747 = vpow.pop %v5746
        %v5748 = vmul.f32 %v5677, 1.442695
        %v5749 = vpow.pop %v5748
        %v5750 = vmul.f32 %v5678, 1.442695
        %v5751 = vpow.pop %v5750
        %v5752 = vmul.f32 %v5679, 1.442695
        %v5753 = vpow.pop %v5752
        %v5754 = vmul.f32 %v5680, 1.442695
        %v5755 = vpow.pop %v5754
        %v5756 = vmul.f32 %v5681, 1.442695
        %v5757 = vpow.pop %v5756
        %v5758 = vmul.f32 %v5682, 1.442695
        %v5759 = vpow.pop %v5758
        %v5760 = vmul.f32 %v5683, 1.442695
        %v5761 = vpow.pop %v5760
        %v5762 = vmul.f32 %v5684, 1.442695
        %v5763 = vpow.pop %v5762
        %v5764 = vmul.f32 %v5685, 1.442695
        %v5765 = vpow.pop %v5764
        %v5766 = vmul.f32 %v5686, 1.442695
        %v5767 = vpow.pop %v5766
        %v5768 = vmul.f32 %v5687, 1.442695
        %v5769 = vpow.pop %v5768
        %v5770 = vmul.f32 %v5688, 1.442695
        %v5771 = vpow.pop %v5770
        %v5772 = vmul.f32 %v5689, 1.442695
        %v5773 = vpow.pop %v5772
        %v5774 = vmul.f32 %v5690, 1.442695
        %v5775 = vpow.pop %v5774
        %v5776 = vmul.f32 %v5691, 1.442695
        %v5777 = vpow.pop %v5776
        %v5778 = vmul.f32 %v5692, 1.442695
        %v5779 = vpow.pop %v5778
        %v5780 = vmul.f32 %v5693, 1.442695
        %v5781 = vpow.pop %v5780
        %v5782 = vmul.f32 %v5694, 1.442695
        %v5783 = vpow.pop %v5782
        %v5784 = vmul.f32 %v5695, 1.442695
        %v5785 = vpow.pop %v5784
        %v5786 = vmul.f32 %v5696, 1.442695
        %v5787 = vpow.pop %v5786
        %v5788 = vmul.f32 %v5697, 1.442695
        %v5789 = vpow.pop %v5788
        %v5790 = vmul.f32 %v5698, 1.442695
        %v5791 = vpow.pop %v5790
        %v5792 = vmul.f32 %v5699, 1.442695
        %v5793 = vpow.pop %v5792
        %v5794 = vmul.f32 %v5700, 1.442695
        %v5795 = vpow.pop %v5794
        %v5796 = vmul.f32 %v5701, 1.442695
        %v5797 = vpow.pop %v5796
        %v5798 = vmul.f32 %v5702, 1.442695
        %v5799 = vpow.pop %v5798
        %v5800 = vmul.f32 %v5703, 1.442695
        %v5801 = vpow.pop %v5800
        %v5802 = vmul.f32 %v5704, 1.442695
        %v5803 = vpow.pop %v5802
        %v5804 = vmul.f32 %v5705, 1.442695
        %v5805 = vpow.pop %v5804
        %v5806 = vmul.f32 %v5706, 1.442695
        %v5807 = vpow.pop %v5806
        %v5808 = vmul.f32 %v5707, 1.442695
        %v5809 = vpow.pop %v5808
        %v5810 = vmul.f32 %v5708, 1.442695
        %v5811 = vpow.pop %v5810
        %v5812 = vmul.f32 %v5709, 1.442695
        %v5813 = vpow.pop %v5812
        %v5814 = vmul.f32 %v5710, 1.442695
        %v5815 = vpow.pop %v5814
        %v5816 = vmul.f32 %v5711, 1.442695
        %v5817 = vpow.pop %v5816
        %v5818 = vmul.f32 %v5712, 1.442695
        %v5819 = vpow.pop %v5818
        %v5820 = vmul.f32 %v5713, 1.442695
        %v5821 = vpow.pop %v5820
        %v5822 = vmul.f32 %v5714, 1.442695
        %v5823 = vpow.pop %v5822
        %v5824 = vmul.f32 %v5715, 1.442695
        %v5825 = vpow.pop %v5824
        %v5826 = vmul.f32 %v5716, 1.442695
        %v5827 = vpow.pop %v5826
        %v5828 = vmul.f32 %v5717, 1.442695
        %v5829 = vpow.pop %v5828
        %v5830 = vmul.f32 %v5718, 1.442695
        %v5831 = vpow.pop %v5830
        %v5832 = vmul.f32 %v5719, 1.442695
        %v5833 = vpow.pop %v5832
        %v5834 = vmul.f32 %v5720, 1.442695
        %v5835 = vpow.pop %v5834
        %v5836 = vmul.f32 %v5721, 1.442695
        %v5837 = vpow.pop %v5836
        %v5838 = vmul.f32 %v5722, 1.442695
        %v5839 = vpow.pop %v5838
        %v5840 = vmul.f32 %v5723, 1.442695
        %v5841 = vpow.pop %v5840
        %v5842 = vmul.f32 %v5724, 1.442695
        %v5843 = vpow.pop %v5842
        %v5844 = vmul.f32 %v5725, 1.442695
        %v5845 = vpow.pop %v5844
        %v5846 = vmul.f32 %v5726, 1.442695
        %v5847 = vpow.pop %v5846
        %v5848 = vmul.f32 %v5727, 1.442695
        %v5849 = vpow.pop %v5848
        %v5850 = vmul.f32 %v5728, 1.442695
        %v5851 = vpow.pop %v5850
        %v5852 = vmul.f32 %v5729, 1.442695
        %v5853 = vpow.pop %v5852
        %v5854 = vmul.f32 %v5730, 1.442695
        %v5855 = vpow.pop %v5854
        %v5856 = vmul.f32 %v5731, 1.442695
        %v5857 = vpow.pop %v5856
        %v5858 = vmul.f32 %v5732, 1.442695
        %v5859 = vpow.pop %v5858
        %v5860 = vmul.f32 %v5733, 1.442695
        %v5861 = vpow.pop %v5860
        %v5862 = vld [vmem:[#allocation3] sm:$0xff]
        %v5863 = vld [vmem:[#allocation3 + $0x8] sm:$0xff]
        %v5864 = vld [vmem:[#allocation3 + $0x10] sm:$0xff]
        %v5865 = vld [vmem:[#allocation3 + $0x18] sm:$0xff]
        %v5866 = vld [vmem:[#allocation3 + $0x20] sm:$0xff]
        %v5867 = vld [vmem:[#allocation3 + $0x28] sm:$0xff]
        %v5868 = vld [vmem:[#allocation3 + $0x30] sm:$0xff]
        %v5869 = vld [vmem:[#allocation3 + $0x38] sm:$0xff]
        %v5870 = vld [vmem:[#allocation3 + $0x40] sm:$0xff]
        %v5871 = vld [vmem:[#allocation3 + $0x48] sm:$0xff]
        %v5872 = vld [vmem:[#allocation3 + $0x50] sm:$0xff]
        %v5873 = vld [vmem:[#allocation3 + $0x58] sm:$0xff]
        %v5874 = vld [vmem:[#allocation3 + $0x60] sm:$0xff]
        %v5875 = vld [vmem:[#allocation3 + $0x68] sm:$0xff]
        %v5876 = vld [vmem:[#allocation3 + $0x70] sm:$0xff]
        %v5877 = vld [vmem:[#allocation3 + $0x78] sm:$0xff]
        %v5878 = vld [vmem:[#allocation3 + $0x80] sm:$0xff]
        %v5879 = vld [vmem:[#allocation3 + $0x88] sm:$0xff]
        %v5880 = vld [vmem:[#allocation3 + $0x90] sm:$0xff]
        %v5881 = vld [vmem:[#allocation3 + $0x98] sm:$0xff]
        %v5882 = vld [vmem:[#allocation3 + $0xa0] sm:$0xff]
        %v5883 = vld [vmem:[#allocation3 + $0xa8] sm:$0xff]
        %v5884 = vld [vmem:[#allocation3 + $0xb0] sm:$0xff]
        %v5885 = vld [vmem:[#allocation3 + $0xb8] sm:$0xff]
        %v5886 = vld [vmem:[#allocation3 + $0xc0] sm:$0xff]
        %v5887 = vld [vmem:[#allocation3 + $0xc8] sm:$0xff]
        %v5888 = vld [vmem:[#allocation3 + $0xd0] sm:$0xff]
        %v5889 = vld [vmem:[#allocation3 + $0xd8] sm:$0xff]
        %v5890 = vld [vmem:[#allocation3 + $0xe0] sm:$0xff]
        %v5891 = vld [vmem:[#allocation3 + $0xe8] sm:$0xff]
        %v5892 = vld [vmem:[#allocation3 + $0xf0] sm:$0xff]
        %v5893 = vld [vmem:[#allocation3 + $0xf8] sm:$0xff]
        %v5894 = vld [vmem:[#allocation3 + $0x100] sm:$0xff]
        %v5895 = vld [vmem:[#allocation3 + $0x108] sm:$0xff]
        %v5896 = vld [vmem:[#allocation3 + $0x110] sm:$0xff]
        %v5897 = vld [vmem:[#allocation3 + $0x118] sm:$0xff]
        %v5898 = vld [vmem:[#allocation3 + $0x120] sm:$0xff]
        %v5899 = vld [vmem:[#allocation3 + $0x128] sm:$0xff]
        %v5900 = vld [vmem:[#allocation3 + $0x130] sm:$0xff]
        %v5901 = vld [vmem:[#allocation3 + $0x138] sm:$0xff]
        %v5902 = vld [vmem:[#allocation3 + $0x140] sm:$0xff]
        %v5903 = vld [vmem:[#allocation3 + $0x148] sm:$0xff]
        %v5904 = vld [vmem:[#allocation3 + $0x150] sm:$0xff]
        %v5905 = vld [vmem:[#allocation3 + $0x158] sm:$0xff]
        %v5906 = vld [vmem:[#allocation3 + $0x160] sm:$0xff]
        %v5907 = vld [vmem:[#allocation3 + $0x168] sm:$0xff]
        %v5908 = vld [vmem:[#allocation3 + $0x170] sm:$0xff]
        %v5909 = vld [vmem:[#allocation3 + $0x178] sm:$0xff]
        %v5910 = vld [vmem:[#allocation3 + $0x180] sm:$0xff]
        %v5911 = vld [vmem:[#allocation3 + $0x188] sm:$0xff]
        %v5912 = vld [vmem:[#allocation3 + $0x190] sm:$0xff]
        %v5913 = vld [vmem:[#allocation3 + $0x198] sm:$0xff]
        %v5914 = vld [vmem:[#allocation3 + $0x1a0] sm:$0xff]
        %v5915 = vld [vmem:[#allocation3 + $0x1a8] sm:$0xff]
        %v5916 = vld [vmem:[#allocation3 + $0x1b0] sm:$0xff]
        %v5917 = vld [vmem:[#allocation3 + $0x1b8] sm:$0xff]
        %v5918 = vld [vmem:[#allocation3 + $0x1c0] sm:$0xff]
        %v5919 = vld [vmem:[#allocation3 + $0x1c8] sm:$0xff]
        %v5920 = vld [vmem:[#allocation3 + $0x1d0] sm:$0xff]
        %v5921 = vld [vmem:[#allocation3 + $0x1d8] sm:$0xff]
        %v5922 = vld [vmem:[#allocation3 + $0x1e0] sm:$0xff]
        %v5923 = vld [vmem:[#allocation3 + $0x1e8] sm:$0xff]
        %v5924 = vld [vmem:[#allocation3 + $0x1f0] sm:$0xff]
        %v5925 = vld [vmem:[#allocation3 + $0x1f8] sm:$0xff]
        %v5926 = vmul.f32 %v5735, %v5862
        %v5927 = vmul.f32 %v5737, %v5863
        %v5928 = vmul.f32 %v5739, %v5864
        %v5929 = vmul.f32 %v5741, %v5865
        %v5930 = vmul.f32 %v5743, %v5866
        %v5931 = vmul.f32 %v5745, %v5867
        %v5932 = vmul.f32 %v5747, %v5868
        %v5933 = vmul.f32 %v5749, %v5869
        %v5934 = vmul.f32 %v5751, %v5870
        %v5935 = vmul.f32 %v5753, %v5871
        %v5936 = vmul.f32 %v5755, %v5872
        %v5937 = vmul.f32 %v5757, %v5873
        %v5938 = vmul.f32 %v5759, %v5874
        %v5939 = vmul.f32 %v5761, %v5875
        %v5940 = vmul.f32 %v5763, %v5876
        %v5941 = vmul.f32 %v5765, %v5877
        %v5942 = vmul.f32 %v5767, %v5878
        %v5943 = vmul.f32 %v5769, %v5879
        %v5944 = vmul.f32 %v5771, %v5880
        %v5945 = vmul.f32 %v5773, %v5881
        %v5946 = vmul.f32 %v5775, %v5882
        %v5947 = vmul.f32 %v5777, %v5883
        %v5948 = vmul.f32 %v5779, %v5884
        %v5949 = vmul.f32 %v5781, %v5885
        %v5950 = vmul.f32 %v5783, %v5886
        %v5951 = vmul.f32 %v5785, %v5887
        %v5952 = vmul.f32 %v5787, %v5888
        %v5953 = vmul.f32 %v5789, %v5889
        %v5954 = vmul.f32 %v5791, %v5890
        %v5955 = vmul.f32 %v5793, %v5891
        %v5956 = vmul.f32 %v5795, %v5892
        %v5957 = vmul.f32 %v5797, %v5893
        %v5958 = vmul.f32 %v5799, %v5894
        %v5959 = vmul.f32 %v5801, %v5895
        %v5960 = vmul.f32 %v5803, %v5896
        %v5961 = vmul.f32 %v5805, %v5897
        %v5962 = vmul.f32 %v5807, %v5898
        %v5963 = vmul.f32 %v5809, %v5899
        %v5964 = vmul.f32 %v5811, %v5900
        %v5965 = vmul.f32 %v5813, %v5901
        %v5966 = vmul.f32 %v5815, %v5902
        %v5967 = vmul.f32 %v5817, %v5903
        %v5968 = vmul.f32 %v5819, %v5904
        %v5969 = vmul.f32 %v5821, %v5905
        %v5970 = vmul.f32 %v5823, %v5906
        %v5971 = vmul.f32 %v5825, %v5907
        %v5972 = vmul.f32 %v5827, %v5908
        %v5973 = vmul.f32 %v5829, %v5909
        %v5974 = vmul.f32 %v5831, %v5910
        %v5975 = vmul.f32 %v5833, %v5911
        %v5976 = vmul.f32 %v5835, %v5912
        %v5977 = vmul.f32 %v5837, %v5913
        %v5978 = vmul.f32 %v5839, %v5914
        %v5979 = vmul.f32 %v5841, %v5915
        %v5980 = vmul.f32 %v5843, %v5916
        %v5981 = vmul.f32 %v5845, %v5917
        %v5982 = vmul.f32 %v5847, %v5918
        %v5983 = vmul.f32 %v5849, %v5919
        %v5984 = vmul.f32 %v5851, %v5920
        %v5985 = vmul.f32 %v5853, %v5921
        %v5986 = vmul.f32 %v5855, %v5922
        %v5987 = vmul.f32 %v5857, %v5923
        %v5988 = vmul.f32 %v5859, %v5924
        %v5989 = vmul.f32 %v5861, %v5925
        %5991 = vset.pattern.permute.xlu0 0
        %5992 = vperm.xlu0 %5991, %v5606
        %v5993 = vpop.permute.xlu0 %5992
        %5996 = vset.pattern.permute.xlu0 0
        %5997 = vperm.xlu0 %5996, %v5607
        %v5998 = vpop.permute.xlu0 %5997
        %6001 = vset.pattern.permute.xlu0 0
        %6002 = vperm.xlu0 %6001, %v5608
        %v6003 = vpop.permute.xlu0 %6002
        %6006 = vset.pattern.permute.xlu0 0
        %6007 = vperm.xlu0 %6006, %v5609
        %v6008 = vpop.permute.xlu0 %6007
        %6011 = vset.pattern.permute.xlu0 0
        %6012 = vperm.xlu0 %6011, %v5610
        %v6013 = vpop.permute.xlu0 %6012
        %6016 = vset.pattern.permute.xlu0 0
        %6017 = vperm.xlu0 %6016, %v5611
        %v6018 = vpop.permute.xlu0 %6017
        %6021 = vset.pattern.permute.xlu0 0
        %6022 = vperm.xlu0 %6021, %v5612
        %v6023 = vpop.permute.xlu0 %6022
        %6026 = vset.pattern.permute.xlu0 0
        %6027 = vperm.xlu0 %6026, %v5613
        %v6028 = vpop.permute.xlu0 %6027
        %6031 = vset.pattern.permute.xlu0 0
        %6032 = vperm.xlu0 %6031, %v5614
        %v6033 = vpop.permute.xlu0 %6032
        %6036 = vset.pattern.permute.xlu0 0
        %6037 = vperm.xlu0 %6036, %v5615
        %v6038 = vpop.permute.xlu0 %6037
        %6041 = vset.pattern.permute.xlu0 0
        %6042 = vperm.xlu0 %6041, %v5616
        %v6043 = vpop.permute.xlu0 %6042
        %6046 = vset.pattern.permute.xlu0 0
        %6047 = vperm.xlu0 %6046, %v5617
        %v6048 = vpop.permute.xlu0 %6047
        %6051 = vset.pattern.permute.xlu0 0
        %6052 = vperm.xlu0 %6051, %v5618
        %v6053 = vpop.permute.xlu0 %6052
        %6056 = vset.pattern.permute.xlu0 0
        %6057 = vperm.xlu0 %6056, %v5619
        %v6058 = vpop.permute.xlu0 %6057
        %6061 = vset.pattern.permute.xlu0 0
        %6062 = vperm.xlu0 %6061, %v5620
        %v6063 = vpop.permute.xlu0 %6062
        %6066 = vset.pattern.permute.xlu0 0
        %6067 = vperm.xlu0 %6066, %v5621
        %v6068 = vpop.permute.xlu0 %6067
        %6071 = vset.pattern.permute.xlu0 0
        %6072 = vperm.xlu0 %6071, %v5622
        %v6073 = vpop.permute.xlu0 %6072
        %6076 = vset.pattern.permute.xlu0 0
        %6077 = vperm.xlu0 %6076, %v5623
        %v6078 = vpop.permute.xlu0 %6077
        %6081 = vset.pattern.permute.xlu0 0
        %6082 = vperm.xlu0 %6081, %v5624
        %v6083 = vpop.permute.xlu0 %6082
        %6086 = vset.pattern.permute.xlu0 0
        %6087 = vperm.xlu0 %6086, %v5625
        %v6088 = vpop.permute.xlu0 %6087
        %6091 = vset.pattern.permute.xlu0 0
        %6092 = vperm.xlu0 %6091, %v5626
        %v6093 = vpop.permute.xlu0 %6092
        %6096 = vset.pattern.permute.xlu0 0
        %6097 = vperm.xlu0 %6096, %v5627
        %v6098 = vpop.permute.xlu0 %6097
        %6101 = vset.pattern.permute.xlu0 0
        %6102 = vperm.xlu0 %6101, %v5628
        %v6103 = vpop.permute.xlu0 %6102
        %6106 = vset.pattern.permute.xlu0 0
        %6107 = vperm.xlu0 %6106, %v5629
        %v6108 = vpop.permute.xlu0 %6107
        %6111 = vset.pattern.permute.xlu0 0
        %6112 = vperm.xlu0 %6111, %v5630
        %v6113 = vpop.permute.xlu0 %6112
        %6116 = vset.pattern.permute.xlu0 0
        %6117 = vperm.xlu0 %6116, %v5631
        %v6118 = vpop.permute.xlu0 %6117
        %6121 = vset.pattern.permute.xlu0 0
        %6122 = vperm.xlu0 %6121, %v5632
        %v6123 = vpop.permute.xlu0 %6122
        %6126 = vset.pattern.permute.xlu0 0
        %6127 = vperm.xlu0 %6126, %v5633
        %v6128 = vpop.permute.xlu0 %6127
        %6131 = vset.pattern.permute.xlu0 0
        %6132 = vperm.xlu0 %6131, %v5634
        %v6133 = vpop.permute.xlu0 %6132
        %6136 = vset.pattern.permute.xlu0 0
        %6137 = vperm.xlu0 %6136, %v5635
        %v6138 = vpop.permute.xlu0 %6137
        %6141 = vset.pattern.permute.xlu0 0
        %6142 = vperm.xlu0 %6141, %v5636
        %v6143 = vpop.permute.xlu0 %6142
        %6146 = vset.pattern.permute.xlu0 0
        %6147 = vperm.xlu0 %6146, %v5637
        %v6148 = vpop.permute.xlu0 %6147
        %6151 = vset.pattern.permute.xlu0 0
        %6152 = vperm.xlu0 %6151, %v5638
        %v6153 = vpop.permute.xlu0 %6152
        %6156 = vset.pattern.permute.xlu0 0
        %6157 = vperm.xlu0 %6156, %v5639
        %v6158 = vpop.permute.xlu0 %6157
        %6161 = vset.pattern.permute.xlu0 0
        %6162 = vperm.xlu0 %6161, %v5640
        %v6163 = vpop.permute.xlu0 %6162
        %6166 = vset.pattern.permute.xlu0 0
        %6167 = vperm.xlu0 %6166, %v5641
        %v6168 = vpop.permute.xlu0 %6167
        %6171 = vset.pattern.permute.xlu0 0
        %6172 = vperm.xlu0 %6171, %v5642
        %v6173 = vpop.permute.xlu0 %6172
        %6176 = vset.pattern.permute.xlu0 0
        %6177 = vperm.xlu0 %6176, %v5643
        %v6178 = vpop.permute.xlu0 %6177
        %6181 = vset.pattern.permute.xlu0 0
        %6182 = vperm.xlu0 %6181, %v5644
        %v6183 = vpop.permute.xlu0 %6182
        %6186 = vset.pattern.permute.xlu0 0
        %6187 = vperm.xlu0 %6186, %v5645
        %v6188 = vpop.permute.xlu0 %6187
        %6191 = vset.pattern.permute.xlu0 0
        %6192 = vperm.xlu0 %6191, %v5646
        %v6193 = vpop.permute.xlu0 %6192
        %6196 = vset.pattern.permute.xlu0 0
        %6197 = vperm.xlu0 %6196, %v5647
        %v6198 = vpop.permute.xlu0 %6197
        %6201 = vset.pattern.permute.xlu0 0
        %6202 = vperm.xlu0 %6201, %v5648
        %v6203 = vpop.permute.xlu0 %6202
        %6206 = vset.pattern.permute.xlu0 0
        %6207 = vperm.xlu0 %6206, %v5649
        %v6208 = vpop.permute.xlu0 %6207
        %6211 = vset.pattern.permute.xlu0 0
        %6212 = vperm.xlu0 %6211, %v5650
        %v6213 = vpop.permute.xlu0 %6212
        %6216 = vset.pattern.permute.xlu0 0
        %6217 = vperm.xlu0 %6216, %v5651
        %v6218 = vpop.permute.xlu0 %6217
        %6221 = vset.pattern.permute.xlu0 0
        %6222 = vperm.xlu0 %6221, %v5652
        %v6223 = vpop.permute.xlu0 %6222
        %6226 = vset.pattern.permute.xlu0 0
        %6227 = vperm.xlu0 %6226, %v5653
        %v6228 = vpop.permute.xlu0 %6227
        %6231 = vset.pattern.permute.xlu0 0
        %6232 = vperm.xlu0 %6231, %v5654
        %v6233 = vpop.permute.xlu0 %6232
        %6236 = vset.pattern.permute.xlu0 0
        %6237 = vperm.xlu0 %6236, %v5655
        %v6238 = vpop.permute.xlu0 %6237
        %6241 = vset.pattern.permute.xlu0 0
        %6242 = vperm.xlu0 %6241, %v5656
        %v6243 = vpop.permute.xlu0 %6242
        %6246 = vset.pattern.permute.xlu0 0
        %6247 = vperm.xlu0 %6246, %v5657
        %v6248 = vpop.permute.xlu0 %6247
        %6251 = vset.pattern.permute.xlu0 0
        %6252 = vperm.xlu0 %6251, %v5658
        %v6253 = vpop.permute.xlu0 %6252
        %6256 = vset.pattern.permute.xlu0 0
        %6257 = vperm.xlu0 %6256, %v5659
        %v6258 = vpop.permute.xlu0 %6257
        %6261 = vset.pattern.permute.xlu0 0
        %6262 = vperm.xlu0 %6261, %v5660
        %v6263 = vpop.permute.xlu0 %6262
        %6266 = vset.pattern.permute.xlu0 0
        %6267 = vperm.xlu0 %6266, %v5661
        %v6268 = vpop.permute.xlu0 %6267
        %6271 = vset.pattern.permute.xlu0 0
        %6272 = vperm.xlu0 %6271, %v5662
        %v6273 = vpop.permute.xlu0 %6272
        %6276 = vset.pattern.permute.xlu0 0
        %6277 = vperm.xlu0 %6276, %v5663
        %v6278 = vpop.permute.xlu0 %6277
        %6281 = vset.pattern.permute.xlu0 0
        %6282 = vperm.xlu0 %6281, %v5664
        %v6283 = vpop.permute.xlu0 %6282
        %6286 = vset.pattern.permute.xlu0 0
        %6287 = vperm.xlu0 %6286, %v5665
        %v6288 = vpop.permute.xlu0 %6287
        %6291 = vset.pattern.permute.xlu0 0
        %6292 = vperm.xlu0 %6291, %v5666
        %v6293 = vpop.permute.xlu0 %6292
        %6296 = vset.pattern.permute.xlu0 0
        %6297 = vperm.xlu0 %6296, %v5667
        %v6298 = vpop.permute.xlu0 %6297
        %6301 = vset.pattern.permute.xlu0 0
        %6302 = vperm.xlu0 %6301, %v5668
        %v6303 = vpop.permute.xlu0 %6302
        %6306 = vset.pattern.permute.xlu0 0
        %6307 = vperm.xlu0 %6306, %v5669
        %v6308 = vpop.permute.xlu0 %6307
        %v6310 = vsub.f32 %v1152, %v5993
        %v6311 = vsub.f32 %v1321, %v5993
        %v6312 = vsub.f32 %v1490, %v5993
        %v6313 = vsub.f32 %v1659, %v5993
        %v6314 = vsub.f32 %v1154, %v5998
        %v6315 = vsub.f32 %v1323, %v5998
        %v6316 = vsub.f32 %v1492, %v5998
        %v6317 = vsub.f32 %v1661, %v5998
        %v6318 = vsub.f32 %v1157, %v6003
        %v6319 = vsub.f32 %v1326, %v6003
        %v6320 = vsub.f32 %v1495, %v6003
        %v6321 = vsub.f32 %v1664, %v6003
        %v6322 = vsub.f32 %v1159, %v6008
        %v6323 = vsub.f32 %v1328, %v6008
        %v6324 = vsub.f32 %v1497, %v6008
        %v6325 = vsub.f32 %v1666, %v6008
        %v6326 = vsub.f32 %v1162, %v6013
        %v6327 = vsub.f32 %v1331, %v6013
        %v6328 = vsub.f32 %v1500, %v6013
        %v6329 = vsub.f32 %v1669, %v6013
        %v6330 = vsub.f32 %v1164, %v6018
        %v6331 = vsub.f32 %v1333, %v6018
        %v6332 = vsub.f32 %v1502, %v6018
        %v6333 = vsub.f32 %v1671, %v6018
        %v6334 = vsub.f32 %v1167, %v6023
        %v6335 = vsub.f32 %v1336, %v6023
        %v6336 = vsub.f32 %v1505, %v6023
        %v6337 = vsub.f32 %v1674, %v6023
        %v6338 = vsub.f32 %v1169, %v6028
        %v6339 = vsub.f32 %v1338, %v6028
        %v6340 = vsub.f32 %v1507, %v6028
        %v6341 = vsub.f32 %v1676, %v6028
        %v6342 = vsub.f32 %v1172, %v6033
        %v6343 = vsub.f32 %v1341, %v6033
        %v6344 = vsub.f32 %v1510, %v6033
        %v6345 = vsub.f32 %v1679, %v6033
        %v6346 = vsub.f32 %v1174, %v6038
        %v6347 = vsub.f32 %v1343, %v6038
        %v6348 = vsub.f32 %v1512, %v6038
        %v6349 = vsub.f32 %v1681, %v6038
        %v6350 = vsub.f32 %v1177, %v6043
        %v6351 = vsub.f32 %v1346, %v6043
        %v6352 = vsub.f32 %v1515, %v6043
        %v6353 = vsub.f32 %v1684, %v6043
        %v6354 = vsub.f32 %v1179, %v6048
        %v6355 = vsub.f32 %v1348, %v6048
        %v6356 = vsub.f32 %v1517, %v6048
        %v6357 = vsub.f32 %v1686, %v6048
        %v6358 = vsub.f32 %v1182, %v6053
        %v6359 = vsub.f32 %v1351, %v6053
        %v6360 = vsub.f32 %v1520, %v6053
        %v6361 = vsub.f32 %v1689, %v6053
        %v6362 = vsub.f32 %v1184, %v6058
        %v6363 = vsub.f32 %v1353, %v6058
        %v6364 = vsub.f32 %v1522, %v6058
        %v6365 = vsub.f32 %v1691, %v6058
        %v6366 = vsub.f32 %v1187, %v6063
        %v6367 = vsub.f32 %v1356, %v6063
        %v6368 = vsub.f32 %v1525, %v6063
        %v6369 = vsub.f32 %v1694, %v6063
        %v6370 = vsub.f32 %v1189, %v6068
        %v6371 = vsub.f32 %v1358, %v6068
        %v6372 = vsub.f32 %v1527, %v6068
        %v6373 = vsub.f32 %v1696, %v6068
        %v6374 = vsub.f32 %v1192, %v6073
        %v6375 = vsub.f32 %v1361, %v6073
        %v6376 = vsub.f32 %v1530, %v6073
        %v6377 = vsub.f32 %v1699, %v6073
        %v6378 = vsub.f32 %v1194, %v6078
        %v6379 = vsub.f32 %v1363, %v6078
        %v6380 = vsub.f32 %v1532, %v6078
        %v6381 = vsub.f32 %v1701, %v6078
        %v6382 = vsub.f32 %v1197, %v6083
        %v6383 = vsub.f32 %v1366, %v6083
        %v6384 = vsub.f32 %v1535, %v6083
        %v6385 = vsub.f32 %v1704, %v6083
        %v6386 = vsub.f32 %v1199, %v6088
        %v6387 = vsub.f32 %v1368, %v6088
        %v6388 = vsub.f32 %v1537, %v6088
        %v6389 = vsub.f32 %v1706, %v6088
        %v6390 = vsub.f32 %v1202, %v6093
        %v6391 = vsub.f32 %v1371, %v6093
        %v6392 = vsub.f32 %v1540, %v6093
        %v6393 = vsub.f32 %v1709, %v6093
        %v6394 = vsub.f32 %v1204, %v6098
        %v6395 = vsub.f32 %v1373, %v6098
        %v6396 = vsub.f32 %v1542, %v6098
        %v6397 = vsub.f32 %v1711, %v6098
        %v6398 = vsub.f32 %v1207, %v6103
        %v6399 = vsub.f32 %v1376, %v6103
        %v6400 = vsub.f32 %v1545, %v6103
        %v6401 = vsub.f32 %v1714, %v6103
        %v6402 = vsub.f32 %v1209, %v6108
        %v6403 = vsub.f32 %v1378, %v6108
        %v6404 = vsub.f32 %v1547, %v6108
        %v6405 = vsub.f32 %v1716, %v6108
        %v6406 = vsub.f32 %v1212, %v6113
        %v6407 = vsub.f32 %v1381, %v6113
        %v6408 = vsub.f32 %v1550, %v6113
        %v6409 = vsub.f32 %v1719, %v6113
        %v6410 = vsub.f32 %v1214, %v6118
        %v6411 = vsub.f32 %v1383, %v6118
        %v6412 = vsub.f32 %v1552, %v6118
        %v6413 = vsub.f32 %v1721, %v6118
        %v6414 = vsub.f32 %v1217, %v6123
        %v6415 = vsub.f32 %v1386, %v6123
        %v6416 = vsub.f32 %v1555, %v6123
        %v6417 = vsub.f32 %v1724, %v6123
        %v6418 = vsub.f32 %v1219, %v6128
        %v6419 = vsub.f32 %v1388, %v6128
        %v6420 = vsub.f32 %v1557, %v6128
        %v6421 = vsub.f32 %v1726, %v6128
        %v6422 = vsub.f32 %v1222, %v6133
        %v6423 = vsub.f32 %v1391, %v6133
        %v6424 = vsub.f32 %v1560, %v6133
        %v6425 = vsub.f32 %v1729, %v6133
        %v6426 = vsub.f32 %v1224, %v6138
        %v6427 = vsub.f32 %v1393, %v6138
        %v6428 = vsub.f32 %v1562, %v6138
        %v6429 = vsub.f32 %v1731, %v6138
        %v6430 = vsub.f32 %v1227, %v6143
        %v6431 = vsub.f32 %v1396, %v6143
        %v6432 = vsub.f32 %v1565, %v6143
        %v6433 = vsub.f32 %v1734, %v6143
        %v6434 = vsub.f32 %v1229, %v6148
        %v6435 = vsub.f32 %v1398, %v6148
        %v6436 = vsub.f32 %v1567, %v6148
        %v6437 = vsub.f32 %v1736, %v6148
        %v6438 = vsub.f32 %v1232, %v6153
        %v6439 = vsub.f32 %v1401, %v6153
        %v6440 = vsub.f32 %v1570, %v6153
        %v6441 = vsub.f32 %v1739, %v6153
        %v6442 = vsub.f32 %v1234, %v6158
        %v6443 = vsub.f32 %v1403, %v6158
        %v6444 = vsub.f32 %v1572, %v6158
        %v6445 = vsub.f32 %v1741, %v6158
        %v6446 = vsub.f32 %v1237, %v6163
        %v6447 = vsub.f32 %v1406, %v6163
        %v6448 = vsub.f32 %v1575, %v6163
        %v6449 = vsub.f32 %v1744, %v6163
        %v6450 = vsub.f32 %v1239, %v6168
        %v6451 = vsub.f32 %v1408, %v6168
        %v6452 = vsub.f32 %v1577, %v6168
        %v6453 = vsub.f32 %v1746, %v6168
        %v6454 = vsub.f32 %v1242, %v6173
        %v6455 = vsub.f32 %v1411, %v6173
        %v6456 = vsub.f32 %v1580, %v6173
        %v6457 = vsub.f32 %v1749, %v6173
        %v6458 = vsub.f32 %v1244, %v6178
        %v6459 = vsub.f32 %v1413, %v6178
        %v6460 = vsub.f32 %v1582, %v6178
        %v6461 = vsub.f32 %v1751, %v6178
        %v6462 = vsub.f32 %v1247, %v6183
        %v6463 = vsub.f32 %v1416, %v6183
        %v6464 = vsub.f32 %v1585, %v6183
        %v6465 = vsub.f32 %v1754, %v6183
        %v6466 = vsub.f32 %v1249, %v6188
        %v6467 = vsub.f32 %v1418, %v6188
        %v6468 = vsub.f32 %v1587, %v6188
        %v6469 = vsub.f32 %v1756, %v6188
        %v6470 = vsub.f32 %v1252, %v6193
        %v6471 = vsub.f32 %v1421, %v6193
        %v6472 = vsub.f32 %v1590, %v6193
        %v6473 = vsub.f32 %v1759, %v6193
        %v6474 = vsub.f32 %v1254, %v6198
        %v6475 = vsub.f32 %v1423, %v6198
        %v6476 = vsub.f32 %v1592, %v6198
        %v6477 = vsub.f32 %v1761, %v6198
        %v6478 = vsub.f32 %v1257, %v6203
        %v6479 = vsub.f32 %v1426, %v6203
        %v6480 = vsub.f32 %v1595, %v6203
        %v6481 = vsub.f32 %v1764, %v6203
        %v6482 = vsub.f32 %v1259, %v6208
        %v6483 = vsub.f32 %v1428, %v6208
        %v6484 = vsub.f32 %v1597, %v6208
        %v6485 = vsub.f32 %v1766, %v6208
        %v6486 = vsub.f32 %v1262, %v6213
        %v6487 = vsub.f32 %v1431, %v6213
        %v6488 = vsub.f32 %v1600, %v6213
        %v6489 = vsub.f32 %v1769, %v6213
        %v6490 = vsub.f32 %v1264, %v6218
        %v6491 = vsub.f32 %v1433, %v6218
        %v6492 = vsub.f32 %v1602, %v6218
        %v6493 = vsub.f32 %v1771, %v6218
        %v6494 = vsub.f32 %v1267, %v6223
        %v6495 = vsub.f32 %v1436, %v6223
        %v6496 = vsub.f32 %v1605, %v6223
        %v6497 = vsub.f32 %v1774, %v6223
        %v6498 = vsub.f32 %v1269, %v6228
        %v6499 = vsub.f32 %v1438, %v6228
        %v6500 = vsub.f32 %v1607, %v6228
        %v6501 = vsub.f32 %v1776, %v6228
        %v6502 = vsub.f32 %v1272, %v6233
        %v6503 = vsub.f32 %v1441, %v6233
        %v6504 = vsub.f32 %v1610, %v6233
        %v6505 = vsub.f32 %v1779, %v6233
        %v6506 = vsub.f32 %v1274, %v6238
        %v6507 = vsub.f32 %v1443, %v6238
        %v6508 = vsub.f32 %v1612, %v6238
        %v6509 = vsub.f32 %v1781, %v6238
        %v6510 = vsub.f32 %v1277, %v6243
        %v6511 = vsub.f32 %v1446, %v6243
        %v6512 = vsub.f32 %v1615, %v6243
        %v6513 = vsub.f32 %v1784, %v6243
        %v6514 = vsub.f32 %v1279, %v6248
        %v6515 = vsub.f32 %v1448, %v6248
        %v6516 = vsub.f32 %v1617, %v6248
        %v6517 = vsub.f32 %v1786, %v6248
        %v6518 = vsub.f32 %v1282, %v6253
        %v6519 = vsub.f32 %v1451, %v6253
        %v6520 = vsub.f32 %v1620, %v6253
        %v6521 = vsub.f32 %v1789, %v6253
        %v6522 = vsub.f32 %v1284, %v6258
        %v6523 = vsub.f32 %v1453, %v6258
        %v6524 = vsub.f32 %v1622, %v6258
        %v6525 = vsub.f32 %v1791, %v6258
        %v6526 = vsub.f32 %v1287, %v6263
        %v6527 = vsub.f32 %v1456, %v6263
        %v6528 = vsub.f32 %v1625, %v6263
        %v6529 = vsub.f32 %v1794, %v6263
        %v6530 = vsub.f32 %v1289, %v6268
        %v6531 = vsub.f32 %v1458, %v6268
        %v6532 = vsub.f32 %v1627, %v6268
        %v6533 = vsub.f32 %v1796, %v6268
        %v6534 = vsub.f32 %v1292, %v6273
        %v6535 = vsub.f32 %v1461, %v6273
        %v6536 = vsub.f32 %v1630, %v6273
        %v6537 = vsub.f32 %v1799, %v6273
        %v6538 = vsub.f32 %v1294, %v6278
        %v6539 = vsub.f32 %v1463, %v6278
        %v6540 = vsub.f32 %v1632, %v6278
        %v6541 = vsub.f32 %v1801, %v6278
        %v6542 = vsub.f32 %v1297, %v6283
        %v6543 = vsub.f32 %v1466, %v6283
        %v6544 = vsub.f32 %v1635, %v6283
        %v6545 = vsub.f32 %v1804, %v6283
        %v6546 = vsub.f32 %v1299, %v6288
        %v6547 = vsub.f32 %v1468, %v6288
        %v6548 = vsub.f32 %v1637, %v6288
        %v6549 = vsub.f32 %v1806, %v6288
        %v6550 = vsub.f32 %v1302, %v6293
        %v6551 = vsub.f32 %v1471, %v6293
        %v6552 = vsub.f32 %v1640, %v6293
        %v6553 = vsub.f32 %v1809, %v6293
        %v6554 = vsub.f32 %v1304, %v6298
        %v6555 = vsub.f32 %v1473, %v6298
        %v6556 = vsub.f32 %v1642, %v6298
        %v6557 = vsub.f32 %v1811, %v6298
        %v6558 = vsub.f32 %v1307, %v6303
        %v6559 = vsub.f32 %v1476, %v6303
        %v6560 = vsub.f32 %v1645, %v6303
        %v6561 = vsub.f32 %v1814, %v6303
        %v6562 = vsub.f32 %v1309, %v6308
        %v6563 = vsub.f32 %v1478, %v6308
        %v6564 = vsub.f32 %v1647, %v6308
        %v6565 = vsub.f32 %v1816, %v6308
        %v6566 = vmul.f32 %v6310, 1.442695
        %v6567 = vpow.pop %v6566
        %v6568 = vmul.f32 %v6311, 1.442695
        %v6569 = vpow.pop %v6568
        %v6570 = vmul.f32 %v6312, 1.442695
        %v6571 = vpow.pop %v6570
        %v6572 = vmul.f32 %v6313, 1.442695
        %v6573 = vpow.pop %v6572
        %v6574 = vmul.f32 %v6314, 1.442695
        %v6575 = vpow.pop %v6574
        %v6576 = vmul.f32 %v6315, 1.442695
        %v6577 = vpow.pop %v6576
        %v6578 = vmul.f32 %v6316, 1.442695
        %v6579 = vpow.pop %v6578
        %v6580 = vmul.f32 %v6317, 1.442695
        %v6581 = vpow.pop %v6580
        %v6582 = vmul.f32 %v6318, 1.442695
        %v6583 = vpow.pop %v6582
        %v6584 = vmul.f32 %v6319, 1.442695
        %v6585 = vpow.pop %v6584
        %v6586 = vmul.f32 %v6320, 1.442695
        %v6587 = vpow.pop %v6586
        %v6588 = vmul.f32 %v6321, 1.442695
        %v6589 = vpow.pop %v6588
        %v6590 = vmul.f32 %v6322, 1.442695
        %v6591 = vpow.pop %v6590
        %v6592 = vmul.f32 %v6323, 1.442695
        %v6593 = vpow.pop %v6592
        %v6594 = vmul.f32 %v6324, 1.442695
        %v6595 = vpow.pop %v6594
        %v6596 = vmul.f32 %v6325, 1.442695
        %v6597 = vpow.pop %v6596
        %v6598 = vmul.f32 %v6326, 1.442695
        %v6599 = vpow.pop %v6598
        %v6600 = vmul.f32 %v6327, 1.442695
        %v6601 = vpow.pop %v6600
        %v6602 = vmul.f32 %v6328, 1.442695
        %v6603 = vpow.pop %v6602
        %v6604 = vmul.f32 %v6329, 1.442695
        %v6605 = vpow.pop %v6604
        %v6606 = vmul.f32 %v6330, 1.442695
        %v6607 = vpow.pop %v6606
        %v6608 = vmul.f32 %v6331, 1.442695
        %v6609 = vpow.pop %v6608
        %v6610 = vmul.f32 %v6332, 1.442695
        %v6611 = vpow.pop %v6610
        %v6612 = vmul.f32 %v6333, 1.442695
        %v6613 = vpow.pop %v6612
        %v6614 = vmul.f32 %v6334, 1.442695
        %v6615 = vpow.pop %v6614
        %v6616 = vmul.f32 %v6335, 1.442695
        %v6617 = vpow.pop %v6616
        %v6618 = vmul.f32 %v6336, 1.442695
        %v6619 = vpow.pop %v6618
        %v6620 = vmul.f32 %v6337, 1.442695
        %v6621 = vpow.pop %v6620
        %v6622 = vmul.f32 %v6338, 1.442695
        %v6623 = vpow.pop %v6622
        %v6624 = vmul.f32 %v6339, 1.442695
        %v6625 = vpow.pop %v6624
        %v6626 = vmul.f32 %v6340, 1.442695
        %v6627 = vpow.pop %v6626
        %v6628 = vmul.f32 %v6341, 1.442695
        %v6629 = vpow.pop %v6628
        %v6630 = vmul.f32 %v6342, 1.442695
        %v6631 = vpow.pop %v6630
        %v6632 = vmul.f32 %v6343, 1.442695
        %v6633 = vpow.pop %v6632
        %v6634 = vmul.f32 %v6344, 1.442695
        %v6635 = vpow.pop %v6634
        %v6636 = vmul.f32 %v6345, 1.442695
        %v6637 = vpow.pop %v6636
        %v6638 = vmul.f32 %v6346, 1.442695
        %v6639 = vpow.pop %v6638
        %v6640 = vmul.f32 %v6347, 1.442695
        %v6641 = vpow.pop %v6640
        %v6642 = vmul.f32 %v6348, 1.442695
        %v6643 = vpow.pop %v6642
        %v6644 = vmul.f32 %v6349, 1.442695
        %v6645 = vpow.pop %v6644
        %v6646 = vmul.f32 %v6350, 1.442695
        %v6647 = vpow.pop %v6646
        %v6648 = vmul.f32 %v6351, 1.442695
        %v6649 = vpow.pop %v6648
        %v6650 = vmul.f32 %v6352, 1.442695
        %v6651 = vpow.pop %v6650
        %v6652 = vmul.f32 %v6353, 1.442695
        %v6653 = vpow.pop %v6652
        %v6654 = vmul.f32 %v6354, 1.442695
        %v6655 = vpow.pop %v6654
        %v6656 = vmul.f32 %v6355, 1.442695
        %v6657 = vpow.pop %v6656
        %v6658 = vmul.f32 %v6356, 1.442695
        %v6659 = vpow.pop %v6658
        %v6660 = vmul.f32 %v6357, 1.442695
        %v6661 = vpow.pop %v6660
        %v6662 = vmul.f32 %v6358, 1.442695
        %v6663 = vpow.pop %v6662
        %v6664 = vmul.f32 %v6359, 1.442695
        %v6665 = vpow.pop %v6664
        %v6666 = vmul.f32 %v6360, 1.442695
        %v6667 = vpow.pop %v6666
        %v6668 = vmul.f32 %v6361, 1.442695
        %v6669 = vpow.pop %v6668
        %v6670 = vmul.f32 %v6362, 1.442695
        %v6671 = vpow.pop %v6670
        %v6672 = vmul.f32 %v6363, 1.442695
        %v6673 = vpow.pop %v6672
        %v6674 = vmul.f32 %v6364, 1.442695
        %v6675 = vpow.pop %v6674
        %v6676 = vmul.f32 %v6365, 1.442695
        %v6677 = vpow.pop %v6676
        %v6678 = vmul.f32 %v6366, 1.442695
        %v6679 = vpow.pop %v6678
        %v6680 = vmul.f32 %v6367, 1.442695
        %v6681 = vpow.pop %v6680
        %v6682 = vmul.f32 %v6368, 1.442695
        %v6683 = vpow.pop %v6682
        %v6684 = vmul.f32 %v6369, 1.442695
        %v6685 = vpow.pop %v6684
        %v6686 = vmul.f32 %v6370, 1.442695
        %v6687 = vpow.pop %v6686
        %v6688 = vmul.f32 %v6371, 1.442695
        %v6689 = vpow.pop %v6688
        %v6690 = vmul.f32 %v6372, 1.442695
        %v6691 = vpow.pop %v6690
        %v6692 = vmul.f32 %v6373, 1.442695
        %v6693 = vpow.pop %v6692
        %v6694 = vmul.f32 %v6374, 1.442695
        %v6695 = vpow.pop %v6694
        %v6696 = vmul.f32 %v6375, 1.442695
        %v6697 = vpow.pop %v6696
        %v6698 = vmul.f32 %v6376, 1.442695
        %v6699 = vpow.pop %v6698
        %v6700 = vmul.f32 %v6377, 1.442695
        %v6701 = vpow.pop %v6700
        %v6702 = vmul.f32 %v6378, 1.442695
        %v6703 = vpow.pop %v6702
        %v6704 = vmul.f32 %v6379, 1.442695
        %v6705 = vpow.pop %v6704
        %v6706 = vmul.f32 %v6380, 1.442695
        %v6707 = vpow.pop %v6706
        %v6708 = vmul.f32 %v6381, 1.442695
        %v6709 = vpow.pop %v6708
        %v6710 = vmul.f32 %v6382, 1.442695
        %v6711 = vpow.pop %v6710
        %v6712 = vmul.f32 %v6383, 1.442695
        %v6713 = vpow.pop %v6712
        %v6714 = vmul.f32 %v6384, 1.442695
        %v6715 = vpow.pop %v6714
        %v6716 = vmul.f32 %v6385, 1.442695
        %v6717 = vpow.pop %v6716
        %v6718 = vmul.f32 %v6386, 1.442695
        %v6719 = vpow.pop %v6718
        %v6720 = vmul.f32 %v6387, 1.442695
        %v6721 = vpow.pop %v6720
        %v6722 = vmul.f32 %v6388, 1.442695
        %v6723 = vpow.pop %v6722
        %v6724 = vmul.f32 %v6389, 1.442695
        %v6725 = vpow.pop %v6724
        %v6726 = vmul.f32 %v6390, 1.442695
        %v6727 = vpow.pop %v6726
        %v6728 = vmul.f32 %v6391, 1.442695
        %v6729 = vpow.pop %v6728
        %v6730 = vmul.f32 %v6392, 1.442695
        %v6731 = vpow.pop %v6730
        %v6732 = vmul.f32 %v6393, 1.442695
        %v6733 = vpow.pop %v6732
        %v6734 = vmul.f32 %v6394, 1.442695
        %v6735 = vpow.pop %v6734
        %v6736 = vmul.f32 %v6395, 1.442695
        %v6737 = vpow.pop %v6736
        %v6738 = vmul.f32 %v6396, 1.442695
        %v6739 = vpow.pop %v6738
        %v6740 = vmul.f32 %v6397, 1.442695
        %v6741 = vpow.pop %v6740
        %v6742 = vmul.f32 %v6398, 1.442695
        %v6743 = vpow.pop %v6742
        %v6744 = vmul.f32 %v6399, 1.442695
        %v6745 = vpow.pop %v6744
        %v6746 = vmul.f32 %v6400, 1.442695
        %v6747 = vpow.pop %v6746
        %v6748 = vmul.f32 %v6401, 1.442695
        %v6749 = vpow.pop %v6748
        %v6750 = vmul.f32 %v6402, 1.442695
        %v6751 = vpow.pop %v6750
        %v6752 = vmul.f32 %v6403, 1.442695
        %v6753 = vpow.pop %v6752
        %v6754 = vmul.f32 %v6404, 1.442695
        %v6755 = vpow.pop %v6754
        %v6756 = vmul.f32 %v6405, 1.442695
        %v6757 = vpow.pop %v6756
        %v6758 = vmul.f32 %v6406, 1.442695
        %v6759 = vpow.pop %v6758
        %v6760 = vmul.f32 %v6407, 1.442695
        %v6761 = vpow.pop %v6760
        %v6762 = vmul.f32 %v6408, 1.442695
        %v6763 = vpow.pop %v6762
        %v6764 = vmul.f32 %v6409, 1.442695
        %v6765 = vpow.pop %v6764
        %v6766 = vmul.f32 %v6410, 1.442695
        %v6767 = vpow.pop %v6766
        %v6768 = vmul.f32 %v6411, 1.442695
        %v6769 = vpow.pop %v6768
        %v6770 = vmul.f32 %v6412, 1.442695
        %v6771 = vpow.pop %v6770
        %v6772 = vmul.f32 %v6413, 1.442695
        %v6773 = vpow.pop %v6772
        %v6774 = vmul.f32 %v6414, 1.442695
        %v6775 = vpow.pop %v6774
        %v6776 = vmul.f32 %v6415, 1.442695
        %v6777 = vpow.pop %v6776
        %v6778 = vmul.f32 %v6416, 1.442695
        %v6779 = vpow.pop %v6778
        %v6780 = vmul.f32 %v6417, 1.442695
        %v6781 = vpow.pop %v6780
        %v6782 = vmul.f32 %v6418, 1.442695
        %v6783 = vpow.pop %v6782
        %v6784 = vmul.f32 %v6419, 1.442695
        %v6785 = vpow.pop %v6784
        %v6786 = vmul.f32 %v6420, 1.442695
        %v6787 = vpow.pop %v6786
        %v6788 = vmul.f32 %v6421, 1.442695
        %v6789 = vpow.pop %v6788
        %v6790 = vmul.f32 %v6422, 1.442695
        %v6791 = vpow.pop %v6790
        %v6792 = vmul.f32 %v6423, 1.442695
        %v6793 = vpow.pop %v6792
        %v6794 = vmul.f32 %v6424, 1.442695
        %v6795 = vpow.pop %v6794
        %v6796 = vmul.f32 %v6425, 1.442695
        %v6797 = vpow.pop %v6796
        %v6798 = vmul.f32 %v6426, 1.442695
        %v6799 = vpow.pop %v6798
        %v6800 = vmul.f32 %v6427, 1.442695
        %v6801 = vpow.pop %v6800
        %v6802 = vmul.f32 %v6428, 1.442695
        %v6803 = vpow.pop %v6802
        %v6804 = vmul.f32 %v6429, 1.442695
        %v6805 = vpow.pop %v6804
        %v6806 = vmul.f32 %v6430, 1.442695
        %v6807 = vpow.pop %v6806
        %v6808 = vmul.f32 %v6431, 1.442695
        %v6809 = vpow.pop %v6808
        %v6810 = vmul.f32 %v6432, 1.442695
        %v6811 = vpow.pop %v6810
        %v6812 = vmul.f32 %v6433, 1.442695
        %v6813 = vpow.pop %v6812
        %v6814 = vmul.f32 %v6434, 1.442695
        %v6815 = vpow.pop %v6814
        %v6816 = vmul.f32 %v6435, 1.442695
        %v6817 = vpow.pop %v6816
        %v6818 = vmul.f32 %v6436, 1.442695
        %v6819 = vpow.pop %v6818
        %v6820 = vmul.f32 %v6437, 1.442695
        %v6821 = vpow.pop %v6820
        %v6822 = vmul.f32 %v6438, 1.442695
        %v6823 = vpow.pop %v6822
        %v6824 = vmul.f32 %v6439, 1.442695
        %v6825 = vpow.pop %v6824
        %v6826 = vmul.f32 %v6440, 1.442695
        %v6827 = vpow.pop %v6826
        %v6828 = vmul.f32 %v6441, 1.442695
        %v6829 = vpow.pop %v6828
        %v6830 = vmul.f32 %v6442, 1.442695
        %v6831 = vpow.pop %v6830
        %v6832 = vmul.f32 %v6443, 1.442695
        %v6833 = vpow.pop %v6832
        %v6834 = vmul.f32 %v6444, 1.442695
        %v6835 = vpow.pop %v6834
        %v6836 = vmul.f32 %v6445, 1.442695
        %v6837 = vpow.pop %v6836
        %v6838 = vmul.f32 %v6446, 1.442695
        %v6839 = vpow.pop %v6838
        %v6840 = vmul.f32 %v6447, 1.442695
        %v6841 = vpow.pop %v6840
        %v6842 = vmul.f32 %v6448, 1.442695
        %v6843 = vpow.pop %v6842
        %v6844 = vmul.f32 %v6449, 1.442695
        %v6845 = vpow.pop %v6844
        %v6846 = vmul.f32 %v6450, 1.442695
        %v6847 = vpow.pop %v6846
        %v6848 = vmul.f32 %v6451, 1.442695
        %v6849 = vpow.pop %v6848
        %v6850 = vmul.f32 %v6452, 1.442695
        %v6851 = vpow.pop %v6850
        %v6852 = vmul.f32 %v6453, 1.442695
        %v6853 = vpow.pop %v6852
        %v6854 = vmul.f32 %v6454, 1.442695
        %v6855 = vpow.pop %v6854
        %v6856 = vmul.f32 %v6455, 1.442695
        %v6857 = vpow.pop %v6856
        %v6858 = vmul.f32 %v6456, 1.442695
        %v6859 = vpow.pop %v6858
        %v6860 = vmul.f32 %v6457, 1.442695
        %v6861 = vpow.pop %v6860
        %v6862 = vmul.f32 %v6458, 1.442695
        %v6863 = vpow.pop %v6862
        %v6864 = vmul.f32 %v6459, 1.442695
        %v6865 = vpow.pop %v6864
        %v6866 = vmul.f32 %v6460, 1.442695
        %v6867 = vpow.pop %v6866
        %v6868 = vmul.f32 %v6461, 1.442695
        %v6869 = vpow.pop %v6868
        %v6870 = vmul.f32 %v6462, 1.442695
        %v6871 = vpow.pop %v6870
        %v6872 = vmul.f32 %v6463, 1.442695
        %v6873 = vpow.pop %v6872
        %v6874 = vmul.f32 %v6464, 1.442695
        %v6875 = vpow.pop %v6874
        %v6876 = vmul.f32 %v6465, 1.442695
        %v6877 = vpow.pop %v6876
        %v6878 = vmul.f32 %v6466, 1.442695
        %v6879 = vpow.pop %v6878
        %v6880 = vmul.f32 %v6467, 1.442695
        %v6881 = vpow.pop %v6880
        %v6882 = vmul.f32 %v6468, 1.442695
        %v6883 = vpow.pop %v6882
        %v6884 = vmul.f32 %v6469, 1.442695
        %v6885 = vpow.pop %v6884
        %v6886 = vmul.f32 %v6470, 1.442695
        %v6887 = vpow.pop %v6886
        %v6888 = vmul.f32 %v6471, 1.442695
        %v6889 = vpow.pop %v6888
        %v6890 = vmul.f32 %v6472, 1.442695
        %v6891 = vpow.pop %v6890
        %v6892 = vmul.f32 %v6473, 1.442695
        %v6893 = vpow.pop %v6892
        %v6894 = vmul.f32 %v6474, 1.442695
        %v6895 = vpow.pop %v6894
        %v6896 = vmul.f32 %v6475, 1.442695
        %v6897 = vpow.pop %v6896
        %v6898 = vmul.f32 %v6476, 1.442695
        %v6899 = vpow.pop %v6898
        %v6900 = vmul.f32 %v6477, 1.442695
        %v6901 = vpow.pop %v6900
        %v6902 = vmul.f32 %v6478, 1.442695
        %v6903 = vpow.pop %v6902
        %v6904 = vmul.f32 %v6479, 1.442695
        %v6905 = vpow.pop %v6904
        %v6906 = vmul.f32 %v6480, 1.442695
        %v6907 = vpow.pop %v6906
        %v6908 = vmul.f32 %v6481, 1.442695
        %v6909 = vpow.pop %v6908
        %v6910 = vmul.f32 %v6482, 1.442695
        %v6911 = vpow.pop %v6910
        %v6912 = vmul.f32 %v6483, 1.442695
        %v6913 = vpow.pop %v6912
        %v6914 = vmul.f32 %v6484, 1.442695
        %v6915 = vpow.pop %v6914
        %v6916 = vmul.f32 %v6485, 1.442695
        %v6917 = vpow.pop %v6916
        %v6918 = vmul.f32 %v6486, 1.442695
        %v6919 = vpow.pop %v6918
        %v6920 = vmul.f32 %v6487, 1.442695
        %v6921 = vpow.pop %v6920
        %v6922 = vmul.f32 %v6488, 1.442695
        %v6923 = vpow.pop %v6922
        %v6924 = vmul.f32 %v6489, 1.442695
        %v6925 = vpow.pop %v6924
        %v6926 = vmul.f32 %v6490, 1.442695
        %v6927 = vpow.pop %v6926
        %v6928 = vmul.f32 %v6491, 1.442695
        %v6929 = vpow.pop %v6928
        %v6930 = vmul.f32 %v6492, 1.442695
        %v6931 = vpow.pop %v6930
        %v6932 = vmul.f32 %v6493, 1.442695
        %v6933 = vpow.pop %v6932
        %v6934 = vmul.f32 %v6494, 1.442695
        %v6935 = vpow.pop %v6934
        %v6936 = vmul.f32 %v6495, 1.442695
        %v6937 = vpow.pop %v6936
        %v6938 = vmul.f32 %v6496, 1.442695
        %v6939 = vpow.pop %v6938
        %v6940 = vmul.f32 %v6497, 1.442695
        %v6941 = vpow.pop %v6940
        %v6942 = vmul.f32 %v6498, 1.442695
        %v6943 = vpow.pop %v6942
        %v6944 = vmul.f32 %v6499, 1.442695
        %v6945 = vpow.pop %v6944
        %v6946 = vmul.f32 %v6500, 1.442695
        %v6947 = vpow.pop %v6946
        %v6948 = vmul.f32 %v6501, 1.442695
        %v6949 = vpow.pop %v6948
        %v6950 = vmul.f32 %v6502, 1.442695
        %v6951 = vpow.pop %v6950
        %v6952 = vmul.f32 %v6503, 1.442695
        %v6953 = vpow.pop %v6952
        %v6954 = vmul.f32 %v6504, 1.442695
        %v6955 = vpow.pop %v6954
        %v6956 = vmul.f32 %v6505, 1.442695
        %v6957 = vpow.pop %v6956
        %v6958 = vmul.f32 %v6506, 1.442695
        %v6959 = vpow.pop %v6958
        %v6960 = vmul.f32 %v6507, 1.442695
        %v6961 = vpow.pop %v6960
        %v6962 = vmul.f32 %v6508, 1.442695
        %v6963 = vpow.pop %v6962
        %v6964 = vmul.f32 %v6509, 1.442695
        %v6965 = vpow.pop %v6964
        %v6966 = vmul.f32 %v6510, 1.442695
        %v6967 = vpow.pop %v6966
        %v6968 = vmul.f32 %v6511, 1.442695
        %v6969 = vpow.pop %v6968
        %v6970 = vmul.f32 %v6512, 1.442695
        %v6971 = vpow.pop %v6970
        %v6972 = vmul.f32 %v6513, 1.442695
        %v6973 = vpow.pop %v6972
        %v6974 = vmul.f32 %v6514, 1.442695
        %v6975 = vpow.pop %v6974
        %v6976 = vmul.f32 %v6515, 1.442695
        %v6977 = vpow.pop %v6976
        %v6978 = vmul.f32 %v6516, 1.442695
        %v6979 = vpow.pop %v6978
        %v6980 = vmul.f32 %v6517, 1.442695
        %v6981 = vpow.pop %v6980
        %v6982 = vmul.f32 %v6518, 1.442695
        %v6983 = vpow.pop %v6982
        %v6984 = vmul.f32 %v6519, 1.442695
        %v6985 = vpow.pop %v6984
        %v6986 = vmul.f32 %v6520, 1.442695
        %v6987 = vpow.pop %v6986
        %v6988 = vmul.f32 %v6521, 1.442695
        %v6989 = vpow.pop %v6988
        %v6990 = vmul.f32 %v6522, 1.442695
        %v6991 = vpow.pop %v6990
        %v6992 = vmul.f32 %v6523, 1.442695
        %v6993 = vpow.pop %v6992
        %v6994 = vmul.f32 %v6524, 1.442695
        %v6995 = vpow.pop %v6994
        %v6996 = vmul.f32 %v6525, 1.442695
        %v6997 = vpow.pop %v6996
        %v6998 = vmul.f32 %v6526, 1.442695
        %v6999 = vpow.pop %v6998
        %v7000 = vmul.f32 %v6527, 1.442695
        %v7001 = vpow.pop %v7000
        %v7002 = vmul.f32 %v6528, 1.442695
        %v7003 = vpow.pop %v7002
        %v7004 = vmul.f32 %v6529, 1.442695
        %v7005 = vpow.pop %v7004
        %v7006 = vmul.f32 %v6530, 1.442695
        %v7007 = vpow.pop %v7006
        %v7008 = vmul.f32 %v6531, 1.442695
        %v7009 = vpow.pop %v7008
        %v7010 = vmul.f32 %v6532, 1.442695
        %v7011 = vpow.pop %v7010
        %v7012 = vmul.f32 %v6533, 1.442695
        %v7013 = vpow.pop %v7012
        %v7014 = vmul.f32 %v6534, 1.442695
        %v7015 = vpow.pop %v7014
        %v7016 = vmul.f32 %v6535, 1.442695
        %v7017 = vpow.pop %v7016
        %v7018 = vmul.f32 %v6536, 1.442695
        %v7019 = vpow.pop %v7018
        %v7020 = vmul.f32 %v6537, 1.442695
        %v7021 = vpow.pop %v7020
        %v7022 = vmul.f32 %v6538, 1.442695
        %v7023 = vpow.pop %v7022
        %v7024 = vmul.f32 %v6539, 1.442695
        %v7025 = vpow.pop %v7024
        %v7026 = vmul.f32 %v6540, 1.442695
        %v7027 = vpow.pop %v7026
        %v7028 = vmul.f32 %v6541, 1.442695
        %v7029 = vpow.pop %v7028
        %v7030 = vmul.f32 %v6542, 1.442695
        %v7031 = vpow.pop %v7030
        %v7032 = vmul.f32 %v6543, 1.442695
        %v7033 = vpow.pop %v7032
        %v7034 = vmul.f32 %v6544, 1.442695
        %v7035 = vpow.pop %v7034
        %v7036 = vmul.f32 %v6545, 1.442695
        %v7037 = vpow.pop %v7036
        %v7038 = vmul.f32 %v6546, 1.442695
        %v7039 = vpow.pop %v7038
        %v7040 = vmul.f32 %v6547, 1.442695
        %v7041 = vpow.pop %v7040
        %v7042 = vmul.f32 %v6548, 1.442695
        %v7043 = vpow.pop %v7042
        %v7044 = vmul.f32 %v6549, 1.442695
        %v7045 = vpow.pop %v7044
        %v7046 = vmul.f32 %v6550, 1.442695
        %v7047 = vpow.pop %v7046
        %v7048 = vmul.f32 %v6551, 1.442695
        %v7049 = vpow.pop %v7048
        %v7050 = vmul.f32 %v6552, 1.442695
        %v7051 = vpow.pop %v7050
        %v7052 = vmul.f32 %v6553, 1.442695
        %v7053 = vpow.pop %v7052
        %v7054 = vmul.f32 %v6554, 1.442695
        %v7055 = vpow.pop %v7054
        %v7056 = vmul.f32 %v6555, 1.442695
        %v7057 = vpow.pop %v7056
        %v7058 = vmul.f32 %v6556, 1.442695
        %v7059 = vpow.pop %v7058
        %v7060 = vmul.f32 %v6557, 1.442695
        %v7061 = vpow.pop %v7060
        %v7062 = vmul.f32 %v6558, 1.442695
        %v7063 = vpow.pop %v7062
        %v7064 = vmul.f32 %v6559, 1.442695
        %v7065 = vpow.pop %v7064
        %v7066 = vmul.f32 %v6560, 1.442695
        %v7067 = vpow.pop %v7066
        %v7068 = vmul.f32 %v6561, 1.442695
        %v7069 = vpow.pop %v7068
        %v7070 = vmul.f32 %v6562, 1.442695
        %v7071 = vpow.pop %v7070
        %v7072 = vmul.f32 %v6563, 1.442695
        %v7073 = vpow.pop %v7072
        %v7074 = vmul.f32 %v6564, 1.442695
        %v7075 = vpow.pop %v7074
        %v7076 = vmul.f32 %v6565, 1.442695
        %v7077 = vpow.pop %v7076
        %v7078 = vadd.f32 %v6567, %v6569
        %v7079 = vadd.f32 %v7078, %v6571
        %v7080 = vadd.f32 %v7079, %v6573
        %7081 = vadd.xlane.f32.xlu0 %v7080
        %v7082 = vpop.xlane.xlu0 %7081
        %v7083 = vadd.f32 %v6575, %v6577
        %v7084 = vadd.f32 %v7083, %v6579
        %v7085 = vadd.f32 %v7084, %v6581
        %7086 = vadd.xlane.f32.xlu0 %v7085
        %v7087 = vpop.xlane.xlu0 %7086
        %v7088 = vadd.f32 %v6583, %v6585
        %v7089 = vadd.f32 %v7088, %v6587
        %v7090 = vadd.f32 %v7089, %v6589
        %7091 = vadd.xlane.f32.xlu0 %v7090
        %v7092 = vpop.xlane.xlu0 %7091
        %v7093 = vadd.f32 %v6591, %v6593
        %v7094 = vadd.f32 %v7093, %v6595
        %v7095 = vadd.f32 %v7094, %v6597
        %7096 = vadd.xlane.f32.xlu0 %v7095
        %v7097 = vpop.xlane.xlu0 %7096
        %v7098 = vadd.f32 %v6599, %v6601
        %v7099 = vadd.f32 %v7098, %v6603
        %v7100 = vadd.f32 %v7099, %v6605
        %7101 = vadd.xlane.f32.xlu0 %v7100
        %v7102 = vpop.xlane.xlu0 %7101
        %v7103 = vadd.f32 %v6607, %v6609
        %v7104 = vadd.f32 %v7103, %v6611
        %v7105 = vadd.f32 %v7104, %v6613
        %7106 = vadd.xlane.f32.xlu0 %v7105
        %v7107 = vpop.xlane.xlu0 %7106
        %v7108 = vadd.f32 %v6615, %v6617
        %v7109 = vadd.f32 %v7108, %v6619
        %v7110 = vadd.f32 %v7109, %v6621
        %7111 = vadd.xlane.f32.xlu0 %v7110
        %v7112 = vpop.xlane.xlu0 %7111
        %v7113 = vadd.f32 %v6623, %v6625
        %v7114 = vadd.f32 %v7113, %v6627
        %v7115 = vadd.f32 %v7114, %v6629
        %7116 = vadd.xlane.f32.xlu0 %v7115
        %v7117 = vpop.xlane.xlu0 %7116
        %v7118 = vadd.f32 %v6631, %v6633
        %v7119 = vadd.f32 %v7118, %v6635
        %v7120 = vadd.f32 %v7119, %v6637
        %7121 = vadd.xlane.f32.xlu0 %v7120
        %v7122 = vpop.xlane.xlu0 %7121
        %v7123 = vadd.f32 %v6639, %v6641
        %v7124 = vadd.f32 %v7123, %v6643
        %v7125 = vadd.f32 %v7124, %v6645
        %7126 = vadd.xlane.f32.xlu0 %v7125
        %v7127 = vpop.xlane.xlu0 %7126
        %v7128 = vadd.f32 %v6647, %v6649
        %v7129 = vadd.f32 %v7128, %v6651
        %v7130 = vadd.f32 %v7129, %v6653
        %7131 = vadd.xlane.f32.xlu0 %v7130
        %v7132 = vpop.xlane.xlu0 %7131
        %v7133 = vadd.f32 %v6655, %v6657
        %v7134 = vadd.f32 %v7133, %v6659
        %v7135 = vadd.f32 %v7134, %v6661
        %7136 = vadd.xlane.f32.xlu0 %v7135
        %v7137 = vpop.xlane.xlu0 %7136
        %v7138 = vadd.f32 %v6663, %v6665
        %v7139 = vadd.f32 %v7138, %v6667
        %v7140 = vadd.f32 %v7139, %v6669
        %7141 = vadd.xlane.f32.xlu0 %v7140
        %v7142 = vpop.xlane.xlu0 %7141
        %v7143 = vadd.f32 %v6671, %v6673
        %v7144 = vadd.f32 %v7143, %v6675
        %v7145 = vadd.f32 %v7144, %v6677
        %7146 = vadd.xlane.f32.xlu0 %v7145
        %v7147 = vpop.xlane.xlu0 %7146
        %v7148 = vadd.f32 %v6679, %v6681
        %v7149 = vadd.f32 %v7148, %v6683
        %v7150 = vadd.f32 %v7149, %v6685
        %7151 = vadd.xlane.f32.xlu0 %v7150
        %v7152 = vpop.xlane.xlu0 %7151
        %v7153 = vadd.f32 %v6687, %v6689
        %v7154 = vadd.f32 %v7153, %v6691
        %v7155 = vadd.f32 %v7154, %v6693
        %7156 = vadd.xlane.f32.xlu0 %v7155
        %v7157 = vpop.xlane.xlu0 %7156
        %v7158 = vadd.f32 %v6695, %v6697
        %v7159 = vadd.f32 %v7158, %v6699
        %v7160 = vadd.f32 %v7159, %v6701
        %7161 = vadd.xlane.f32.xlu0 %v7160
        %v7162 = vpop.xlane.xlu0 %7161
        %v7163 = vadd.f32 %v6703, %v6705
        %v7164 = vadd.f32 %v7163, %v6707
        %v7165 = vadd.f32 %v7164, %v6709
        %7166 = vadd.xlane.f32.xlu0 %v7165
        %v7167 = vpop.xlane.xlu0 %7166
        %v7168 = vadd.f32 %v6711, %v6713
        %v7169 = vadd.f32 %v7168, %v6715
        %v7170 = vadd.f32 %v7169, %v6717
        %7171 = vadd.xlane.f32.xlu0 %v7170
        %v7172 = vpop.xlane.xlu0 %7171
        %v7173 = vadd.f32 %v6719, %v6721
        %v7174 = vadd.f32 %v7173, %v6723
        %v7175 = vadd.f32 %v7174, %v6725
        %7176 = vadd.xlane.f32.xlu0 %v7175
        %v7177 = vpop.xlane.xlu0 %7176
        %v7178 = vadd.f32 %v6727, %v6729
        %v7179 = vadd.f32 %v7178, %v6731
        %v7180 = vadd.f32 %v7179, %v6733
        %7181 = vadd.xlane.f32.xlu0 %v7180
        %v7182 = vpop.xlane.xlu0 %7181
        %v7183 = vadd.f32 %v6735, %v6737
        %v7184 = vadd.f32 %v7183, %v6739
        %v7185 = vadd.f32 %v7184, %v6741
        %7186 = vadd.xlane.f32.xlu0 %v7185
        %v7187 = vpop.xlane.xlu0 %7186
        %v7188 = vadd.f32 %v6743, %v6745
        %v7189 = vadd.f32 %v7188, %v6747
        %v7190 = vadd.f32 %v7189, %v6749
        %7191 = vadd.xlane.f32.xlu0 %v7190
        %v7192 = vpop.xlane.xlu0 %7191
        %v7193 = vadd.f32 %v6751, %v6753
        %v7194 = vadd.f32 %v7193, %v6755
        %v7195 = vadd.f32 %v7194, %v6757
        %7196 = vadd.xlane.f32.xlu0 %v7195
        %v7197 = vpop.xlane.xlu0 %7196
        %v7198 = vadd.f32 %v6759, %v6761
        %v7199 = vadd.f32 %v7198, %v6763
        %v7200 = vadd.f32 %v7199, %v6765
        %7201 = vadd.xlane.f32.xlu0 %v7200
        %v7202 = vpop.xlane.xlu0 %7201
        %v7203 = vadd.f32 %v6767, %v6769
        %v7204 = vadd.f32 %v7203, %v6771
        %v7205 = vadd.f32 %v7204, %v6773
        %7206 = vadd.xlane.f32.xlu0 %v7205
        %v7207 = vpop.xlane.xlu0 %7206
        %v7208 = vadd.f32 %v6775, %v6777
        %v7209 = vadd.f32 %v7208, %v6779
        %v7210 = vadd.f32 %v7209, %v6781
        %7211 = vadd.xlane.f32.xlu0 %v7210
        %v7212 = vpop.xlane.xlu0 %7211
        %v7213 = vadd.f32 %v6783, %v6785
        %v7214 = vadd.f32 %v7213, %v6787
        %v7215 = vadd.f32 %v7214, %v6789
        %7216 = vadd.xlane.f32.xlu0 %v7215
        %v7217 = vpop.xlane.xlu0 %7216
        %v7218 = vadd.f32 %v6791, %v6793
        %v7219 = vadd.f32 %v7218, %v6795
        %v7220 = vadd.f32 %v7219, %v6797
        %7221 = vadd.xlane.f32.xlu0 %v7220
        %v7222 = vpop.xlane.xlu0 %7221
        %v7223 = vadd.f32 %v6799, %v6801
        %v7224 = vadd.f32 %v7223, %v6803
        %v7225 = vadd.f32 %v7224, %v6805
        %7226 = vadd.xlane.f32.xlu0 %v7225
        %v7227 = vpop.xlane.xlu0 %7226
        %v7228 = vadd.f32 %v6807, %v6809
        %v7229 = vadd.f32 %v7228, %v6811
        %v7230 = vadd.f32 %v7229, %v6813
        %7231 = vadd.xlane.f32.xlu0 %v7230
        %v7232 = vpop.xlane.xlu0 %7231
        %v7233 = vadd.f32 %v6815, %v6817
        %v7234 = vadd.f32 %v7233, %v6819
        %v7235 = vadd.f32 %v7234, %v6821
        %7236 = vadd.xlane.f32.xlu0 %v7235
        %v7237 = vpop.xlane.xlu0 %7236
        %v7238 = vadd.f32 %v6823, %v6825
        %v7239 = vadd.f32 %v7238, %v6827
        %v7240 = vadd.f32 %v7239, %v6829
        %7241 = vadd.xlane.f32.xlu0 %v7240
        %v7242 = vpop.xlane.xlu0 %7241
        %v7243 = vadd.f32 %v6831, %v6833
        %v7244 = vadd.f32 %v7243, %v6835
        %v7245 = vadd.f32 %v7244, %v6837
        %7246 = vadd.xlane.f32.xlu0 %v7245
        %v7247 = vpop.xlane.xlu0 %7246
        %v7248 = vadd.f32 %v6839, %v6841
        %v7249 = vadd.f32 %v7248, %v6843
        %v7250 = vadd.f32 %v7249, %v6845
        %7251 = vadd.xlane.f32.xlu0 %v7250
        %v7252 = vpop.xlane.xlu0 %7251
        %v7253 = vadd.f32 %v6847, %v6849
        %v7254 = vadd.f32 %v7253, %v6851
        %v7255 = vadd.f32 %v7254, %v6853
        %7256 = vadd.xlane.f32.xlu0 %v7255
        %v7257 = vpop.xlane.xlu0 %7256
        %v7258 = vadd.f32 %v6855, %v6857
        %v7259 = vadd.f32 %v7258, %v6859
        %v7260 = vadd.f32 %v7259, %v6861
        %7261 = vadd.xlane.f32.xlu0 %v7260
        %v7262 = vpop.xlane.xlu0 %7261
        %v7263 = vadd.f32 %v6863, %v6865
        %v7264 = vadd.f32 %v7263, %v6867
        %v7265 = vadd.f32 %v7264, %v6869
        %7266 = vadd.xlane.f32.xlu0 %v7265
        %v7267 = vpop.xlane.xlu0 %7266
        %v7268 = vadd.f32 %v6871, %v6873
        %v7269 = vadd.f32 %v7268, %v6875
        %v7270 = vadd.f32 %v7269, %v6877
        %7271 = vadd.xlane.f32.xlu0 %v7270
        %v7272 = vpop.xlane.xlu0 %7271
        %v7273 = vadd.f32 %v6879, %v6881
        %v7274 = vadd.f32 %v7273, %v6883
        %v7275 = vadd.f32 %v7274, %v6885
        %7276 = vadd.xlane.f32.xlu0 %v7275
        %v7277 = vpop.xlane.xlu0 %7276
        %v7278 = vadd.f32 %v6887, %v6889
        %v7279 = vadd.f32 %v7278, %v6891
        %v7280 = vadd.f32 %v7279, %v6893
        %7281 = vadd.xlane.f32.xlu0 %v7280
        %v7282 = vpop.xlane.xlu0 %7281
        %v7283 = vadd.f32 %v6895, %v6897
        %v7284 = vadd.f32 %v7283, %v6899
        %v7285 = vadd.f32 %v7284, %v6901
        %7286 = vadd.xlane.f32.xlu0 %v7285
        %v7287 = vpop.xlane.xlu0 %7286
        %v7288 = vadd.f32 %v6903, %v6905
        %v7289 = vadd.f32 %v7288, %v6907
        %v7290 = vadd.f32 %v7289, %v6909
        %7291 = vadd.xlane.f32.xlu0 %v7290
        %v7292 = vpop.xlane.xlu0 %7291
        %v7293 = vadd.f32 %v6911, %v6913
        %v7294 = vadd.f32 %v7293, %v6915
        %v7295 = vadd.f32 %v7294, %v6917
        %7296 = vadd.xlane.f32.xlu0 %v7295
        %v7297 = vpop.xlane.xlu0 %7296
        %v7298 = vadd.f32 %v6919, %v6921
        %v7299 = vadd.f32 %v7298, %v6923
        %v7300 = vadd.f32 %v7299, %v6925
        %7301 = vadd.xlane.f32.xlu0 %v7300
        %v7302 = vpop.xlane.xlu0 %7301
        %v7303 = vadd.f32 %v6927, %v6929
        %v7304 = vadd.f32 %v7303, %v6931
        %v7305 = vadd.f32 %v7304, %v6933
        %7306 = vadd.xlane.f32.xlu0 %v7305
        %v7307 = vpop.xlane.xlu0 %7306
        %v7308 = vadd.f32 %v6935, %v6937
        %v7309 = vadd.f32 %v7308, %v6939
        %v7310 = vadd.f32 %v7309, %v6941
        %7311 = vadd.xlane.f32.xlu0 %v7310
        %v7312 = vpop.xlane.xlu0 %7311
        %v7313 = vadd.f32 %v6943, %v6945
        %v7314 = vadd.f32 %v7313, %v6947
        %v7315 = vadd.f32 %v7314, %v6949
        %7316 = vadd.xlane.f32.xlu0 %v7315
        %v7317 = vpop.xlane.xlu0 %7316
        %v7318 = vadd.f32 %v6951, %v6953
        %v7319 = vadd.f32 %v7318, %v6955
        %v7320 = vadd.f32 %v7319, %v6957
        %7321 = vadd.xlane.f32.xlu0 %v7320
        %v7322 = vpop.xlane.xlu0 %7321
        %v7323 = vadd.f32 %v6959, %v6961
        %v7324 = vadd.f32 %v7323, %v6963
        %v7325 = vadd.f32 %v7324, %v6965
        %7326 = vadd.xlane.f32.xlu0 %v7325
        %v7327 = vpop.xlane.xlu0 %7326
        %v7328 = vadd.f32 %v6967, %v6969
        %v7329 = vadd.f32 %v7328, %v6971
        %v7330 = vadd.f32 %v7329, %v6973
        %7331 = vadd.xlane.f32.xlu0 %v7330
        %v7332 = vpop.xlane.xlu0 %7331
        %v7333 = vadd.f32 %v6975, %v6977
        %v7334 = vadd.f32 %v7333, %v6979
        %v7335 = vadd.f32 %v7334, %v6981
        %7336 = vadd.xlane.f32.xlu0 %v7335
        %v7337 = vpop.xlane.xlu0 %7336
        %v7338 = vadd.f32 %v6983, %v6985
        %v7339 = vadd.f32 %v7338, %v6987
        %v7340 = vadd.f32 %v7339, %v6989
        %7341 = vadd.xlane.f32.xlu0 %v7340
        %v7342 = vpop.xlane.xlu0 %7341
        %v7343 = vadd.f32 %v6991, %v6993
        %v7344 = vadd.f32 %v7343, %v6995
        %v7345 = vadd.f32 %v7344, %v6997
        %7346 = vadd.xlane.f32.xlu0 %v7345
        %v7347 = vpop.xlane.xlu0 %7346
        %v7348 = vadd.f32 %v6999, %v7001
        %v7349 = vadd.f32 %v7348, %v7003
        %v7350 = vadd.f32 %v7349, %v7005
        %7351 = vadd.xlane.f32.xlu0 %v7350
        %v7352 = vpop.xlane.xlu0 %7351
        %v7353 = vadd.f32 %v7007, %v7009
        %v7354 = vadd.f32 %v7353, %v7011
        %v7355 = vadd.f32 %v7354, %v7013
        %7356 = vadd.xlane.f32.xlu0 %v7355
        %v7357 = vpop.xlane.xlu0 %7356
        %v7358 = vadd.f32 %v7015, %v7017
        %v7359 = vadd.f32 %v7358, %v7019
        %v7360 = vadd.f32 %v7359, %v7021
        %7361 = vadd.xlane.f32.xlu0 %v7360
        %v7362 = vpop.xlane.xlu0 %7361
        %v7363 = vadd.f32 %v7023, %v7025
        %v7364 = vadd.f32 %v7363, %v7027
        %v7365 = vadd.f32 %v7364, %v7029
        %7366 = vadd.xlane.f32.xlu0 %v7365
        %v7367 = vpop.xlane.xlu0 %7366
        %v7368 = vadd.f32 %v7031, %v7033
        %v7369 = vadd.f32 %v7368, %v7035
        %v7370 = vadd.f32 %v7369, %v7037
        %7371 = vadd.xlane.f32.xlu0 %v7370
        %v7372 = vpop.xlane.xlu0 %7371
        %v7373 = vadd.f32 %v7039, %v7041
        %v7374 = vadd.f32 %v7373, %v7043
        %v7375 = vadd.f32 %v7374, %v7045
        %7376 = vadd.xlane.f32.xlu0 %v7375
        %v7377 = vpop.xlane.xlu0 %7376
        %v7378 = vadd.f32 %v7047, %v7049
        %v7379 = vadd.f32 %v7378, %v7051
        %v7380 = vadd.f32 %v7379, %v7053
        %7381 = vadd.xlane.f32.xlu0 %v7380
        %v7382 = vpop.xlane.xlu0 %7381
        %v7383 = vadd.f32 %v7055, %v7057
        %v7384 = vadd.f32 %v7383, %v7059
        %v7385 = vadd.f32 %v7384, %v7061
        %7386 = vadd.xlane.f32.xlu0 %v7385
        %v7387 = vpop.xlane.xlu0 %7386
        %v7388 = vadd.f32 %v7063, %v7065
        %v7389 = vadd.f32 %v7388, %v7067
        %v7390 = vadd.f32 %v7389, %v7069
        %7391 = vadd.xlane.f32.xlu0 %v7390
        %v7392 = vpop.xlane.xlu0 %7391
        %v7393 = vadd.f32 %v7071, %v7073
        %v7394 = vadd.f32 %v7393, %v7075
        %v7395 = vadd.f32 %v7394, %v7077
        %7396 = vadd.xlane.f32.xlu0 %v7395
        %v7397 = vpop.xlane.xlu0 %7396
        %v7398 = vadd.f32 %v5926, %v7082
        %v7399 = vadd.f32 %v5927, %v7087
        %v7400 = vadd.f32 %v5928, %v7092
        %v7401 = vadd.f32 %v5929, %v7097
        %v7402 = vadd.f32 %v5930, %v7102
        %v7403 = vadd.f32 %v5931, %v7107
        %v7404 = vadd.f32 %v5932, %v7112
        %v7405 = vadd.f32 %v5933, %v7117
        %v7406 = vadd.f32 %v5934, %v7122
        %v7407 = vadd.f32 %v5935, %v7127
        %v7408 = vadd.f32 %v5936, %v7132
        %v7409 = vadd.f32 %v5937, %v7137
        %v7410 = vadd.f32 %v5938, %v7142
        %v7411 = vadd.f32 %v5939, %v7147
        %v7412 = vadd.f32 %v5940, %v7152
        %v7413 = vadd.f32 %v5941, %v7157
        %v7414 = vadd.f32 %v5942, %v7162
        %v7415 = vadd.f32 %v5943, %v7167
        %v7416 = vadd.f32 %v5944, %v7172
        %v7417 = vadd.f32 %v5945, %v7177
        %v7418 = vadd.f32 %v5946, %v7182
        %v7419 = vadd.f32 %v5947, %v7187
        %v7420 = vadd.f32 %v5948, %v7192
        %v7421 = vadd.f32 %v5949, %v7197
        %v7422 = vadd.f32 %v5950, %v7202
        %v7423 = vadd.f32 %v5951, %v7207
        %v7424 = vadd.f32 %v5952, %v7212
        %v7425 = vadd.f32 %v5953, %v7217
        %v7426 = vadd.f32 %v5954, %v7222
        %v7427 = vadd.f32 %v5955, %v7227
        %v7428 = vadd.f32 %v5956, %v7232
        %v7429 = vadd.f32 %v5957, %v7237
        %v7430 = vadd.f32 %v5958, %v7242
        %v7431 = vadd.f32 %v5959, %v7247
        %v7432 = vadd.f32 %v5960, %v7252
        %v7433 = vadd.f32 %v5961, %v7257
        %v7434 = vadd.f32 %v5962, %v7262
        %v7435 = vadd.f32 %v5963, %v7267
        %v7436 = vadd.f32 %v5964, %v7272
        %v7437 = vadd.f32 %v5965, %v7277
        %v7438 = vadd.f32 %v5966, %v7282
        %v7439 = vadd.f32 %v5967, %v7287
        %v7440 = vadd.f32 %v5968, %v7292
        %v7441 = vadd.f32 %v5969, %v7297
        %v7442 = vadd.f32 %v5970, %v7302
        %v7443 = vadd.f32 %v5971, %v7307
        %v7444 = vadd.f32 %v5972, %v7312
        %v7445 = vadd.f32 %v5973, %v7317
        %v7446 = vadd.f32 %v5974, %v7322
        %v7447 = vadd.f32 %v5975, %v7327
        %v7448 = vadd.f32 %v5976, %v7332
        %v7449 = vadd.f32 %v5977, %v7337
        %v7450 = vadd.f32 %v5978, %v7342
        %v7451 = vadd.f32 %v5979, %v7347
        %v7452 = vadd.f32 %v5980, %v7352
        %v7453 = vadd.f32 %v5981, %v7357
        %v7454 = vadd.f32 %v5982, %v7362
        %v7455 = vadd.f32 %v5983, %v7367
        %v7456 = vadd.f32 %v5984, %v7372
        %v7457 = vadd.f32 %v5985, %v7377
        %v7458 = vadd.f32 %v5986, %v7382
        %v7459 = vadd.f32 %v5987, %v7387
        %v7460 = vadd.f32 %v5988, %v7392
        %v7461 = vadd.f32 %v5989, %v7397
        %7462 = vst.msk [vmem:[#allocation3] sm:$0xff] %vm3045, %v7398
        %7463 = vst.msk [vmem:[#allocation3 + $0x8] sm:$0xff] %vm3045, %v7399
        %7464 = vst.msk [vmem:[#allocation3 + $0x10] sm:$0xff] %vm3045, %v7400
        %7465 = vst.msk [vmem:[#allocation3 + $0x18] sm:$0xff] %vm3045, %v7401
        %7466 = vst.msk [vmem:[#allocation3 + $0x20] sm:$0xff] %vm3045, %v7402
        %7467 = vst.msk [vmem:[#allocation3 + $0x28] sm:$0xff] %vm3045, %v7403
        %7468 = vst.msk [vmem:[#allocation3 + $0x30] sm:$0xff] %vm3045, %v7404
        %7469 = vst.msk [vmem:[#allocation3 + $0x38] sm:$0xff] %vm3045, %v7405
        %7470 = vst.msk [vmem:[#allocation3 + $0x40] sm:$0xff] %vm3045, %v7406
        %7471 = vst.msk [vmem:[#allocation3 + $0x48] sm:$0xff] %vm3045, %v7407
        %7472 = vst.msk [vmem:[#allocation3 + $0x50] sm:$0xff] %vm3045, %v7408
        %7473 = vst.msk [vmem:[#allocation3 + $0x58] sm:$0xff] %vm3045, %v7409
        %7474 = vst.msk [vmem:[#allocation3 + $0x60] sm:$0xff] %vm3045, %v7410
        %7475 = vst.msk [vmem:[#allocation3 + $0x68] sm:$0xff] %vm3045, %v7411
        %7476 = vst.msk [vmem:[#allocation3 + $0x70] sm:$0xff] %vm3045, %v7412
        %7477 = vst.msk [vmem:[#allocation3 + $0x78] sm:$0xff] %vm3045, %v7413
        %7478 = vst.msk [vmem:[#allocation3 + $0x80] sm:$0xff] %vm3045, %v7414
        %7479 = vst.msk [vmem:[#allocation3 + $0x88] sm:$0xff] %vm3045, %v7415
        %7480 = vst.msk [vmem:[#allocation3 + $0x90] sm:$0xff] %vm3045, %v7416
        %7481 = vst.msk [vmem:[#allocation3 + $0x98] sm:$0xff] %vm3045, %v7417
        %7482 = vst.msk [vmem:[#allocation3 + $0xa0] sm:$0xff] %vm3045, %v7418
        %7483 = vst.msk [vmem:[#allocation3 + $0xa8] sm:$0xff] %vm3045, %v7419
        %7484 = vst.msk [vmem:[#allocation3 + $0xb0] sm:$0xff] %vm3045, %v7420
        %7485 = vst.msk [vmem:[#allocation3 + $0xb8] sm:$0xff] %vm3045, %v7421
        %7486 = vst.msk [vmem:[#allocation3 + $0xc0] sm:$0xff] %vm3045, %v7422
        %7487 = vst.msk [vmem:[#allocation3 + $0xc8] sm:$0xff] %vm3045, %v7423
        %7488 = vst.msk [vmem:[#allocation3 + $0xd0] sm:$0xff] %vm3045, %v7424
        %7489 = vst.msk [vmem:[#allocation3 + $0xd8] sm:$0xff] %vm3045, %v7425
        %7490 = vst.msk [vmem:[#allocation3 + $0xe0] sm:$0xff] %vm3045, %v7426
        %7491 = vst.msk [vmem:[#allocation3 + $0xe8] sm:$0xff] %vm3045, %v7427
        %7492 = vst.msk [vmem:[#allocation3 + $0xf0] sm:$0xff] %vm3045, %v7428
        %7493 = vst.msk [vmem:[#allocation3 + $0xf8] sm:$0xff] %vm3045, %v7429
        %7494 = vst.msk [vmem:[#allocation3 + $0x100] sm:$0xff] %vm3045, %v7430
        %7495 = vst.msk [vmem:[#allocation3 + $0x108] sm:$0xff] %vm3045, %v7431
        %7496 = vst.msk [vmem:[#allocation3 + $0x110] sm:$0xff] %vm3045, %v7432
        %7497 = vst.msk [vmem:[#allocation3 + $0x118] sm:$0xff] %vm3045, %v7433
        %7498 = vst.msk [vmem:[#allocation3 + $0x120] sm:$0xff] %vm3045, %v7434
        %7499 = vst.msk [vmem:[#allocation3 + $0x128] sm:$0xff] %vm3045, %v7435
        %7500 = vst.msk [vmem:[#allocation3 + $0x130] sm:$0xff] %vm3045, %v7436
        %7501 = vst.msk [vmem:[#allocation3 + $0x138] sm:$0xff] %vm3045, %v7437
        %7502 = vst.msk [vmem:[#allocation3 + $0x140] sm:$0xff] %vm3045, %v7438
        %7503 = vst.msk [vmem:[#allocation3 + $0x148] sm:$0xff] %vm3045, %v7439
        %7504 = vst.msk [vmem:[#allocation3 + $0x150] sm:$0xff] %vm3045, %v7440
        %7505 = vst.msk [vmem:[#allocation3 + $0x158] sm:$0xff] %vm3045, %v7441
        %7506 = vst.msk [vmem:[#allocation3 + $0x160] sm:$0xff] %vm3045, %v7442
        %7507 = vst.msk [vmem:[#allocation3 + $0x168] sm:$0xff] %vm3045, %v7443
        %7508 = vst.msk [vmem:[#allocation3 + $0x170] sm:$0xff] %vm3045, %v7444
        %7509 = vst.msk [vmem:[#allocation3 + $0x178] sm:$0xff] %vm3045, %v7445
        %7510 = vst.msk [vmem:[#allocation3 + $0x180] sm:$0xff] %vm3045, %v7446
        %7511 = vst.msk [vmem:[#allocation3 + $0x188] sm:$0xff] %vm3045, %v7447
        %7512 = vst.msk [vmem:[#allocation3 + $0x190] sm:$0xff] %vm3045, %v7448
        %7513 = vst.msk [vmem:[#allocation3 + $0x198] sm:$0xff] %vm3045, %v7449
        %7514 = vst.msk [vmem:[#allocation3 + $0x1a0] sm:$0xff] %vm3045, %v7450
        %7515 = vst.msk [vmem:[#allocation3 + $0x1a8] sm:$0xff] %vm3045, %v7451
        %7516 = vst.msk [vmem:[#allocation3 + $0x1b0] sm:$0xff] %vm3045, %v7452
        %7517 = vst.msk [vmem:[#allocation3 + $0x1b8] sm:$0xff] %vm3045, %v7453
        %7518 = vst.msk [vmem:[#allocation3 + $0x1c0] sm:$0xff] %vm3045, %v7454
        %7519 = vst.msk [vmem:[#allocation3 + $0x1c8] sm:$0xff] %vm3045, %v7455
        %7520 = vst.msk [vmem:[#allocation3 + $0x1d0] sm:$0xff] %vm3045, %v7456
        %7521 = vst.msk [vmem:[#allocation3 + $0x1d8] sm:$0xff] %vm3045, %v7457
        %7522 = vst.msk [vmem:[#allocation3 + $0x1e0] sm:$0xff] %vm3045, %v7458
        %7523 = vst.msk [vmem:[#allocation3 + $0x1e8] sm:$0xff] %vm3045, %v7459
        %7524 = vst.msk [vmem:[#allocation3 + $0x1f0] sm:$0xff] %vm3045, %v7460
        %7525 = vst.msk [vmem:[#allocation3 + $0x1f8] sm:$0xff] %vm3045, %v7461
        %7526 = vst.msk [vmem:[#allocation2] sm:$0xff] %vm3045, %v5606
        %7527 = vst.msk [vmem:[#allocation2 + $0x8] sm:$0xff] %vm3045, %v5607
        %7528 = vst.msk [vmem:[#allocation2 + $0x10] sm:$0xff] %vm3045, %v5608
        %7529 = vst.msk [vmem:[#allocation2 + $0x18] sm:$0xff] %vm3045, %v5609
        %7530 = vst.msk [vmem:[#allocation2 + $0x20] sm:$0xff] %vm3045, %v5610
        %7531 = vst.msk [vmem:[#allocation2 + $0x28] sm:$0xff] %vm3045, %v5611
        %7532 = vst.msk [vmem:[#allocation2 + $0x30] sm:$0xff] %vm3045, %v5612
        %7533 = vst.msk [vmem:[#allocation2 + $0x38] sm:$0xff] %vm3045, %v5613
        %7534 = vst.msk [vmem:[#allocation2 + $0x40] sm:$0xff] %vm3045, %v5614
        %7535 = vst.msk [vmem:[#allocation2 + $0x48] sm:$0xff] %vm3045, %v5615
        %7536 = vst.msk [vmem:[#allocation2 + $0x50] sm:$0xff] %vm3045, %v5616
        %7537 = vst.msk [vmem:[#allocation2 + $0x58] sm:$0xff] %vm3045, %v5617
        %7538 = vst.msk [vmem:[#allocation2 + $0x60] sm:$0xff] %vm3045, %v5618
        %7539 = vst.msk [vmem:[#allocation2 + $0x68] sm:$0xff] %vm3045, %v5619
        %7540 = vst.msk [vmem:[#allocation2 + $0x70] sm:$0xff] %vm3045, %v5620
        %7541 = vst.msk [vmem:[#allocation2 + $0x78] sm:$0xff] %vm3045, %v5621
        %7542 = vst.msk [vmem:[#allocation2 + $0x80] sm:$0xff] %vm3045, %v5622
        %7543 = vst.msk [vmem:[#allocation2 + $0x88] sm:$0xff] %vm3045, %v5623
        %7544 = vst.msk [vmem:[#allocation2 + $0x90] sm:$0xff] %vm3045, %v5624
        %7545 = vst.msk [vmem:[#allocation2 + $0x98] sm:$0xff] %vm3045, %v5625
        %7546 = vst.msk [vmem:[#allocation2 + $0xa0] sm:$0xff] %vm3045, %v5626
        %7547 = vst.msk [vmem:[#allocation2 + $0xa8] sm:$0xff] %vm3045, %v5627
        %7548 = vst.msk [vmem:[#allocation2 + $0xb0] sm:$0xff] %vm3045, %v5628
        %7549 = vst.msk [vmem:[#allocation2 + $0xb8] sm:$0xff] %vm3045, %v5629
        %7550 = vst.msk [vmem:[#allocation2 + $0xc0] sm:$0xff] %vm3045, %v5630
        %7551 = vst.msk [vmem:[#allocation2 + $0xc8] sm:$0xff] %vm3045, %v5631
        %7552 = vst.msk [vmem:[#allocation2 + $0xd0] sm:$0xff] %vm3045, %v5632
        %7553 = vst.msk [vmem:[#allocation2 + $0xd8] sm:$0xff] %vm3045, %v5633
        %7554 = vst.msk [vmem:[#allocation2 + $0xe0] sm:$0xff] %vm3045, %v5634
        %7555 = vst.msk [vmem:[#allocation2 + $0xe8] sm:$0xff] %vm3045, %v5635
        %7556 = vst.msk [vmem:[#allocation2 + $0xf0] sm:$0xff] %vm3045, %v5636
        %7557 = vst.msk [vmem:[#allocation2 + $0xf8] sm:$0xff] %vm3045, %v5637
        %7558 = vst.msk [vmem:[#allocation2 + $0x100] sm:$0xff] %vm3045, %v5638
        %7559 = vst.msk [vmem:[#allocation2 + $0x108] sm:$0xff] %vm3045, %v5639
        %7560 = vst.msk [vmem:[#allocation2 + $0x110] sm:$0xff] %vm3045, %v5640
        %7561 = vst.msk [vmem:[#allocation2 + $0x118] sm:$0xff] %vm3045, %v5641
        %7562 = vst.msk [vmem:[#allocation2 + $0x120] sm:$0xff] %vm3045, %v5642
        %7563 = vst.msk [vmem:[#allocation2 + $0x128] sm:$0xff] %vm3045, %v5643
        %7564 = vst.msk [vmem:[#allocation2 + $0x130] sm:$0xff] %vm3045, %v5644
        %7565 = vst.msk [vmem:[#allocation2 + $0x138] sm:$0xff] %vm3045, %v5645
        %7566 = vst.msk [vmem:[#allocation2 + $0x140] sm:$0xff] %vm3045, %v5646
        %7567 = vst.msk [vmem:[#allocation2 + $0x148] sm:$0xff] %vm3045, %v5647
        %7568 = vst.msk [vmem:[#allocation2 + $0x150] sm:$0xff] %vm3045, %v5648
        %7569 = vst.msk [vmem:[#allocation2 + $0x158] sm:$0xff] %vm3045, %v5649
        %7570 = vst.msk [vmem:[#allocation2 + $0x160] sm:$0xff] %vm3045, %v5650
        %7571 = vst.msk [vmem:[#allocation2 + $0x168] sm:$0xff] %vm3045, %v5651
        %7572 = vst.msk [vmem:[#allocation2 + $0x170] sm:$0xff] %vm3045, %v5652
        %7573 = vst.msk [vmem:[#allocation2 + $0x178] sm:$0xff] %vm3045, %v5653
        %7574 = vst.msk [vmem:[#allocation2 + $0x180] sm:$0xff] %vm3045, %v5654
        %7575 = vst.msk [vmem:[#allocation2 + $0x188] sm:$0xff] %vm3045, %v5655
        %7576 = vst.msk [vmem:[#allocation2 + $0x190] sm:$0xff] %vm3045, %v5656
        %7577 = vst.msk [vmem:[#allocation2 + $0x198] sm:$0xff] %vm3045, %v5657
        %7578 = vst.msk [vmem:[#allocation2 + $0x1a0] sm:$0xff] %vm3045, %v5658
        %7579 = vst.msk [vmem:[#allocation2 + $0x1a8] sm:$0xff] %vm3045, %v5659
        %7580 = vst.msk [vmem:[#allocation2 + $0x1b0] sm:$0xff] %vm3045, %v5660
        %7581 = vst.msk [vmem:[#allocation2 + $0x1b8] sm:$0xff] %vm3045, %v5661
        %7582 = vst.msk [vmem:[#allocation2 + $0x1c0] sm:$0xff] %vm3045, %v5662
        %7583 = vst.msk [vmem:[#allocation2 + $0x1c8] sm:$0xff] %vm3045, %v5663
        %7584 = vst.msk [vmem:[#allocation2 + $0x1d0] sm:$0xff] %vm3045, %v5664
        %7585 = vst.msk [vmem:[#allocation2 + $0x1d8] sm:$0xff] %vm3045, %v5665
        %7586 = vst.msk [vmem:[#allocation2 + $0x1e0] sm:$0xff] %vm3045, %v5666
        %7587 = vst.msk [vmem:[#allocation2 + $0x1e8] sm:$0xff] %vm3045, %v5667
        %7588 = vst.msk [vmem:[#allocation2 + $0x1f0] sm:$0xff] %vm3045, %v5668
        %7589 = vst.msk [vmem:[#allocation2 + $0x1f8] sm:$0xff] %vm3045, %v5669
        %p7590 = scmp.eq.s32.totalorder %s26, 1
        // Predicated region
        $region72: #{tpu_custom_call.1} parent=54 // pred_check
          %p7591 = pneg %p7590
        $region73: #{tpu_custom_call.1} parent=54 // pred_check_branch
          %7593 = sbr.rel (%p7591) target = $region75
        $region74: #{tpu_custom_call.1} parent=54 // pred_region
          %v7594 = vld [vmem:[#allocation2] sm:$0xff]
          %v7595 = vld [vmem:[#allocation2 + $0x8] sm:$0xff]
          %v7596 = vld [vmem:[#allocation2 + $0x10] sm:$0xff]
          %v7597 = vld [vmem:[#allocation2 + $0x18] sm:$0xff]
          %v7598 = vld [vmem:[#allocation2 + $0x20] sm:$0xff]
          %v7599 = vld [vmem:[#allocation2 + $0x28] sm:$0xff]
          %v7600 = vld [vmem:[#allocation2 + $0x30] sm:$0xff]
          %v7601 = vld [vmem:[#allocation2 + $0x38] sm:$0xff]
          %v7602 = vld [vmem:[#allocation2 + $0x40] sm:$0xff]
          %v7603 = vld [vmem:[#allocation2 + $0x48] sm:$0xff]
          %v7604 = vld [vmem:[#allocation2 + $0x50] sm:$0xff]
          %v7605 = vld [vmem:[#allocation2 + $0x58] sm:$0xff]
          %v7606 = vld [vmem:[#allocation2 + $0x60] sm:$0xff]
          %v7607 = vld [vmem:[#allocation2 + $0x68] sm:$0xff]
          %v7608 = vld [vmem:[#allocation2 + $0x70] sm:$0xff]
          %v7609 = vld [vmem:[#allocation2 + $0x78] sm:$0xff]
          %v7610 = vld [vmem:[#allocation2 + $0x80] sm:$0xff]
          %v7611 = vld [vmem:[#allocation2 + $0x88] sm:$0xff]
          %v7612 = vld [vmem:[#allocation2 + $0x90] sm:$0xff]
          %v7613 = vld [vmem:[#allocation2 + $0x98] sm:$0xff]
          %v7614 = vld [vmem:[#allocation2 + $0xa0] sm:$0xff]
          %v7615 = vld [vmem:[#allocation2 + $0xa8] sm:$0xff]
          %v7616 = vld [vmem:[#allocation2 + $0xb0] sm:$0xff]
          %v7617 = vld [vmem:[#allocation2 + $0xb8] sm:$0xff]
          %v7618 = vld [vmem:[#allocation2 + $0xc0] sm:$0xff]
          %v7619 = vld [vmem:[#allocation2 + $0xc8] sm:$0xff]
          %v7620 = vld [vmem:[#allocation2 + $0xd0] sm:$0xff]
          %v7621 = vld [vmem:[#allocation2 + $0xd8] sm:$0xff]
          %v7622 = vld [vmem:[#allocation2 + $0xe0] sm:$0xff]
          %v7623 = vld [vmem:[#allocation2 + $0xe8] sm:$0xff]
          %v7624 = vld [vmem:[#allocation2 + $0xf0] sm:$0xff]
          %v7625 = vld [vmem:[#allocation2 + $0xf8] sm:$0xff]
          %v7626 = vld [vmem:[#allocation2 + $0x100] sm:$0xff]
          %v7627 = vld [vmem:[#allocation2 + $0x108] sm:$0xff]
          %v7628 = vld [vmem:[#allocation2 + $0x110] sm:$0xff]
          %v7629 = vld [vmem:[#allocation2 + $0x118] sm:$0xff]
          %v7630 = vld [vmem:[#allocation2 + $0x120] sm:$0xff]
          %v7631 = vld [vmem:[#allocation2 + $0x128] sm:$0xff]
          %v7632 = vld [vmem:[#allocation2 + $0x130] sm:$0xff]
          %v7633 = vld [vmem:[#allocation2 + $0x138] sm:$0xff]
          %v7634 = vld [vmem:[#allocation2 + $0x140] sm:$0xff]
          %v7635 = vld [vmem:[#allocation2 + $0x148] sm:$0xff]
          %v7636 = vld [vmem:[#allocation2 + $0x150] sm:$0xff]
          %v7637 = vld [vmem:[#allocation2 + $0x158] sm:$0xff]
          %v7638 = vld [vmem:[#allocation2 + $0x160] sm:$0xff]
          %v7639 = vld [vmem:[#allocation2 + $0x168] sm:$0xff]
          %v7640 = vld [vmem:[#allocation2 + $0x170] sm:$0xff]
          %v7641 = vld [vmem:[#allocation2 + $0x178] sm:$0xff]
          %v7642 = vld [vmem:[#allocation2 + $0x180] sm:$0xff]
          %v7643 = vld [vmem:[#allocation2 + $0x188] sm:$0xff]
          %v7644 = vld [vmem:[#allocation2 + $0x190] sm:$0xff]
          %v7645 = vld [vmem:[#allocation2 + $0x198] sm:$0xff]
          %v7646 = vld [vmem:[#allocation2 + $0x1a0] sm:$0xff]
          %v7647 = vld [vmem:[#allocation2 + $0x1a8] sm:$0xff]
          %v7648 = vld [vmem:[#allocation2 + $0x1b0] sm:$0xff]
          %v7649 = vld [vmem:[#allocation2 + $0x1b8] sm:$0xff]
          %v7650 = vld [vmem:[#allocation2 + $0x1c0] sm:$0xff]
          %v7651 = vld [vmem:[#allocation2 + $0x1c8] sm:$0xff]
          %v7652 = vld [vmem:[#allocation2 + $0x1d0] sm:$0xff]
          %v7653 = vld [vmem:[#allocation2 + $0x1d8] sm:$0xff]
          %v7654 = vld [vmem:[#allocation2 + $0x1e0] sm:$0xff]
          %v7655 = vld [vmem:[#allocation2 + $0x1e8] sm:$0xff]
          %v7656 = vld [vmem:[#allocation2 + $0x1f0] sm:$0xff]
          %v7657 = vld [vmem:[#allocation2 + $0x1f8] sm:$0xff]
          %v7658 = vld [vmem:[#allocation3] sm:$0xff]
          %v7659 = vld [vmem:[#allocation3 + $0x8] sm:$0xff]
          %v7660 = vld [vmem:[#allocation3 + $0x10] sm:$0xff]
          %v7661 = vld [vmem:[#allocation3 + $0x18] sm:$0xff]
          %v7662 = vld [vmem:[#allocation3 + $0x20] sm:$0xff]
          %v7663 = vld [vmem:[#allocation3 + $0x28] sm:$0xff]
          %v7664 = vld [vmem:[#allocation3 + $0x30] sm:$0xff]
          %v7665 = vld [vmem:[#allocation3 + $0x38] sm:$0xff]
          %v7666 = vld [vmem:[#allocation3 + $0x40] sm:$0xff]
          %v7667 = vld [vmem:[#allocation3 + $0x48] sm:$0xff]
          %v7668 = vld [vmem:[#allocation3 + $0x50] sm:$0xff]
          %v7669 = vld [vmem:[#allocation3 + $0x58] sm:$0xff]
          %v7670 = vld [vmem:[#allocation3 + $0x60] sm:$0xff]
          %v7671 = vld [vmem:[#allocation3 + $0x68] sm:$0xff]
          %v7672 = vld [vmem:[#allocation3 + $0x70] sm:$0xff]
          %v7673 = vld [vmem:[#allocation3 + $0x78] sm:$0xff]
          %v7674 = vld [vmem:[#allocation3 + $0x80] sm:$0xff]
          %v7675 = vld [vmem:[#allocation3 + $0x88] sm:$0xff]
          %v7676 = vld [vmem:[#allocation3 + $0x90] sm:$0xff]
          %v7677 = vld [vmem:[#allocation3 + $0x98] sm:$0xff]
          %v7678 = vld [vmem:[#allocation3 + $0xa0] sm:$0xff]
          %v7679 = vld [vmem:[#allocation3 + $0xa8] sm:$0xff]
          %v7680 = vld [vmem:[#allocation3 + $0xb0] sm:$0xff]
          %v7681 = vld [vmem:[#allocation3 + $0xb8] sm:$0xff]
          %v7682 = vld [vmem:[#allocation3 + $0xc0] sm:$0xff]
          %v7683 = vld [vmem:[#allocation3 + $0xc8] sm:$0xff]
          %v7684 = vld [vmem:[#allocation3 + $0xd0] sm:$0xff]
          %v7685 = vld [vmem:[#allocation3 + $0xd8] sm:$0xff]
          %v7686 = vld [vmem:[#allocation3 + $0xe0] sm:$0xff]
          %v7687 = vld [vmem:[#allocation3 + $0xe8] sm:$0xff]
          %v7688 = vld [vmem:[#allocation3 + $0xf0] sm:$0xff]
          %v7689 = vld [vmem:[#allocation3 + $0xf8] sm:$0xff]
          %v7690 = vld [vmem:[#allocation3 + $0x100] sm:$0xff]
          %v7691 = vld [vmem:[#allocation3 + $0x108] sm:$0xff]
          %v7692 = vld [vmem:[#allocation3 + $0x110] sm:$0xff]
          %v7693 = vld [vmem:[#allocation3 + $0x118] sm:$0xff]
          %v7694 = vld [vmem:[#allocation3 + $0x120] sm:$0xff]
          %v7695 = vld [vmem:[#allocation3 + $0x128] sm:$0xff]
          %v7696 = vld [vmem:[#allocation3 + $0x130] sm:$0xff]
          %v7697 = vld [vmem:[#allocation3 + $0x138] sm:$0xff]
          %v7698 = vld [vmem:[#allocation3 + $0x140] sm:$0xff]
          %v7699 = vld [vmem:[#allocation3 + $0x148] sm:$0xff]
          %v7700 = vld [vmem:[#allocation3 + $0x150] sm:$0xff]
          %v7701 = vld [vmem:[#allocation3 + $0x158] sm:$0xff]
          %v7702 = vld [vmem:[#allocation3 + $0x160] sm:$0xff]
          %v7703 = vld [vmem:[#allocation3 + $0x168] sm:$0xff]
          %v7704 = vld [vmem:[#allocation3 + $0x170] sm:$0xff]
          %v7705 = vld [vmem:[#allocation3 + $0x178] sm:$0xff]
          %v7706 = vld [vmem:[#allocation3 + $0x180] sm:$0xff]
          %v7707 = vld [vmem:[#allocation3 + $0x188] sm:$0xff]
          %v7708 = vld [vmem:[#allocation3 + $0x190] sm:$0xff]
          %v7709 = vld [vmem:[#allocation3 + $0x198] sm:$0xff]
          %v7710 = vld [vmem:[#allocation3 + $0x1a0] sm:$0xff]
          %v7711 = vld [vmem:[#allocation3 + $0x1a8] sm:$0xff]
          %v7712 = vld [vmem:[#allocation3 + $0x1b0] sm:$0xff]
          %v7713 = vld [vmem:[#allocation3 + $0x1b8] sm:$0xff]
          %v7714 = vld [vmem:[#allocation3 + $0x1c0] sm:$0xff]
          %v7715 = vld [vmem:[#allocation3 + $0x1c8] sm:$0xff]
          %v7716 = vld [vmem:[#allocation3 + $0x1d0] sm:$0xff]
          %v7717 = vld [vmem:[#allocation3 + $0x1d8] sm:$0xff]
          %v7718 = vld [vmem:[#allocation3 + $0x1e0] sm:$0xff]
          %v7719 = vld [vmem:[#allocation3 + $0x1e8] sm:$0xff]
          %v7720 = vld [vmem:[#allocation3 + $0x1f0] sm:$0xff]
          %v7721 = vld [vmem:[#allocation3 + $0x1f8] sm:$0xff]
          %v7722 = vlog2.pop %v7658
          %v7723 = vmul.f32 %v7722, 0.6931472
          %v7724 = vlog2.pop %v7659
          %v7725 = vmul.f32 %v7724, 0.6931472
          %v7726 = vlog2.pop %v7660
          %v7727 = vmul.f32 %v7726, 0.6931472
          %v7728 = vlog2.pop %v7661
          %v7729 = vmul.f32 %v7728, 0.6931472
          %v7730 = vlog2.pop %v7662
          %v7731 = vmul.f32 %v7730, 0.6931472
          %v7732 = vlog2.pop %v7663
          %v7733 = vmul.f32 %v7732, 0.6931472
          %v7734 = vlog2.pop %v7664
          %v7735 = vmul.f32 %v7734, 0.6931472
          %v7736 = vlog2.pop %v7665
          %v7737 = vmul.f32 %v7736, 0.6931472
          %v7738 = vlog2.pop %v7666
          %v7739 = vmul.f32 %v7738, 0.6931472
          %v7740 = vlog2.pop %v7667
          %v7741 = vmul.f32 %v7740, 0.6931472
          %v7742 = vlog2.pop %v7668
          %v7743 = vmul.f32 %v7742, 0.6931472
          %v7744 = vlog2.pop %v7669
          %v7745 = vmul.f32 %v7744, 0.6931472
          %v7746 = vlog2.pop %v7670
          %v7747 = vmul.f32 %v7746, 0.6931472
          %v7748 = vlog2.pop %v7671
          %v7749 = vmul.f32 %v7748, 0.6931472
          %v7750 = vlog2.pop %v7672
          %v7751 = vmul.f32 %v7750, 0.6931472
          %v7752 = vlog2.pop %v7673
          %v7753 = vmul.f32 %v7752, 0.6931472
          %v7754 = vlog2.pop %v7674
          %v7755 = vmul.f32 %v7754, 0.6931472
          %v7756 = vlog2.pop %v7675
          %v7757 = vmul.f32 %v7756, 0.6931472
          %v7758 = vlog2.pop %v7676
          %v7759 = vmul.f32 %v7758, 0.6931472
          %v7760 = vlog2.pop %v7677
          %v7761 = vmul.f32 %v7760, 0.6931472
          %v7762 = vlog2.pop %v7678
          %v7763 = vmul.f32 %v7762, 0.6931472
          %v7764 = vlog2.pop %v7679
          %v7765 = vmul.f32 %v7764, 0.6931472
          %v7766 = vlog2.pop %v7680
          %v7767 = vmul.f32 %v7766, 0.6931472
          %v7768 = vlog2.pop %v7681
          %v7769 = vmul.f32 %v7768, 0.6931472
          %v7770 = vlog2.pop %v7682
          %v7771 = vmul.f32 %v7770, 0.6931472
          %v7772 = vlog2.pop %v7683
          %v7773 = vmul.f32 %v7772, 0.6931472
          %v7774 = vlog2.pop %v7684
          %v7775 = vmul.f32 %v7774, 0.6931472
          %v7776 = vlog2.pop %v7685
          %v7777 = vmul.f32 %v7776, 0.6931472
          %v7778 = vlog2.pop %v7686
          %v7779 = vmul.f32 %v7778, 0.6931472
          %v7780 = vlog2.pop %v7687
          %v7781 = vmul.f32 %v7780, 0.6931472
          %v7782 = vlog2.pop %v7688
          %v7783 = vmul.f32 %v7782, 0.6931472
          %v7784 = vlog2.pop %v7689
          %v7785 = vmul.f32 %v7784, 0.6931472
          %v7786 = vlog2.pop %v7690
          %v7787 = vmul.f32 %v7786, 0.6931472
          %v7788 = vlog2.pop %v7691
          %v7789 = vmul.f32 %v7788, 0.6931472
          %v7790 = vlog2.pop %v7692
          %v7791 = vmul.f32 %v7790, 0.6931472
          %v7792 = vlog2.pop %v7693
          %v7793 = vmul.f32 %v7792, 0.6931472
          %v7794 = vlog2.pop %v7694
          %v7795 = vmul.f32 %v7794, 0.6931472
          %v7796 = vlog2.pop %v7695
          %v7797 = vmul.f32 %v7796, 0.6931472
          %v7798 = vlog2.pop %v7696
          %v7799 = vmul.f32 %v7798, 0.6931472
          %v7800 = vlog2.pop %v7697
          %v7801 = vmul.f32 %v7800, 0.6931472
          %v7802 = vlog2.pop %v7698
          %v7803 = vmul.f32 %v7802, 0.6931472
          %v7804 = vlog2.pop %v7699
          %v7805 = vmul.f32 %v7804, 0.6931472
          %v7806 = vlog2.pop %v7700
          %v7807 = vmul.f32 %v7806, 0.6931472
          %v7808 = vlog2.pop %v7701
          %v7809 = vmul.f32 %v7808, 0.6931472
          %v7810 = vlog2.pop %v7702
          %v7811 = vmul.f32 %v7810, 0.6931472
          %v7812 = vlog2.pop %v7703
          %v7813 = vmul.f32 %v7812, 0.6931472
          %v7814 = vlog2.pop %v7704
          %v7815 = vmul.f32 %v7814, 0.6931472
          %v7816 = vlog2.pop %v7705
          %v7817 = vmul.f32 %v7816, 0.6931472
          %v7818 = vlog2.pop %v7706
          %v7819 = vmul.f32 %v7818, 0.6931472
          %v7820 = vlog2.pop %v7707
          %v7821 = vmul.f32 %v7820, 0.6931472
          %v7822 = vlog2.pop %v7708
          %v7823 = vmul.f32 %v7822, 0.6931472
          %v7824 = vlog2.pop %v7709
          %v7825 = vmul.f32 %v7824, 0.6931472
          %v7826 = vlog2.pop %v7710
          %v7827 = vmul.f32 %v7826, 0.6931472
          %v7828 = vlog2.pop %v7711
          %v7829 = vmul.f32 %v7828, 0.6931472
          %v7830 = vlog2.pop %v7712
          %v7831 = vmul.f32 %v7830, 0.6931472
          %v7832 = vlog2.pop %v7713
          %v7833 = vmul.f32 %v7832, 0.6931472
          %v7834 = vlog2.pop %v7714
          %v7835 = vmul.f32 %v7834, 0.6931472
          %v7836 = vlog2.pop %v7715
          %v7837 = vmul.f32 %v7836, 0.6931472
          %v7838 = vlog2.pop %v7716
          %v7839 = vmul.f32 %v7838, 0.6931472
          %v7840 = vlog2.pop %v7717
          %v7841 = vmul.f32 %v7840, 0.6931472
          %v7842 = vlog2.pop %v7718
          %v7843 = vmul.f32 %v7842, 0.6931472
          %v7844 = vlog2.pop %v7719
          %v7845 = vmul.f32 %v7844, 0.6931472
          %v7846 = vlog2.pop %v7720
          %v7847 = vmul.f32 %v7846, 0.6931472
          %v7848 = vlog2.pop %v7721
          %v7849 = vmul.f32 %v7848, 0.6931472
          %v7850 = vadd.f32 %v7594, %v7723
          %v7851 = vadd.f32 %v7595, %v7725
          %v7852 = vadd.f32 %v7596, %v7727
          %v7853 = vadd.f32 %v7597, %v7729
          %v7854 = vadd.f32 %v7598, %v7731
          %v7855 = vadd.f32 %v7599, %v7733
          %v7856 = vadd.f32 %v7600, %v7735
          %v7857 = vadd.f32 %v7601, %v7737
          %v7858 = vadd.f32 %v7602, %v7739
          %v7859 = vadd.f32 %v7603, %v7741
          %v7860 = vadd.f32 %v7604, %v7743
          %v7861 = vadd.f32 %v7605, %v7745
          %v7862 = vadd.f32 %v7606, %v7747
          %v7863 = vadd.f32 %v7607, %v7749
          %v7864 = vadd.f32 %v7608, %v7751
          %v7865 = vadd.f32 %v7609, %v7753
          %v7866 = vadd.f32 %v7610, %v7755
          %v7867 = vadd.f32 %v7611, %v7757
          %v7868 = vadd.f32 %v7612, %v7759
          %v7869 = vadd.f32 %v7613, %v7761
          %v7870 = vadd.f32 %v7614, %v7763
          %v7871 = vadd.f32 %v7615, %v7765
          %v7872 = vadd.f32 %v7616, %v7767
          %v7873 = vadd.f32 %v7617, %v7769
          %v7874 = vadd.f32 %v7618, %v7771
          %v7875 = vadd.f32 %v7619, %v7773
          %v7876 = vadd.f32 %v7620, %v7775
          %v7877 = vadd.f32 %v7621, %v7777
          %v7878 = vadd.f32 %v7622, %v7779
          %v7879 = vadd.f32 %v7623, %v7781
          %v7880 = vadd.f32 %v7624, %v7783
          %v7881 = vadd.f32 %v7625, %v7785
          %v7882 = vadd.f32 %v7626, %v7787
          %v7883 = vadd.f32 %v7627, %v7789
          %v7884 = vadd.f32 %v7628, %v7791
          %v7885 = vadd.f32 %v7629, %v7793
          %v7886 = vadd.f32 %v7630, %v7795
          %v7887 = vadd.f32 %v7631, %v7797
          %v7888 = vadd.f32 %v7632, %v7799
          %v7889 = vadd.f32 %v7633, %v7801
          %v7890 = vadd.f32 %v7634, %v7803
          %v7891 = vadd.f32 %v7635, %v7805
          %v7892 = vadd.f32 %v7636, %v7807
          %v7893 = vadd.f32 %v7637, %v7809
          %v7894 = vadd.f32 %v7638, %v7811
          %v7895 = vadd.f32 %v7639, %v7813
          %v7896 = vadd.f32 %v7640, %v7815
          %v7897 = vadd.f32 %v7641, %v7817
          %v7898 = vadd.f32 %v7642, %v7819
          %v7899 = vadd.f32 %v7643, %v7821
          %v7900 = vadd.f32 %v7644, %v7823
          %v7901 = vadd.f32 %v7645, %v7825
          %v7902 = vadd.f32 %v7646, %v7827
          %v7903 = vadd.f32 %v7647, %v7829
          %v7904 = vadd.f32 %v7648, %v7831
          %v7905 = vadd.f32 %v7649, %v7833
          %v7906 = vadd.f32 %v7650, %v7835
          %v7907 = vadd.f32 %v7651, %v7837
          %v7908 = vadd.f32 %v7652, %v7839
          %v7909 = vadd.f32 %v7653, %v7841
          %v7910 = vadd.f32 %v7654, %v7843
          %v7911 = vadd.f32 %v7655, %v7845
          %v7912 = vadd.f32 %v7656, %v7847
          %v7913 = vadd.f32 %v7657, %v7849
          %v7914 = vld [vmem:[#allocation4] sm:$0xff]
          %v7915 = vld [vmem:[#allocation4 + $0x8] sm:$0xff]
          %v7916 = vld [vmem:[#allocation4 + $0x10] sm:$0xff]
          %v7917 = vld [vmem:[#allocation4 + $0x18] sm:$0xff]
          %v7918 = vld [vmem:[#allocation4 + $0x20] sm:$0xff]
          %v7919 = vld [vmem:[#allocation4 + $0x28] sm:$0xff]
          %v7920 = vld [vmem:[#allocation4 + $0x30] sm:$0xff]
          %v7921 = vld [vmem:[#allocation4 + $0x38] sm:$0xff]
          %v7922 = vld [vmem:[#allocation4 + $0x40] sm:$0xff]
          %v7923 = vld [vmem:[#allocation4 + $0x48] sm:$0xff]
          %v7924 = vld [vmem:[#allocation4 + $0x50] sm:$0xff]
          %v7925 = vld [vmem:[#allocation4 + $0x58] sm:$0xff]
          %v7926 = vld [vmem:[#allocation4 + $0x60] sm:$0xff]
          %v7927 = vld [vmem:[#allocation4 + $0x68] sm:$0xff]
          %v7928 = vld [vmem:[#allocation4 + $0x70] sm:$0xff]
          %v7929 = vld [vmem:[#allocation4 + $0x78] sm:$0xff]
          %v7930 = vld [vmem:[#allocation4 + $0x80] sm:$0xff]
          %v7931 = vld [vmem:[#allocation4 + $0x88] sm:$0xff]
          %v7932 = vld [vmem:[#allocation4 + $0x90] sm:$0xff]
          %v7933 = vld [vmem:[#allocation4 + $0x98] sm:$0xff]
          %v7934 = vld [vmem:[#allocation4 + $0xa0] sm:$0xff]
          %v7935 = vld [vmem:[#allocation4 + $0xa8] sm:$0xff]
          %v7936 = vld [vmem:[#allocation4 + $0xb0] sm:$0xff]
          %v7937 = vld [vmem:[#allocation4 + $0xb8] sm:$0xff]
          %v7938 = vld [vmem:[#allocation4 + $0xc0] sm:$0xff]
          %v7939 = vld [vmem:[#allocation4 + $0xc8] sm:$0xff]
          %v7940 = vld [vmem:[#allocation4 + $0xd0] sm:$0xff]
          %v7941 = vld [vmem:[#allocation4 + $0xd8] sm:$0xff]
          %v7942 = vld [vmem:[#allocation4 + $0xe0] sm:$0xff]
          %v7943 = vld [vmem:[#allocation4 + $0xe8] sm:$0xff]
          %v7944 = vld [vmem:[#allocation4 + $0xf0] sm:$0xff]
          %v7945 = vld [vmem:[#allocation4 + $0xf8] sm:$0xff]
          %v7946 = vld [vmem:[#allocation4 + $0x100] sm:$0xff]
          %v7947 = vld [vmem:[#allocation4 + $0x108] sm:$0xff]
          %v7948 = vld [vmem:[#allocation4 + $0x110] sm:$0xff]
          %v7949 = vld [vmem:[#allocation4 + $0x118] sm:$0xff]
          %v7950 = vld [vmem:[#allocation4 + $0x120] sm:$0xff]
          %v7951 = vld [vmem:[#allocation4 + $0x128] sm:$0xff]
          %v7952 = vld [vmem:[#allocation4 + $0x130] sm:$0xff]
          %v7953 = vld [vmem:[#allocation4 + $0x138] sm:$0xff]
          %v7954 = vld [vmem:[#allocation4 + $0x140] sm:$0xff]
          %v7955 = vld [vmem:[#allocation4 + $0x148] sm:$0xff]
          %v7956 = vld [vmem:[#allocation4 + $0x150] sm:$0xff]
          %v7957 = vld [vmem:[#allocation4 + $0x158] sm:$0xff]
          %v7958 = vld [vmem:[#allocation4 + $0x160] sm:$0xff]
          %v7959 = vld [vmem:[#allocation4 + $0x168] sm:$0xff]
          %v7960 = vld [vmem:[#allocation4 + $0x170] sm:$0xff]
          %v7961 = vld [vmem:[#allocation4 + $0x178] sm:$0xff]
          %v7962 = vld [vmem:[#allocation4 + $0x180] sm:$0xff]
          %v7963 = vld [vmem:[#allocation4 + $0x188] sm:$0xff]
          %v7964 = vld [vmem:[#allocation4 + $0x190] sm:$0xff]
          %v7965 = vld [vmem:[#allocation4 + $0x198] sm:$0xff]
          %v7966 = vld [vmem:[#allocation4 + $0x1a0] sm:$0xff]
          %v7967 = vld [vmem:[#allocation4 + $0x1a8] sm:$0xff]
          %v7968 = vld [vmem:[#allocation4 + $0x1b0] sm:$0xff]
          %v7969 = vld [vmem:[#allocation4 + $0x1b8] sm:$0xff]
          %v7970 = vld [vmem:[#allocation4 + $0x1c0] sm:$0xff]
          %v7971 = vld [vmem:[#allocation4 + $0x1c8] sm:$0xff]
          %v7972 = vld [vmem:[#allocation4 + $0x1d0] sm:$0xff]
          %v7973 = vld [vmem:[#allocation4 + $0x1d8] sm:$0xff]
          %v7974 = vld [vmem:[#allocation4 + $0x1e0] sm:$0xff]
          %v7975 = vld [vmem:[#allocation4 + $0x1e8] sm:$0xff]
          %v7976 = vld [vmem:[#allocation4 + $0x1f0] sm:$0xff]
          %v7977 = vld [vmem:[#allocation4 + $0x1f8] sm:$0xff]
          %v7978 = vsub.f32 %v7850, %v7914
          %v7979 = vsub.f32 %v7851, %v7915
          %v7980 = vsub.f32 %v7852, %v7916
          %v7981 = vsub.f32 %v7853, %v7917
          %v7982 = vsub.f32 %v7854, %v7918
          %v7983 = vsub.f32 %v7855, %v7919
          %v7984 = vsub.f32 %v7856, %v7920
          %v7985 = vsub.f32 %v7857, %v7921
          %v7986 = vsub.f32 %v7858, %v7922
          %v7987 = vsub.f32 %v7859, %v7923
          %v7988 = vsub.f32 %v7860, %v7924
          %v7989 = vsub.f32 %v7861, %v7925
          %v7990 = vsub.f32 %v7862, %v7926
          %v7991 = vsub.f32 %v7863, %v7927
          %v7992 = vsub.f32 %v7864, %v7928
          %v7993 = vsub.f32 %v7865, %v7929
          %v7994 = vsub.f32 %v7866, %v7930
          %v7995 = vsub.f32 %v7867, %v7931
          %v7996 = vsub.f32 %v7868, %v7932
          %v7997 = vsub.f32 %v7869, %v7933
          %v7998 = vsub.f32 %v7870, %v7934
          %v7999 = vsub.f32 %v7871, %v7935
          %v8000 = vsub.f32 %v7872, %v7936
          %v8001 = vsub.f32 %v7873, %v7937
          %v8002 = vsub.f32 %v7874, %v7938
          %v8003 = vsub.f32 %v7875, %v7939
          %v8004 = vsub.f32 %v7876, %v7940
          %v8005 = vsub.f32 %v7877, %v7941
          %v8006 = vsub.f32 %v7878, %v7942
          %v8007 = vsub.f32 %v7879, %v7943
          %v8008 = vsub.f32 %v7880, %v7944
          %v8009 = vsub.f32 %v7881, %v7945
          %v8010 = vsub.f32 %v7882, %v7946
          %v8011 = vsub.f32 %v7883, %v7947
          %v8012 = vsub.f32 %v7884, %v7948
          %v8013 = vsub.f32 %v7885, %v7949
          %v8014 = vsub.f32 %v7886, %v7950
          %v8015 = vsub.f32 %v7887, %v7951
          %v8016 = vsub.f32 %v7888, %v7952
          %v8017 = vsub.f32 %v7889, %v7953
          %v8018 = vsub.f32 %v7890, %v7954
          %v8019 = vsub.f32 %v7891, %v7955
          %v8020 = vsub.f32 %v7892, %v7956
          %v8021 = vsub.f32 %v7893, %v7957
          %v8022 = vsub.f32 %v7894, %v7958
          %v8023 = vsub.f32 %v7895, %v7959
          %v8024 = vsub.f32 %v7896, %v7960
          %v8025 = vsub.f32 %v7897, %v7961
          %v8026 = vsub.f32 %v7898, %v7962
          %v8027 = vsub.f32 %v7899, %v7963
          %v8028 = vsub.f32 %v7900, %v7964
          %v8029 = vsub.f32 %v7901, %v7965
          %v8030 = vsub.f32 %v7902, %v7966
          %v8031 = vsub.f32 %v7903, %v7967
          %v8032 = vsub.f32 %v7904, %v7968
          %v8033 = vsub.f32 %v7905, %v7969
          %v8034 = vsub.f32 %v7906, %v7970
          %v8035 = vsub.f32 %v7907, %v7971
          %v8036 = vsub.f32 %v7908, %v7972
          %v8037 = vsub.f32 %v7909, %v7973
          %v8038 = vsub.f32 %v7910, %v7974
          %v8039 = vsub.f32 %v7911, %v7975
          %v8040 = vsub.f32 %v7912, %v7976
          %v8041 = vsub.f32 %v7913, %v7977
          %vm8042 = vcmp.eq.s32.totalorder %v1829, 4294967196
          %vm8043 = vcmp.eq.s32.totalorder %v1830, 4294967196
          %vm8044 = vcmp.eq.s32.totalorder %v1831, 4294967196
          %vm8045 = vcmp.eq.s32.totalorder %v1832, 4294967196
          %vm8046 = vcmp.eq.s32.totalorder %v1833, 4294967196
          %vm8047 = vcmp.eq.s32.totalorder %v1834, 4294967196
          %vm8048 = vcmp.eq.s32.totalorder %v1835, 4294967196
          %vm8049 = vcmp.eq.s32.totalorder %v1836, 4294967196
          %vm8050 = vcmp.eq.s32.totalorder %v1837, 4294967196
          %vm8051 = vcmp.eq.s32.totalorder %v1838, 4294967196
          %vm8052 = vcmp.eq.s32.totalorder %v1839, 4294967196
          %vm8053 = vcmp.eq.s32.totalorder %v1840, 4294967196
          %vm8054 = vcmp.eq.s32.totalorder %v1841, 4294967196
          %vm8055 = vcmp.eq.s32.totalorder %v1842, 4294967196
          %vm8056 = vcmp.eq.s32.totalorder %v1843, 4294967196
          %vm8057 = vcmp.eq.s32.totalorder %v1844, 4294967196
          %vm8058 = vcmp.eq.s32.totalorder %v1845, 4294967196
          %vm8059 = vcmp.eq.s32.totalorder %v1846, 4294967196
          %vm8060 = vcmp.eq.s32.totalorder %v1847, 4294967196
          %vm8061 = vcmp.eq.s32.totalorder %v1848, 4294967196
          %vm8062 = vcmp.eq.s32.totalorder %v1849, 4294967196
          %vm8063 = vcmp.eq.s32.totalorder %v1850, 4294967196
          %vm8064 = vcmp.eq.s32.totalorder %v1851, 4294967196
          %vm8065 = vcmp.eq.s32.totalorder %v1852, 4294967196
          %vm8066 = vcmp.eq.s32.totalorder %v1853, 4294967196
          %vm8067 = vcmp.eq.s32.totalorder %v1854, 4294967196
          %vm8068 = vcmp.eq.s32.totalorder %v1855, 4294967196
          %vm8069 = vcmp.eq.s32.totalorder %v1856, 4294967196
          %vm8070 = vcmp.eq.s32.totalorder %v1857, 4294967196
          %vm8071 = vcmp.eq.s32.totalorder %v1858, 4294967196
          %vm8072 = vcmp.eq.s32.totalorder %v1859, 4294967196
          %vm8073 = vcmp.eq.s32.totalorder %v1860, 4294967196
          %vm8074 = vcmp.eq.s32.totalorder %v1861, 4294967196
          %vm8075 = vcmp.eq.s32.totalorder %v1862, 4294967196
          %vm8076 = vcmp.eq.s32.totalorder %v1863, 4294967196
          %vm8077 = vcmp.eq.s32.totalorder %v1864, 4294967196
          %vm8078 = vcmp.eq.s32.totalorder %v1865, 4294967196
          %vm8079 = vcmp.eq.s32.totalorder %v1866, 4294967196
          %vm8080 = vcmp.eq.s32.totalorder %v1867, 4294967196
          %vm8081 = vcmp.eq.s32.totalorder %v1868, 4294967196
          %vm8082 = vcmp.eq.s32.totalorder %v1869, 4294967196
          %vm8083 = vcmp.eq.s32.totalorder %v1870, 4294967196
          %vm8084 = vcmp.eq.s32.totalorder %v1871, 4294967196
          %vm8085 = vcmp.eq.s32.totalorder %v1872, 4294967196
          %vm8086 = vcmp.eq.s32.totalorder %v1873, 4294967196
          %vm8087 = vcmp.eq.s32.totalorder %v1874, 4294967196
          %vm8088 = vcmp.eq.s32.totalorder %v1875, 4294967196
          %vm8089 = vcmp.eq.s32.totalorder %v1876, 4294967196
          %vm8090 = vcmp.eq.s32.totalorder %v1877, 4294967196
          %vm8091 = vcmp.eq.s32.totalorder %v1878, 4294967196
          %vm8092 = vcmp.eq.s32.totalorder %v1879, 4294967196
          %vm8093 = vcmp.eq.s32.totalorder %v1880, 4294967196
          %vm8094 = vcmp.eq.s32.totalorder %v1881, 4294967196
          %vm8095 = vcmp.eq.s32.totalorder %v1882, 4294967196
          %vm8096 = vcmp.eq.s32.totalorder %v1883, 4294967196
          %vm8097 = vcmp.eq.s32.totalorder %v1884, 4294967196
          %vm8098 = vcmp.eq.s32.totalorder %v1885, 4294967196
          %vm8099 = vcmp.eq.s32.totalorder %v1886, 4294967196
          %vm8100 = vcmp.eq.s32.totalorder %v1887, 4294967196
          %vm8101 = vcmp.eq.s32.totalorder %v1888, 4294967196
          %vm8102 = vcmp.eq.s32.totalorder %v1889, 4294967196
          %vm8103 = vcmp.eq.s32.totalorder %v1890, 4294967196
          %vm8104 = vcmp.eq.s32.totalorder %v1891, 4294967196
          %vm8105 = vcmp.eq.s32.totalorder %v1892, 4294967196
          %v8106 = vsel %vm8042, 0.0, %v7978
          %v8107 = vsel %vm8043, 0.0, %v7979
          %v8108 = vsel %vm8044, 0.0, %v7980
          %v8109 = vsel %vm8045, 0.0, %v7981
          %v8110 = vsel %vm8046, 0.0, %v7982
          %v8111 = vsel %vm8047, 0.0, %v7983
          %v8112 = vsel %vm8048, 0.0, %v7984
          %v8113 = vsel %vm8049, 0.0, %v7985
          %v8114 = vsel %vm8050, 0.0, %v7986
          %v8115 = vsel %vm8051, 0.0, %v7987
          %v8116 = vsel %vm8052, 0.0, %v7988
          %v8117 = vsel %vm8053, 0.0, %v7989
          %v8118 = vsel %vm8054, 0.0, %v7990
          %v8119 = vsel %vm8055, 0.0, %v7991
          %v8120 = vsel %vm8056, 0.0, %v7992
          %v8121 = vsel %vm8057, 0.0, %v7993
          %v8122 = vsel %vm8058, 0.0, %v7994
          %v8123 = vsel %vm8059, 0.0, %v7995
          %v8124 = vsel %vm8060, 0.0, %v7996
          %v8125 = vsel %vm8061, 0.0, %v7997
          %v8126 = vsel %vm8062, 0.0, %v7998
          %v8127 = vsel %vm8063, 0.0, %v7999
          %v8128 = vsel %vm8064, 0.0, %v8000
          %v8129 = vsel %vm8065, 0.0, %v8001
          %v8130 = vsel %vm8066, 0.0, %v8002
          %v8131 = vsel %vm8067, 0.0, %v8003
          %v8132 = vsel %vm8068, 0.0, %v8004
          %v8133 = vsel %vm8069, 0.0, %v8005
          %v8134 = vsel %vm8070, 0.0, %v8006
          %v8135 = vsel %vm8071, 0.0, %v8007
          %v8136 = vsel %vm8072, 0.0, %v8008
          %v8137 = vsel %vm8073, 0.0, %v8009
          %v8138 = vsel %vm8074, 0.0, %v8010
          %v8139 = vsel %vm8075, 0.0, %v8011
          %v8140 = vsel %vm8076, 0.0, %v8012
          %v8141 = vsel %vm8077, 0.0, %v8013
          %v8142 = vsel %vm8078, 0.0, %v8014
          %v8143 = vsel %vm8079, 0.0, %v8015
          %v8144 = vsel %vm8080, 0.0, %v8016
          %v8145 = vsel %vm8081, 0.0, %v8017
          %v8146 = vsel %vm8082, 0.0, %v8018
          %v8147 = vsel %vm8083, 0.0, %v8019
          %v8148 = vsel %vm8084, 0.0, %v8020
          %v8149 = vsel %vm8085, 0.0, %v8021
          %v8150 = vsel %vm8086, 0.0, %v8022
          %v8151 = vsel %vm8087, 0.0, %v8023
          %v8152 = vsel %vm8088, 0.0, %v8024
          %v8153 = vsel %vm8089, 0.0, %v8025
          %v8154 = vsel %vm8090, 0.0, %v8026
          %v8155 = vsel %vm8091, 0.0, %v8027
          %v8156 = vsel %vm8092, 0.0, %v8028
          %v8157 = vsel %vm8093, 0.0, %v8029
          %v8158 = vsel %vm8094, 0.0, %v8030
          %v8159 = vsel %vm8095, 0.0, %v8031
          %v8160 = vsel %vm8096, 0.0, %v8032
          %v8161 = vsel %vm8097, 0.0, %v8033
          %v8162 = vsel %vm8098, 0.0, %v8034
          %v8163 = vsel %vm8099, 0.0, %v8035
          %v8164 = vsel %vm8100, 0.0, %v8036
          %v8165 = vsel %vm8101, 0.0, %v8037
          %v8166 = vsel %vm8102, 0.0, %v8038
          %v8167 = vsel %vm8103, 0.0, %v8039
          %v8168 = vsel %vm8104, 0.0, %v8040
          %v8169 = vsel %vm8105, 0.0, %v8041
          %8170 = vst.msk [vmem:[%s415] sm:$0xff] %vm3045, %v8106
          %8171 = vst.msk [vmem:[%s415 + $0x8] sm:$0xff] %vm3045, %v8107
          %8172 = vst.msk [vmem:[%s415 + $0x10] sm:$0xff] %vm3045, %v8108
          %8173 = vst.msk [vmem:[%s415 + $0x18] sm:$0xff] %vm3045, %v8109
          %8174 = vst.msk [vmem:[%s415 + $0x20] sm:$0xff] %vm3045, %v8110
          %8175 = vst.msk [vmem:[%s415 + $0x28] sm:$0xff] %vm3045, %v8111
          %8176 = vst.msk [vmem:[%s415 + $0x30] sm:$0xff] %vm3045, %v8112
          %8177 = vst.msk [vmem:[%s415 + $0x38] sm:$0xff] %vm3045, %v8113
          %8178 = vst.msk [vmem:[%s415 + $0x40] sm:$0xff] %vm3045, %v8114
          %8179 = vst.msk [vmem:[%s415 + $0x48] sm:$0xff] %vm3045, %v8115
          %8180 = vst.msk [vmem:[%s415 + $0x50] sm:$0xff] %vm3045, %v8116
          %8181 = vst.msk [vmem:[%s415 + $0x58] sm:$0xff] %vm3045, %v8117
          %8182 = vst.msk [vmem:[%s415 + $0x60] sm:$0xff] %vm3045, %v8118
          %8183 = vst.msk [vmem:[%s415 + $0x68] sm:$0xff] %vm3045, %v8119
          %8184 = vst.msk [vmem:[%s415 + $0x70] sm:$0xff] %vm3045, %v8120
          %8185 = vst.msk [vmem:[%s415 + $0x78] sm:$0xff] %vm3045, %v8121
          %8186 = vst.msk [vmem:[%s415 + $0x80] sm:$0xff] %vm3045, %v8122
          %8187 = vst.msk [vmem:[%s415 + $0x88] sm:$0xff] %vm3045, %v8123
          %8188 = vst.msk [vmem:[%s415 + $0x90] sm:$0xff] %vm3045, %v8124
          %8189 = vst.msk [vmem:[%s415 + $0x98] sm:$0xff] %vm3045, %v8125
          %8190 = vst.msk [vmem:[%s415 + $0xa0] sm:$0xff] %vm3045, %v8126
          %8191 = vst.msk [vmem:[%s415 + $0xa8] sm:$0xff] %vm3045, %v8127
          %8192 = vst.msk [vmem:[%s415 + $0xb0] sm:$0xff] %vm3045, %v8128
          %8193 = vst.msk [vmem:[%s415 + $0xb8] sm:$0xff] %vm3045, %v8129
          %8194 = vst.msk [vmem:[%s415 + $0xc0] sm:$0xff] %vm3045, %v8130
          %8195 = vst.msk [vmem:[%s415 + $0xc8] sm:$0xff] %vm3045, %v8131
          %8196 = vst.msk [vmem:[%s415 + $0xd0] sm:$0xff] %vm3045, %v8132
          %8197 = vst.msk [vmem:[%s415 + $0xd8] sm:$0xff] %vm3045, %v8133
          %8198 = vst.msk [vmem:[%s415 + $0xe0] sm:$0xff] %vm3045, %v8134
          %8199 = vst.msk [vmem:[%s415 + $0xe8] sm:$0xff] %vm3045, %v8135
          %8200 = vst.msk [vmem:[%s415 + $0xf0] sm:$0xff] %vm3045, %v8136
          %8201 = vst.msk [vmem:[%s415 + $0xf8] sm:$0xff] %vm3045, %v8137
          %8202 = vst.msk [vmem:[%s415 + $0x100] sm:$0xff] %vm3045, %v8138
          %8203 = vst.msk [vmem:[%s415 + $0x108] sm:$0xff] %vm3045, %v8139
          %8204 = vst.msk [vmem:[%s415 + $0x110] sm:$0xff] %vm3045, %v8140
          %8205 = vst.msk [vmem:[%s415 + $0x118] sm:$0xff] %vm3045, %v8141
          %8206 = vst.msk [vmem:[%s415 + $0x120] sm:$0xff] %vm3045, %v8142
          %8207 = vst.msk [vmem:[%s415 + $0x128] sm:$0xff] %vm3045, %v8143
          %8208 = vst.msk [vmem:[%s415 + $0x130] sm:$0xff] %vm3045, %v8144
          %8209 = vst.msk [vmem:[%s415 + $0x138] sm:$0xff] %vm3045, %v8145
          %8210 = vst.msk [vmem:[%s415 + $0x140] sm:$0xff] %vm3045, %v8146
          %8211 = vst.msk [vmem:[%s415 + $0x148] sm:$0xff] %vm3045, %v8147
          %8212 = vst.msk [vmem:[%s415 + $0x150] sm:$0xff] %vm3045, %v8148
          %8213 = vst.msk [vmem:[%s415 + $0x158] sm:$0xff] %vm3045, %v8149
          %8214 = vst.msk [vmem:[%s415 + $0x160] sm:$0xff] %vm3045, %v8150
          %8215 = vst.msk [vmem:[%s415 + $0x168] sm:$0xff] %vm3045, %v8151
          %8216 = vst.msk [vmem:[%s415 + $0x170] sm:$0xff] %vm3045, %v8152
          %8217 = vst.msk [vmem:[%s415 + $0x178] sm:$0xff] %vm3045, %v8153
          %8218 = vst.msk [vmem:[%s415 + $0x180] sm:$0xff] %vm3045, %v8154
          %8219 = vst.msk [vmem:[%s415 + $0x188] sm:$0xff] %vm3045, %v8155
          %8220 = vst.msk [vmem:[%s415 + $0x190] sm:$0xff] %vm3045, %v8156
          %8221 = vst.msk [vmem:[%s415 + $0x198] sm:$0xff] %vm3045, %v8157
          %8222 = vst.msk [vmem:[%s415 + $0x1a0] sm:$0xff] %vm3045, %v8158
          %8223 = vst.msk [vmem:[%s415 + $0x1a8] sm:$0xff] %vm3045, %v8159
          %8224 = vst.msk [vmem:[%s415 + $0x1b0] sm:$0xff] %vm3045, %v8160
          %8225 = vst.msk [vmem:[%s415 + $0x1b8] sm:$0xff] %vm3045, %v8161
          %8226 = vst.msk [vmem:[%s415 + $0x1c0] sm:$0xff] %vm3045, %v8162
          %8227 = vst.msk [vmem:[%s415 + $0x1c8] sm:$0xff] %vm3045, %v8163
          %8228 = vst.msk [vmem:[%s415 + $0x1d0] sm:$0xff] %vm3045, %v8164
          %8229 = vst.msk [vmem:[%s415 + $0x1d8] sm:$0xff] %vm3045, %v8165
          %8230 = vst.msk [vmem:[%s415 + $0x1e0] sm:$0xff] %vm3045, %v8166
          %8231 = vst.msk [vmem:[%s415 + $0x1e8] sm:$0xff] %vm3045, %v8167
          %8232 = vst.msk [vmem:[%s415 + $0x1f0] sm:$0xff] %vm3045, %v8168
          %8233 = vst.msk [vmem:[%s415 + $0x1f8] sm:$0xff] %vm3045, %v8169
          %v8234 = vld [vmem:[#allocation5] sm:$0xff]
          %v8235 = vld [vmem:[#allocation5 + $0x8] sm:$0xff]
          %v8236 = vld [vmem:[#allocation5 + $0x10] sm:$0xff]
          %v8237 = vld [vmem:[#allocation5 + $0x18] sm:$0xff]
          %v8238 = vld [vmem:[#allocation5 + $0x20] sm:$0xff]
          %v8239 = vld [vmem:[#allocation5 + $0x28] sm:$0xff]
          %v8240 = vld [vmem:[#allocation5 + $0x30] sm:$0xff]
          %v8241 = vld [vmem:[#allocation5 + $0x38] sm:$0xff]
          %v8242 = vld [vmem:[#allocation5 + $0x40] sm:$0xff]
          %v8243 = vld [vmem:[#allocation5 + $0x48] sm:$0xff]
          %v8244 = vld [vmem:[#allocation5 + $0x50] sm:$0xff]
          %v8245 = vld [vmem:[#allocation5 + $0x58] sm:$0xff]
          %v8246 = vld [vmem:[#allocation5 + $0x60] sm:$0xff]
          %v8247 = vld [vmem:[#allocation5 + $0x68] sm:$0xff]
          %v8248 = vld [vmem:[#allocation5 + $0x70] sm:$0xff]
          %v8249 = vld [vmem:[#allocation5 + $0x78] sm:$0xff]
          %v8250 = vld [vmem:[#allocation5 + $0x80] sm:$0xff]
          %v8251 = vld [vmem:[#allocation5 + $0x88] sm:$0xff]
          %v8252 = vld [vmem:[#allocation5 + $0x90] sm:$0xff]
          %v8253 = vld [vmem:[#allocation5 + $0x98] sm:$0xff]
          %v8254 = vld [vmem:[#allocation5 + $0xa0] sm:$0xff]
          %v8255 = vld [vmem:[#allocation5 + $0xa8] sm:$0xff]
          %v8256 = vld [vmem:[#allocation5 + $0xb0] sm:$0xff]
          %v8257 = vld [vmem:[#allocation5 + $0xb8] sm:$0xff]
          %v8258 = vld [vmem:[#allocation5 + $0xc0] sm:$0xff]
          %v8259 = vld [vmem:[#allocation5 + $0xc8] sm:$0xff]
          %v8260 = vld [vmem:[#allocation5 + $0xd0] sm:$0xff]
          %v8261 = vld [vmem:[#allocation5 + $0xd8] sm:$0xff]
          %v8262 = vld [vmem:[#allocation5 + $0xe0] sm:$0xff]
          %v8263 = vld [vmem:[#allocation5 + $0xe8] sm:$0xff]
          %v8264 = vld [vmem:[#allocation5 + $0xf0] sm:$0xff]
          %v8265 = vld [vmem:[#allocation5 + $0xf8] sm:$0xff]
          %v8266 = vld [vmem:[#allocation5 + $0x100] sm:$0xff]
          %v8267 = vld [vmem:[#allocation5 + $0x108] sm:$0xff]
          %v8268 = vld [vmem:[#allocation5 + $0x110] sm:$0xff]
          %v8269 = vld [vmem:[#allocation5 + $0x118] sm:$0xff]
          %v8270 = vld [vmem:[#allocation5 + $0x120] sm:$0xff]
          %v8271 = vld [vmem:[#allocation5 + $0x128] sm:$0xff]
          %v8272 = vld [vmem:[#allocation5 + $0x130] sm:$0xff]
          %v8273 = vld [vmem:[#allocation5 + $0x138] sm:$0xff]
          %v8274 = vld [vmem:[#allocation5 + $0x140] sm:$0xff]
          %v8275 = vld [vmem:[#allocation5 + $0x148] sm:$0xff]
          %v8276 = vld [vmem:[#allocation5 + $0x150] sm:$0xff]
          %v8277 = vld [vmem:[#allocation5 + $0x158] sm:$0xff]
          %v8278 = vld [vmem:[#allocation5 + $0x160] sm:$0xff]
          %v8279 = vld [vmem:[#allocation5 + $0x168] sm:$0xff]
          %v8280 = vld [vmem:[#allocation5 + $0x170] sm:$0xff]
          %v8281 = vld [vmem:[#allocation5 + $0x178] sm:$0xff]
          %v8282 = vld [vmem:[#allocation5 + $0x180] sm:$0xff]
          %v8283 = vld [vmem:[#allocation5 + $0x188] sm:$0xff]
          %v8284 = vld [vmem:[#allocation5 + $0x190] sm:$0xff]
          %v8285 = vld [vmem:[#allocation5 + $0x198] sm:$0xff]
          %v8286 = vld [vmem:[#allocation5 + $0x1a0] sm:$0xff]
          %v8287 = vld [vmem:[#allocation5 + $0x1a8] sm:$0xff]
          %v8288 = vld [vmem:[#allocation5 + $0x1b0] sm:$0xff]
          %v8289 = vld [vmem:[#allocation5 + $0x1b8] sm:$0xff]
          %v8290 = vld [vmem:[#allocation5 + $0x1c0] sm:$0xff]
          %v8291 = vld [vmem:[#allocation5 + $0x1c8] sm:$0xff]
          %v8292 = vld [vmem:[#allocation5 + $0x1d0] sm:$0xff]
          %v8293 = vld [vmem:[#allocation5 + $0x1d8] sm:$0xff]
          %v8294 = vld [vmem:[#allocation5 + $0x1e0] sm:$0xff]
          %v8295 = vld [vmem:[#allocation5 + $0x1e8] sm:$0xff]
          %v8296 = vld [vmem:[#allocation5 + $0x1f0] sm:$0xff]
          %v8297 = vld [vmem:[#allocation5 + $0x1f8] sm:$0xff]
          %8298 = vst.msk [vmem:[%s421] sm:$0xff] %vm3045, %v8234
          %8299 = vst.msk [vmem:[%s421 + $0x8] sm:$0xff] %vm3045, %v8235
          %8300 = vst.msk [vmem:[%s421 + $0x10] sm:$0xff] %vm3045, %v8236
          %8301 = vst.msk [vmem:[%s421 + $0x18] sm:$0xff] %vm3045, %v8237
          %8302 = vst.msk [vmem:[%s421 + $0x20] sm:$0xff] %vm3045, %v8238
          %8303 = vst.msk [vmem:[%s421 + $0x28] sm:$0xff] %vm3045, %v8239
          %8304 = vst.msk [vmem:[%s421 + $0x30] sm:$0xff] %vm3045, %v8240
          %8305 = vst.msk [vmem:[%s421 + $0x38] sm:$0xff] %vm3045, %v8241
          %8306 = vst.msk [vmem:[%s421 + $0x40] sm:$0xff] %vm3045, %v8242
          %8307 = vst.msk [vmem:[%s421 + $0x48] sm:$0xff] %vm3045, %v8243
          %8308 = vst.msk [vmem:[%s421 + $0x50] sm:$0xff] %vm3045, %v8244
          %8309 = vst.msk [vmem:[%s421 + $0x58] sm:$0xff] %vm3045, %v8245
          %8310 = vst.msk [vmem:[%s421 + $0x60] sm:$0xff] %vm3045, %v8246
          %8311 = vst.msk [vmem:[%s421 + $0x68] sm:$0xff] %vm3045, %v8247
          %8312 = vst.msk [vmem:[%s421 + $0x70] sm:$0xff] %vm3045, %v8248
          %8313 = vst.msk [vmem:[%s421 + $0x78] sm:$0xff] %vm3045, %v8249
          %8314 = vst.msk [vmem:[%s421 + $0x80] sm:$0xff] %vm3045, %v8250
          %8315 = vst.msk [vmem:[%s421 + $0x88] sm:$0xff] %vm3045, %v8251
          %8316 = vst.msk [vmem:[%s421 + $0x90] sm:$0xff] %vm3045, %v8252
          %8317 = vst.msk [vmem:[%s421 + $0x98] sm:$0xff] %vm3045, %v8253
          %8318 = vst.msk [vmem:[%s421 + $0xa0] sm:$0xff] %vm3045, %v8254
          %8319 = vst.msk [vmem:[%s421 + $0xa8] sm:$0xff] %vm3045, %v8255
          %8320 = vst.msk [vmem:[%s421 + $0xb0] sm:$0xff] %vm3045, %v8256
          %8321 = vst.msk [vmem:[%s421 + $0xb8] sm:$0xff] %vm3045, %v8257
          %8322 = vst.msk [vmem:[%s421 + $0xc0] sm:$0xff] %vm3045, %v8258
          %8323 = vst.msk [vmem:[%s421 + $0xc8] sm:$0xff] %vm3045, %v8259
          %8324 = vst.msk [vmem:[%s421 + $0xd0] sm:$0xff] %vm3045, %v8260
          %8325 = vst.msk [vmem:[%s421 + $0xd8] sm:$0xff] %vm3045, %v8261
          %8326 = vst.msk [vmem:[%s421 + $0xe0] sm:$0xff] %vm3045, %v8262
          %8327 = vst.msk [vmem:[%s421 + $0xe8] sm:$0xff] %vm3045, %v8263
          %8328 = vst.msk [vmem:[%s421 + $0xf0] sm:$0xff] %vm3045, %v8264
          %8329 = vst.msk [vmem:[%s421 + $0xf8] sm:$0xff] %vm3045, %v8265
          %8330 = vst.msk [vmem:[%s421 + $0x100] sm:$0xff] %vm3045, %v8266
          %8331 = vst.msk [vmem:[%s421 + $0x108] sm:$0xff] %vm3045, %v8267
          %8332 = vst.msk [vmem:[%s421 + $0x110] sm:$0xff] %vm3045, %v8268
          %8333 = vst.msk [vmem:[%s421 + $0x118] sm:$0xff] %vm3045, %v8269
          %8334 = vst.msk [vmem:[%s421 + $0x120] sm:$0xff] %vm3045, %v8270
          %8335 = vst.msk [vmem:[%s421 + $0x128] sm:$0xff] %vm3045, %v8271
          %8336 = vst.msk [vmem:[%s421 + $0x130] sm:$0xff] %vm3045, %v8272
          %8337 = vst.msk [vmem:[%s421 + $0x138] sm:$0xff] %vm3045, %v8273
          %8338 = vst.msk [vmem:[%s421 + $0x140] sm:$0xff] %vm3045, %v8274
          %8339 = vst.msk [vmem:[%s421 + $0x148] sm:$0xff] %vm3045, %v8275
          %8340 = vst.msk [vmem:[%s421 + $0x150] sm:$0xff] %vm3045, %v8276
          %8341 = vst.msk [vmem:[%s421 + $0x158] sm:$0xff] %vm3045, %v8277
          %8342 = vst.msk [vmem:[%s421 + $0x160] sm:$0xff] %vm3045, %v8278
          %8343 = vst.msk [vmem:[%s421 + $0x168] sm:$0xff] %vm3045, %v8279
          %8344 = vst.msk [vmem:[%s421 + $0x170] sm:$0xff] %vm3045, %v8280
          %8345 = vst.msk [vmem:[%s421 + $0x178] sm:$0xff] %vm3045, %v8281
          %8346 = vst.msk [vmem:[%s421 + $0x180] sm:$0xff] %vm3045, %v8282
          %8347 = vst.msk [vmem:[%s421 + $0x188] sm:$0xff] %vm3045, %v8283
          %8348 = vst.msk [vmem:[%s421 + $0x190] sm:$0xff] %vm3045, %v8284
          %8349 = vst.msk [vmem:[%s421 + $0x198] sm:$0xff] %vm3045, %v8285
          %8350 = vst.msk [vmem:[%s421 + $0x1a0] sm:$0xff] %vm3045, %v8286
          %8351 = vst.msk [vmem:[%s421 + $0x1a8] sm:$0xff] %vm3045, %v8287
          %8352 = vst.msk [vmem:[%s421 + $0x1b0] sm:$0xff] %vm3045, %v8288
          %8353 = vst.msk [vmem:[%s421 + $0x1b8] sm:$0xff] %vm3045, %v8289
          %8354 = vst.msk [vmem:[%s421 + $0x1c0] sm:$0xff] %vm3045, %v8290
          %8355 = vst.msk [vmem:[%s421 + $0x1c8] sm:$0xff] %vm3045, %v8291
          %8356 = vst.msk [vmem:[%s421 + $0x1d0] sm:$0xff] %vm3045, %v8292
          %8357 = vst.msk [vmem:[%s421 + $0x1d8] sm:$0xff] %vm3045, %v8293
          %8358 = vst.msk [vmem:[%s421 + $0x1e0] sm:$0xff] %vm3045, %v8294
          %8359 = vst.msk [vmem:[%s421 + $0x1e8] sm:$0xff] %vm3045, %v8295
          %8360 = vst.msk [vmem:[%s421 + $0x1f0] sm:$0xff] %vm3045, %v8296
          %8361 = vst.msk [vmem:[%s421 + $0x1f8] sm:$0xff] %vm3045, %v8297
        $region75: #{tpu_custom_call.1} parent=54 // pred_fallthru
          _
        %s8362 = smul.u32 64, %s25
        %p8363 = scmp.lt.s32.totalorder %s8362, 63
        %s8364 = scalar_select %p8363, %s8362, 63
        %s8365 = smul.addr %s8364, 8
        %s8366 = scalar_lea.vmem %s4, %s8365
        %s8367 = smul.u32 64, %s25
        %p8368 = scmp.lt.s32.totalorder %s8367, 63
        %s8369 = scalar_select %p8368, %s8367, 63
        %s8370 = smul.addr %s8369, 8
        %s8371 = scalar_lea.vmem %s5, %s8370
        // Predicated region
        $region76: #{tpu_custom_call.1} parent=54 // pred_check
          %p8372 = pneg %p155
        $region77: #{tpu_custom_call.1} parent=54 // pred_check_branch
          %8374 = sbr.rel (%p8372) target = $region79
        $region78: #{tpu_custom_call.1} parent=54 // pred_region
          %s8375 = smul.u32 64, %s25
        $region79: #{tpu_custom_call.1} parent=54 // pred_fallthru
          _
        // Predicated region
        $region80: #{tpu_custom_call.1} parent=54 // pred_check
          %p8376 = pneg %p181
        $region81: #{tpu_custom_call.1} parent=54 // pred_check_branch
          %8378 = sbr.rel (%p8376) target = $region83
        $region82: #{tpu_custom_call.1} parent=54 // pred_region
          %s8379 = smul.u32 64, %s25
        $region83: #{tpu_custom_call.1} parent=54 // pred_fallthru
          _
        // Predicated region
        $region84: #{tpu_custom_call.1} parent=54 // pred_check
          %p8380 = pneg %p155
        $region85: #{tpu_custom_call.1} parent=54 // pred_check_branch
          %8382 = sbr.rel (%p8380) target = $region87
        $region86: #{tpu_custom_call.1} parent=54 // pred_region
          %s8383 = smul.u32 64, %s25
          %p8384 = scmp.lt.s32.totalorder %s8383, 63
          %s8385 = scalar_select %p8384, %s8383, 63
          %s8386 = smul.addr %s8385, 8
          %s8387 = scalar_lea.vmem %s4, %s8386
        $region87: #{tpu_custom_call.1} parent=54 // pred_fallthru
          _
        // Predicated region
        $region88: #{tpu_custom_call.1} parent=54 // pred_check
          %p8388 = pneg %p181
        $region89: #{tpu_custom_call.1} parent=54 // pred_check_branch
          %8390 = sbr.rel (%p8388) target = $region91
        $region90: #{tpu_custom_call.1} parent=54 // pred_region
          %s8391 = smul.u32 64, %s25
          %p8392 = scmp.lt.s32.totalorder %s8391, 63
          %s8393 = scalar_select %p8392, %s8391, 63
          %s8394 = smul.addr %s8393, 8
          %s8395 = scalar_lea.vmem %s5, %s8394
        $region91: #{tpu_custom_call.1} parent=54 // pred_fallthru
          _
      $region55: #{tpu_custom_call.1} parent=5 // pred_fallthru
        _
      %p8396 = scmp.le.s32.totalorder 2, %s16
      // Predicated region
      $region92: #{tpu_custom_call.1} parent=5 // pred_check
        %p8397 = pneg %p8396
      $region93: #{tpu_custom_call.1} parent=5 // pred_check_branch
        %8399 = sbr.rel (%p8397) target = $region95
      $region94: #{tpu_custom_call.1} parent=5 // pred_region
        %s8400 = ssub.s32 %s16, 2
      $region95: #{tpu_custom_call.1} parent=5 // pred_fallthru
        _
    $region6: #{tpu_custom_call.1} parent=1 // loop_footer
      %s20 = sadd.s32 1, %s16
    $region7: #{tpu_custom_call.1} parent=1 // loop_footer_branch
      %15 = sbr.rel target = $region3
    $region8: #{tpu_custom_call.1} parent=1 // loop_exit
      _
    %8401 = vsyncpa [#allocation7], 1
    %s8402 = scalar_lea.sflag [#allocation7], 1
    %8403 = vsyncpa %s8402, 1
    %8404 = vsyncpa [#allocation10], 1
    %s8405 = scalar_lea.sflag [#allocation10], 1
    %8406 = vsyncpa %s8405, 1

</llo_original>
